<compile_context>
chip_gen: v7x
topology: tpu7x:2x2x1
jax: 0.10.0
libtpu: 0.0.40
codegen_flags: <defaults>
</compile_context>

<pallas_src>
import numpy as np
import jax
import jax.numpy as jnp
from jax.experimental import pallas as pl
from jax.experimental.pallas import tpu as pltpu

RNN_HIDDEN = 32
AMP_WINDOW = 24
SERIES_WINDOW = 24      # kept for parity with the module (unused by the "avg" score path)
SCORE_WINDOW = 60

GATE_LANE = 128                  # lane stride of one gate block (vreg aligned)
GP = 4 * GATE_LANE               # packed gate width: [ i | f | o | g ]


# -----------------------------------------------------------------------------
# Spectral-residual ("Silency") preprocessing, reproduced from the sranodec
# reference implementation used as `anom.Silency`.  The original forward runs
# this on CPU with numpy (input.cpu().numpy()), so we do exactly the same.
# TODO(synk): np.fft has no Pallas equivalent; this stage stays host-side numpy.
# -----------------------------------------------------------------------------
def _series_filter(values, kernel_size):
    filt = np.cumsum(values, dtype=float)
    filt[kernel_size:] = filt[kernel_size:] - filt[:-kernel_size]
    filt[kernel_size:] = filt[kernel_size:] / kernel_size
    for i in range(1, kernel_size):
        filt[i] /= (i + 1)
    return filt


def _extrapolate_next(values):
    last_value = values[-1]
    n = len(values)
    slope = [(last_value - v) / (n - 1 - i) for i, v in enumerate(values[:-1])]
    return last_value + np.sum(slope)


def _extend_series(values, extend_num=5):
    next_value = _extrapolate_next(values)
    return np.append(values, [next_value] * extend_num)


def generate_anomaly_score(values):
    """Spectral-residual anomaly score ("avg" type) of a 1-D series."""
    extended = _extend_series(np.asarray(values, dtype=np.float64))
    freq = np.fft.fft(extended)
    mag = np.sqrt(freq.real ** 2 + freq.imag ** 2)
    spectral_residual = np.exp(np.log(mag) - _series_filter(np.log(mag), AMP_WINDOW))
    freq = freq * (spectral_residual / mag)
    silency_map = np.fft.ifft(freq)
    mag2 = np.sqrt(silency_map.real ** 2 + silency_map.imag ** 2)[: len(values)]
    ave = _series_filter(mag2, SCORE_WINDOW)
    return (mag2 - ave) / ave


def sr_preprocess(x):
    """x: (B, S, 1) -> (B, S) float32 SR score (mirrors the per-row CPU loop)."""
    x_np = np.asarray(jax.device_get(x))[:, :, 0].astype(np.float64)
    scores = np.stack([generate_anomaly_score(row) for row in x_np], axis=0)
    return jnp.asarray(scores.astype(np.float32))


# -----------------------------------------------------------------------------
# Host-side packing (done ONCE): CNN selector matrices + fused LSTM weights
# -----------------------------------------------------------------------------
_GATE_ORDER = ("i", "f", "o", "g")              # kernel lane-block order
_TORCH_ROW = {"i": 0, "f": 1, "g": 2, "o": 3}   # PyTorch row-block order


def _np(a):
    return np.asarray(jax.device_get(a), np.float32)


def _torch_rows(name):
    H = RNN_HIDDEN
    r = _TORCH_ROW[name]
    return slice(r * H, (r + 1) * H)


def _gate_cols(blk, direction):
    """Gate block `blk` occupies lanes [blk*128, blk*128+2H); fwd half then rev half."""
    H = RNN_HIDDEN
    start = blk * GATE_LANE + direction * H
    return slice(start, start + H)


def _cnn_matrices(params, L):
    """Conv weights folded into strided selector matrices + maxpool selectors."""
    def conv_mat(w, l_in):
        l_out = (l_in - 3) // 2 + 1
        m = np.zeros((l_in, l_out), np.float32)
        idx = np.arange(l_out)
        for k in range(3):
            m[2 * idx + k, idx] = w[k]
        return m, l_out

    def pool_sel(l_in):
        l_out = (l_in - 3) // 2 + 1
        p = np.zeros((3, l_in, l_out), np.float32)
        idx = np.arange(l_out)
        for k in range(3):
            p[k, 2 * idx + k, idx] = 1.0
        return p, l_out

    m1, L1 = conv_mat(_np(params["w1"]), L)
    p1, L2 = pool_sel(L1)
    m2, L3 = conv_mat(_np(params["w2"]), L2)
    p2, L4 = pool_sel(L3)
    cnn_b = np.array([float(params["b1"]), float(params["b2"])], np.float32)
    return m1, p1, m2, p2, cnn_b, L4


def _pack_lstm_params(params):
    """Repack torch-layout LSTM weights into the fused-direction kernel layout.

    Gate lanes (GP = 4*128): block k*128 holds [gate_fwd(H) | gate_rev(H) | pad]
    for gate k in (i, f, o, g)  -> every gate slice is 128-lane aligned.
    State lanes: [h_fwd | h_rev]  (2H lanes).
    Layer-1 input weights are folded with the fwd/rev output re-concat:
        pre1[s] = h_step[s] @ A + h_step[T-1-s] @ Bm + b1
    """
    H = RNN_HIDDEN
    H2 = 2 * H

    # ---- layer 0 (input size 1 per direction) ----
    w0f = np.zeros((1, GP), np.float32)
    w0r = np.zeros((1, GP), np.float32)
    b0 = np.zeros((1, GP), np.float32)
    whh0 = np.zeros((H2, GP), np.float32)
    wih0f, wih0r = _np(params["w_ih_l0"]), _np(params["w_ih_l0r"])
    whh0f, whh0r = _np(params["w_hh_l0"]), _np(params["w_hh_l0r"])
    bf0 = _np(params["b_ih_l0"]) + _np(params["b_hh_l0"])
    br0 = _np(params["b_ih_l0r"]) + _np(params["b_hh_l0r"])
    for blk, name in enumerate(_GATE_ORDER):
        rows = _torch_rows(name)
        w0f[0, _gate_cols(blk, 0)] = wih0f[rows, 0]
        w0r[0, _gate_cols(blk, 1)] = wih0r[rows, 0]
        b0[0, _gate_cols(blk, 0)] = bf0[rows]
        b0[0, _gate_cols(blk, 1)] = br0[rows]
        whh0[0:H, _gate_cols(blk, 0)] = whh0f[rows, :].T
        whh0[H:H2, _gate_cols(blk, 1)] = whh0r[rows, :].T

    # ---- layer 1 (input size 2H = layer-0 fwd||rev output) ----
    w1f = np.zeros((H2, GP), np.float32)
    w1r = np.zeros((H2, GP), np.float32)
    b1 = np.zeros((1, GP), np.float32)
    whh1 = np.zeros((H2, GP), np.float32)
    wih1f, wih1r = _np(params["w_ih_l1"]), _np(params["w_ih_l1r"])
    whh1f, whh1r = _np(params["w_hh_l1"]), _np(params["w_hh_l1r"])
    bf1 = _np(params["b_ih_l1"]) + _np(params["b_hh_l1"])
    br1 = _np(params["b_ih_l1r"]) + _np(params["b_hh_l1r"])
    for blk, name in enumerate(_GATE_ORDER):
        rows = _torch_rows(name)
        w1f[:, _gate_cols(blk, 0)] = wih1f[rows, :].T
        w1r[:, _gate_cols(blk, 1)] = wih1r[rows, :].T
        b1[0, _gate_cols(blk, 0)] = bf1[rows]
        b1[0, _gate_cols(blk, 1)] = br1[rows]
        whh1[0:H, _gate_cols(blk, 0)] = whh1f[rows, :].T
        whh1[H:H2, _gate_cols(blk, 1)] = whh1r[rows, :].T

    # Fold the layer-0 output reconstruction [h_f(t) | h_r(t)] into the weights:
    #   o0[s] @ w1f + o0[T-1-s] @ w1r == h_step[s] @ a1 + h_step[T-1-s] @ bm1
    a1 = np.concatenate([w1f[0:H, :], w1r[H:H2, :]], axis=0)   # (2H, GP)
    bm1 = np.concatenate([w1r[0:H, :], w1f[H:H2, :]], axis=0)  # (2H, GP)

    wcls = _np(params["w_cls"]).T          # (2H, 2)
    bcls = _np(params["b_cls"])[None, :]   # (1, 2)
    return w0f, w0r, b0, whh0, a1, bm1, b1, whh1, wcls, bcls


# -----------------------------------------------------------------------------
# The single fused kernel: CNN -> 2-layer bidirectional LSTM -> Linear -> sigmoid
# -----------------------------------------------------------------------------
def fused_kernel(x_ref, m1_ref, p1_ref, m2_ref, p2_ref, cnnb_ref,
                 w0f_ref, w0r_ref, b0_ref, whh0_ref,
                 a1_ref, bm1_ref, b1_ref, whh1_ref,
                 wc_ref, bc_ref, o_ref,
                 hbuf_ref, pA_ref, pB_ref):
    B = x_ref.shape[0]
    H2, GPk = whh0_ref.shape            # (2H, 4*128)
    H = H2 // 2
    GB = GPk // 4                       # 128: lane stride of each gate block
    T = p2_ref.shape[2]                 # CNN output length = LSTM sequence length

    def mm(a, b):
        return jnp.dot(a, b, preferred_element_type=jnp.float32)

    # ---------------- CNN: conv -> maxpool -> conv -> maxpool ----------------
    # Selector matrices are precomputed on the host; every stage is one or
    # three small matmuls (+ elementwise max).
    y = mm(x_ref[...], m1_ref[...]) + cnnb_ref[0]
    y = jnp.maximum(jnp.maximum(mm(y, p1_ref[0]), mm(y, p1_ref[1])), mm(y, p1_ref[2]))
    y = mm(y, m2_ref[...]) + cnnb_ref[1]
    y = jnp.maximum(jnp.maximum(mm(y, p2_ref[0]), mm(y, p2_ref[1])), mm(y, p2_ref[2]))
    # y: (B, T) -- one scalar LSTM input feature per time step.
    # nn.Dropout(0.2) on the LSTM input: eval-mode identity (deterministic fwd).

    # ---- stage layer-0 pre-activations (independent of h) into VMEM ----
    # Step s: fwd half sees x[s], rev half sees x[T-1-s].  Keeping these in a
    # VMEM buffer (not live values) keeps the recurrence spill-free.
    w0f, w0r, b0 = w0f_ref[...], w0r_ref[...], b0_ref[...]
    for s in range(T):
        pA_ref[pl.ds(s * B, B), :] = (y[:, s:s + 1] * w0f
                                      + y[:, T - 1 - s:T - s] * w0r + b0)

    # ------------- fused-direction LSTM cell (both dirs per step) -------------
    # Gate blocks are 128-lane aligned: every slice starts at lane 0 of a vreg.
    def cell(pre, h, c, whh):
        gates = pre + mm(h, whh)                      # only op on the h chain
        i = jax.nn.sigmoid(gates[:, 0 * GB:0 * GB + H2])
        f = jax.nn.sigmoid(gates[:, 1 * GB:1 * GB + H2])
        o = jax.nn.sigmoid(gates[:, 2 * GB:2 * GB + H2])
        g = jnp.tanh(gates[:, 3 * GB:3 * GB + H2])
        c = f * c + i * g
        return o * jnp.tanh(c), c

    # ------------- layer 0: fwd+rev in ONE recurrence (T steps) -------------
    whh0 = whh0_ref[...]
    h = jnp.zeros((B, H2), jnp.float32)
    c = jnp.zeros((B, H2), jnp.float32)
    for s in range(T):                                # fully unrolled
        h, c = cell(pA_ref[pl.ds(s * B, B), :], h, c, whh0)
        hbuf_ref[pl.ds(s * B, B), :] = h              # stash step state for layer 1

    # ---- layer-1 input projections: TWO batched (T*B,2H)x(2H,GP) matmuls ----
    # (fwd/rev output re-concat already folded into a1 / bm1 on the host)
    hs = hbuf_ref[...]                                # (T*B, 2H)
    pA_ref[...] = mm(hs, a1_ref[...]) + b1_ref[...]
    pB_ref[...] = mm(hs, bm1_ref[...])

    # ------------- layer 1: fwd+rev in ONE recurrence (T steps) -------------
    whh1 = whh1_ref[...]
    h = jnp.zeros((B, H2), jnp.float32)
    c = jnp.zeros((B, H2), jnp.float32)
    for s in range(T):                                # fully unrolled
        pre = pA_ref[pl.ds(s * B, B), :] + pB_ref[pl.ds((T - 1 - s) * B, B), :]
        h, c = cell(pre, h, c, whh1)

    # h == concat([hn[-2], hn[-1]], -1): fwd final state | rev final state
    o_ref[...] = jax.nn.sigmoid(mm(h, wc_ref[...]) + bc_ref[...])


# -----------------------------------------------------------------------------
# One-time builder: pack params, place them on device, jit the pallas_call.
# -----------------------------------------------------------------------------
def build_fused_forward(params, batch, length):
    m1, p1, m2, p2, cnn_b, T = _cnn_matrices(params, length)
    packed = _pack_lstm_params(params)
    consts = tuple(jnp.asarray(a) for a in (m1, p1, m2, p2, cnn_b) + packed)

    H2 = 2 * RNN_HIDDEN
    TB = T * batch
    vmem = pl.BlockSpec(memory_space=pltpu.MemorySpace.VMEM)
    smem = pl.BlockSpec(memory_space=pltpu.MemorySpace.SMEM)
    call = pl.pallas_call(
        fused_kernel,
        out_shape=jax.ShapeDtypeStruct((batch, 2), jnp.float32),
        in_specs=[vmem, vmem, vmem, vmem, vmem, smem] + [vmem] * 10,
        out_specs=vmem,
        scratch_shapes=[
            pltpu.VMEM((TB, H2), jnp.float32),   # layer-0 per-step hidden states
            pltpu.VMEM((TB, GP), jnp.float32),   # staged pre-activations (fwd role)
            pltpu.VMEM((TB, GP), jnp.float32),   # staged pre-activations (rev role)
        ],
    )

    @jax.jit
    def forward(sr):
        return call(sr.astype(jnp.float32), *consts)

    return forward


def base_lstm_forward(x, params, fused=None):
    """Full forward = SR preprocessing (host, np.fft) + one fused Pallas kernel."""
    sr = sr_preprocess(x)                             # (B, S) float32
    if fused is None:
        fused = build_fused_forward(params, sr.shape[0], sr.shape[1])
    return fused(sr)                                  # (B, 2); .squeeze(-1) is a no-op


# -----------------------------------------------------------------------------
# Deterministic parameter init (PyTorch-default-like uniform bounds)
# -----------------------------------------------------------------------------
def init_params(key):
    H = RNN_HIDDEN
    ks = list(jax.random.split(key, 24))
    it = iter(ks)

    def u(shape, bound):
        return jax.random.uniform(next(it), shape, jnp.float32, -bound, bound)

    cb = 1.0 / np.sqrt(1 * 3)       # Conv1d(1, 1, 3)
    lb = 1.0 / np.sqrt(H)           # nn.LSTM
    fb = 1.0 / np.sqrt(2 * H)       # nn.Linear(2H, 2)
    p = {
        "w1": u((3,), cb), "b1": u((), cb),
        "w2": u((3,), cb), "b2": u((), cb),
        "w_cls": u((2, 2 * H), fb), "b_cls": u((2,), fb),
    }
    for layer, in_dim in ((0, 1), (1, 2 * H)):
        for suf in ("", "r"):
            p[f"w_ih_l{layer}{suf}"] = u((4 * H, in_dim), lb)
            p[f"w_hh_l{layer}{suf}"] = u((4 * H, H), lb)
            p[f"b_ih_l{layer}{suf}"] = u((4 * H,), lb)
            p[f"b_hh_l{layer}{suf}"] = u((4 * H,), lb)
    return p


# -----------------------------------------------------------------------------
# Pure-JAX reference of the same forward (numerical sanity check)
# -----------------------------------------------------------------------------
def reference_forward(sr, params):
    hp = jax.lax.Precision.HIGHEST
    H = RNN_HIDDEN

    def conv1d(x, w, b):
        lo = (x.shape[1] - 3) // 2 + 1
        return (w[0] * x[:, 0:2 * lo:2] + w[1] * x[:, 1:2 * lo + 1:2]
                + w[2] * x[:, 2:2 * lo + 2:2] + b)

    def maxpool(x):
        lo = (x.shape[1] - 3) // 2 + 1
        return jnp.maximum(jnp.maximum(x[:, 0:2 * lo:2], x[:, 1:2 * lo + 1:2]),
                           x[:, 2:2 * lo + 2:2])

    y = maxpool(conv1d(sr, params["w1"], params["b1"]))
    y = maxpool(conv1d(y, params["w2"], params["b2"]))     # (B, T)
    x_seq = y.T[:, :, None]                                # (T, B, 1)

    def run_dir(xs, w_ih, w_hh, b_ih, b_hh, reverse):
        T, B, _ = xs.shape
        h = jnp.zeros((B, H), jnp.float32)
        c = jnp.zeros((B, H), jnp.float32)
        outs = [None] * T
        order = range(T - 1, -1, -1) if reverse else range(T)
        for t in order:
            g = (jnp.dot(xs[t], w_ih.T, precision=hp)
                 + jnp.dot(h, w_hh.T, precision=hp) + b_ih + b_hh)
            i = jax.nn.sigmoid(g[:, :H]); f = jax.nn.sigmoid(g[:, H:2 * H])
            gg = jnp.tanh(g[:, 2 * H:3 * H]); o = jax.nn.sigmoid(g[:, 3 * H:4 * H])
            c = f * c + i * gg
            h = o * jnp.tanh(c)
            outs[t] = h
        return jnp.stack(outs, 0), h

    of, _ = run_dir(x_seq, params["w_ih_l0"], params["w_hh_l0"],
                    params["b_ih_l0"], params["b_hh_l0"], False)
    orv, _ = run_dir(x_seq, params["w_ih_l0r"], params["w_hh_l0r"],
                     params["b_ih_l0r"], params["b_hh_l0r"], True)
    x1 = jnp.concatenate([of, orv], axis=-1)
    _, hf1 = run_dir(x1, params["w_ih_l1"], params["w_hh_l1"],
                     params["b_ih_l1"], params["b_hh_l1"], False)
    _, hr1 = run_dir(x1, params["w_ih_l1r"], params["w_hh_l1r"],
                     params["b_ih_l1r"], params["b_hh_l1r"], True)
    hidden = jnp.concatenate([hf1, hr1], axis=-1)
    logits = jnp.dot(hidden, params["w_cls"].T, precision=hp) + params["b_cls"]
    return jax.nn.sigmoid(logits)


if __name__ == "__main__":
    B, S = 2, 256
    key = jax.random.PRNGKey(0)
    kx, kp = jax.random.split(key)
    x = jax.random.normal(kx, (B, S, 1), dtype=jnp.float32)   # (batch, seq, 1)
    params = init_params(kp)

    sr = sr_preprocess(x)                        # host-side SR (np.fft), once
    fused = build_fused_forward(params, B, S)    # one-time pack + compile
    pred = jax.block_until_ready(fused(sr))
    assert pred.shape == (B, 2) and pred.dtype == jnp.float32

    # sanity check against the pure-JAX reference
    ref = jax.block_until_ready(reference_forward(sr, params))
    np.testing.assert_allclose(np.asarray(pred), np.asarray(ref), rtol=2e-3, atol=2e-3)

    print("KERNEL_OK")
</pallas_src>

<mosaic_0001>
module attributes {stable_mosaic.version = 11 : i64} {
  func.func @fused_kernel(%arg0: memref<2x256xf32, #tpu.memory_space<vmem>>, %arg1: memref<256x127xf32, #tpu.memory_space<vmem>>, %arg2: memref<3x127x63xf32, #tpu.memory_space<vmem>>, %arg3: memref<63x31xf32, #tpu.memory_space<vmem>>, %arg4: memref<3x31x15xf32, #tpu.memory_space<vmem>>, %arg5: memref<2xf32, #tpu.memory_space<smem>>, %arg6: memref<1x512xf32, #tpu.memory_space<vmem>>, %arg7: memref<1x512xf32, #tpu.memory_space<vmem>>, %arg8: memref<1x512xf32, #tpu.memory_space<vmem>>, %arg9: memref<64x512xf32, #tpu.memory_space<vmem>>, %arg10: memref<64x512xf32, #tpu.memory_space<vmem>>, %arg11: memref<64x512xf32, #tpu.memory_space<vmem>>, %arg12: memref<1x512xf32, #tpu.memory_space<vmem>>, %arg13: memref<64x512xf32, #tpu.memory_space<vmem>>, %arg14: memref<64x2xf32, #tpu.memory_space<vmem>>, %arg15: memref<1x2xf32, #tpu.memory_space<vmem>>, %arg16: memref<2x2xf32, #tpu.memory_space<vmem>>, %arg17: memref<30x64xf32, #tpu.memory_space<vmem>>, %arg18: memref<30x512xf32, #tpu.memory_space<vmem>>, %arg19: memref<30x512xf32, #tpu.memory_space<vmem>>) attributes {dimension_semantics = [], scalar_prefetch = 0 : i64, scratch_operands = 3 : i64, tpu.core_type = #tpu.core_type<tc>} {
    %c0 = arith.constant 0 : index
    %c0_0 = arith.constant 0 : index
    %0 = vector.load %arg0[%c0, %c0_0] : memref<2x256xf32, #tpu.memory_space<vmem>>, vector<2x256xf32>
    %c0_1 = arith.constant 0 : index
    %c0_2 = arith.constant 0 : index
    %1 = vector.load %arg1[%c0_1, %c0_2] : memref<256x127xf32, #tpu.memory_space<vmem>>, vector<256x127xf32>
    %cst = arith.constant dense<0.000000e+00> : vector<2x127xf32>
    %2 = tpu.matmul %0, %1, %cst {dimension_numbers = #tpu.dot_dimension_numbers<[1], [0], [0], [1], [0, 0, 1, 1], [], []>} : vector<2x256xf32>, vector<256x127xf32>, vector<2x127xf32> -> vector<2x127xf32>
    %c0_3 = arith.constant 0 : index
    %3 = memref.load %arg5[%c0_3] : memref<2xf32, #tpu.memory_space<smem>>
    %4 = vector.broadcast %3 : f32 to vector<2x127xf32>
    %5 = arith.addf %2, %4 : vector<2x127xf32>
    %c0_4 = arith.constant 0 : index
    %c0_5 = arith.constant 0 : index
    %c0_6 = arith.constant 0 : index
    %6 = vector.load %arg2[%c0_4, %c0_5, %c0_6] : memref<3x127x63xf32, #tpu.memory_space<vmem>>, vector<1x127x63xf32>
    %7 = vector.shape_cast %6 : vector<1x127x63xf32> to vector<127x63xf32>
    %cst_7 = arith.constant dense<0.000000e+00> : vector<2x63xf32>
    %8 = tpu.matmul %5, %7, %cst_7 {dimension_numbers = #tpu.dot_dimension_numbers<[1], [0], [0], [1], [0, 0, 1, 1], [], []>} : vector<2x127xf32>, vector<127x63xf32>, vector<2x63xf32> -> vector<2x63xf32>
    %c1 = arith.constant 1 : index
    %c0_8 = arith.constant 0 : index
    %c0_9 = arith.constant 0 : index
    %9 = vector.load %arg2[%c1, %c0_8, %c0_9] : memref<3x127x63xf32, #tpu.memory_space<vmem>>, vector<1x127x63xf32>
    %10 = vector.shape_cast %9 : vector<1x127x63xf32> to vector<127x63xf32>
    %cst_10 = arith.constant dense<0.000000e+00> : vector<2x63xf32>
    %11 = tpu.matmul %5, %10, %cst_10 {dimension_numbers = #tpu.dot_dimension_numbers<[1], [0], [0], [1], [0, 0, 1, 1], [], []>} : vector<2x127xf32>, vector<127x63xf32>, vector<2x63xf32> -> vector<2x63xf32>
    %12 = arith.maximumf %8, %11 : vector<2x63xf32>
    %c2 = arith.constant 2 : index
    %c0_11 = arith.constant 0 : index
    %c0_12 = arith.constant 0 : index
    %13 = vector.load %arg2[%c2, %c0_11, %c0_12] : memref<3x127x63xf32, #tpu.memory_space<vmem>>, vector<1x127x63xf32>
    %14 = vector.shape_cast %13 : vector<1x127x63xf32> to vector<127x63xf32>
    %cst_13 = arith.constant dense<0.000000e+00> : vector<2x63xf32>
    %15 = tpu.matmul %5, %14, %cst_13 {dimension_numbers = #tpu.dot_dimension_numbers<[1], [0], [0], [1], [0, 0, 1, 1], [], []>} : vector<2x127xf32>, vector<127x63xf32>, vector<2x63xf32> -> vector<2x63xf32>
    %16 = arith.maximumf %12, %15 : vector<2x63xf32>
    %c0_14 = arith.constant 0 : index
    %c0_15 = arith.constant 0 : index
    %17 = vector.load %arg3[%c0_14, %c0_15] : memref<63x31xf32, #tpu.memory_space<vmem>>, vector<63x31xf32>
    %cst_16 = arith.constant dense<0.000000e+00> : vector<2x31xf32>
    %18 = tpu.matmul %16, %17, %cst_16 {dimension_numbers = #tpu.dot_dimension_numbers<[1], [0], [0], [1], [0, 0, 1, 1], [], []>} : vector<2x63xf32>, vector<63x31xf32>, vector<2x31xf32> -> vector<2x31xf32>
    %c1_17 = arith.constant 1 : index
    %19 = memref.load %arg5[%c1_17] : memref<2xf32, #tpu.memory_space<smem>>
    %20 = vector.broadcast %19 : f32 to vector<2x31xf32>
    %21 = arith.addf %18, %20 : vector<2x31xf32>
    %c0_18 = arith.constant 0 : index
    %c0_19 = arith.constant 0 : index
    %c0_20 = arith.constant 0 : index
    %22 = vector.load %arg4[%c0_18, %c0_19, %c0_20] : memref<3x31x15xf32, #tpu.memory_space<vmem>>, vector<1x31x15xf32>
    %23 = vector.shape_cast %22 : vector<1x31x15xf32> to vector<31x15xf32>
    %cst_21 = arith.constant dense<0.000000e+00> : vector<2x15xf32>
    %24 = tpu.matmul %21, %23, %cst_21 {dimension_numbers = #tpu.dot_dimension_numbers<[1], [0], [0], [1], [0, 0, 1, 1], [], []>} : vector<2x31xf32>, vector<31x15xf32>, vector<2x15xf32> -> vector<2x15xf32>
    %c1_22 = arith.constant 1 : index
    %c0_23 = arith.constant 0 : index
    %c0_24 = arith.constant 0 : index
    %25 = vector.load %arg4[%c1_22, %c0_23, %c0_24] : memref<3x31x15xf32, #tpu.memory_space<vmem>>, vector<1x31x15xf32>
    %26 = vector.shape_cast %25 : vector<1x31x15xf32> to vector<31x15xf32>
    %cst_25 = arith.constant dense<0.000000e+00> : vector<2x15xf32>
    %27 = tpu.matmul %21, %26, %cst_25 {dimension_numbers = #tpu.dot_dimension_numbers<[1], [0], [0], [1], [0, 0, 1, 1], [], []>} : vector<2x31xf32>, vector<31x15xf32>, vector<2x15xf32> -> vector<2x15xf32>
    %28 = arith.maximumf %24, %27 : vector<2x15xf32>
    %c2_26 = arith.constant 2 : index
    %c0_27 = arith.constant 0 : index
    %c0_28 = arith.constant 0 : index
    %29 = vector.load %arg4[%c2_26, %c0_27, %c0_28] : memref<3x31x15xf32, #tpu.memory_space<vmem>>, vector<1x31x15xf32>
    %30 = vector.shape_cast %29 : vector<1x31x15xf32> to vector<31x15xf32>
    %cst_29 = arith.constant dense<0.000000e+00> : vector<2x15xf32>
    %31 = tpu.matmul %21, %30, %cst_29 {dimension_numbers = #tpu.dot_dimension_numbers<[1], [0], [0], [1], [0, 0, 1, 1], [], []>} : vector<2x31xf32>, vector<31x15xf32>, vector<2x15xf32> -> vector<2x15xf32>
    %32 = arith.maximumf %28, %31 : vector<2x15xf32>
    %c0_30 = arith.constant 0 : index
    %c0_31 = arith.constant 0 : index
    %33 = vector.load %arg6[%c0_30, %c0_31] : memref<1x512xf32, #tpu.memory_space<vmem>>, vector<1x512xf32>
    %c0_32 = arith.constant 0 : index
    %c0_33 = arith.constant 0 : index
    %34 = vector.load %arg7[%c0_32, %c0_33] : memref<1x512xf32, #tpu.memory_space<vmem>>, vector<1x512xf32>
    %c0_34 = arith.constant 0 : index
    %c0_35 = arith.constant 0 : index
    %35 = vector.load %arg8[%c0_34, %c0_35] : memref<1x512xf32, #tpu.memory_space<vmem>>, vector<1x512xf32>
    %36 = vector.extract_strided_slice %32 {offsets = [0, 0], sizes = [2, 1], strides = [1, 1]} : vector<2x15xf32> to vector<2x1xf32>
    %37 = vector.broadcast %36 : vector<2x1xf32> to vector<2x512xf32>
    %38 = vector.broadcast %33 : vector<1x512xf32> to vector<2x512xf32>
    %39 = arith.mulf %37, %38 : vector<2x512xf32>
    %40 = vector.extract_strided_slice %32 {offsets = [0, 14], sizes = [2, 1], strides = [1, 1]} : vector<2x15xf32> to vector<2x1xf32>
    %41 = vector.broadcast %40 : vector<2x1xf32> to vector<2x512xf32>
    %42 = vector.broadcast %34 : vector<1x512xf32> to vector<2x512xf32>
    %43 = arith.mulf %41, %42 : vector<2x512xf32>
    %44 = arith.addf %39, %43 : vector<2x512xf32>
    %45 = vector.broadcast %35 : vector<1x512xf32> to vector<2x512xf32>
    %46 = arith.addf %44, %45 : vector<2x512xf32>
    %c0_36 = arith.constant 0 : index
    %c0_37 = arith.constant 0 : index
    %47 = vector.load %arg18[%c0_36, %c0_37] : memref<30x512xf32, #tpu.memory_space<vmem>>, vector<2x512xf32>
    tpu.vector_store %arg18[%c0_36, %c0_37], %46 {strides = array<i32>} : memref<30x512xf32, #tpu.memory_space<vmem>>, vector<2x512xf32>,
    %48 = vector.extract_strided_slice %32 {offsets = [0, 1], sizes = [2, 1], strides = [1, 1]} : vector<2x15xf32> to vector<2x1xf32>
    %49 = vector.broadcast %48 : vector<2x1xf32> to vector<2x512xf32>
    %50 = vector.broadcast %33 : vector<1x512xf32> to vector<2x512xf32>
    %51 = arith.mulf %49, %50 : vector<2x512xf32>
    %52 = vector.extract_strided_slice %32 {offsets = [0, 13], sizes = [2, 1], strides = [1, 1]} : vector<2x15xf32> to vector<2x1xf32>
    %53 = vector.broadcast %52 : vector<2x1xf32> to vector<2x512xf32>
    %54 = vector.broadcast %34 : vector<1x512xf32> to vector<2x512xf32>
    %55 = arith.mulf %53, %54 : vector<2x512xf32>
    %56 = arith.addf %51, %55 : vector<2x512xf32>
    %57 = vector.broadcast %35 : vector<1x512xf32> to vector<2x512xf32>
    %58 = arith.addf %56, %57 : vector<2x512xf32>
    %c2_38 = arith.constant 2 : index
    %c0_39 = arith.constant 0 : index
    %59 = vector.load %arg18[%c2_38, %c0_39] : memref<30x512xf32, #tpu.memory_space<vmem>>, vector<2x512xf32>
    tpu.vector_store %arg18[%c2_38, %c0_39], %58 {strides = array<i32>} : memref<30x512xf32, #tpu.memory_space<vmem>>, vector<2x512xf32>,
    %60 = vector.extract_strided_slice %32 {offsets = [0, 2], sizes = [2, 1], strides = [1, 1]} : vector<2x15xf32> to vector<2x1xf32>
    %61 = vector.broadcast %60 : vector<2x1xf32> to vector<2x512xf32>
    %62 = vector.broadcast %33 : vector<1x512xf32> to vector<2x512xf32>
    %63 = arith.mulf %61, %62 : vector<2x512xf32>
    %64 = vector.extract_strided_slice %32 {offsets = [0, 12], sizes = [2, 1], strides = [1, 1]} : vector<2x15xf32> to vector<2x1xf32>
    %65 = vector.broadcast %64 : vector<2x1xf32> to vector<2x512xf32>
    %66 = vector.broadcast %34 : vector<1x512xf32> to vector<2x512xf32>
    %67 = arith.mulf %65, %66 : vector<2x512xf32>
    %68 = arith.addf %63, %67 : vector<2x512xf32>
    %69 = vector.broadcast %35 : vector<1x512xf32> to vector<2x512xf32>
    %70 = arith.addf %68, %69 : vector<2x512xf32>
    %c4 = arith.constant 4 : index
    %c0_40 = arith.constant 0 : index
    %71 = vector.load %arg18[%c4, %c0_40] : memref<30x512xf32, #tpu.memory_space<vmem>>, vector<2x512xf32>
    tpu.vector_store %arg18[%c4, %c0_40], %70 {strides = array<i32>} : memref<30x512xf32, #tpu.memory_space<vmem>>, vector<2x512xf32>,
    %72 = vector.extract_strided_slice %32 {offsets = [0, 3], sizes = [2, 1], strides = [1, 1]} : vector<2x15xf32> to vector<2x1xf32>
    %73 = vector.broadcast %72 : vector<2x1xf32> to vector<2x512xf32>
    %74 = vector.broadcast %33 : vector<1x512xf32> to vector<2x512xf32>
    %75 = arith.mulf %73, %74 : vector<2x512xf32>
    %76 = vector.extract_strided_slice %32 {offsets = [0, 11], sizes = [2, 1], strides = [1, 1]} : vector<2x15xf32> to vector<2x1xf32>
    %77 = vector.broadcast %76 : vector<2x1xf32> to vector<2x512xf32>
    %78 = vector.broadcast %34 : vector<1x512xf32> to vector<2x512xf32>
    %79 = arith.mulf %77, %78 : vector<2x512xf32>
    %80 = arith.addf %75, %79 : vector<2x512xf32>
    %81 = vector.broadcast %35 : vector<1x512xf32> to vector<2x512xf32>
    %82 = arith.addf %80, %81 : vector<2x512xf32>
    %c6 = arith.constant 6 : index
    %c0_41 = arith.constant 0 : index
    %83 = vector.load %arg18[%c6, %c0_41] : memref<30x512xf32, #tpu.memory_space<vmem>>, vector<2x512xf32>
    tpu.vector_store %arg18[%c6, %c0_41], %82 {strides = array<i32>} : memref<30x512xf32, #tpu.memory_space<vmem>>, vector<2x512xf32>,
    %84 = vector.extract_strided_slice %32 {offsets = [0, 4], sizes = [2, 1], strides = [1, 1]} : vector<2x15xf32> to vector<2x1xf32>
    %85 = vector.broadcast %84 : vector<2x1xf32> to vector<2x512xf32>
    %86 = vector.broadcast %33 : vector<1x512xf32> to vector<2x512xf32>
    %87 = arith.mulf %85, %86 : vector<2x512xf32>
    %88 = vector.extract_strided_slice %32 {offsets = [0, 10], sizes = [2, 1], strides = [1, 1]} : vector<2x15xf32> to vector<2x1xf32>
    %89 = vector.broadcast %88 : vector<2x1xf32> to vector<2x512xf32>
    %90 = vector.broadcast %34 : vector<1x512xf32> to vector<2x512xf32>
    %91 = arith.mulf %89, %90 : vector<2x512xf32>
    %92 = arith.addf %87, %91 : vector<2x512xf32>
    %93 = vector.broadcast %35 : vector<1x512xf32> to vector<2x512xf32>
    %94 = arith.addf %92, %93 : vector<2x512xf32>
    %c8 = arith.constant 8 : index
    %c0_42 = arith.constant 0 : index
    %95 = vector.load %arg18[%c8, %c0_42] : memref<30x512xf32, #tpu.memory_space<vmem>>, vector<2x512xf32>
    tpu.vector_store %arg18[%c8, %c0_42], %94 {strides = array<i32>} : memref<30x512xf32, #tpu.memory_space<vmem>>, vector<2x512xf32>,
    %96 = vector.extract_strided_slice %32 {offsets = [0, 5], sizes = [2, 1], strides = [1, 1]} : vector<2x15xf32> to vector<2x1xf32>
    %97 = vector.broadcast %96 : vector<2x1xf32> to vector<2x512xf32>
    %98 = vector.broadcast %33 : vector<1x512xf32> to vector<2x512xf32>
    %99 = arith.mulf %97, %98 : vector<2x512xf32>
    %100 = vector.extract_strided_slice %32 {offsets = [0, 9], sizes = [2, 1], strides = [1, 1]} : vector<2x15xf32> to vector<2x1xf32>
    %101 = vector.broadcast %100 : vector<2x1xf32> to vector<2x512xf32>
    %102 = vector.broadcast %34 : vector<1x512xf32> to vector<2x512xf32>
    %103 = arith.mulf %101, %102 : vector<2x512xf32>
    %104 = arith.addf %99, %103 : vector<2x512xf32>
    %105 = vector.broadcast %35 : vector<1x512xf32> to vector<2x512xf32>
    %106 = arith.addf %104, %105 : vector<2x512xf32>
    %c10 = arith.constant 10 : index
    %c0_43 = arith.constant 0 : index
    %107 = vector.load %arg18[%c10, %c0_43] : memref<30x512xf32, #tpu.memory_space<vmem>>, vector<2x512xf32>
    tpu.vector_store %arg18[%c10, %c0_43], %106 {strides = array<i32>} : memref<30x512xf32, #tpu.memory_space<vmem>>, vector<2x512xf32>,
    %108 = vector.extract_strided_slice %32 {offsets = [0, 6], sizes = [2, 1], strides = [1, 1]} : vector<2x15xf32> to vector<2x1xf32>
    %109 = vector.broadcast %108 : vector<2x1xf32> to vector<2x512xf32>
    %110 = vector.broadcast %33 : vector<1x512xf32> to vector<2x512xf32>
    %111 = arith.mulf %109, %110 : vector<2x512xf32>
    %112 = vector.extract_strided_slice %32 {offsets = [0, 8], sizes = [2, 1], strides = [1, 1]} : vector<2x15xf32> to vector<2x1xf32>
    %113 = vector.broadcast %112 : vector<2x1xf32> to vector<2x512xf32>
    %114 = vector.broadcast %34 : vector<1x512xf32> to vector<2x512xf32>
    %115 = arith.mulf %113, %114 : vector<2x512xf32>
    %116 = arith.addf %111, %115 : vector<2x512xf32>
    %117 = vector.broadcast %35 : vector<1x512xf32> to vector<2x512xf32>
    %118 = arith.addf %116, %117 : vector<2x512xf32>
    %c12 = arith.constant 12 : index
    %c0_44 = arith.constant 0 : index
    %119 = vector.load %arg18[%c12, %c0_44] : memref<30x512xf32, #tpu.memory_space<vmem>>, vector<2x512xf32>
    tpu.vector_store %arg18[%c12, %c0_44], %118 {strides = array<i32>} : memref<30x512xf32, #tpu.memory_space<vmem>>, vector<2x512xf32>,
    %120 = vector.extract_strided_slice %32 {offsets = [0, 7], sizes = [2, 1], strides = [1, 1]} : vector<2x15xf32> to vector<2x1xf32>
    %121 = vector.broadcast %120 : vector<2x1xf32> to vector<2x512xf32>
    %122 = vector.broadcast %33 : vector<1x512xf32> to vector<2x512xf32>
    %123 = arith.mulf %121, %122 : vector<2x512xf32>
    %124 = vector.extract_strided_slice %32 {offsets = [0, 7], sizes = [2, 1], strides = [1, 1]} : vector<2x15xf32> to vector<2x1xf32>
    %125 = vector.broadcast %124 : vector<2x1xf32> to vector<2x512xf32>
    %126 = vector.broadcast %34 : vector<1x512xf32> to vector<2x512xf32>
    %127 = arith.mulf %125, %126 : vector<2x512xf32>
    %128 = arith.addf %123, %127 : vector<2x512xf32>
    %129 = vector.broadcast %35 : vector<1x512xf32> to vector<2x512xf32>
    %130 = arith.addf %128, %129 : vector<2x512xf32>
    %c14 = arith.constant 14 : index
    %c0_45 = arith.constant 0 : index
    %131 = vector.load %arg18[%c14, %c0_45] : memref<30x512xf32, #tpu.memory_space<vmem>>, vector<2x512xf32>
    tpu.vector_store %arg18[%c14, %c0_45], %130 {strides = array<i32>} : memref<30x512xf32, #tpu.memory_space<vmem>>, vector<2x512xf32>,
    %132 = vector.extract_strided_slice %32 {offsets = [0, 8], sizes = [2, 1], strides = [1, 1]} : vector<2x15xf32> to vector<2x1xf32>
    %133 = vector.broadcast %132 : vector<2x1xf32> to vector<2x512xf32>
    %134 = vector.broadcast %33 : vector<1x512xf32> to vector<2x512xf32>
    %135 = arith.mulf %133, %134 : vector<2x512xf32>
    %136 = vector.extract_strided_slice %32 {offsets = [0, 6], sizes = [2, 1], strides = [1, 1]} : vector<2x15xf32> to vector<2x1xf32>
    %137 = vector.broadcast %136 : vector<2x1xf32> to vector<2x512xf32>
    %138 = vector.broadcast %34 : vector<1x512xf32> to vector<2x512xf32>
    %139 = arith.mulf %137, %138 : vector<2x512xf32>
    %140 = arith.addf %135, %139 : vector<2x512xf32>
    %141 = vector.broadcast %35 : vector<1x512xf32> to vector<2x512xf32>
    %142 = arith.addf %140, %141 : vector<2x512xf32>
    %c16 = arith.constant 16 : index
    %c0_46 = arith.constant 0 : index
    %143 = vector.load %arg18[%c16, %c0_46] : memref<30x512xf32, #tpu.memory_space<vmem>>, vector<2x512xf32>
    tpu.vector_store %arg18[%c16, %c0_46], %142 {strides = array<i32>} : memref<30x512xf32, #tpu.memory_space<vmem>>, vector<2x512xf32>,
    %144 = vector.extract_strided_slice %32 {offsets = [0, 9], sizes = [2, 1], strides = [1, 1]} : vector<2x15xf32> to vector<2x1xf32>
    %145 = vector.broadcast %144 : vector<2x1xf32> to vector<2x512xf32>
    %146 = vector.broadcast %33 : vector<1x512xf32> to vector<2x512xf32>
    %147 = arith.mulf %145, %146 : vector<2x512xf32>
    %148 = vector.extract_strided_slice %32 {offsets = [0, 5], sizes = [2, 1], strides = [1, 1]} : vector<2x15xf32> to vector<2x1xf32>
    %149 = vector.broadcast %148 : vector<2x1xf32> to vector<2x512xf32>
    %150 = vector.broadcast %34 : vector<1x512xf32> to vector<2x512xf32>
    %151 = arith.mulf %149, %150 : vector<2x512xf32>
    %152 = arith.addf %147, %151 : vector<2x512xf32>
    %153 = vector.broadcast %35 : vector<1x512xf32> to vector<2x512xf32>
    %154 = arith.addf %152, %153 : vector<2x512xf32>
    %c18 = arith.constant 18 : index
    %c0_47 = arith.constant 0 : index
    %155 = vector.load %arg18[%c18, %c0_47] : memref<30x512xf32, #tpu.memory_space<vmem>>, vector<2x512xf32>
    tpu.vector_store %arg18[%c18, %c0_47], %154 {strides = array<i32>} : memref<30x512xf32, #tpu.memory_space<vmem>>, vector<2x512xf32>,
    %156 = vector.extract_strided_slice %32 {offsets = [0, 10], sizes = [2, 1], strides = [1, 1]} : vector<2x15xf32> to vector<2x1xf32>
    %157 = vector.broadcast %156 : vector<2x1xf32> to vector<2x512xf32>
    %158 = vector.broadcast %33 : vector<1x512xf32> to vector<2x512xf32>
    %159 = arith.mulf %157, %158 : vector<2x512xf32>
    %160 = vector.extract_strided_slice %32 {offsets = [0, 4], sizes = [2, 1], strides = [1, 1]} : vector<2x15xf32> to vector<2x1xf32>
    %161 = vector.broadcast %160 : vector<2x1xf32> to vector<2x512xf32>
    %162 = vector.broadcast %34 : vector<1x512xf32> to vector<2x512xf32>
    %163 = arith.mulf %161, %162 : vector<2x512xf32>
    %164 = arith.addf %159, %163 : vector<2x512xf32>
    %165 = vector.broadcast %35 : vector<1x512xf32> to vector<2x512xf32>
    %166 = arith.addf %164, %165 : vector<2x512xf32>
    %c20 = arith.constant 20 : index
    %c0_48 = arith.constant 0 : index
    %167 = vector.load %arg18[%c20, %c0_48] : memref<30x512xf32, #tpu.memory_space<vmem>>, vector<2x512xf32>
    tpu.vector_store %arg18[%c20, %c0_48], %166 {strides = array<i32>} : memref<30x512xf32, #tpu.memory_space<vmem>>, vector<2x512xf32>,
    %168 = vector.extract_strided_slice %32 {offsets = [0, 11], sizes = [2, 1], strides = [1, 1]} : vector<2x15xf32> to vector<2x1xf32>
    %169 = vector.broadcast %168 : vector<2x1xf32> to vector<2x512xf32>
    %170 = vector.broadcast %33 : vector<1x512xf32> to vector<2x512xf32>
    %171 = arith.mulf %169, %170 : vector<2x512xf32>
    %172 = vector.extract_strided_slice %32 {offsets = [0, 3], sizes = [2, 1], strides = [1, 1]} : vector<2x15xf32> to vector<2x1xf32>
    %173 = vector.broadcast %172 : vector<2x1xf32> to vector<2x512xf32>
    %174 = vector.broadcast %34 : vector<1x512xf32> to vector<2x512xf32>
    %175 = arith.mulf %173, %174 : vector<2x512xf32>
    %176 = arith.addf %171, %175 : vector<2x512xf32>
    %177 = vector.broadcast %35 : vector<1x512xf32> to vector<2x512xf32>
    %178 = arith.addf %176, %177 : vector<2x512xf32>
    %c22 = arith.constant 22 : index
    %c0_49 = arith.constant 0 : index
    %179 = vector.load %arg18[%c22, %c0_49] : memref<30x512xf32, #tpu.memory_space<vmem>>, vector<2x512xf32>
    tpu.vector_store %arg18[%c22, %c0_49], %178 {strides = array<i32>} : memref<30x512xf32, #tpu.memory_space<vmem>>, vector<2x512xf32>,
    %180 = vector.extract_strided_slice %32 {offsets = [0, 12], sizes = [2, 1], strides = [1, 1]} : vector<2x15xf32> to vector<2x1xf32>
    %181 = vector.broadcast %180 : vector<2x1xf32> to vector<2x512xf32>
    %182 = vector.broadcast %33 : vector<1x512xf32> to vector<2x512xf32>
    %183 = arith.mulf %181, %182 : vector<2x512xf32>
    %184 = vector.extract_strided_slice %32 {offsets = [0, 2], sizes = [2, 1], strides = [1, 1]} : vector<2x15xf32> to vector<2x1xf32>
    %185 = vector.broadcast %184 : vector<2x1xf32> to vector<2x512xf32>
    %186 = vector.broadcast %34 : vector<1x512xf32> to vector<2x512xf32>
    %187 = arith.mulf %185, %186 : vector<2x512xf32>
    %188 = arith.addf %183, %187 : vector<2x512xf32>
    %189 = vector.broadcast %35 : vector<1x512xf32> to vector<2x512xf32>
    %190 = arith.addf %188, %189 : vector<2x512xf32>
    %c24 = arith.constant 24 : index
    %c0_50 = arith.constant 0 : index
    %191 = vector.load %arg18[%c24, %c0_50] : memref<30x512xf32, #tpu.memory_space<vmem>>, vector<2x512xf32>
    tpu.vector_store %arg18[%c24, %c0_50], %190 {strides = array<i32>} : memref<30x512xf32, #tpu.memory_space<vmem>>, vector<2x512xf32>,
    %192 = vector.extract_strided_slice %32 {offsets = [0, 13], sizes = [2, 1], strides = [1, 1]} : vector<2x15xf32> to vector<2x1xf32>
    %193 = vector.broadcast %192 : vector<2x1xf32> to vector<2x512xf32>
    %194 = vector.broadcast %33 : vector<1x512xf32> to vector<2x512xf32>
    %195 = arith.mulf %193, %194 : vector<2x512xf32>
    %196 = vector.extract_strided_slice %32 {offsets = [0, 1], sizes = [2, 1], strides = [1, 1]} : vector<2x15xf32> to vector<2x1xf32>
    %197 = vector.broadcast %196 : vector<2x1xf32> to vector<2x512xf32>
    %198 = vector.broadcast %34 : vector<1x512xf32> to vector<2x512xf32>
    %199 = arith.mulf %197, %198 : vector<2x512xf32>
    %200 = arith.addf %195, %199 : vector<2x512xf32>
    %201 = vector.broadcast %35 : vector<1x512xf32> to vector<2x512xf32>
    %202 = arith.addf %200, %201 : vector<2x512xf32>
    %c26 = arith.constant 26 : index
    %c0_51 = arith.constant 0 : index
    %203 = vector.load %arg18[%c26, %c0_51] : memref<30x512xf32, #tpu.memory_space<vmem>>, vector<2x512xf32>
    tpu.vector_store %arg18[%c26, %c0_51], %202 {strides = array<i32>} : memref<30x512xf32, #tpu.memory_space<vmem>>, vector<2x512xf32>,
    %204 = vector.extract_strided_slice %32 {offsets = [0, 14], sizes = [2, 1], strides = [1, 1]} : vector<2x15xf32> to vector<2x1xf32>
    %205 = vector.broadcast %204 : vector<2x1xf32> to vector<2x512xf32>
    %206 = vector.broadcast %33 : vector<1x512xf32> to vector<2x512xf32>
    %207 = arith.mulf %205, %206 : vector<2x512xf32>
    %208 = vector.extract_strided_slice %32 {offsets = [0, 0], sizes = [2, 1], strides = [1, 1]} : vector<2x15xf32> to vector<2x1xf32>
    %209 = vector.broadcast %208 : vector<2x1xf32> to vector<2x512xf32>
    %210 = vector.broadcast %34 : vector<1x512xf32> to vector<2x512xf32>
    %211 = arith.mulf %209, %210 : vector<2x512xf32>
    %212 = arith.addf %207, %211 : vector<2x512xf32>
    %213 = vector.broadcast %35 : vector<1x512xf32> to vector<2x512xf32>
    %214 = arith.addf %212, %213 : vector<2x512xf32>
    %c28 = arith.constant 28 : index
    %c0_52 = arith.constant 0 : index
    %215 = vector.load %arg18[%c28, %c0_52] : memref<30x512xf32, #tpu.memory_space<vmem>>, vector<2x512xf32>
    tpu.vector_store %arg18[%c28, %c0_52], %214 {strides = array<i32>} : memref<30x512xf32, #tpu.memory_space<vmem>>, vector<2x512xf32>,
    %c0_53 = arith.constant 0 : index
    %c0_54 = arith.constant 0 : index
    %216 = vector.load %arg9[%c0_53, %c0_54] : memref<64x512xf32, #tpu.memory_space<vmem>>, vector<64x512xf32>
    %cst_55 = arith.constant 0.000000e+00 : f32
    %217 = vector.broadcast %cst_55 : f32 to vector<2x64xf32>
    %cst_56 = arith.constant 0.000000e+00 : f32
    %218 = vector.broadcast %cst_56 : f32 to vector<2x64xf32>
    %c0_57 = arith.constant 0 : index
    %c0_58 = arith.constant 0 : index
    %219 = vector.load %arg18[%c0_57, %c0_58] : memref<30x512xf32, #tpu.memory_space<vmem>>, vector<2x512xf32>
    %cst_59 = arith.constant dense<0.000000e+00> : vector<2x512xf32>
    %220 = tpu.matmul %217, %216, %cst_59 {dimension_numbers = #tpu.dot_dimension_numbers<[1], [0], [0], [1], [0, 0, 1, 1], [], []>} : vector<2x64xf32>, vector<64x512xf32>, vector<2x512xf32> -> vector<2x512xf32>
    %221 = arith.addf %219, %220 : vector<2x512xf32>
    %222 = vector.extract_strided_slice %221 {offsets = [0, 0], sizes = [2, 64], strides = [1, 1]} : vector<2x512xf32> to vector<2x64xf32>
    %223 = arith.negf %222 : vector<2x64xf32>
    %224 = math.exp %223 : vector<2x64xf32>
    %cst_60 = arith.constant 1.000000e+00 : f32
    %225 = vector.broadcast %cst_60 : f32 to vector<2x64xf32>
    %226 = arith.addf %225, %224 : vector<2x64xf32>
    %227 = arith.divf %225, %226 : vector<2x64xf32>
    %228 = vector.extract_strided_slice %221 {offsets = [0, 128], sizes = [2, 64], strides = [1, 1]} : vector<2x512xf32> to vector<2x64xf32>
    %229 = arith.negf %228 : vector<2x64xf32>
    %230 = math.exp %229 : vector<2x64xf32>
    %cst_61 = arith.constant 1.000000e+00 : f32
    %231 = vector.broadcast %cst_61 : f32 to vector<2x64xf32>
    %232 = arith.addf %231, %230 : vector<2x64xf32>
    %233 = arith.divf %231, %232 : vector<2x64xf32>
    %234 = vector.extract_strided_slice %221 {offsets = [0, 256], sizes = [2, 64], strides = [1, 1]} : vector<2x512xf32> to vector<2x64xf32>
    %235 = arith.negf %234 : vector<2x64xf32>
    %236 = math.exp %235 : vector<2x64xf32>
    %cst_62 = arith.constant 1.000000e+00 : f32
    %237 = vector.broadcast %cst_62 : f32 to vector<2x64xf32>
    %238 = arith.addf %237, %236 : vector<2x64xf32>
    %239 = arith.divf %237, %238 : vector<2x64xf32>
    %240 = vector.extract_strided_slice %221 {offsets = [0, 384], sizes = [2, 64], strides = [1, 1]} : vector<2x512xf32> to vector<2x64xf32>
    %241 = math.tanh %240 : vector<2x64xf32>
    %242 = arith.mulf %233, %218 : vector<2x64xf32>
    %243 = arith.mulf %227, %241 : vector<2x64xf32>
    %244 = arith.addf %242, %243 : vector<2x64xf32>
    %245 = math.tanh %244 : vector<2x64xf32>
    %246 = arith.mulf %239, %245 : vector<2x64xf32>
    %c0_63 = arith.constant 0 : index
    %c0_64 = arith.constant 0 : index
    %247 = vector.load %arg17[%c0_63, %c0_64] : memref<30x64xf32, #tpu.memory_space<vmem>>, vector<2x64xf32>
    tpu.vector_store %arg17[%c0_63, %c0_64], %246 {strides = array<i32>} : memref<30x64xf32, #tpu.memory_space<vmem>>, vector<2x64xf32>,
    %c2_65 = arith.constant 2 : index
    %c0_66 = arith.constant 0 : index
    %248 = vector.load %arg18[%c2_65, %c0_66] : memref<30x512xf32, #tpu.memory_space<vmem>>, vector<2x512xf32>
    %cst_67 = arith.constant dense<0.000000e+00> : vector<2x512xf32>
    %249 = tpu.matmul %246, %216, %cst_67 {dimension_numbers = #tpu.dot_dimension_numbers<[1], [0], [0], [1], [0, 0, 1, 1], [], []>} : vector<2x64xf32>, vector<64x512xf32>, vector<2x512xf32> -> vector<2x512xf32>
    %250 = arith.addf %248, %249 : vector<2x512xf32>
    %251 = vector.extract_strided_slice %250 {offsets = [0, 0], sizes = [2, 64], strides = [1, 1]} : vector<2x512xf32> to vector<2x64xf32>
    %252 = arith.negf %251 : vector<2x64xf32>
    %253 = math.exp %252 : vector<2x64xf32>
    %cst_68 = arith.constant 1.000000e+00 : f32
    %254 = vector.broadcast %cst_68 : f32 to vector<2x64xf32>
    %255 = arith.addf %254, %253 : vector<2x64xf32>
    %256 = arith.divf %254, %255 : vector<2x64xf32>
    %257 = vector.extract_strided_slice %250 {offsets = [0, 128], sizes = [2, 64], strides = [1, 1]} : vector<2x512xf32> to vector<2x64xf32>
    %258 = arith.negf %257 : vector<2x64xf32>
    %259 = math.exp %258 : vector<2x64xf32>
    %cst_69 = arith.constant 1.000000e+00 : f32
    %260 = vector.broadcast %cst_69 : f32 to vector<2x64xf32>
    %261 = arith.addf %260, %259 : vector<2x64xf32>
    %262 = arith.divf %260, %261 : vector<2x64xf32>
    %263 = vector.extract_strided_slice %250 {offsets = [0, 256], sizes = [2, 64], strides = [1, 1]} : vector<2x512xf32> to vector<2x64xf32>
    %264 = arith.negf %263 : vector<2x64xf32>
    %265 = math.exp %264 : vector<2x64xf32>
    %cst_70 = arith.constant 1.000000e+00 : f32
    %266 = vector.broadcast %cst_70 : f32 to vector<2x64xf32>
    %267 = arith.addf %266, %265 : vector<2x64xf32>
    %268 = arith.divf %266, %267 : vector<2x64xf32>
    %269 = vector.extract_strided_slice %250 {offsets = [0, 384], sizes = [2, 64], strides = [1, 1]} : vector<2x512xf32> to vector<2x64xf32>
    %270 = math.tanh %269 : vector<2x64xf32>
    %271 = arith.mulf %262, %244 : vector<2x64xf32>
    %272 = arith.mulf %256, %270 : vector<2x64xf32>
    %273 = arith.addf %271, %272 : vector<2x64xf32>
    %274 = math.tanh %273 : vector<2x64xf32>
    %275 = arith.mulf %268, %274 : vector<2x64xf32>
    %c2_71 = arith.constant 2 : index
    %c0_72 = arith.constant 0 : index
    %276 = vector.load %arg17[%c2_71, %c0_72] : memref<30x64xf32, #tpu.memory_space<vmem>>, vector<2x64xf32>
    tpu.vector_store %arg17[%c2_71, %c0_72], %275 {strides = array<i32>} : memref<30x64xf32, #tpu.memory_space<vmem>>, vector<2x64xf32>,
    %c4_73 = arith.constant 4 : index
    %c0_74 = arith.constant 0 : index
    %277 = vector.load %arg18[%c4_73, %c0_74] : memref<30x512xf32, #tpu.memory_space<vmem>>, vector<2x512xf32>
    %cst_75 = arith.constant dense<0.000000e+00> : vector<2x512xf32>
    %278 = tpu.matmul %275, %216, %cst_75 {dimension_numbers = #tpu.dot_dimension_numbers<[1], [0], [0], [1], [0, 0, 1, 1], [], []>} : vector<2x64xf32>, vector<64x512xf32>, vector<2x512xf32> -> vector<2x512xf32>
    %279 = arith.addf %277, %278 : vector<2x512xf32>
    %280 = vector.extract_strided_slice %279 {offsets = [0, 0], sizes = [2, 64], strides = [1, 1]} : vector<2x512xf32> to vector<2x64xf32>
    %281 = arith.negf %280 : vector<2x64xf32>
    %282 = math.exp %281 : vector<2x64xf32>
    %cst_76 = arith.constant 1.000000e+00 : f32
    %283 = vector.broadcast %cst_76 : f32 to vector<2x64xf32>
    %284 = arith.addf %283, %282 : vector<2x64xf32>
    %285 = arith.divf %283, %284 : vector<2x64xf32>
    %286 = vector.extract_strided_slice %279 {offsets = [0, 128], sizes = [2, 64], strides = [1, 1]} : vector<2x512xf32> to vector<2x64xf32>
    %287 = arith.negf %286 : vector<2x64xf32>
    %288 = math.exp %287 : vector<2x64xf32>
    %cst_77 = arith.constant 1.000000e+00 : f32
    %289 = vector.broadcast %cst_77 : f32 to vector<2x64xf32>
    %290 = arith.addf %289, %288 : vector<2x64xf32>
    %291 = arith.divf %289, %290 : vector<2x64xf32>
    %292 = vector.extract_strided_slice %279 {offsets = [0, 256], sizes = [2, 64], strides = [1, 1]} : vector<2x512xf32> to vector<2x64xf32>
    %293 = arith.negf %292 : vector<2x64xf32>
    %294 = math.exp %293 : vector<2x64xf32>
    %cst_78 = arith.constant 1.000000e+00 : f32
    %295 = vector.broadcast %cst_78 : f32 to vector<2x64xf32>
    %296 = arith.addf %295, %294 : vector<2x64xf32>
    %297 = arith.divf %295, %296 : vector<2x64xf32>
    %298 = vector.extract_strided_slice %279 {offsets = [0, 384], sizes = [2, 64], strides = [1, 1]} : vector<2x512xf32> to vector<2x64xf32>
    %299 = math.tanh %298 : vector<2x64xf32>
    %300 = arith.mulf %291, %273 : vector<2x64xf32>
    %301 = arith.mulf %285, %299 : vector<2x64xf32>
    %302 = arith.addf %300, %301 : vector<2x64xf32>
    %303 = math.tanh %302 : vector<2x64xf32>
    %304 = arith.mulf %297, %303 : vector<2x64xf32>
    %c4_79 = arith.constant 4 : index
    %c0_80 = arith.constant 0 : index
    %305 = vector.load %arg17[%c4_79, %c0_80] : memref<30x64xf32, #tpu.memory_space<vmem>>, vector<2x64xf32>
    tpu.vector_store %arg17[%c4_79, %c0_80], %304 {strides = array<i32>} : memref<30x64xf32, #tpu.memory_space<vmem>>, vector<2x64xf32>,
    %c6_81 = arith.constant 6 : index
    %c0_82 = arith.constant 0 : index
    %306 = vector.load %arg18[%c6_81, %c0_82] : memref<30x512xf32, #tpu.memory_space<vmem>>, vector<2x512xf32>
    %cst_83 = arith.constant dense<0.000000e+00> : vector<2x512xf32>
    %307 = tpu.matmul %304, %216, %cst_83 {dimension_numbers = #tpu.dot_dimension_numbers<[1], [0], [0], [1], [0, 0, 1, 1], [], []>} : vector<2x64xf32>, vector<64x512xf32>, vector<2x512xf32> -> vector<2x512xf32>
    %308 = arith.addf %306, %307 : vector<2x512xf32>
    %309 = vector.extract_strided_slice %308 {offsets = [0, 0], sizes = [2, 64], strides = [1, 1]} : vector<2x512xf32> to vector<2x64xf32>
    %310 = arith.negf %309 : vector<2x64xf32>
    %311 = math.exp %310 : vector<2x64xf32>
    %cst_84 = arith.constant 1.000000e+00 : f32
    %312 = vector.broadcast %cst_84 : f32 to vector<2x64xf32>
    %313 = arith.addf %312, %311 : vector<2x64xf32>
    %314 = arith.divf %312, %313 : vector<2x64xf32>
    %315 = vector.extract_strided_slice %308 {offsets = [0, 128], sizes = [2, 64], strides = [1, 1]} : vector<2x512xf32> to vector<2x64xf32>
    %316 = arith.negf %315 : vector<2x64xf32>
    %317 = math.exp %316 : vector<2x64xf32>
    %cst_85 = arith.constant 1.000000e+00 : f32
    %318 = vector.broadcast %cst_85 : f32 to vector<2x64xf32>
    %319 = arith.addf %318, %317 : vector<2x64xf32>
    %320 = arith.divf %318, %319 : vector<2x64xf32>
    %321 = vector.extract_strided_slice %308 {offsets = [0, 256], sizes = [2, 64], strides = [1, 1]} : vector<2x512xf32> to vector<2x64xf32>
    %322 = arith.negf %321 : vector<2x64xf32>
    %323 = math.exp %322 : vector<2x64xf32>
    %cst_86 = arith.constant 1.000000e+00 : f32
    %324 = vector.broadcast %cst_86 : f32 to vector<2x64xf32>
    %325 = arith.addf %324, %323 : vector<2x64xf32>
    %326 = arith.divf %324, %325 : vector<2x64xf32>
    %327 = vector.extract_strided_slice %308 {offsets = [0, 384], sizes = [2, 64], strides = [1, 1]} : vector<2x512xf32> to vector<2x64xf32>
    %328 = math.tanh %327 : vector<2x64xf32>
    %329 = arith.mulf %320, %302 : vector<2x64xf32>
    %330 = arith.mulf %314, %328 : vector<2x64xf32>
    %331 = arith.addf %329, %330 : vector<2x64xf32>
    %332 = math.tanh %331 : vector<2x64xf32>
    %333 = arith.mulf %326, %332 : vector<2x64xf32>
    %c6_87 = arith.constant 6 : index
    %c0_88 = arith.constant 0 : index
    %334 = vector.load %arg17[%c6_87, %c0_88] : memref<30x64xf32, #tpu.memory_space<vmem>>, vector<2x64xf32>
    tpu.vector_store %arg17[%c6_87, %c0_88], %333 {strides = array<i32>} : memref<30x64xf32, #tpu.memory_space<vmem>>, vector<2x64xf32>,
    %c8_89 = arith.constant 8 : index
    %c0_90 = arith.constant 0 : index
    %335 = vector.load %arg18[%c8_89, %c0_90] : memref<30x512xf32, #tpu.memory_space<vmem>>, vector<2x512xf32>
    %cst_91 = arith.constant dense<0.000000e+00> : vector<2x512xf32>
    %336 = tpu.matmul %333, %216, %cst_91 {dimension_numbers = #tpu.dot_dimension_numbers<[1], [0], [0], [1], [0, 0, 1, 1], [], []>} : vector<2x64xf32>, vector<64x512xf32>, vector<2x512xf32> -> vector<2x512xf32>
    %337 = arith.addf %335, %336 : vector<2x512xf32>
    %338 = vector.extract_strided_slice %337 {offsets = [0, 0], sizes = [2, 64], strides = [1, 1]} : vector<2x512xf32> to vector<2x64xf32>
    %339 = arith.negf %338 : vector<2x64xf32>
    %340 = math.exp %339 : vector<2x64xf32>
    %cst_92 = arith.constant 1.000000e+00 : f32
    %341 = vector.broadcast %cst_92 : f32 to vector<2x64xf32>
    %342 = arith.addf %341, %340 : vector<2x64xf32>
    %343 = arith.divf %341, %342 : vector<2x64xf32>
    %344 = vector.extract_strided_slice %337 {offsets = [0, 128], sizes = [2, 64], strides = [1, 1]} : vector<2x512xf32> to vector<2x64xf32>
    %345 = arith.negf %344 : vector<2x64xf32>
    %346 = math.exp %345 : vector<2x64xf32>
    %cst_93 = arith.constant 1.000000e+00 : f32
    %347 = vector.broadcast %cst_93 : f32 to vector<2x64xf32>
    %348 = arith.addf %347, %346 : vector<2x64xf32>
    %349 = arith.divf %347, %348 : vector<2x64xf32>
    %350 = vector.extract_strided_slice %337 {offsets = [0, 256], sizes = [2, 64], strides = [1, 1]} : vector<2x512xf32> to vector<2x64xf32>
    %351 = arith.negf %350 : vector<2x64xf32>
    %352 = math.exp %351 : vector<2x64xf32>
    %cst_94 = arith.constant 1.000000e+00 : f32
    %353 = vector.broadcast %cst_94 : f32 to vector<2x64xf32>
    %354 = arith.addf %353, %352 : vector<2x64xf32>
    %355 = arith.divf %353, %354 : vector<2x64xf32>
    %356 = vector.extract_strided_slice %337 {offsets = [0, 384], sizes = [2, 64], strides = [1, 1]} : vector<2x512xf32> to vector<2x64xf32>
    %357 = math.tanh %356 : vector<2x64xf32>
    %358 = arith.mulf %349, %331 : vector<2x64xf32>
    %359 = arith.mulf %343, %357 : vector<2x64xf32>
    %360 = arith.addf %358, %359 : vector<2x64xf32>
    %361 = math.tanh %360 : vector<2x64xf32>
    %362 = arith.mulf %355, %361 : vector<2x64xf32>
    %c8_95 = arith.constant 8 : index
    %c0_96 = arith.constant 0 : index
    %363 = vector.load %arg17[%c8_95, %c0_96] : memref<30x64xf32, #tpu.memory_space<vmem>>, vector<2x64xf32>
    tpu.vector_store %arg17[%c8_95, %c0_96], %362 {strides = array<i32>} : memref<30x64xf32, #tpu.memory_space<vmem>>, vector<2x64xf32>,
    %c10_97 = arith.constant 10 : index
    %c0_98 = arith.constant 0 : index
    %364 = vector.load %arg18[%c10_97, %c0_98] : memref<30x512xf32, #tpu.memory_space<vmem>>, vector<2x512xf32>
    %cst_99 = arith.constant dense<0.000000e+00> : vector<2x512xf32>
    %365 = tpu.matmul %362, %216, %cst_99 {dimension_numbers = #tpu.dot_dimension_numbers<[1], [0], [0], [1], [0, 0, 1, 1], [], []>} : vector<2x64xf32>, vector<64x512xf32>, vector<2x512xf32> -> vector<2x512xf32>
    %366 = arith.addf %364, %365 : vector<2x512xf32>
    %367 = vector.extract_strided_slice %366 {offsets = [0, 0], sizes = [2, 64], strides = [1, 1]} : vector<2x512xf32> to vector<2x64xf32>
    %368 = arith.negf %367 : vector<2x64xf32>
    %369 = math.exp %368 : vector<2x64xf32>
    %cst_100 = arith.constant 1.000000e+00 : f32
    %370 = vector.broadcast %cst_100 : f32 to vector<2x64xf32>
    %371 = arith.addf %370, %369 : vector<2x64xf32>
    %372 = arith.divf %370, %371 : vector<2x64xf32>
    %373 = vector.extract_strided_slice %366 {offsets = [0, 128], sizes = [2, 64], strides = [1, 1]} : vector<2x512xf32> to vector<2x64xf32>
    %374 = arith.negf %373 : vector<2x64xf32>
    %375 = math.exp %374 : vector<2x64xf32>
    %cst_101 = arith.constant 1.000000e+00 : f32
    %376 = vector.broadcast %cst_101 : f32 to vector<2x64xf32>
    %377 = arith.addf %376, %375 : vector<2x64xf32>
    %378 = arith.divf %376, %377 : vector<2x64xf32>
    %379 = vector.extract_strided_slice %366 {offsets = [0, 256], sizes = [2, 64], strides = [1, 1]} : vector<2x512xf32> to vector<2x64xf32>
    %380 = arith.negf %379 : vector<2x64xf32>
    %381 = math.exp %380 : vector<2x64xf32>
    %cst_102 = arith.constant 1.000000e+00 : f32
    %382 = vector.broadcast %cst_102 : f32 to vector<2x64xf32>
    %383 = arith.addf %382, %381 : vector<2x64xf32>
    %384 = arith.divf %382, %383 : vector<2x64xf32>
    %385 = vector.extract_strided_slice %366 {offsets = [0, 384], sizes = [2, 64], strides = [1, 1]} : vector<2x512xf32> to vector<2x64xf32>
    %386 = math.tanh %385 : vector<2x64xf32>
    %387 = arith.mulf %378, %360 : vector<2x64xf32>
    %388 = arith.mulf %372, %386 : vector<2x64xf32>
    %389 = arith.addf %387, %388 : vector<2x64xf32>
    %390 = math.tanh %389 : vector<2x64xf32>
    %391 = arith.mulf %384, %390 : vector<2x64xf32>
    %c10_103 = arith.constant 10 : index
    %c0_104 = arith.constant 0 : index
    %392 = vector.load %arg17[%c10_103, %c0_104] : memref<30x64xf32, #tpu.memory_space<vmem>>, vector<2x64xf32>
    tpu.vector_store %arg17[%c10_103, %c0_104], %391 {strides = array<i32>} : memref<30x64xf32, #tpu.memory_space<vmem>>, vector<2x64xf32>,
    %c12_105 = arith.constant 12 : index
    %c0_106 = arith.constant 0 : index
    %393 = vector.load %arg18[%c12_105, %c0_106] : memref<30x512xf32, #tpu.memory_space<vmem>>, vector<2x512xf32>
    %cst_107 = arith.constant dense<0.000000e+00> : vector<2x512xf32>
    %394 = tpu.matmul %391, %216, %cst_107 {dimension_numbers = #tpu.dot_dimension_numbers<[1], [0], [0], [1], [0, 0, 1, 1], [], []>} : vector<2x64xf32>, vector<64x512xf32>, vector<2x512xf32> -> vector<2x512xf32>
    %395 = arith.addf %393, %394 : vector<2x512xf32>
    %396 = vector.extract_strided_slice %395 {offsets = [0, 0], sizes = [2, 64], strides = [1, 1]} : vector<2x512xf32> to vector<2x64xf32>
    %397 = arith.negf %396 : vector<2x64xf32>
    %398 = math.exp %397 : vector<2x64xf32>
    %cst_108 = arith.constant 1.000000e+00 : f32
    %399 = vector.broadcast %cst_108 : f32 to vector<2x64xf32>
    %400 = arith.addf %399, %398 : vector<2x64xf32>
    %401 = arith.divf %399, %400 : vector<2x64xf32>
    %402 = vector.extract_strided_slice %395 {offsets = [0, 128], sizes = [2, 64], strides = [1, 1]} : vector<2x512xf32> to vector<2x64xf32>
    %403 = arith.negf %402 : vector<2x64xf32>
    %404 = math.exp %403 : vector<2x64xf32>
    %cst_109 = arith.constant 1.000000e+00 : f32
    %405 = vector.broadcast %cst_109 : f32 to vector<2x64xf32>
    %406 = arith.addf %405, %404 : vector<2x64xf32>
    %407 = arith.divf %405, %406 : vector<2x64xf32>
    %408 = vector.extract_strided_slice %395 {offsets = [0, 256], sizes = [2, 64], strides = [1, 1]} : vector<2x512xf32> to vector<2x64xf32>
    %409 = arith.negf %408 : vector<2x64xf32>
    %410 = math.exp %409 : vector<2x64xf32>
    %cst_110 = arith.constant 1.000000e+00 : f32
    %411 = vector.broadcast %cst_110 : f32 to vector<2x64xf32>
    %412 = arith.addf %411, %410 : vector<2x64xf32>
    %413 = arith.divf %411, %412 : vector<2x64xf32>
    %414 = vector.extract_strided_slice %395 {offsets = [0, 384], sizes = [2, 64], strides = [1, 1]} : vector<2x512xf32> to vector<2x64xf32>
    %415 = math.tanh %414 : vector<2x64xf32>
    %416 = arith.mulf %407, %389 : vector<2x64xf32>
    %417 = arith.mulf %401, %415 : vector<2x64xf32>
    %418 = arith.addf %416, %417 : vector<2x64xf32>
    %419 = math.tanh %418 : vector<2x64xf32>
    %420 = arith.mulf %413, %419 : vector<2x64xf32>
    %c12_111 = arith.constant 12 : index
    %c0_112 = arith.constant 0 : index
    %421 = vector.load %arg17[%c12_111, %c0_112] : memref<30x64xf32, #tpu.memory_space<vmem>>, vector<2x64xf32>
    tpu.vector_store %arg17[%c12_111, %c0_112], %420 {strides = array<i32>} : memref<30x64xf32, #tpu.memory_space<vmem>>, vector<2x64xf32>,
    %c14_113 = arith.constant 14 : index
    %c0_114 = arith.constant 0 : index
    %422 = vector.load %arg18[%c14_113, %c0_114] : memref<30x512xf32, #tpu.memory_space<vmem>>, vector<2x512xf32>
    %cst_115 = arith.constant dense<0.000000e+00> : vector<2x512xf32>
    %423 = tpu.matmul %420, %216, %cst_115 {dimension_numbers = #tpu.dot_dimension_numbers<[1], [0], [0], [1], [0, 0, 1, 1], [], []>} : vector<2x64xf32>, vector<64x512xf32>, vector<2x512xf32> -> vector<2x512xf32>
    %424 = arith.addf %422, %423 : vector<2x512xf32>
    %425 = vector.extract_strided_slice %424 {offsets = [0, 0], sizes = [2, 64], strides = [1, 1]} : vector<2x512xf32> to vector<2x64xf32>
    %426 = arith.negf %425 : vector<2x64xf32>
    %427 = math.exp %426 : vector<2x64xf32>
    %cst_116 = arith.constant 1.000000e+00 : f32
    %428 = vector.broadcast %cst_116 : f32 to vector<2x64xf32>
    %429 = arith.addf %428, %427 : vector<2x64xf32>
    %430 = arith.divf %428, %429 : vector<2x64xf32>
    %431 = vector.extract_strided_slice %424 {offsets = [0, 128], sizes = [2, 64], strides = [1, 1]} : vector<2x512xf32> to vector<2x64xf32>
    %432 = arith.negf %431 : vector<2x64xf32>
    %433 = math.exp %432 : vector<2x64xf32>
    %cst_117 = arith.constant 1.000000e+00 : f32
    %434 = vector.broadcast %cst_117 : f32 to vector<2x64xf32>
    %435 = arith.addf %434, %433 : vector<2x64xf32>
    %436 = arith.divf %434, %435 : vector<2x64xf32>
    %437 = vector.extract_strided_slice %424 {offsets = [0, 256], sizes = [2, 64], strides = [1, 1]} : vector<2x512xf32> to vector<2x64xf32>
    %438 = arith.negf %437 : vector<2x64xf32>
    %439 = math.exp %438 : vector<2x64xf32>
    %cst_118 = arith.constant 1.000000e+00 : f32
    %440 = vector.broadcast %cst_118 : f32 to vector<2x64xf32>
    %441 = arith.addf %440, %439 : vector<2x64xf32>
    %442 = arith.divf %440, %441 : vector<2x64xf32>
    %443 = vector.extract_strided_slice %424 {offsets = [0, 384], sizes = [2, 64], strides = [1, 1]} : vector<2x512xf32> to vector<2x64xf32>
    %444 = math.tanh %443 : vector<2x64xf32>
    %445 = arith.mulf %436, %418 : vector<2x64xf32>
    %446 = arith.mulf %430, %444 : vector<2x64xf32>
    %447 = arith.addf %445, %446 : vector<2x64xf32>
    %448 = math.tanh %447 : vector<2x64xf32>
    %449 = arith.mulf %442, %448 : vector<2x64xf32>
    %c14_119 = arith.constant 14 : index
    %c0_120 = arith.constant 0 : index
    %450 = vector.load %arg17[%c14_119, %c0_120] : memref<30x64xf32, #tpu.memory_space<vmem>>, vector<2x64xf32>
    tpu.vector_store %arg17[%c14_119, %c0_120], %449 {strides = array<i32>} : memref<30x64xf32, #tpu.memory_space<vmem>>, vector<2x64xf32>,
    %c16_121 = arith.constant 16 : index
    %c0_122 = arith.constant 0 : index
    %451 = vector.load %arg18[%c16_121, %c0_122] : memref<30x512xf32, #tpu.memory_space<vmem>>, vector<2x512xf32>
    %cst_123 = arith.constant dense<0.000000e+00> : vector<2x512xf32>
    %452 = tpu.matmul %449, %216, %cst_123 {dimension_numbers = #tpu.dot_dimension_numbers<[1], [0], [0], [1], [0, 0, 1, 1], [], []>} : vector<2x64xf32>, vector<64x512xf32>, vector<2x512xf32> -> vector<2x512xf32>
    %453 = arith.addf %451, %452 : vector<2x512xf32>
    %454 = vector.extract_strided_slice %453 {offsets = [0, 0], sizes = [2, 64], strides = [1, 1]} : vector<2x512xf32> to vector<2x64xf32>
    %455 = arith.negf %454 : vector<2x64xf32>
    %456 = math.exp %455 : vector<2x64xf32>
    %cst_124 = arith.constant 1.000000e+00 : f32
    %457 = vector.broadcast %cst_124 : f32 to vector<2x64xf32>
    %458 = arith.addf %457, %456 : vector<2x64xf32>
    %459 = arith.divf %457, %458 : vector<2x64xf32>
    %460 = vector.extract_strided_slice %453 {offsets = [0, 128], sizes = [2, 64], strides = [1, 1]} : vector<2x512xf32> to vector<2x64xf32>
    %461 = arith.negf %460 : vector<2x64xf32>
    %462 = math.exp %461 : vector<2x64xf32>
    %cst_125 = arith.constant 1.000000e+00 : f32
    %463 = vector.broadcast %cst_125 : f32 to vector<2x64xf32>
    %464 = arith.addf %463, %462 : vector<2x64xf32>
    %465 = arith.divf %463, %464 : vector<2x64xf32>
    %466 = vector.extract_strided_slice %453 {offsets = [0, 256], sizes = [2, 64], strides = [1, 1]} : vector<2x512xf32> to vector<2x64xf32>
    %467 = arith.negf %466 : vector<2x64xf32>
    %468 = math.exp %467 : vector<2x64xf32>
    %cst_126 = arith.constant 1.000000e+00 : f32
    %469 = vector.broadcast %cst_126 : f32 to vector<2x64xf32>
    %470 = arith.addf %469, %468 : vector<2x64xf32>
    %471 = arith.divf %469, %470 : vector<2x64xf32>
    %472 = vector.extract_strided_slice %453 {offsets = [0, 384], sizes = [2, 64], strides = [1, 1]} : vector<2x512xf32> to vector<2x64xf32>
    %473 = math.tanh %472 : vector<2x64xf32>
    %474 = arith.mulf %465, %447 : vector<2x64xf32>
    %475 = arith.mulf %459, %473 : vector<2x64xf32>
    %476 = arith.addf %474, %475 : vector<2x64xf32>
    %477 = math.tanh %476 : vector<2x64xf32>
    %478 = arith.mulf %471, %477 : vector<2x64xf32>
    %c16_127 = arith.constant 16 : index
    %c0_128 = arith.constant 0 : index
    %479 = vector.load %arg17[%c16_127, %c0_128] : memref<30x64xf32, #tpu.memory_space<vmem>>, vector<2x64xf32>
    tpu.vector_store %arg17[%c16_127, %c0_128], %478 {strides = array<i32>} : memref<30x64xf32, #tpu.memory_space<vmem>>, vector<2x64xf32>,
    %c18_129 = arith.constant 18 : index
    %c0_130 = arith.constant 0 : index
    %480 = vector.load %arg18[%c18_129, %c0_130] : memref<30x512xf32, #tpu.memory_space<vmem>>, vector<2x512xf32>
    %cst_131 = arith.constant dense<0.000000e+00> : vector<2x512xf32>
    %481 = tpu.matmul %478, %216, %cst_131 {dimension_numbers = #tpu.dot_dimension_numbers<[1], [0], [0], [1], [0, 0, 1, 1], [], []>} : vector<2x64xf32>, vector<64x512xf32>, vector<2x512xf32> -> vector<2x512xf32>
    %482 = arith.addf %480, %481 : vector<2x512xf32>
    %483 = vector.extract_strided_slice %482 {offsets = [0, 0], sizes = [2, 64], strides = [1, 1]} : vector<2x512xf32> to vector<2x64xf32>
    %484 = arith.negf %483 : vector<2x64xf32>
    %485 = math.exp %484 : vector<2x64xf32>
    %cst_132 = arith.constant 1.000000e+00 : f32
    %486 = vector.broadcast %cst_132 : f32 to vector<2x64xf32>
    %487 = arith.addf %486, %485 : vector<2x64xf32>
    %488 = arith.divf %486, %487 : vector<2x64xf32>
    %489 = vector.extract_strided_slice %482 {offsets = [0, 128], sizes = [2, 64], strides = [1, 1]} : vector<2x512xf32> to vector<2x64xf32>
    %490 = arith.negf %489 : vector<2x64xf32>
    %491 = math.exp %490 : vector<2x64xf32>
    %cst_133 = arith.constant 1.000000e+00 : f32
    %492 = vector.broadcast %cst_133 : f32 to vector<2x64xf32>
    %493 = arith.addf %492, %491 : vector<2x64xf32>
    %494 = arith.divf %492, %493 : vector<2x64xf32>
    %495 = vector.extract_strided_slice %482 {offsets = [0, 256], sizes = [2, 64], strides = [1, 1]} : vector<2x512xf32> to vector<2x64xf32>
    %496 = arith.negf %495 : vector<2x64xf32>
    %497 = math.exp %496 : vector<2x64xf32>
    %cst_134 = arith.constant 1.000000e+00 : f32
    %498 = vector.broadcast %cst_134 : f32 to vector<2x64xf32>
    %499 = arith.addf %498, %497 : vector<2x64xf32>
    %500 = arith.divf %498, %499 : vector<2x64xf32>
    %501 = vector.extract_strided_slice %482 {offsets = [0, 384], sizes = [2, 64], strides = [1, 1]} : vector<2x512xf32> to vector<2x64xf32>
    %502 = math.tanh %501 : vector<2x64xf32>
    %503 = arith.mulf %494, %476 : vector<2x64xf32>
    %504 = arith.mulf %488, %502 : vector<2x64xf32>
    %505 = arith.addf %503, %504 : vector<2x64xf32>
    %506 = math.tanh %505 : vector<2x64xf32>
    %507 = arith.mulf %500, %506 : vector<2x64xf32>
    %c18_135 = arith.constant 18 : index
    %c0_136 = arith.constant 0 : index
    %508 = vector.load %arg17[%c18_135, %c0_136] : memref<30x64xf32, #tpu.memory_space<vmem>>, vector<2x64xf32>
    tpu.vector_store %arg17[%c18_135, %c0_136], %507 {strides = array<i32>} : memref<30x64xf32, #tpu.memory_space<vmem>>, vector<2x64xf32>,
    %c20_137 = arith.constant 20 : index
    %c0_138 = arith.constant 0 : index
    %509 = vector.load %arg18[%c20_137, %c0_138] : memref<30x512xf32, #tpu.memory_space<vmem>>, vector<2x512xf32>
    %cst_139 = arith.constant dense<0.000000e+00> : vector<2x512xf32>
    %510 = tpu.matmul %507, %216, %cst_139 {dimension_numbers = #tpu.dot_dimension_numbers<[1], [0], [0], [1], [0, 0, 1, 1], [], []>} : vector<2x64xf32>, vector<64x512xf32>, vector<2x512xf32> -> vector<2x512xf32>
    %511 = arith.addf %509, %510 : vector<2x512xf32>
    %512 = vector.extract_strided_slice %511 {offsets = [0, 0], sizes = [2, 64], strides = [1, 1]} : vector<2x512xf32> to vector<2x64xf32>
    %513 = arith.negf %512 : vector<2x64xf32>
    %514 = math.exp %513 : vector<2x64xf32>
    %cst_140 = arith.constant 1.000000e+00 : f32
    %515 = vector.broadcast %cst_140 : f32 to vector<2x64xf32>
    %516 = arith.addf %515, %514 : vector<2x64xf32>
    %517 = arith.divf %515, %516 : vector<2x64xf32>
    %518 = vector.extract_strided_slice %511 {offsets = [0, 128], sizes = [2, 64], strides = [1, 1]} : vector<2x512xf32> to vector<2x64xf32>
    %519 = arith.negf %518 : vector<2x64xf32>
    %520 = math.exp %519 : vector<2x64xf32>
    %cst_141 = arith.constant 1.000000e+00 : f32
    %521 = vector.broadcast %cst_141 : f32 to vector<2x64xf32>
    %522 = arith.addf %521, %520 : vector<2x64xf32>
    %523 = arith.divf %521, %522 : vector<2x64xf32>
    %524 = vector.extract_strided_slice %511 {offsets = [0, 256], sizes = [2, 64], strides = [1, 1]} : vector<2x512xf32> to vector<2x64xf32>
    %525 = arith.negf %524 : vector<2x64xf32>
    %526 = math.exp %525 : vector<2x64xf32>
    %cst_142 = arith.constant 1.000000e+00 : f32
    %527 = vector.broadcast %cst_142 : f32 to vector<2x64xf32>
    %528 = arith.addf %527, %526 : vector<2x64xf32>
    %529 = arith.divf %527, %528 : vector<2x64xf32>
    %530 = vector.extract_strided_slice %511 {offsets = [0, 384], sizes = [2, 64], strides = [1, 1]} : vector<2x512xf32> to vector<2x64xf32>
    %531 = math.tanh %530 : vector<2x64xf32>
    %532 = arith.mulf %523, %505 : vector<2x64xf32>
    %533 = arith.mulf %517, %531 : vector<2x64xf32>
    %534 = arith.addf %532, %533 : vector<2x64xf32>
    %535 = math.tanh %534 : vector<2x64xf32>
    %536 = arith.mulf %529, %535 : vector<2x64xf32>
    %c20_143 = arith.constant 20 : index
    %c0_144 = arith.constant 0 : index
    %537 = vector.load %arg17[%c20_143, %c0_144] : memref<30x64xf32, #tpu.memory_space<vmem>>, vector<2x64xf32>
    tpu.vector_store %arg17[%c20_143, %c0_144], %536 {strides = array<i32>} : memref<30x64xf32, #tpu.memory_space<vmem>>, vector<2x64xf32>,
    %c22_145 = arith.constant 22 : index
    %c0_146 = arith.constant 0 : index
    %538 = vector.load %arg18[%c22_145, %c0_146] : memref<30x512xf32, #tpu.memory_space<vmem>>, vector<2x512xf32>
    %cst_147 = arith.constant dense<0.000000e+00> : vector<2x512xf32>
    %539 = tpu.matmul %536, %216, %cst_147 {dimension_numbers = #tpu.dot_dimension_numbers<[1], [0], [0], [1], [0, 0, 1, 1], [], []>} : vector<2x64xf32>, vector<64x512xf32>, vector<2x512xf32> -> vector<2x512xf32>
    %540 = arith.addf %538, %539 : vector<2x512xf32>
    %541 = vector.extract_strided_slice %540 {offsets = [0, 0], sizes = [2, 64], strides = [1, 1]} : vector<2x512xf32> to vector<2x64xf32>
    %542 = arith.negf %541 : vector<2x64xf32>
    %543 = math.exp %542 : vector<2x64xf32>
    %cst_148 = arith.constant 1.000000e+00 : f32
    %544 = vector.broadcast %cst_148 : f32 to vector<2x64xf32>
    %545 = arith.addf %544, %543 : vector<2x64xf32>
    %546 = arith.divf %544, %545 : vector<2x64xf32>
    %547 = vector.extract_strided_slice %540 {offsets = [0, 128], sizes = [2, 64], strides = [1, 1]} : vector<2x512xf32> to vector<2x64xf32>
    %548 = arith.negf %547 : vector<2x64xf32>
    %549 = math.exp %548 : vector<2x64xf32>
    %cst_149 = arith.constant 1.000000e+00 : f32
    %550 = vector.broadcast %cst_149 : f32 to vector<2x64xf32>
    %551 = arith.addf %550, %549 : vector<2x64xf32>
    %552 = arith.divf %550, %551 : vector<2x64xf32>
    %553 = vector.extract_strided_slice %540 {offsets = [0, 256], sizes = [2, 64], strides = [1, 1]} : vector<2x512xf32> to vector<2x64xf32>
    %554 = arith.negf %553 : vector<2x64xf32>
    %555 = math.exp %554 : vector<2x64xf32>
    %cst_150 = arith.constant 1.000000e+00 : f32
    %556 = vector.broadcast %cst_150 : f32 to vector<2x64xf32>
    %557 = arith.addf %556, %555 : vector<2x64xf32>
    %558 = arith.divf %556, %557 : vector<2x64xf32>
    %559 = vector.extract_strided_slice %540 {offsets = [0, 384], sizes = [2, 64], strides = [1, 1]} : vector<2x512xf32> to vector<2x64xf32>
    %560 = math.tanh %559 : vector<2x64xf32>
    %561 = arith.mulf %552, %534 : vector<2x64xf32>
    %562 = arith.mulf %546, %560 : vector<2x64xf32>
    %563 = arith.addf %561, %562 : vector<2x64xf32>
    %564 = math.tanh %563 : vector<2x64xf32>
    %565 = arith.mulf %558, %564 : vector<2x64xf32>
    %c22_151 = arith.constant 22 : index
    %c0_152 = arith.constant 0 : index
    %566 = vector.load %arg17[%c22_151, %c0_152] : memref<30x64xf32, #tpu.memory_space<vmem>>, vector<2x64xf32>
    tpu.vector_store %arg17[%c22_151, %c0_152], %565 {strides = array<i32>} : memref<30x64xf32, #tpu.memory_space<vmem>>, vector<2x64xf32>,
    %c24_153 = arith.constant 24 : index
    %c0_154 = arith.constant 0 : index
    %567 = vector.load %arg18[%c24_153, %c0_154] : memref<30x512xf32, #tpu.memory_space<vmem>>, vector<2x512xf32>
    %cst_155 = arith.constant dense<0.000000e+00> : vector<2x512xf32>
    %568 = tpu.matmul %565, %216, %cst_155 {dimension_numbers = #tpu.dot_dimension_numbers<[1], [0], [0], [1], [0, 0, 1, 1], [], []>} : vector<2x64xf32>, vector<64x512xf32>, vector<2x512xf32> -> vector<2x512xf32>
    %569 = arith.addf %567, %568 : vector<2x512xf32>
    %570 = vector.extract_strided_slice %569 {offsets = [0, 0], sizes = [2, 64], strides = [1, 1]} : vector<2x512xf32> to vector<2x64xf32>
    %571 = arith.negf %570 : vector<2x64xf32>
    %572 = math.exp %571 : vector<2x64xf32>
    %cst_156 = arith.constant 1.000000e+00 : f32
    %573 = vector.broadcast %cst_156 : f32 to vector<2x64xf32>
    %574 = arith.addf %573, %572 : vector<2x64xf32>
    %575 = arith.divf %573, %574 : vector<2x64xf32>
    %576 = vector.extract_strided_slice %569 {offsets = [0, 128], sizes = [2, 64], strides = [1, 1]} : vector<2x512xf32> to vector<2x64xf32>
    %577 = arith.negf %576 : vector<2x64xf32>
    %578 = math.exp %577 : vector<2x64xf32>
    %cst_157 = arith.constant 1.000000e+00 : f32
    %579 = vector.broadcast %cst_157 : f32 to vector<2x64xf32>
    %580 = arith.addf %579, %578 : vector<2x64xf32>
    %581 = arith.divf %579, %580 : vector<2x64xf32>
    %582 = vector.extract_strided_slice %569 {offsets = [0, 256], sizes = [2, 64], strides = [1, 1]} : vector<2x512xf32> to vector<2x64xf32>
    %583 = arith.negf %582 : vector<2x64xf32>
    %584 = math.exp %583 : vector<2x64xf32>
    %cst_158 = arith.constant 1.000000e+00 : f32
    %585 = vector.broadcast %cst_158 : f32 to vector<2x64xf32>
    %586 = arith.addf %585, %584 : vector<2x64xf32>
    %587 = arith.divf %585, %586 : vector<2x64xf32>
    %588 = vector.extract_strided_slice %569 {offsets = [0, 384], sizes = [2, 64], strides = [1, 1]} : vector<2x512xf32> to vector<2x64xf32>
    %589 = math.tanh %588 : vector<2x64xf32>
    %590 = arith.mulf %581, %563 : vector<2x64xf32>
    %591 = arith.mulf %575, %589 : vector<2x64xf32>
    %592 = arith.addf %590, %591 : vector<2x64xf32>
    %593 = math.tanh %592 : vector<2x64xf32>
    %594 = arith.mulf %587, %593 : vector<2x64xf32>
    %c24_159 = arith.constant 24 : index
    %c0_160 = arith.constant 0 : index
    %595 = vector.load %arg17[%c24_159, %c0_160] : memref<30x64xf32, #tpu.memory_space<vmem>>, vector<2x64xf32>
    tpu.vector_store %arg17[%c24_159, %c0_160], %594 {strides = array<i32>} : memref<30x64xf32, #tpu.memory_space<vmem>>, vector<2x64xf32>,
    %c26_161 = arith.constant 26 : index
    %c0_162 = arith.constant 0 : index
    %596 = vector.load %arg18[%c26_161, %c0_162] : memref<30x512xf32, #tpu.memory_space<vmem>>, vector<2x512xf32>
    %cst_163 = arith.constant dense<0.000000e+00> : vector<2x512xf32>
    %597 = tpu.matmul %594, %216, %cst_163 {dimension_numbers = #tpu.dot_dimension_numbers<[1], [0], [0], [1], [0, 0, 1, 1], [], []>} : vector<2x64xf32>, vector<64x512xf32>, vector<2x512xf32> -> vector<2x512xf32>
    %598 = arith.addf %596, %597 : vector<2x512xf32>
    %599 = vector.extract_strided_slice %598 {offsets = [0, 0], sizes = [2, 64], strides = [1, 1]} : vector<2x512xf32> to vector<2x64xf32>
    %600 = arith.negf %599 : vector<2x64xf32>
    %601 = math.exp %600 : vector<2x64xf32>
    %cst_164 = arith.constant 1.000000e+00 : f32
    %602 = vector.broadcast %cst_164 : f32 to vector<2x64xf32>
    %603 = arith.addf %602, %601 : vector<2x64xf32>
    %604 = arith.divf %602, %603 : vector<2x64xf32>
    %605 = vector.extract_strided_slice %598 {offsets = [0, 128], sizes = [2, 64], strides = [1, 1]} : vector<2x512xf32> to vector<2x64xf32>
    %606 = arith.negf %605 : vector<2x64xf32>
    %607 = math.exp %606 : vector<2x64xf32>
    %cst_165 = arith.constant 1.000000e+00 : f32
    %608 = vector.broadcast %cst_165 : f32 to vector<2x64xf32>
    %609 = arith.addf %608, %607 : vector<2x64xf32>
    %610 = arith.divf %608, %609 : vector<2x64xf32>
    %611 = vector.extract_strided_slice %598 {offsets = [0, 256], sizes = [2, 64], strides = [1, 1]} : vector<2x512xf32> to vector<2x64xf32>
    %612 = arith.negf %611 : vector<2x64xf32>
    %613 = math.exp %612 : vector<2x64xf32>
    %cst_166 = arith.constant 1.000000e+00 : f32
    %614 = vector.broadcast %cst_166 : f32 to vector<2x64xf32>
    %615 = arith.addf %614, %613 : vector<2x64xf32>
    %616 = arith.divf %614, %615 : vector<2x64xf32>
    %617 = vector.extract_strided_slice %598 {offsets = [0, 384], sizes = [2, 64], strides = [1, 1]} : vector<2x512xf32> to vector<2x64xf32>
    %618 = math.tanh %617 : vector<2x64xf32>
    %619 = arith.mulf %610, %592 : vector<2x64xf32>
    %620 = arith.mulf %604, %618 : vector<2x64xf32>
    %621 = arith.addf %619, %620 : vector<2x64xf32>
    %622 = math.tanh %621 : vector<2x64xf32>
    %623 = arith.mulf %616, %622 : vector<2x64xf32>
    %c26_167 = arith.constant 26 : index
    %c0_168 = arith.constant 0 : index
    %624 = vector.load %arg17[%c26_167, %c0_168] : memref<30x64xf32, #tpu.memory_space<vmem>>, vector<2x64xf32>
    tpu.vector_store %arg17[%c26_167, %c0_168], %623 {strides = array<i32>} : memref<30x64xf32, #tpu.memory_space<vmem>>, vector<2x64xf32>,
    %c28_169 = arith.constant 28 : index
    %c0_170 = arith.constant 0 : index
    %625 = vector.load %arg18[%c28_169, %c0_170] : memref<30x512xf32, #tpu.memory_space<vmem>>, vector<2x512xf32>
    %cst_171 = arith.constant dense<0.000000e+00> : vector<2x512xf32>
    %626 = tpu.matmul %623, %216, %cst_171 {dimension_numbers = #tpu.dot_dimension_numbers<[1], [0], [0], [1], [0, 0, 1, 1], [], []>} : vector<2x64xf32>, vector<64x512xf32>, vector<2x512xf32> -> vector<2x512xf32>
    %627 = arith.addf %625, %626 : vector<2x512xf32>
    %628 = vector.extract_strided_slice %627 {offsets = [0, 0], sizes = [2, 64], strides = [1, 1]} : vector<2x512xf32> to vector<2x64xf32>
    %629 = arith.negf %628 : vector<2x64xf32>
    %630 = math.exp %629 : vector<2x64xf32>
    %cst_172 = arith.constant 1.000000e+00 : f32
    %631 = vector.broadcast %cst_172 : f32 to vector<2x64xf32>
    %632 = arith.addf %631, %630 : vector<2x64xf32>
    %633 = arith.divf %631, %632 : vector<2x64xf32>
    %634 = vector.extract_strided_slice %627 {offsets = [0, 128], sizes = [2, 64], strides = [1, 1]} : vector<2x512xf32> to vector<2x64xf32>
    %635 = arith.negf %634 : vector<2x64xf32>
    %636 = math.exp %635 : vector<2x64xf32>
    %cst_173 = arith.constant 1.000000e+00 : f32
    %637 = vector.broadcast %cst_173 : f32 to vector<2x64xf32>
    %638 = arith.addf %637, %636 : vector<2x64xf32>
    %639 = arith.divf %637, %638 : vector<2x64xf32>
    %640 = vector.extract_strided_slice %627 {offsets = [0, 256], sizes = [2, 64], strides = [1, 1]} : vector<2x512xf32> to vector<2x64xf32>
    %641 = arith.negf %640 : vector<2x64xf32>
    %642 = math.exp %641 : vector<2x64xf32>
    %cst_174 = arith.constant 1.000000e+00 : f32
    %643 = vector.broadcast %cst_174 : f32 to vector<2x64xf32>
    %644 = arith.addf %643, %642 : vector<2x64xf32>
    %645 = arith.divf %643, %644 : vector<2x64xf32>
    %646 = vector.extract_strided_slice %627 {offsets = [0, 384], sizes = [2, 64], strides = [1, 1]} : vector<2x512xf32> to vector<2x64xf32>
    %647 = math.tanh %646 : vector<2x64xf32>
    %648 = arith.mulf %639, %621 : vector<2x64xf32>
    %649 = arith.mulf %633, %647 : vector<2x64xf32>
    %650 = arith.addf %648, %649 : vector<2x64xf32>
    %651 = math.tanh %650 : vector<2x64xf32>
    %652 = arith.mulf %645, %651 : vector<2x64xf32>
    %c28_175 = arith.constant 28 : index
    %c0_176 = arith.constant 0 : index
    %653 = vector.load %arg17[%c28_175, %c0_176] : memref<30x64xf32, #tpu.memory_space<vmem>>, vector<2x64xf32>
    tpu.vector_store %arg17[%c28_175, %c0_176], %652 {strides = array<i32>} : memref<30x64xf32, #tpu.memory_space<vmem>>, vector<2x64xf32>,
    %c0_177 = arith.constant 0 : index
    %c0_178 = arith.constant 0 : index
    %654 = vector.load %arg17[%c0_177, %c0_178] : memref<30x64xf32, #tpu.memory_space<vmem>>, vector<30x64xf32>
    %c0_179 = arith.constant 0 : index
    %c0_180 = arith.constant 0 : index
    %655 = vector.load %arg10[%c0_179, %c0_180] : memref<64x512xf32, #tpu.memory_space<vmem>>, vector<64x512xf32>
    %cst_181 = arith.constant dense<0.000000e+00> : vector<30x512xf32>
    %656 = tpu.matmul %654, %655, %cst_181 {dimension_numbers = #tpu.dot_dimension_numbers<[1], [0], [0], [1], [0, 0, 1, 1], [], []>} : vector<30x64xf32>, vector<64x512xf32>, vector<30x512xf32> -> vector<30x512xf32>
    %c0_182 = arith.constant 0 : index
    %c0_183 = arith.constant 0 : index
    %657 = vector.load %arg12[%c0_182, %c0_183] : memref<1x512xf32, #tpu.memory_space<vmem>>, vector<1x512xf32>
    %658 = vector.broadcast %657 : vector<1x512xf32> to vector<30x512xf32>
    %659 = arith.addf %656, %658 : vector<30x512xf32>
    %c0_184 = arith.constant 0 : index
    %c0_185 = arith.constant 0 : index
    %660 = vector.load %arg18[%c0_184, %c0_185] : memref<30x512xf32, #tpu.memory_space<vmem>>, vector<30x512xf32>
    tpu.vector_store %arg18[%c0_184, %c0_185], %659 {strides = array<i32>} : memref<30x512xf32, #tpu.memory_space<vmem>>, vector<30x512xf32>,
    %c0_186 = arith.constant 0 : index
    %c0_187 = arith.constant 0 : index
    %661 = vector.load %arg11[%c0_186, %c0_187] : memref<64x512xf32, #tpu.memory_space<vmem>>, vector<64x512xf32>
    %cst_188 = arith.constant dense<0.000000e+00> : vector<30x512xf32>
    %662 = tpu.matmul %654, %661, %cst_188 {dimension_numbers = #tpu.dot_dimension_numbers<[1], [0], [0], [1], [0, 0, 1, 1], [], []>} : vector<30x64xf32>, vector<64x512xf32>, vector<30x512xf32> -> vector<30x512xf32>
    %c0_189 = arith.constant 0 : index
    %c0_190 = arith.constant 0 : index
    %663 = vector.load %arg19[%c0_189, %c0_190] : memref<30x512xf32, #tpu.memory_space<vmem>>, vector<30x512xf32>
    tpu.vector_store %arg19[%c0_189, %c0_190], %662 {strides = array<i32>} : memref<30x512xf32, #tpu.memory_space<vmem>>, vector<30x512xf32>,
    %c0_191 = arith.constant 0 : index
    %c0_192 = arith.constant 0 : index
    %664 = vector.load %arg13[%c0_191, %c0_192] : memref<64x512xf32, #tpu.memory_space<vmem>>, vector<64x512xf32>
    %cst_193 = arith.constant 0.000000e+00 : f32
    %665 = vector.broadcast %cst_193 : f32 to vector<2x64xf32>
    %cst_194 = arith.constant 0.000000e+00 : f32
    %666 = vector.broadcast %cst_194 : f32 to vector<2x64xf32>
    %c0_195 = arith.constant 0 : index
    %c0_196 = arith.constant 0 : index
    %667 = vector.load %arg18[%c0_195, %c0_196] : memref<30x512xf32, #tpu.memory_space<vmem>>, vector<2x512xf32>
    %c28_197 = arith.constant 28 : index
    %c0_198 = arith.constant 0 : index
    %668 = vector.load %arg19[%c28_197, %c0_198] : memref<30x512xf32, #tpu.memory_space<vmem>>, vector<2x512xf32>
    %669 = arith.addf %667, %668 : vector<2x512xf32>
    %cst_199 = arith.constant dense<0.000000e+00> : vector<2x512xf32>
    %670 = tpu.matmul %665, %664, %cst_199 {dimension_numbers = #tpu.dot_dimension_numbers<[1], [0], [0], [1], [0, 0, 1, 1], [], []>} : vector<2x64xf32>, vector<64x512xf32>, vector<2x512xf32> -> vector<2x512xf32>
    %671 = arith.addf %669, %670 : vector<2x512xf32>
    %672 = vector.extract_strided_slice %671 {offsets = [0, 0], sizes = [2, 64], strides = [1, 1]} : vector<2x512xf32> to vector<2x64xf32>
    %673 = arith.negf %672 : vector<2x64xf32>
    %674 = math.exp %673 : vector<2x64xf32>
    %cst_200 = arith.constant 1.000000e+00 : f32
    %675 = vector.broadcast %cst_200 : f32 to vector<2x64xf32>
    %676 = arith.addf %675, %674 : vector<2x64xf32>
    %677 = arith.divf %675, %676 : vector<2x64xf32>
    %678 = vector.extract_strided_slice %671 {offsets = [0, 128], sizes = [2, 64], strides = [1, 1]} : vector<2x512xf32> to vector<2x64xf32>
    %679 = arith.negf %678 : vector<2x64xf32>
    %680 = math.exp %679 : vector<2x64xf32>
    %cst_201 = arith.constant 1.000000e+00 : f32
    %681 = vector.broadcast %cst_201 : f32 to vector<2x64xf32>
    %682 = arith.addf %681, %680 : vector<2x64xf32>
    %683 = arith.divf %681, %682 : vector<2x64xf32>
    %684 = vector.extract_strided_slice %671 {offsets = [0, 256], sizes = [2, 64], strides = [1, 1]} : vector<2x512xf32> to vector<2x64xf32>
    %685 = arith.negf %684 : vector<2x64xf32>
    %686 = math.exp %685 : vector<2x64xf32>
    %cst_202 = arith.constant 1.000000e+00 : f32
    %687 = vector.broadcast %cst_202 : f32 to vector<2x64xf32>
    %688 = arith.addf %687, %686 : vector<2x64xf32>
    %689 = arith.divf %687, %688 : vector<2x64xf32>
    %690 = vector.extract_strided_slice %671 {offsets = [0, 384], sizes = [2, 64], strides = [1, 1]} : vector<2x512xf32> to vector<2x64xf32>
    %691 = math.tanh %690 : vector<2x64xf32>
    %692 = arith.mulf %683, %666 : vector<2x64xf32>
    %693 = arith.mulf %677, %691 : vector<2x64xf32>
    %694 = arith.addf %692, %693 : vector<2x64xf32>
    %695 = math.tanh %694 : vector<2x64xf32>
    %696 = arith.mulf %689, %695 : vector<2x64xf32>
    %c2_203 = arith.constant 2 : index
    %c0_204 = arith.constant 0 : index
    %697 = vector.load %arg18[%c2_203, %c0_204] : memref<30x512xf32, #tpu.memory_space<vmem>>, vector<2x512xf32>
    %c26_205 = arith.constant 26 : index
    %c0_206 = arith.constant 0 : index
    %698 = vector.load %arg19[%c26_205, %c0_206] : memref<30x512xf32, #tpu.memory_space<vmem>>, vector<2x512xf32>
    %699 = arith.addf %697, %698 : vector<2x512xf32>
    %cst_207 = arith.constant dense<0.000000e+00> : vector<2x512xf32>
    %700 = tpu.matmul %696, %664, %cst_207 {dimension_numbers = #tpu.dot_dimension_numbers<[1], [0], [0], [1], [0, 0, 1, 1], [], []>} : vector<2x64xf32>, vector<64x512xf32>, vector<2x512xf32> -> vector<2x512xf32>
    %701 = arith.addf %699, %700 : vector<2x512xf32>
    %702 = vector.extract_strided_slice %701 {offsets = [0, 0], sizes = [2, 64], strides = [1, 1]} : vector<2x512xf32> to vector<2x64xf32>
    %703 = arith.negf %702 : vector<2x64xf32>
    %704 = math.exp %703 : vector<2x64xf32>
    %cst_208 = arith.constant 1.000000e+00 : f32
    %705 = vector.broadcast %cst_208 : f32 to vector<2x64xf32>
    %706 = arith.addf %705, %704 : vector<2x64xf32>
    %707 = arith.divf %705, %706 : vector<2x64xf32>
    %708 = vector.extract_strided_slice %701 {offsets = [0, 128], sizes = [2, 64], strides = [1, 1]} : vector<2x512xf32> to vector<2x64xf32>
    %709 = arith.negf %708 : vector<2x64xf32>
    %710 = math.exp %709 : vector<2x64xf32>
    %cst_209 = arith.constant 1.000000e+00 : f32
    %711 = vector.broadcast %cst_209 : f32 to vector<2x64xf32>
    %712 = arith.addf %711, %710 : vector<2x64xf32>
    %713 = arith.divf %711, %712 : vector<2x64xf32>
    %714 = vector.extract_strided_slice %701 {offsets = [0, 256], sizes = [2, 64], strides = [1, 1]} : vector<2x512xf32> to vector<2x64xf32>
    %715 = arith.negf %714 : vector<2x64xf32>
    %716 = math.exp %715 : vector<2x64xf32>
    %cst_210 = arith.constant 1.000000e+00 : f32
    %717 = vector.broadcast %cst_210 : f32 to vector<2x64xf32>
    %718 = arith.addf %717, %716 : vector<2x64xf32>
    %719 = arith.divf %717, %718 : vector<2x64xf32>
    %720 = vector.extract_strided_slice %701 {offsets = [0, 384], sizes = [2, 64], strides = [1, 1]} : vector<2x512xf32> to vector<2x64xf32>
    %721 = math.tanh %720 : vector<2x64xf32>
    %722 = arith.mulf %713, %694 : vector<2x64xf32>
    %723 = arith.mulf %707, %721 : vector<2x64xf32>
    %724 = arith.addf %722, %723 : vector<2x64xf32>
    %725 = math.tanh %724 : vector<2x64xf32>
    %726 = arith.mulf %719, %725 : vector<2x64xf32>
    %c4_211 = arith.constant 4 : index
    %c0_212 = arith.constant 0 : index
    %727 = vector.load %arg18[%c4_211, %c0_212] : memref<30x512xf32, #tpu.memory_space<vmem>>, vector<2x512xf32>
    %c24_213 = arith.constant 24 : index
    %c0_214 = arith.constant 0 : index
    %728 = vector.load %arg19[%c24_213, %c0_214] : memref<30x512xf32, #tpu.memory_space<vmem>>, vector<2x512xf32>
    %729 = arith.addf %727, %728 : vector<2x512xf32>
    %cst_215 = arith.constant dense<0.000000e+00> : vector<2x512xf32>
    %730 = tpu.matmul %726, %664, %cst_215 {dimension_numbers = #tpu.dot_dimension_numbers<[1], [0], [0], [1], [0, 0, 1, 1], [], []>} : vector<2x64xf32>, vector<64x512xf32>, vector<2x512xf32> -> vector<2x512xf32>
    %731 = arith.addf %729, %730 : vector<2x512xf32>
    %732 = vector.extract_strided_slice %731 {offsets = [0, 0], sizes = [2, 64], strides = [1, 1]} : vector<2x512xf32> to vector<2x64xf32>
    %733 = arith.negf %732 : vector<2x64xf32>
    %734 = math.exp %733 : vector<2x64xf32>
    %cst_216 = arith.constant 1.000000e+00 : f32
    %735 = vector.broadcast %cst_216 : f32 to vector<2x64xf32>
    %736 = arith.addf %735, %734 : vector<2x64xf32>
    %737 = arith.divf %735, %736 : vector<2x64xf32>
    %738 = vector.extract_strided_slice %731 {offsets = [0, 128], sizes = [2, 64], strides = [1, 1]} : vector<2x512xf32> to vector<2x64xf32>
    %739 = arith.negf %738 : vector<2x64xf32>
    %740 = math.exp %739 : vector<2x64xf32>
    %cst_217 = arith.constant 1.000000e+00 : f32
    %741 = vector.broadcast %cst_217 : f32 to vector<2x64xf32>
    %742 = arith.addf %741, %740 : vector<2x64xf32>
    %743 = arith.divf %741, %742 : vector<2x64xf32>
    %744 = vector.extract_strided_slice %731 {offsets = [0, 256], sizes = [2, 64], strides = [1, 1]} : vector<2x512xf32> to vector<2x64xf32>
    %745 = arith.negf %744 : vector<2x64xf32>
    %746 = math.exp %745 : vector<2x64xf32>
    %cst_218 = arith.constant 1.000000e+00 : f32
    %747 = vector.broadcast %cst_218 : f32 to vector<2x64xf32>
    %748 = arith.addf %747, %746 : vector<2x64xf32>
    %749 = arith.divf %747, %748 : vector<2x64xf32>
    %750 = vector.extract_strided_slice %731 {offsets = [0, 384], sizes = [2, 64], strides = [1, 1]} : vector<2x512xf32> to vector<2x64xf32>
    %751 = math.tanh %750 : vector<2x64xf32>
    %752 = arith.mulf %743, %724 : vector<2x64xf32>
    %753 = arith.mulf %737, %751 : vector<2x64xf32>
    %754 = arith.addf %752, %753 : vector<2x64xf32>
    %755 = math.tanh %754 : vector<2x64xf32>
    %756 = arith.mulf %749, %755 : vector<2x64xf32>
    %c6_219 = arith.constant 6 : index
    %c0_220 = arith.constant 0 : index
    %757 = vector.load %arg18[%c6_219, %c0_220] : memref<30x512xf32, #tpu.memory_space<vmem>>, vector<2x512xf32>
    %c22_221 = arith.constant 22 : index
    %c0_222 = arith.constant 0 : index
    %758 = vector.load %arg19[%c22_221, %c0_222] : memref<30x512xf32, #tpu.memory_space<vmem>>, vector<2x512xf32>
    %759 = arith.addf %757, %758 : vector<2x512xf32>
    %cst_223 = arith.constant dense<0.000000e+00> : vector<2x512xf32>
    %760 = tpu.matmul %756, %664, %cst_223 {dimension_numbers = #tpu.dot_dimension_numbers<[1], [0], [0], [1], [0, 0, 1, 1], [], []>} : vector<2x64xf32>, vector<64x512xf32>, vector<2x512xf32> -> vector<2x512xf32>
    %761 = arith.addf %759, %760 : vector<2x512xf32>
    %762 = vector.extract_strided_slice %761 {offsets = [0, 0], sizes = [2, 64], strides = [1, 1]} : vector<2x512xf32> to vector<2x64xf32>
    %763 = arith.negf %762 : vector<2x64xf32>
    %764 = math.exp %763 : vector<2x64xf32>
    %cst_224 = arith.constant 1.000000e+00 : f32
    %765 = vector.broadcast %cst_224 : f32 to vector<2x64xf32>
    %766 = arith.addf %765, %764 : vector<2x64xf32>
    %767 = arith.divf %765, %766 : vector<2x64xf32>
    %768 = vector.extract_strided_slice %761 {offsets = [0, 128], sizes = [2, 64], strides = [1, 1]} : vector<2x512xf32> to vector<2x64xf32>
    %769 = arith.negf %768 : vector<2x64xf32>
    %770 = math.exp %769 : vector<2x64xf32>
    %cst_225 = arith.constant 1.000000e+00 : f32
    %771 = vector.broadcast %cst_225 : f32 to vector<2x64xf32>
    %772 = arith.addf %771, %770 : vector<2x64xf32>
    %773 = arith.divf %771, %772 : vector<2x64xf32>
    %774 = vector.extract_strided_slice %761 {offsets = [0, 256], sizes = [2, 64], strides = [1, 1]} : vector<2x512xf32> to vector<2x64xf32>
    %775 = arith.negf %774 : vector<2x64xf32>
    %776 = math.exp %775 : vector<2x64xf32>
    %cst_226 = arith.constant 1.000000e+00 : f32
    %777 = vector.broadcast %cst_226 : f32 to vector<2x64xf32>
    %778 = arith.addf %777, %776 : vector<2x64xf32>
    %779 = arith.divf %777, %778 : vector<2x64xf32>
    %780 = vector.extract_strided_slice %761 {offsets = [0, 384], sizes = [2, 64], strides = [1, 1]} : vector<2x512xf32> to vector<2x64xf32>
    %781 = math.tanh %780 : vector<2x64xf32>
    %782 = arith.mulf %773, %754 : vector<2x64xf32>
    %783 = arith.mulf %767, %781 : vector<2x64xf32>
    %784 = arith.addf %782, %783 : vector<2x64xf32>
    %785 = math.tanh %784 : vector<2x64xf32>
    %786 = arith.mulf %779, %785 : vector<2x64xf32>
    %c8_227 = arith.constant 8 : index
    %c0_228 = arith.constant 0 : index
    %787 = vector.load %arg18[%c8_227, %c0_228] : memref<30x512xf32, #tpu.memory_space<vmem>>, vector<2x512xf32>
    %c20_229 = arith.constant 20 : index
    %c0_230 = arith.constant 0 : index
    %788 = vector.load %arg19[%c20_229, %c0_230] : memref<30x512xf32, #tpu.memory_space<vmem>>, vector<2x512xf32>
    %789 = arith.addf %787, %788 : vector<2x512xf32>
    %cst_231 = arith.constant dense<0.000000e+00> : vector<2x512xf32>
    %790 = tpu.matmul %786, %664, %cst_231 {dimension_numbers = #tpu.dot_dimension_numbers<[1], [0], [0], [1], [0, 0, 1, 1], [], []>} : vector<2x64xf32>, vector<64x512xf32>, vector<2x512xf32> -> vector<2x512xf32>
    %791 = arith.addf %789, %790 : vector<2x512xf32>
    %792 = vector.extract_strided_slice %791 {offsets = [0, 0], sizes = [2, 64], strides = [1, 1]} : vector<2x512xf32> to vector<2x64xf32>
    %793 = arith.negf %792 : vector<2x64xf32>
    %794 = math.exp %793 : vector<2x64xf32>
    %cst_232 = arith.constant 1.000000e+00 : f32
    %795 = vector.broadcast %cst_232 : f32 to vector<2x64xf32>
    %796 = arith.addf %795, %794 : vector<2x64xf32>
    %797 = arith.divf %795, %796 : vector<2x64xf32>
    %798 = vector.extract_strided_slice %791 {offsets = [0, 128], sizes = [2, 64], strides = [1, 1]} : vector<2x512xf32> to vector<2x64xf32>
    %799 = arith.negf %798 : vector<2x64xf32>
    %800 = math.exp %799 : vector<2x64xf32>
    %cst_233 = arith.constant 1.000000e+00 : f32
    %801 = vector.broadcast %cst_233 : f32 to vector<2x64xf32>
    %802 = arith.addf %801, %800 : vector<2x64xf32>
    %803 = arith.divf %801, %802 : vector<2x64xf32>
    %804 = vector.extract_strided_slice %791 {offsets = [0, 256], sizes = [2, 64], strides = [1, 1]} : vector<2x512xf32> to vector<2x64xf32>
    %805 = arith.negf %804 : vector<2x64xf32>
    %806 = math.exp %805 : vector<2x64xf32>
    %cst_234 = arith.constant 1.000000e+00 : f32
    %807 = vector.broadcast %cst_234 : f32 to vector<2x64xf32>
    %808 = arith.addf %807, %806 : vector<2x64xf32>
    %809 = arith.divf %807, %808 : vector<2x64xf32>
    %810 = vector.extract_strided_slice %791 {offsets = [0, 384], sizes = [2, 64], strides = [1, 1]} : vector<2x512xf32> to vector<2x64xf32>
    %811 = math.tanh %810 : vector<2x64xf32>
    %812 = arith.mulf %803, %784 : vector<2x64xf32>
    %813 = arith.mulf %797, %811 : vector<2x64xf32>
    %814 = arith.addf %812, %813 : vector<2x64xf32>
    %815 = math.tanh %814 : vector<2x64xf32>
    %816 = arith.mulf %809, %815 : vector<2x64xf32>
    %c10_235 = arith.constant 10 : index
    %c0_236 = arith.constant 0 : index
    %817 = vector.load %arg18[%c10_235, %c0_236] : memref<30x512xf32, #tpu.memory_space<vmem>>, vector<2x512xf32>
    %c18_237 = arith.constant 18 : index
    %c0_238 = arith.constant 0 : index
    %818 = vector.load %arg19[%c18_237, %c0_238] : memref<30x512xf32, #tpu.memory_space<vmem>>, vector<2x512xf32>
    %819 = arith.addf %817, %818 : vector<2x512xf32>
    %cst_239 = arith.constant dense<0.000000e+00> : vector<2x512xf32>
    %820 = tpu.matmul %816, %664, %cst_239 {dimension_numbers = #tpu.dot_dimension_numbers<[1], [0], [0], [1], [0, 0, 1, 1], [], []>} : vector<2x64xf32>, vector<64x512xf32>, vector<2x512xf32> -> vector<2x512xf32>
    %821 = arith.addf %819, %820 : vector<2x512xf32>
    %822 = vector.extract_strided_slice %821 {offsets = [0, 0], sizes = [2, 64], strides = [1, 1]} : vector<2x512xf32> to vector<2x64xf32>
    %823 = arith.negf %822 : vector<2x64xf32>
    %824 = math.exp %823 : vector<2x64xf32>
    %cst_240 = arith.constant 1.000000e+00 : f32
    %825 = vector.broadcast %cst_240 : f32 to vector<2x64xf32>
    %826 = arith.addf %825, %824 : vector<2x64xf32>
    %827 = arith.divf %825, %826 : vector<2x64xf32>
    %828 = vector.extract_strided_slice %821 {offsets = [0, 128], sizes = [2, 64], strides = [1, 1]} : vector<2x512xf32> to vector<2x64xf32>
    %829 = arith.negf %828 : vector<2x64xf32>
    %830 = math.exp %829 : vector<2x64xf32>
    %cst_241 = arith.constant 1.000000e+00 : f32
    %831 = vector.broadcast %cst_241 : f32 to vector<2x64xf32>
    %832 = arith.addf %831, %830 : vector<2x64xf32>
    %833 = arith.divf %831, %832 : vector<2x64xf32>
    %834 = vector.extract_strided_slice %821 {offsets = [0, 256], sizes = [2, 64], strides = [1, 1]} : vector<2x512xf32> to vector<2x64xf32>
    %835 = arith.negf %834 : vector<2x64xf32>
    %836 = math.exp %835 : vector<2x64xf32>
    %cst_242 = arith.constant 1.000000e+00 : f32
    %837 = vector.broadcast %cst_242 : f32 to vector<2x64xf32>
    %838 = arith.addf %837, %836 : vector<2x64xf32>
    %839 = arith.divf %837, %838 : vector<2x64xf32>
    %840 = vector.extract_strided_slice %821 {offsets = [0, 384], sizes = [2, 64], strides = [1, 1]} : vector<2x512xf32> to vector<2x64xf32>
    %841 = math.tanh %840 : vector<2x64xf32>
    %842 = arith.mulf %833, %814 : vector<2x64xf32>
    %843 = arith.mulf %827, %841 : vector<2x64xf32>
    %844 = arith.addf %842, %843 : vector<2x64xf32>
    %845 = math.tanh %844 : vector<2x64xf32>
    %846 = arith.mulf %839, %845 : vector<2x64xf32>
    %c12_243 = arith.constant 12 : index
    %c0_244 = arith.constant 0 : index
    %847 = vector.load %arg18[%c12_243, %c0_244] : memref<30x512xf32, #tpu.memory_space<vmem>>, vector<2x512xf32>
    %c16_245 = arith.constant 16 : index
    %c0_246 = arith.constant 0 : index
    %848 = vector.load %arg19[%c16_245, %c0_246] : memref<30x512xf32, #tpu.memory_space<vmem>>, vector<2x512xf32>
    %849 = arith.addf %847, %848 : vector<2x512xf32>
    %cst_247 = arith.constant dense<0.000000e+00> : vector<2x512xf32>
    %850 = tpu.matmul %846, %664, %cst_247 {dimension_numbers = #tpu.dot_dimension_numbers<[1], [0], [0], [1], [0, 0, 1, 1], [], []>} : vector<2x64xf32>, vector<64x512xf32>, vector<2x512xf32> -> vector<2x512xf32>
    %851 = arith.addf %849, %850 : vector<2x512xf32>
    %852 = vector.extract_strided_slice %851 {offsets = [0, 0], sizes = [2, 64], strides = [1, 1]} : vector<2x512xf32> to vector<2x64xf32>
    %853 = arith.negf %852 : vector<2x64xf32>
    %854 = math.exp %853 : vector<2x64xf32>
    %cst_248 = arith.constant 1.000000e+00 : f32
    %855 = vector.broadcast %cst_248 : f32 to vector<2x64xf32>
    %856 = arith.addf %855, %854 : vector<2x64xf32>
    %857 = arith.divf %855, %856 : vector<2x64xf32>
    %858 = vector.extract_strided_slice %851 {offsets = [0, 128], sizes = [2, 64], strides = [1, 1]} : vector<2x512xf32> to vector<2x64xf32>
    %859 = arith.negf %858 : vector<2x64xf32>
    %860 = math.exp %859 : vector<2x64xf32>
    %cst_249 = arith.constant 1.000000e+00 : f32
    %861 = vector.broadcast %cst_249 : f32 to vector<2x64xf32>
    %862 = arith.addf %861, %860 : vector<2x64xf32>
    %863 = arith.divf %861, %862 : vector<2x64xf32>
    %864 = vector.extract_strided_slice %851 {offsets = [0, 256], sizes = [2, 64], strides = [1, 1]} : vector<2x512xf32> to vector<2x64xf32>
    %865 = arith.negf %864 : vector<2x64xf32>
    %866 = math.exp %865 : vector<2x64xf32>
    %cst_250 = arith.constant 1.000000e+00 : f32
    %867 = vector.broadcast %cst_250 : f32 to vector<2x64xf32>
    %868 = arith.addf %867, %866 : vector<2x64xf32>
    %869 = arith.divf %867, %868 : vector<2x64xf32>
    %870 = vector.extract_strided_slice %851 {offsets = [0, 384], sizes = [2, 64], strides = [1, 1]} : vector<2x512xf32> to vector<2x64xf32>
    %871 = math.tanh %870 : vector<2x64xf32>
    %872 = arith.mulf %863, %844 : vector<2x64xf32>
    %873 = arith.mulf %857, %871 : vector<2x64xf32>
    %874 = arith.addf %872, %873 : vector<2x64xf32>
    %875 = math.tanh %874 : vector<2x64xf32>
    %876 = arith.mulf %869, %875 : vector<2x64xf32>
    %c14_251 = arith.constant 14 : index
    %c0_252 = arith.constant 0 : index
    %877 = vector.load %arg18[%c14_251, %c0_252] : memref<30x512xf32, #tpu.memory_space<vmem>>, vector<2x512xf32>
    %c14_253 = arith.constant 14 : index
    %c0_254 = arith.constant 0 : index
    %878 = vector.load %arg19[%c14_253, %c0_254] : memref<30x512xf32, #tpu.memory_space<vmem>>, vector<2x512xf32>
    %879 = arith.addf %877, %878 : vector<2x512xf32>
    %cst_255 = arith.constant dense<0.000000e+00> : vector<2x512xf32>
    %880 = tpu.matmul %876, %664, %cst_255 {dimension_numbers = #tpu.dot_dimension_numbers<[1], [0], [0], [1], [0, 0, 1, 1], [], []>} : vector<2x64xf32>, vector<64x512xf32>, vector<2x512xf32> -> vector<2x512xf32>
    %881 = arith.addf %879, %880 : vector<2x512xf32>
    %882 = vector.extract_strided_slice %881 {offsets = [0, 0], sizes = [2, 64], strides = [1, 1]} : vector<2x512xf32> to vector<2x64xf32>
    %883 = arith.negf %882 : vector<2x64xf32>
    %884 = math.exp %883 : vector<2x64xf32>
    %cst_256 = arith.constant 1.000000e+00 : f32
    %885 = vector.broadcast %cst_256 : f32 to vector<2x64xf32>
    %886 = arith.addf %885, %884 : vector<2x64xf32>
    %887 = arith.divf %885, %886 : vector<2x64xf32>
    %888 = vector.extract_strided_slice %881 {offsets = [0, 128], sizes = [2, 64], strides = [1, 1]} : vector<2x512xf32> to vector<2x64xf32>
    %889 = arith.negf %888 : vector<2x64xf32>
    %890 = math.exp %889 : vector<2x64xf32>
    %cst_257 = arith.constant 1.000000e+00 : f32
    %891 = vector.broadcast %cst_257 : f32 to vector<2x64xf32>
    %892 = arith.addf %891, %890 : vector<2x64xf32>
    %893 = arith.divf %891, %892 : vector<2x64xf32>
    %894 = vector.extract_strided_slice %881 {offsets = [0, 256], sizes = [2, 64], strides = [1, 1]} : vector<2x512xf32> to vector<2x64xf32>
    %895 = arith.negf %894 : vector<2x64xf32>
    %896 = math.exp %895 : vector<2x64xf32>
    %cst_258 = arith.constant 1.000000e+00 : f32
    %897 = vector.broadcast %cst_258 : f32 to vector<2x64xf32>
    %898 = arith.addf %897, %896 : vector<2x64xf32>
    %899 = arith.divf %897, %898 : vector<2x64xf32>
    %900 = vector.extract_strided_slice %881 {offsets = [0, 384], sizes = [2, 64], strides = [1, 1]} : vector<2x512xf32> to vector<2x64xf32>
    %901 = math.tanh %900 : vector<2x64xf32>
    %902 = arith.mulf %893, %874 : vector<2x64xf32>
    %903 = arith.mulf %887, %901 : vector<2x64xf32>
    %904 = arith.addf %902, %903 : vector<2x64xf32>
    %905 = math.tanh %904 : vector<2x64xf32>
    %906 = arith.mulf %899, %905 : vector<2x64xf32>
    %c16_259 = arith.constant 16 : index
    %c0_260 = arith.constant 0 : index
    %907 = vector.load %arg18[%c16_259, %c0_260] : memref<30x512xf32, #tpu.memory_space<vmem>>, vector<2x512xf32>
    %c12_261 = arith.constant 12 : index
    %c0_262 = arith.constant 0 : index
    %908 = vector.load %arg19[%c12_261, %c0_262] : memref<30x512xf32, #tpu.memory_space<vmem>>, vector<2x512xf32>
    %909 = arith.addf %907, %908 : vector<2x512xf32>
    %cst_263 = arith.constant dense<0.000000e+00> : vector<2x512xf32>
    %910 = tpu.matmul %906, %664, %cst_263 {dimension_numbers = #tpu.dot_dimension_numbers<[1], [0], [0], [1], [0, 0, 1, 1], [], []>} : vector<2x64xf32>, vector<64x512xf32>, vector<2x512xf32> -> vector<2x512xf32>
    %911 = arith.addf %909, %910 : vector<2x512xf32>
    %912 = vector.extract_strided_slice %911 {offsets = [0, 0], sizes = [2, 64], strides = [1, 1]} : vector<2x512xf32> to vector<2x64xf32>
    %913 = arith.negf %912 : vector<2x64xf32>
    %914 = math.exp %913 : vector<2x64xf32>
    %cst_264 = arith.constant 1.000000e+00 : f32
    %915 = vector.broadcast %cst_264 : f32 to vector<2x64xf32>
    %916 = arith.addf %915, %914 : vector<2x64xf32>
    %917 = arith.divf %915, %916 : vector<2x64xf32>
    %918 = vector.extract_strided_slice %911 {offsets = [0, 128], sizes = [2, 64], strides = [1, 1]} : vector<2x512xf32> to vector<2x64xf32>
    %919 = arith.negf %918 : vector<2x64xf32>
    %920 = math.exp %919 : vector<2x64xf32>
    %cst_265 = arith.constant 1.000000e+00 : f32
    %921 = vector.broadcast %cst_265 : f32 to vector<2x64xf32>
    %922 = arith.addf %921, %920 : vector<2x64xf32>
    %923 = arith.divf %921, %922 : vector<2x64xf32>
    %924 = vector.extract_strided_slice %911 {offsets = [0, 256], sizes = [2, 64], strides = [1, 1]} : vector<2x512xf32> to vector<2x64xf32>
    %925 = arith.negf %924 : vector<2x64xf32>
    %926 = math.exp %925 : vector<2x64xf32>
    %cst_266 = arith.constant 1.000000e+00 : f32
    %927 = vector.broadcast %cst_266 : f32 to vector<2x64xf32>
    %928 = arith.addf %927, %926 : vector<2x64xf32>
    %929 = arith.divf %927, %928 : vector<2x64xf32>
    %930 = vector.extract_strided_slice %911 {offsets = [0, 384], sizes = [2, 64], strides = [1, 1]} : vector<2x512xf32> to vector<2x64xf32>
    %931 = math.tanh %930 : vector<2x64xf32>
    %932 = arith.mulf %923, %904 : vector<2x64xf32>
    %933 = arith.mulf %917, %931 : vector<2x64xf32>
    %934 = arith.addf %932, %933 : vector<2x64xf32>
    %935 = math.tanh %934 : vector<2x64xf32>
    %936 = arith.mulf %929, %935 : vector<2x64xf32>
    %c18_267 = arith.constant 18 : index
    %c0_268 = arith.constant 0 : index
    %937 = vector.load %arg18[%c18_267, %c0_268] : memref<30x512xf32, #tpu.memory_space<vmem>>, vector<2x512xf32>
    %c10_269 = arith.constant 10 : index
    %c0_270 = arith.constant 0 : index
    %938 = vector.load %arg19[%c10_269, %c0_270] : memref<30x512xf32, #tpu.memory_space<vmem>>, vector<2x512xf32>
    %939 = arith.addf %937, %938 : vector<2x512xf32>
    %cst_271 = arith.constant dense<0.000000e+00> : vector<2x512xf32>
    %940 = tpu.matmul %936, %664, %cst_271 {dimension_numbers = #tpu.dot_dimension_numbers<[1], [0], [0], [1], [0, 0, 1, 1], [], []>} : vector<2x64xf32>, vector<64x512xf32>, vector<2x512xf32> -> vector<2x512xf32>
    %941 = arith.addf %939, %940 : vector<2x512xf32>
    %942 = vector.extract_strided_slice %941 {offsets = [0, 0], sizes = [2, 64], strides = [1, 1]} : vector<2x512xf32> to vector<2x64xf32>
    %943 = arith.negf %942 : vector<2x64xf32>
    %944 = math.exp %943 : vector<2x64xf32>
    %cst_272 = arith.constant 1.000000e+00 : f32
    %945 = vector.broadcast %cst_272 : f32 to vector<2x64xf32>
    %946 = arith.addf %945, %944 : vector<2x64xf32>
    %947 = arith.divf %945, %946 : vector<2x64xf32>
    %948 = vector.extract_strided_slice %941 {offsets = [0, 128], sizes = [2, 64], strides = [1, 1]} : vector<2x512xf32> to vector<2x64xf32>
    %949 = arith.negf %948 : vector<2x64xf32>
    %950 = math.exp %949 : vector<2x64xf32>
    %cst_273 = arith.constant 1.000000e+00 : f32
    %951 = vector.broadcast %cst_273 : f32 to vector<2x64xf32>
    %952 = arith.addf %951, %950 : vector<2x64xf32>
    %953 = arith.divf %951, %952 : vector<2x64xf32>
    %954 = vector.extract_strided_slice %941 {offsets = [0, 256], sizes = [2, 64], strides = [1, 1]} : vector<2x512xf32> to vector<2x64xf32>
    %955 = arith.negf %954 : vector<2x64xf32>
    %956 = math.exp %955 : vector<2x64xf32>
    %cst_274 = arith.constant 1.000000e+00 : f32
    %957 = vector.broadcast %cst_274 : f32 to vector<2x64xf32>
    %958 = arith.addf %957, %956 : vector<2x64xf32>
    %959 = arith.divf %957, %958 : vector<2x64xf32>
    %960 = vector.extract_strided_slice %941 {offsets = [0, 384], sizes = [2, 64], strides = [1, 1]} : vector<2x512xf32> to vector<2x64xf32>
    %961 = math.tanh %960 : vector<2x64xf32>
    %962 = arith.mulf %953, %934 : vector<2x64xf32>
    %963 = arith.mulf %947, %961 : vector<2x64xf32>
    %964 = arith.addf %962, %963 : vector<2x64xf32>
    %965 = math.tanh %964 : vector<2x64xf32>
    %966 = arith.mulf %959, %965 : vector<2x64xf32>
    %c20_275 = arith.constant 20 : index
    %c0_276 = arith.constant 0 : index
    %967 = vector.load %arg18[%c20_275, %c0_276] : memref<30x512xf32, #tpu.memory_space<vmem>>, vector<2x512xf32>
    %c8_277 = arith.constant 8 : index
    %c0_278 = arith.constant 0 : index
    %968 = vector.load %arg19[%c8_277, %c0_278] : memref<30x512xf32, #tpu.memory_space<vmem>>, vector<2x512xf32>
    %969 = arith.addf %967, %968 : vector<2x512xf32>
    %cst_279 = arith.constant dense<0.000000e+00> : vector<2x512xf32>
    %970 = tpu.matmul %966, %664, %cst_279 {dimension_numbers = #tpu.dot_dimension_numbers<[1], [0], [0], [1], [0, 0, 1, 1], [], []>} : vector<2x64xf32>, vector<64x512xf32>, vector<2x512xf32> -> vector<2x512xf32>
    %971 = arith.addf %969, %970 : vector<2x512xf32>
    %972 = vector.extract_strided_slice %971 {offsets = [0, 0], sizes = [2, 64], strides = [1, 1]} : vector<2x512xf32> to vector<2x64xf32>
    %973 = arith.negf %972 : vector<2x64xf32>
    %974 = math.exp %973 : vector<2x64xf32>
    %cst_280 = arith.constant 1.000000e+00 : f32
    %975 = vector.broadcast %cst_280 : f32 to vector<2x64xf32>
    %976 = arith.addf %975, %974 : vector<2x64xf32>
    %977 = arith.divf %975, %976 : vector<2x64xf32>
    %978 = vector.extract_strided_slice %971 {offsets = [0, 128], sizes = [2, 64], strides = [1, 1]} : vector<2x512xf32> to vector<2x64xf32>
    %979 = arith.negf %978 : vector<2x64xf32>
    %980 = math.exp %979 : vector<2x64xf32>
    %cst_281 = arith.constant 1.000000e+00 : f32
    %981 = vector.broadcast %cst_281 : f32 to vector<2x64xf32>
    %982 = arith.addf %981, %980 : vector<2x64xf32>
    %983 = arith.divf %981, %982 : vector<2x64xf32>
    %984 = vector.extract_strided_slice %971 {offsets = [0, 256], sizes = [2, 64], strides = [1, 1]} : vector<2x512xf32> to vector<2x64xf32>
    %985 = arith.negf %984 : vector<2x64xf32>
    %986 = math.exp %985 : vector<2x64xf32>
    %cst_282 = arith.constant 1.000000e+00 : f32
    %987 = vector.broadcast %cst_282 : f32 to vector<2x64xf32>
    %988 = arith.addf %987, %986 : vector<2x64xf32>
    %989 = arith.divf %987, %988 : vector<2x64xf32>
    %990 = vector.extract_strided_slice %971 {offsets = [0, 384], sizes = [2, 64], strides = [1, 1]} : vector<2x512xf32> to vector<2x64xf32>
    %991 = math.tanh %990 : vector<2x64xf32>
    %992 = arith.mulf %983, %964 : vector<2x64xf32>
    %993 = arith.mulf %977, %991 : vector<2x64xf32>
    %994 = arith.addf %992, %993 : vector<2x64xf32>
    %995 = math.tanh %994 : vector<2x64xf32>
    %996 = arith.mulf %989, %995 : vector<2x64xf32>
    %c22_283 = arith.constant 22 : index
    %c0_284 = arith.constant 0 : index
    %997 = vector.load %arg18[%c22_283, %c0_284] : memref<30x512xf32, #tpu.memory_space<vmem>>, vector<2x512xf32>
    %c6_285 = arith.constant 6 : index
    %c0_286 = arith.constant 0 : index
    %998 = vector.load %arg19[%c6_285, %c0_286] : memref<30x512xf32, #tpu.memory_space<vmem>>, vector<2x512xf32>
    %999 = arith.addf %997, %998 : vector<2x512xf32>
    %cst_287 = arith.constant dense<0.000000e+00> : vector<2x512xf32>
    %1000 = tpu.matmul %996, %664, %cst_287 {dimension_numbers = #tpu.dot_dimension_numbers<[1], [0], [0], [1], [0, 0, 1, 1], [], []>} : vector<2x64xf32>, vector<64x512xf32>, vector<2x512xf32> -> vector<2x512xf32>
    %1001 = arith.addf %999, %1000 : vector<2x512xf32>
    %1002 = vector.extract_strided_slice %1001 {offsets = [0, 0], sizes = [2, 64], strides = [1, 1]} : vector<2x512xf32> to vector<2x64xf32>
    %1003 = arith.negf %1002 : vector<2x64xf32>
    %1004 = math.exp %1003 : vector<2x64xf32>
    %cst_288 = arith.constant 1.000000e+00 : f32
    %1005 = vector.broadcast %cst_288 : f32 to vector<2x64xf32>
    %1006 = arith.addf %1005, %1004 : vector<2x64xf32>
    %1007 = arith.divf %1005, %1006 : vector<2x64xf32>
    %1008 = vector.extract_strided_slice %1001 {offsets = [0, 128], sizes = [2, 64], strides = [1, 1]} : vector<2x512xf32> to vector<2x64xf32>
    %1009 = arith.negf %1008 : vector<2x64xf32>
    %1010 = math.exp %1009 : vector<2x64xf32>
    %cst_289 = arith.constant 1.000000e+00 : f32
    %1011 = vector.broadcast %cst_289 : f32 to vector<2x64xf32>
    %1012 = arith.addf %1011, %1010 : vector<2x64xf32>
    %1013 = arith.divf %1011, %1012 : vector<2x64xf32>
    %1014 = vector.extract_strided_slice %1001 {offsets = [0, 256], sizes = [2, 64], strides = [1, 1]} : vector<2x512xf32> to vector<2x64xf32>
    %1015 = arith.negf %1014 : vector<2x64xf32>
    %1016 = math.exp %1015 : vector<2x64xf32>
    %cst_290 = arith.constant 1.000000e+00 : f32
    %1017 = vector.broadcast %cst_290 : f32 to vector<2x64xf32>
    %1018 = arith.addf %1017, %1016 : vector<2x64xf32>
    %1019 = arith.divf %1017, %1018 : vector<2x64xf32>
    %1020 = vector.extract_strided_slice %1001 {offsets = [0, 384], sizes = [2, 64], strides = [1, 1]} : vector<2x512xf32> to vector<2x64xf32>
    %1021 = math.tanh %1020 : vector<2x64xf32>
    %1022 = arith.mulf %1013, %994 : vector<2x64xf32>
    %1023 = arith.mulf %1007, %1021 : vector<2x64xf32>
    %1024 = arith.addf %1022, %1023 : vector<2x64xf32>
    %1025 = math.tanh %1024 : vector<2x64xf32>
    %1026 = arith.mulf %1019, %1025 : vector<2x64xf32>
    %c24_291 = arith.constant 24 : index
    %c0_292 = arith.constant 0 : index
    %1027 = vector.load %arg18[%c24_291, %c0_292] : memref<30x512xf32, #tpu.memory_space<vmem>>, vector<2x512xf32>
    %c4_293 = arith.constant 4 : index
    %c0_294 = arith.constant 0 : index
    %1028 = vector.load %arg19[%c4_293, %c0_294] : memref<30x512xf32, #tpu.memory_space<vmem>>, vector<2x512xf32>
    %1029 = arith.addf %1027, %1028 : vector<2x512xf32>
    %cst_295 = arith.constant dense<0.000000e+00> : vector<2x512xf32>
    %1030 = tpu.matmul %1026, %664, %cst_295 {dimension_numbers = #tpu.dot_dimension_numbers<[1], [0], [0], [1], [0, 0, 1, 1], [], []>} : vector<2x64xf32>, vector<64x512xf32>, vector<2x512xf32> -> vector<2x512xf32>
    %1031 = arith.addf %1029, %1030 : vector<2x512xf32>
    %1032 = vector.extract_strided_slice %1031 {offsets = [0, 0], sizes = [2, 64], strides = [1, 1]} : vector<2x512xf32> to vector<2x64xf32>
    %1033 = arith.negf %1032 : vector<2x64xf32>
    %1034 = math.exp %1033 : vector<2x64xf32>
    %cst_296 = arith.constant 1.000000e+00 : f32
    %1035 = vector.broadcast %cst_296 : f32 to vector<2x64xf32>
    %1036 = arith.addf %1035, %1034 : vector<2x64xf32>
    %1037 = arith.divf %1035, %1036 : vector<2x64xf32>
    %1038 = vector.extract_strided_slice %1031 {offsets = [0, 128], sizes = [2, 64], strides = [1, 1]} : vector<2x512xf32> to vector<2x64xf32>
    %1039 = arith.negf %1038 : vector<2x64xf32>
    %1040 = math.exp %1039 : vector<2x64xf32>
    %cst_297 = arith.constant 1.000000e+00 : f32
    %1041 = vector.broadcast %cst_297 : f32 to vector<2x64xf32>
    %1042 = arith.addf %1041, %1040 : vector<2x64xf32>
    %1043 = arith.divf %1041, %1042 : vector<2x64xf32>
    %1044 = vector.extract_strided_slice %1031 {offsets = [0, 256], sizes = [2, 64], strides = [1, 1]} : vector<2x512xf32> to vector<2x64xf32>
    %1045 = arith.negf %1044 : vector<2x64xf32>
    %1046 = math.exp %1045 : vector<2x64xf32>
    %cst_298 = arith.constant 1.000000e+00 : f32
    %1047 = vector.broadcast %cst_298 : f32 to vector<2x64xf32>
    %1048 = arith.addf %1047, %1046 : vector<2x64xf32>
    %1049 = arith.divf %1047, %1048 : vector<2x64xf32>
    %1050 = vector.extract_strided_slice %1031 {offsets = [0, 384], sizes = [2, 64], strides = [1, 1]} : vector<2x512xf32> to vector<2x64xf32>
    %1051 = math.tanh %1050 : vector<2x64xf32>
    %1052 = arith.mulf %1043, %1024 : vector<2x64xf32>
    %1053 = arith.mulf %1037, %1051 : vector<2x64xf32>
    %1054 = arith.addf %1052, %1053 : vector<2x64xf32>
    %1055 = math.tanh %1054 : vector<2x64xf32>
    %1056 = arith.mulf %1049, %1055 : vector<2x64xf32>
    %c26_299 = arith.constant 26 : index
    %c0_300 = arith.constant 0 : index
    %1057 = vector.load %arg18[%c26_299, %c0_300] : memref<30x512xf32, #tpu.memory_space<vmem>>, vector<2x512xf32>
    %c2_301 = arith.constant 2 : index
    %c0_302 = arith.constant 0 : index
    %1058 = vector.load %arg19[%c2_301, %c0_302] : memref<30x512xf32, #tpu.memory_space<vmem>>, vector<2x512xf32>
    %1059 = arith.addf %1057, %1058 : vector<2x512xf32>
    %cst_303 = arith.constant dense<0.000000e+00> : vector<2x512xf32>
    %1060 = tpu.matmul %1056, %664, %cst_303 {dimension_numbers = #tpu.dot_dimension_numbers<[1], [0], [0], [1], [0, 0, 1, 1], [], []>} : vector<2x64xf32>, vector<64x512xf32>, vector<2x512xf32> -> vector<2x512xf32>
    %1061 = arith.addf %1059, %1060 : vector<2x512xf32>
    %1062 = vector.extract_strided_slice %1061 {offsets = [0, 0], sizes = [2, 64], strides = [1, 1]} : vector<2x512xf32> to vector<2x64xf32>
    %1063 = arith.negf %1062 : vector<2x64xf32>
    %1064 = math.exp %1063 : vector<2x64xf32>
    %cst_304 = arith.constant 1.000000e+00 : f32
    %1065 = vector.broadcast %cst_304 : f32 to vector<2x64xf32>
    %1066 = arith.addf %1065, %1064 : vector<2x64xf32>
    %1067 = arith.divf %1065, %1066 : vector<2x64xf32>
    %1068 = vector.extract_strided_slice %1061 {offsets = [0, 128], sizes = [2, 64], strides = [1, 1]} : vector<2x512xf32> to vector<2x64xf32>
    %1069 = arith.negf %1068 : vector<2x64xf32>
    %1070 = math.exp %1069 : vector<2x64xf32>
    %cst_305 = arith.constant 1.000000e+00 : f32
    %1071 = vector.broadcast %cst_305 : f32 to vector<2x64xf32>
    %1072 = arith.addf %1071, %1070 : vector<2x64xf32>
    %1073 = arith.divf %1071, %1072 : vector<2x64xf32>
    %1074 = vector.extract_strided_slice %1061 {offsets = [0, 256], sizes = [2, 64], strides = [1, 1]} : vector<2x512xf32> to vector<2x64xf32>
    %1075 = arith.negf %1074 : vector<2x64xf32>
    %1076 = math.exp %1075 : vector<2x64xf32>
    %cst_306 = arith.constant 1.000000e+00 : f32
    %1077 = vector.broadcast %cst_306 : f32 to vector<2x64xf32>
    %1078 = arith.addf %1077, %1076 : vector<2x64xf32>
    %1079 = arith.divf %1077, %1078 : vector<2x64xf32>
    %1080 = vector.extract_strided_slice %1061 {offsets = [0, 384], sizes = [2, 64], strides = [1, 1]} : vector<2x512xf32> to vector<2x64xf32>
    %1081 = math.tanh %1080 : vector<2x64xf32>
    %1082 = arith.mulf %1073, %1054 : vector<2x64xf32>
    %1083 = arith.mulf %1067, %1081 : vector<2x64xf32>
    %1084 = arith.addf %1082, %1083 : vector<2x64xf32>
    %1085 = math.tanh %1084 : vector<2x64xf32>
    %1086 = arith.mulf %1079, %1085 : vector<2x64xf32>
    %c28_307 = arith.constant 28 : index
    %c0_308 = arith.constant 0 : index
    %1087 = vector.load %arg18[%c28_307, %c0_308] : memref<30x512xf32, #tpu.memory_space<vmem>>, vector<2x512xf32>
    %c0_309 = arith.constant 0 : index
    %c0_310 = arith.constant 0 : index
    %1088 = vector.load %arg19[%c0_309, %c0_310] : memref<30x512xf32, #tpu.memory_space<vmem>>, vector<2x512xf32>
    %1089 = arith.addf %1087, %1088 : vector<2x512xf32>
    %cst_311 = arith.constant dense<0.000000e+00> : vector<2x512xf32>
    %1090 = tpu.matmul %1086, %664, %cst_311 {dimension_numbers = #tpu.dot_dimension_numbers<[1], [0], [0], [1], [0, 0, 1, 1], [], []>} : vector<2x64xf32>, vector<64x512xf32>, vector<2x512xf32> -> vector<2x512xf32>
    %1091 = arith.addf %1089, %1090 : vector<2x512xf32>
    %1092 = vector.extract_strided_slice %1091 {offsets = [0, 0], sizes = [2, 64], strides = [1, 1]} : vector<2x512xf32> to vector<2x64xf32>
    %1093 = arith.negf %1092 : vector<2x64xf32>
    %1094 = math.exp %1093 : vector<2x64xf32>
    %cst_312 = arith.constant 1.000000e+00 : f32
    %1095 = vector.broadcast %cst_312 : f32 to vector<2x64xf32>
    %1096 = arith.addf %1095, %1094 : vector<2x64xf32>
    %1097 = arith.divf %1095, %1096 : vector<2x64xf32>
    %1098 = vector.extract_strided_slice %1091 {offsets = [0, 128], sizes = [2, 64], strides = [1, 1]} : vector<2x512xf32> to vector<2x64xf32>
    %1099 = arith.negf %1098 : vector<2x64xf32>
    %1100 = math.exp %1099 : vector<2x64xf32>
    %cst_313 = arith.constant 1.000000e+00 : f32
    %1101 = vector.broadcast %cst_313 : f32 to vector<2x64xf32>
    %1102 = arith.addf %1101, %1100 : vector<2x64xf32>
    %1103 = arith.divf %1101, %1102 : vector<2x64xf32>
    %1104 = vector.extract_strided_slice %1091 {offsets = [0, 256], sizes = [2, 64], strides = [1, 1]} : vector<2x512xf32> to vector<2x64xf32>
    %1105 = arith.negf %1104 : vector<2x64xf32>
    %1106 = math.exp %1105 : vector<2x64xf32>
    %cst_314 = arith.constant 1.000000e+00 : f32
    %1107 = vector.broadcast %cst_314 : f32 to vector<2x64xf32>
    %1108 = arith.addf %1107, %1106 : vector<2x64xf32>
    %1109 = arith.divf %1107, %1108 : vector<2x64xf32>
    %1110 = vector.extract_strided_slice %1091 {offsets = [0, 384], sizes = [2, 64], strides = [1, 1]} : vector<2x512xf32> to vector<2x64xf32>
    %1111 = math.tanh %1110 : vector<2x64xf32>
    %1112 = arith.mulf %1103, %1084 : vector<2x64xf32>
    %1113 = arith.mulf %1097, %1111 : vector<2x64xf32>
    %1114 = arith.addf %1112, %1113 : vector<2x64xf32>
    %1115 = math.tanh %1114 : vector<2x64xf32>
    %1116 = arith.mulf %1109, %1115 : vector<2x64xf32>
    %c0_315 = arith.constant 0 : index
    %c0_316 = arith.constant 0 : index
    %1117 = vector.load %arg14[%c0_315, %c0_316] : memref<64x2xf32, #tpu.memory_space<vmem>>, vector<64x2xf32>
    %cst_317 = arith.constant dense<0.000000e+00> : vector<2x2xf32>
    %1118 = tpu.matmul %1116, %1117, %cst_317 {dimension_numbers = #tpu.dot_dimension_numbers<[1], [0], [0], [1], [0, 0, 1, 1], [], []>} : vector<2x64xf32>, vector<64x2xf32>, vector<2x2xf32> -> vector<2x2xf32>
    %c0_318 = arith.constant 0 : index
    %c0_319 = arith.constant 0 : index
    %1119 = vector.load %arg15[%c0_318, %c0_319] : memref<1x2xf32, #tpu.memory_space<vmem>>, vector<1x2xf32>
    %1120 = vector.broadcast %1119 : vector<1x2xf32> to vector<2x2xf32>
    %1121 = arith.addf %1118, %1120 : vector<2x2xf32>
    %1122 = arith.negf %1121 : vector<2x2xf32>
    %1123 = math.exp %1122 : vector<2x2xf32>
    %cst_320 = arith.constant 1.000000e+00 : f32
    %1124 = vector.broadcast %cst_320 : f32 to vector<2x2xf32>
    %1125 = arith.addf %1124, %1123 : vector<2x2xf32>
    %1126 = arith.divf %1124, %1125 : vector<2x2xf32>
    %c0_321 = arith.constant 0 : index
    %c0_322 = arith.constant 0 : index
    %1127 = vector.load %arg16[%c0_321, %c0_322] : memref<2x2xf32, #tpu.memory_space<vmem>>, vector<2x2xf32>
    tpu.vector_store %arg16[%c0_321, %c0_322], %1126 {strides = array<i32>} : memref<2x2xf32, #tpu.memory_space<vmem>>, vector<2x2xf32>,
    return
  }
}

</mosaic_0001>

<llo_original>
// kernel: forward.1
$region0: #{forward.1}
  #allocation0 [shape = 'u32[]', space=smem, size = 0x4, offset = 0x4, fixed_abs, tag = 'smem constant byte address 0x4 - core index']
  #allocation1 [shape = 'u32[144,128]{1,0:T(1,128)}', space=vmem, size = 0x12000, scoped, tag = 'internal scratch']
  #allocation2 [shape = 'f32[30,64]{1,0:T(8,128)}', space=vmem, size = 0x4000, scoped, tag = 'scratch operand']
  #allocation3 [shape = 'f32[30,512]{1,0:T(8,128)}', space=vmem, size = 0x10000, scoped, tag = 'scratch operand']
  #allocation4 [shape = 'f32[30,512]{1,0:T(8,128)}', space=vmem, size = 0x10000, scoped, tag = 'scratch operand']
  %s0 = inlined_call_operand.hbm [shape: f32[2,256], index: 0, kind: input, shape index: {}]
  %s1 = inlined_call_operand.hbm [shape: f32[256,127], index: 1, kind: input, shape index: {}]
  %s2 = inlined_call_operand.hbm [shape: f32[3,127,63], index: 2, kind: input, shape index: {}]
  %s3 = inlined_call_operand.hbm [shape: f32[63,31], index: 3, kind: input, shape index: {}]
  %s4 = inlined_call_operand.hbm [shape: f32[3,31,15], index: 4, kind: input, shape index: {}]
  %s5 = inlined_call_operand.vmem [shape: f32[2], index: 5, kind: input, shape index: {}]
  %s6 = inlined_call_operand.vmem [shape: f32[1,512], index: 6, kind: input, shape index: {}]
  %s7 = inlined_call_operand.vmem [shape: f32[1,512], index: 7, kind: input, shape index: {}]
  %s8 = inlined_call_operand.vmem [shape: f32[1,512], index: 8, kind: input, shape index: {}]
  %s9 = inlined_call_operand.hbm [shape: f32[64,512], index: 9, kind: input, shape index: {}]
  %s10 = inlined_call_operand.hbm [shape: f32[64,512], index: 10, kind: input, shape index: {}]
  %s11 = inlined_call_operand.hbm [shape: f32[64,512], index: 11, kind: input, shape index: {}]
  %s12 = inlined_call_operand.vmem [shape: f32[1,512], index: 12, kind: input, shape index: {}]
  %s13 = inlined_call_operand.hbm [shape: f32[64,512], index: 13, kind: input, shape index: {}]
  %s14 = inlined_call_operand.hbm [shape: f32[64,2], index: 14, kind: input, shape index: {}]
  %s15 = inlined_call_operand.vmem [shape: f32[1,2], index: 15, kind: input, shape index: {}]
  %s16 = inlined_call_operand.hbm [shape: f32[2,2], index: 16, kind: output, shape index: {}]
  %s17 = sld [smem:[#allocation0]]
  $region118: #{forward.1} parent=0
    _
  %s19 = ssub.s32 1, %s17
  %s20 = scalar_select 0, %s19, %s17
  $region1: #{forward.1} parent=0
    #allocation5 [shape = 'u8[2048]{0}', space=vmem, size = 0x800, scoped, tag = 'input window, operand 0, single buffered']
    #allocation6 [shape = 's32[1]{0}', space=sflag, size = 0x4, scoped, tag = 'scoped memory for forward.1']
    #allocation7 [shape = 's32[1]{0}', space=sflag, size = 0x4, scoped, tag = 'scoped memory for forward.1']
    #allocation8 [shape = 's32[1]{0}', space=sflag, size = 0x4, scoped, tag = 'scoped memory for forward.1']
    #allocation9 [shape = 'u8[131072]{0}', space=vmem, size = 0x20000, scoped, tag = 'input window, operand 1, single buffered']
    #allocation10 [shape = 's32[1]{0}', space=sflag, size = 0x4, scoped, tag = 'scoped memory for forward.1']
    #allocation11 [shape = 'u8[196608]{0}', space=vmem, size = 0x30000, scoped, tag = 'input window, operand 2, single buffered']
    #allocation12 [shape = 'u8[32768]{0}', space=vmem, size = 0x8000, scoped, tag = 'input window, operand 3, single buffered']
    #allocation13 [shape = 's32[1]{0}', space=sflag, size = 0x4, scoped, tag = 'scoped memory for forward.1']
    #allocation14 [shape = 'u8[49152]{0}', space=vmem, size = 0xc000, scoped, tag = 'input window, operand 4, single buffered']
    #allocation15 [shape = 'u8[512]{0}', space=smem, size = 0x200, scoped, tag = 'input window, operand 5, single buffered']
    #allocation16 [shape = 'u8[131072]{0}', space=vmem, size = 0x20000, scoped, tag = 'input window, operand 9, single buffered']
    #allocation17 [shape = 's32[1]{0}', space=sflag, size = 0x4, scoped, tag = 'scoped memory for forward.1']
    #allocation18 [shape = 'u8[131072]{0}', space=vmem, size = 0x20000, scoped, tag = 'input window, operand 10, single buffered']
    #allocation19 [shape = 'u8[131072]{0}', space=vmem, size = 0x20000, scoped, tag = 'input window, operand 11, single buffered']
    #allocation20 [shape = 's32[1]{0}', space=sflag, size = 0x4, scoped, tag = 'scoped memory for forward.1']
    #allocation21 [shape = 'u8[131072]{0}', space=vmem, size = 0x20000, scoped, tag = 'input window, operand 13, single buffered']
    #allocation22 [shape = 'u8[32768]{0}', space=vmem, size = 0x8000, scoped, tag = 'input window, operand 14, single buffered']
    #allocation23 [shape = 's32[1]{0}', space=sflag, size = 0x4, scoped, tag = 'scoped memory for forward.1']
    #allocation24 [shape = 'u8[1024]{0}', space=vmem, size = 0x400, scoped, tag = 'output window, operand 0, single buffered']
    %21 = vsyncpa [#allocation6], 0
    %22 = vsyncpa [#allocation10], 0
    %23 = vsyncpa [#allocation13], 0
    %24 = vsyncpa [#allocation8], 0
    %25 = vsyncpa [#allocation17], 0
    %26 = vsyncpa [#allocation20], 0
    %27 = vsyncpa [#allocation23], 0
    %28 = vsyncpa [#allocation7], 0
    // Predicated region
    $region2: #{forward.1} parent=1 // pred_check
      _
    $region3: #{forward.1} parent=1 // pred_check_branch
      %30 = sbr.rel (0) target = $region5
    $region4: #{forward.1} parent=1 // pred_region
      %s32 = ssub.s32 64, 64
      %33 = vsyncadd [#allocation6], %s32
      %s35 = sshll.u32 [#allocation5], 4
      %s36 = int_to_ptr.vmem [resolvable:$true] %s35
      %38 = dma.hbm_to_vmem [thread:$0]  %s0, 64, %s36, [#allocation6]
    $region5: #{forward.1} parent=1 // pred_fallthru
      _
    // Predicated region
    $region6: #{forward.1} parent=1 // pred_check
      _
    $region7: #{forward.1} parent=1 // pred_check_branch
      %40 = sbr.rel (0) target = $region9
    $region8: #{forward.1} parent=1 // pred_region
      %s42 = ssub.s32 4096, 4096
      %43 = vsyncadd [#allocation10], %s42
      %s44 = sshll.u32 [#allocation9], 4
      %s45 = int_to_ptr.vmem [resolvable:$true] %s44
      %50 = dma.hbm_to_vmem [thread:$0]  %s1, 4096, %s45, [#allocation10], 128, 128, 8
    $region9: #{forward.1} parent=1 // pred_fallthru
      _
    // Predicated region
    $region10: #{forward.1} parent=1 // pred_check
      _
    $region11: #{forward.1} parent=1 // pred_check_branch
      %52 = sbr.rel (0) target = $region13
    $region12: #{forward.1} parent=1 // pred_region
      %s54 = ssub.s32 6144, 6144
      %55 = vsyncadd [#allocation10], %s54
      %s56 = sshll.u32 [#allocation11], 4
      %s57 = int_to_ptr.vmem [resolvable:$true] %s56
      %62 = dma.hbm_to_vmem [thread:$0]  %s2, 6144, %s57, [#allocation10], 128, 128, 8
    $region13: #{forward.1} parent=1 // pred_fallthru
      _
    // Predicated region
    $region14: #{forward.1} parent=1 // pred_check
      _
    $region15: #{forward.1} parent=1 // pred_check_branch
      %64 = sbr.rel (0) target = $region17
    $region16: #{forward.1} parent=1 // pred_region
      %s66 = ssub.s32 1024, 1024
      %67 = vsyncadd [#allocation13], %s66
      %s68 = sshll.u32 [#allocation12], 4
      %s69 = int_to_ptr.vmem [resolvable:$true] %s68
      %74 = dma.hbm_to_vmem [thread:$0]  %s3, 1024, %s69, [#allocation13], 128, 128, 8
    $region17: #{forward.1} parent=1 // pred_fallthru
      _
    // Predicated region
    $region18: #{forward.1} parent=1 // pred_check
      _
    $region19: #{forward.1} parent=1 // pred_check_branch
      %76 = sbr.rel (0) target = $region21
    $region20: #{forward.1} parent=1 // pred_region
      %s78 = ssub.s32 1536, 1536
      %79 = vsyncadd [#allocation13], %s78
      %s80 = sshll.u32 [#allocation14], 4
      %s81 = int_to_ptr.vmem [resolvable:$true] %s80
      %86 = dma.hbm_to_vmem [thread:$0]  %s4, 1536, %s81, [#allocation13], 128, 128, 8
    $region21: #{forward.1} parent=1 // pred_fallthru
      _
    // Predicated region
    $region22: #{forward.1} parent=1 // pred_check
      _
    $region23: #{forward.1} parent=1 // pred_check_branch
      %88 = sbr.rel (0) target = $region25
    $region24: #{forward.1} parent=1 // pred_region
      %s90 = ssub.s32 16, 16
      %91 = vsyncadd [#allocation8], %s90
      %s93 = sshll.u32 %s5, 4
      %s94 = int_to_ptr.vmem [resolvable:$true] %s93
      %96 = dma.vmem_to_smem %s94, 16, [#allocation15], [#allocation8]
    $region25: #{forward.1} parent=1 // pred_fallthru
      _
    // Predicated region
    $region26: #{forward.1} parent=1 // pred_check
      _
    $region27: #{forward.1} parent=1 // pred_check_branch
      %98 = sbr.rel (0) target = $region29
    $region28: #{forward.1} parent=1 // pred_region
      _
    $region29: #{forward.1} parent=1 // pred_fallthru
      _
    // Predicated region
    $region30: #{forward.1} parent=1 // pred_check
      _
    $region31: #{forward.1} parent=1 // pred_check_branch
      %100 = sbr.rel (0) target = $region33
    $region32: #{forward.1} parent=1 // pred_region
      _
    $region33: #{forward.1} parent=1 // pred_fallthru
      _
    // Predicated region
    $region34: #{forward.1} parent=1 // pred_check
      _
    $region35: #{forward.1} parent=1 // pred_check_branch
      %102 = sbr.rel (0) target = $region37
    $region36: #{forward.1} parent=1 // pred_region
      _
    $region37: #{forward.1} parent=1 // pred_fallthru
      _
    // Predicated region
    $region38: #{forward.1} parent=1 // pred_check
      _
    $region39: #{forward.1} parent=1 // pred_check_branch
      %104 = sbr.rel (0) target = $region41
    $region40: #{forward.1} parent=1 // pred_region
      %s106 = ssub.s32 4096, 4096
      %107 = vsyncadd [#allocation17], %s106
      %s108 = sshll.u32 [#allocation16], 4
      %s109 = int_to_ptr.vmem [resolvable:$true] %s108
      %114 = dma.hbm_to_vmem [thread:$0]  %s9, 4096, %s109, [#allocation17], 512, 512, 32
    $region41: #{forward.1} parent=1 // pred_fallthru
      _
    // Predicated region
    $region42: #{forward.1} parent=1 // pred_check
      _
    $region43: #{forward.1} parent=1 // pred_check_branch
      %116 = sbr.rel (0) target = $region45
    $region44: #{forward.1} parent=1 // pred_region
      %s118 = ssub.s32 4096, 4096
      %119 = vsyncadd [#allocation17], %s118
      %s120 = sshll.u32 [#allocation18], 4
      %s121 = int_to_ptr.vmem [resolvable:$true] %s120
      %126 = dma.hbm_to_vmem [thread:$0]  %s10, 4096, %s121, [#allocation17], 512, 512, 32
    $region45: #{forward.1} parent=1 // pred_fallthru
      _
    // Predicated region
    $region46: #{forward.1} parent=1 // pred_check
      _
    $region47: #{forward.1} parent=1 // pred_check_branch
      %128 = sbr.rel (0) target = $region49
    $region48: #{forward.1} parent=1 // pred_region
      %s130 = ssub.s32 4096, 4096
      %131 = vsyncadd [#allocation20], %s130
      %s132 = sshll.u32 [#allocation19], 4
      %s133 = int_to_ptr.vmem [resolvable:$true] %s132
      %138 = dma.hbm_to_vmem [thread:$0]  %s11, 4096, %s133, [#allocation20], 512, 512, 32
    $region49: #{forward.1} parent=1 // pred_fallthru
      _
    // Predicated region
    $region50: #{forward.1} parent=1 // pred_check
      _
    $region51: #{forward.1} parent=1 // pred_check_branch
      %140 = sbr.rel (0) target = $region53
    $region52: #{forward.1} parent=1 // pred_region
      _
    $region53: #{forward.1} parent=1 // pred_fallthru
      _
    // Predicated region
    $region54: #{forward.1} parent=1 // pred_check
      _
    $region55: #{forward.1} parent=1 // pred_check_branch
      %142 = sbr.rel (0) target = $region57
    $region56: #{forward.1} parent=1 // pred_region
      %s144 = ssub.s32 4096, 4096
      %145 = vsyncadd [#allocation20], %s144
      %s146 = sshll.u32 [#allocation21], 4
      %s147 = int_to_ptr.vmem [resolvable:$true] %s146
      %152 = dma.hbm_to_vmem [thread:$0]  %s13, 4096, %s147, [#allocation20], 512, 512, 32
    $region57: #{forward.1} parent=1 // pred_fallthru
      _
    // Predicated region
    $region58: #{forward.1} parent=1 // pred_check
      _
    $region59: #{forward.1} parent=1 // pred_check_branch
      %154 = sbr.rel (0) target = $region61
    $region60: #{forward.1} parent=1 // pred_region
      %s156 = ssub.s32 1024, 1024
      %157 = vsyncadd [#allocation23], %s156
      %s158 = sshll.u32 [#allocation22], 4
      %s159 = int_to_ptr.vmem [resolvable:$true] %s158
      %164 = dma.hbm_to_vmem [thread:$0]  %s14, 1024, %s159, [#allocation23], 128, 128, 8
    $region61: #{forward.1} parent=1 // pred_fallthru
      _
    // Predicated region
    $region62: #{forward.1} parent=1 // pred_check
      _
    $region63: #{forward.1} parent=1 // pred_check_branch
      %166 = sbr.rel (0) target = $region65
    $region64: #{forward.1} parent=1 // pred_region
      _
    $region65: #{forward.1} parent=1 // pred_fallthru
      _
    // Predicated region
    $region66: #{forward.1} parent=1 // pred_check
      _
    $region67: #{forward.1} parent=1 // pred_check_branch
      %168 = sbr.rel (0) target = $region69
    $region68: #{forward.1} parent=1 // pred_region
      %169 = dma.done [#allocation6], 64
    $region69: #{forward.1} parent=1 // pred_fallthru
      _
    // Predicated region
    $region70: #{forward.1} parent=1 // pred_check
      _
    $region71: #{forward.1} parent=1 // pred_check_branch
      %171 = sbr.rel (0) target = $region73
    $region72: #{forward.1} parent=1 // pred_region
      %172 = dma.done [#allocation10], 4096
    $region73: #{forward.1} parent=1 // pred_fallthru
      _
    // Predicated region
    $region74: #{forward.1} parent=1 // pred_check
      _
    $region75: #{forward.1} parent=1 // pred_check_branch
      %174 = sbr.rel (0) target = $region77
    $region76: #{forward.1} parent=1 // pred_region
      %175 = dma.done [#allocation10], 6144
    $region77: #{forward.1} parent=1 // pred_fallthru
      _
    // Predicated region
    $region78: #{forward.1} parent=1 // pred_check
      _
    $region79: #{forward.1} parent=1 // pred_check_branch
      %177 = sbr.rel (0) target = $region81
    $region80: #{forward.1} parent=1 // pred_region
      %178 = dma.done [#allocation13], 1024
    $region81: #{forward.1} parent=1 // pred_fallthru
      _
    // Predicated region
    $region82: #{forward.1} parent=1 // pred_check
      _
    $region83: #{forward.1} parent=1 // pred_check_branch
      %180 = sbr.rel (0) target = $region85
    $region84: #{forward.1} parent=1 // pred_region
      %181 = dma.done [#allocation13], 1536
    $region85: #{forward.1} parent=1 // pred_fallthru
      _
    // Predicated region
    $region86: #{forward.1} parent=1 // pred_check
      _
    $region87: #{forward.1} parent=1 // pred_check_branch
      %183 = sbr.rel (0) target = $region89
    $region88: #{forward.1} parent=1 // pred_region
      %184 = dma.done [#allocation8], 16
    $region89: #{forward.1} parent=1 // pred_fallthru
      _
    // Predicated region
    $region90: #{forward.1} parent=1 // pred_check
      _
    $region91: #{forward.1} parent=1 // pred_check_branch
      %186 = sbr.rel (0) target = $region93
    $region92: #{forward.1} parent=1 // pred_region
      %187 = dma.done [#allocation17], 4096
    $region93: #{forward.1} parent=1 // pred_fallthru
      _
    // Predicated region
    $region94: #{forward.1} parent=1 // pred_check
      _
    $region95: #{forward.1} parent=1 // pred_check_branch
      %189 = sbr.rel (0) target = $region97
    $region96: #{forward.1} parent=1 // pred_region
      %190 = dma.done [#allocation17], 4096
    $region97: #{forward.1} parent=1 // pred_fallthru
      _
    // Predicated region
    $region98: #{forward.1} parent=1 // pred_check
      _
    $region99: #{forward.1} parent=1 // pred_check_branch
      %192 = sbr.rel (0) target = $region101
    $region100: #{forward.1} parent=1 // pred_region
      %193 = dma.done [#allocation20], 4096
    $region101: #{forward.1} parent=1 // pred_fallthru
      _
    // Predicated region
    $region102: #{forward.1} parent=1 // pred_check
      _
    $region103: #{forward.1} parent=1 // pred_check_branch
      %195 = sbr.rel (0) target = $region105
    $region104: #{forward.1} parent=1 // pred_region
      %196 = dma.done [#allocation20], 4096
    $region105: #{forward.1} parent=1 // pred_fallthru
      _
    // Predicated region
    $region106: #{forward.1} parent=1 // pred_check
      _
    $region107: #{forward.1} parent=1 // pred_check_branch
      %198 = sbr.rel (0) target = $region109
    $region108: #{forward.1} parent=1 // pred_region
      %199 = dma.done [#allocation23], 1024
    $region109: #{forward.1} parent=1 // pred_fallthru
      _
    %200 = sfence
    %v201 = vld [vmem:[#allocation5] sm:$0xf]
    %v202 = vld [vmem:[#allocation9] sm:$0xff]
    %v203 = vld [vmem:[#allocation9 + $0x8] sm:$0xff]
    %v204 = vld [vmem:[#allocation9 + $0x10] sm:$0xff]
    %v205 = vld [vmem:[#allocation9 + $0x18] sm:$0xff]
    %v206 = vld [vmem:[#allocation9 + $0x20] sm:$0xff]
    %v207 = vld [vmem:[#allocation9 + $0x28] sm:$0xff]
    %v208 = vld [vmem:[#allocation9 + $0x30] sm:$0xff]
    %v209 = vld [vmem:[#allocation9 + $0x38] sm:$0xff]
    %v210 = vld [vmem:[#allocation9 + $0x40] sm:$0xff]
    %v211 = vld [vmem:[#allocation9 + $0x48] sm:$0xff]
    %v212 = vld [vmem:[#allocation9 + $0x50] sm:$0xff]
    %v213 = vld [vmem:[#allocation9 + $0x58] sm:$0xff]
    %v214 = vld [vmem:[#allocation9 + $0x60] sm:$0xff]
    %v215 = vld [vmem:[#allocation9 + $0x68] sm:$0xff]
    %v216 = vld [vmem:[#allocation9 + $0x70] sm:$0xff]
    %v217 = vld [vmem:[#allocation9 + $0x78] sm:$0xff]
    %v218 = vld [vmem:[#allocation9 + $0x80] sm:$0xff]
    %v219 = vld [vmem:[#allocation9 + $0x88] sm:$0xff]
    %v220 = vld [vmem:[#allocation9 + $0x90] sm:$0xff]
    %v221 = vld [vmem:[#allocation9 + $0x98] sm:$0xff]
    %v222 = vld [vmem:[#allocation9 + $0xa0] sm:$0xff]
    %v223 = vld [vmem:[#allocation9 + $0xa8] sm:$0xff]
    %v224 = vld [vmem:[#allocation9 + $0xb0] sm:$0xff]
    %v225 = vld [vmem:[#allocation9 + $0xb8] sm:$0xff]
    %v226 = vld [vmem:[#allocation9 + $0xc0] sm:$0xff]
    %v227 = vld [vmem:[#allocation9 + $0xc8] sm:$0xff]
    %v228 = vld [vmem:[#allocation9 + $0xd0] sm:$0xff]
    %v229 = vld [vmem:[#allocation9 + $0xd8] sm:$0xff]
    %v230 = vld [vmem:[#allocation9 + $0xe0] sm:$0xff]
    %v231 = vld [vmem:[#allocation9 + $0xe8] sm:$0xff]
    %v232 = vld [vmem:[#allocation9 + $0xf0] sm:$0xff]
    %v233 = vld [vmem:[#allocation9 + $0xf8] sm:$0xff]
    %s234 = sld [smem:[#allocation15]]
    %v235 = vstv %s234
    %v238 = vunpack.c.l.s4 1983009808
    %v239 = vunpack.c.0.s8 %v238
    %v240 = vlaneseq
    %v241 = vshrl.u32 %v240, 7
    %v242 = vsub.s32 %v239, %v241
    %v243 = vrot.slane %v201, %v242
    %v244 = vcombine.high %v243, %v243
    %247 = vmatprep.subr.mxu0 0.0
    %248 = vmatpush1.msra.mxu0 %v202
    %249 = vmatprep.subr.mxu0 0.0
    %250 = vmatpush1.msra.mxu0 %v203
    %251 = vmatprep.subr.mxu0 0.0
    %252 = vmatpush1.msra.mxu0 %v204
    %253 = vmatprep.subr.mxu0 0.0
    %254 = vmatpush1.msra.mxu0 %v205
    %255 = vmatprep.subr.mxu0 0.0
    %256 = vmatpush1.msra.mxu0 %v206
    %257 = vmatprep.subr.mxu0 0.0
    %258 = vmatpush1.msra.mxu0 %v207
    %259 = vmatprep.subr.mxu0 0.0
    %260 = vmatpush1.msra.mxu0 %v208
    %261 = vmatprep.subr.mxu0 0.0
    %262 = vmatpush1.msra.mxu0 %v209
    %263 = vmatprep.subr.mxu0 0.0
    %264 = vmatpush1.msra.mxu0 %v210
    %265 = vmatprep.subr.mxu0 0.0
    %266 = vmatpush1.msra.mxu0 %v211
    %267 = vmatprep.subr.mxu0 0.0
    %268 = vmatpush1.msra.mxu0 %v212
    %269 = vmatprep.subr.mxu0 0.0
    %270 = vmatpush1.msra.mxu0 %v213
    %271 = vmatprep.subr.mxu0 0.0
    %272 = vmatpush1.msra.mxu0 %v214
    %273 = vmatprep.subr.mxu0 0.0
    %274 = vmatpush1.msra.mxu0 %v215
    %275 = vmatprep.subr.mxu0 0.0
    %276 = vmatpush1.msra.mxu0 %v216
    %277 = vmatprep.subr.mxu0 0.0
    %278 = vmatpush1.msra.mxu0 %v217
    %279 = vmatprep.subr.mxu0 0.0
    %280 = vmatpush1.msra.mxu0 %v218
    %281 = vmatprep.subr.mxu0 0.0
    %282 = vmatpush1.msra.mxu0 %v219
    %283 = vmatprep.subr.mxu0 0.0
    %284 = vmatpush1.msra.mxu0 %v220
    %285 = vmatprep.subr.mxu0 0.0
    %286 = vmatpush1.msra.mxu0 %v221
    %287 = vmatprep.subr.mxu0 0.0
    %288 = vmatpush1.msra.mxu0 %v222
    %289 = vmatprep.subr.mxu0 0.0
    %290 = vmatpush1.msra.mxu0 %v223
    %291 = vmatprep.subr.mxu0 0.0
    %292 = vmatpush1.msra.mxu0 %v224
    %293 = vmatprep.subr.mxu0 0.0
    %294 = vmatpush1.msra.mxu0 %v225
    %295 = vmatprep.subr.mxu0 0.0
    %296 = vmatpush1.msra.mxu0 %v226
    %297 = vmatprep.subr.mxu0 0.0
    %298 = vmatpush1.msra.mxu0 %v227
    %299 = vmatprep.subr.mxu0 0.0
    %300 = vmatpush1.msra.mxu0 %v228
    %301 = vmatprep.subr.mxu0 0.0
    %302 = vmatpush1.msra.mxu0 %v229
    %303 = vmatprep.subr.mxu0 0.0
    %304 = vmatpush1.msra.mxu0 %v230
    %305 = vmatprep.subr.mxu0 0.0
    %306 = vmatpush1.msra.mxu0 %v231
    %307 = vmatprep.subr.mxu0 0.0
    %308 = vmatpush1.msra.mxu0 %v232
    %309 = vmatprep.subr.mxu0 0.0
    %310 = vmatpush1.msra.mxu0 %v233
    %311 = vmatprep.mubr.f32.mxu0 %v244
    %312 = vmatmul.mubr.f32.gmra.mrb[0].mxu0 %v243
    %v313 = vpop.f32.mrb[0].mxu0
    %v314 = vadd.f32 %v235, %v313
    %v315 = vpop.f32.mrb[0].mxu0
    %316 = vdwg.mxu0
    %v317 = vld [vmem:[#allocation11] sm:$0xff]
    %v318 = vld [vmem:[#allocation11 + $0x8] sm:$0xff]
    %v319 = vld [vmem:[#allocation11 + $0x10] sm:$0xff]
    %v320 = vld [vmem:[#allocation11 + $0x18] sm:$0xff]
    %v321 = vld [vmem:[#allocation11 + $0x20] sm:$0xff]
    %v322 = vld [vmem:[#allocation11 + $0x28] sm:$0xff]
    %v323 = vld [vmem:[#allocation11 + $0x30] sm:$0xff]
    %v324 = vld [vmem:[#allocation11 + $0x38] sm:$0xff]
    %v325 = vld [vmem:[#allocation11 + $0x40] sm:$0xff]
    %v326 = vld [vmem:[#allocation11 + $0x48] sm:$0xff]
    %v327 = vld [vmem:[#allocation11 + $0x50] sm:$0xff]
    %v328 = vld [vmem:[#allocation11 + $0x58] sm:$0xff]
    %v329 = vld [vmem:[#allocation11 + $0x60] sm:$0xff]
    %v330 = vld [vmem:[#allocation11 + $0x68] sm:$0xff]
    %v331 = vld [vmem:[#allocation11 + $0x70] sm:$0xff]
    %v332 = vld [vmem:[#allocation11 + $0x78] sm:$0x7f]
    %vm333 = vcmask 1039360
    %v335 = vsel %vm333, %v314, 0
    %vm337 = vcmask 1046528
    %v339 = vsel %vm337, %v332, 0
    %341 = vmatprep.subr.mxu0 0.0
    %342 = vmatpush1.msra.mxu0 %v317
    %343 = vmatprep.subr.mxu0 0.0
    %344 = vmatpush1.msra.mxu0 %v318
    %345 = vmatprep.subr.mxu0 0.0
    %346 = vmatpush1.msra.mxu0 %v319
    %347 = vmatprep.subr.mxu0 0.0
    %348 = vmatpush1.msra.mxu0 %v320
    %349 = vmatprep.subr.mxu0 0.0
    %350 = vmatpush1.msra.mxu0 %v321
    %351 = vmatprep.subr.mxu0 0.0
    %352 = vmatpush1.msra.mxu0 %v322
    %353 = vmatprep.subr.mxu0 0.0
    %354 = vmatpush1.msra.mxu0 %v323
    %355 = vmatprep.subr.mxu0 0.0
    %356 = vmatpush1.msra.mxu0 %v324
    %357 = vmatprep.subr.mxu0 0.0
    %358 = vmatpush1.msra.mxu0 %v325
    %359 = vmatprep.subr.mxu0 0.0
    %360 = vmatpush1.msra.mxu0 %v326
    %361 = vmatprep.subr.mxu0 0.0
    %362 = vmatpush1.msra.mxu0 %v327
    %363 = vmatprep.subr.mxu0 0.0
    %364 = vmatpush1.msra.mxu0 %v328
    %365 = vmatprep.subr.mxu0 0.0
    %366 = vmatpush1.msra.mxu0 %v329
    %367 = vmatprep.subr.mxu0 0.0
    %368 = vmatpush1.msra.mxu0 %v330
    %369 = vmatprep.subr.mxu0 0.0
    %370 = vmatpush1.msra.mxu0 %v331
    %371 = vmatprep.subr.mxu0 0.0
    %372 = vmatpush1.msra.mxu0 %v339
    %373 = vmatprep.subr.mxu0 0.0
    %374 = vmatpush1.msra.mxu0 0.0
    %375 = vmatprep.subr.mxu0 0.0
    %376 = vmatpush1.msra.mxu0 0.0
    %377 = vmatprep.subr.mxu0 0.0
    %378 = vmatpush1.msra.mxu0 0.0
    %379 = vmatprep.subr.mxu0 0.0
    %380 = vmatpush1.msra.mxu0 0.0
    %381 = vmatprep.subr.mxu0 0.0
    %382 = vmatpush1.msra.mxu0 0.0
    %383 = vmatprep.subr.mxu0 0.0
    %384 = vmatpush1.msra.mxu0 0.0
    %385 = vmatprep.subr.mxu0 0.0
    %386 = vmatpush1.msra.mxu0 0.0
    %387 = vmatprep.subr.mxu0 0.0
    %388 = vmatpush1.msra.mxu0 0.0
    %389 = vmatprep.subr.mxu0 0.0
    %390 = vmatpush1.msra.mxu0 0.0
    %391 = vmatprep.subr.mxu0 0.0
    %392 = vmatpush1.msra.mxu0 0.0
    %393 = vmatprep.subr.mxu0 0.0
    %394 = vmatpush1.msra.mxu0 0.0
    %395 = vmatprep.subr.mxu0 0.0
    %396 = vmatpush1.msra.mxu0 0.0
    %397 = vmatprep.subr.mxu0 0.0
    %398 = vmatpush1.msra.mxu0 0.0
    %399 = vmatprep.subr.mxu0 0.0
    %400 = vmatpush1.msra.mxu0 0.0
    %401 = vmatprep.subr.mxu0 0.0
    %402 = vmatpush1.msra.mxu0 0.0
    %403 = vmatprep.subr.mxu0 0.0
    %404 = vmatpush1.msra.mxu0 0.0
    %405 = vmatprep.mubr.f32.mxu0 0.0
    %406 = vmatmul.mubr.f32.gmra.mrb[0].mxu0 %v335
    %v407 = vpop.f32.mrb[0].mxu0
    %v408 = vadd.f32 0.0, %v407
    %v409 = vpop.f32.mrb[0].mxu0
    %410 = vdwg.mxu0
    %s411 = scalar_lea.vmem [#allocation11], 128
    %v412 = vld [vmem:[%s411] sm:$0xff]
    %v413 = vld [vmem:[%s411 + $0x8] sm:$0xff]
    %v414 = vld [vmem:[%s411 + $0x10] sm:$0xff]
    %v415 = vld [vmem:[%s411 + $0x18] sm:$0xff]
    %v416 = vld [vmem:[%s411 + $0x20] sm:$0xff]
    %v417 = vld [vmem:[%s411 + $0x28] sm:$0xff]
    %v418 = vld [vmem:[%s411 + $0x30] sm:$0xff]
    %v419 = vld [vmem:[%s411 + $0x38] sm:$0xff]
    %v420 = vld [vmem:[%s411 + $0x40] sm:$0xff]
    %v421 = vld [vmem:[%s411 + $0x48] sm:$0xff]
    %v422 = vld [vmem:[%s411 + $0x50] sm:$0xff]
    %v423 = vld [vmem:[%s411 + $0x58] sm:$0xff]
    %v424 = vld [vmem:[%s411 + $0x60] sm:$0xff]
    %v425 = vld [vmem:[%s411 + $0x68] sm:$0xff]
    %v426 = vld [vmem:[%s411 + $0x70] sm:$0xff]
    %v427 = vld [vmem:[%s411 + $0x78] sm:$0x7f]
    %v429 = vsel %vm337, %v427, 0
    %431 = vmatprep.subr.mxu0 0.0
    %432 = vmatpush1.msra.mxu0 %v412
    %433 = vmatprep.subr.mxu0 0.0
    %434 = vmatpush1.msra.mxu0 %v413
    %435 = vmatprep.subr.mxu0 0.0
    %436 = vmatpush1.msra.mxu0 %v414
    %437 = vmatprep.subr.mxu0 0.0
    %438 = vmatpush1.msra.mxu0 %v415
    %439 = vmatprep.subr.mxu0 0.0
    %440 = vmatpush1.msra.mxu0 %v416
    %441 = vmatprep.subr.mxu0 0.0
    %442 = vmatpush1.msra.mxu0 %v417
    %443 = vmatprep.subr.mxu0 0.0
    %444 = vmatpush1.msra.mxu0 %v418
    %445 = vmatprep.subr.mxu0 0.0
    %446 = vmatpush1.msra.mxu0 %v419
    %447 = vmatprep.subr.mxu0 0.0
    %448 = vmatpush1.msra.mxu0 %v420
    %449 = vmatprep.subr.mxu0 0.0
    %450 = vmatpush1.msra.mxu0 %v421
    %451 = vmatprep.subr.mxu0 0.0
    %452 = vmatpush1.msra.mxu0 %v422
    %453 = vmatprep.subr.mxu0 0.0
    %454 = vmatpush1.msra.mxu0 %v423
    %455 = vmatprep.subr.mxu0 0.0
    %456 = vmatpush1.msra.mxu0 %v424
    %457 = vmatprep.subr.mxu0 0.0
    %458 = vmatpush1.msra.mxu0 %v425
    %459 = vmatprep.subr.mxu0 0.0
    %460 = vmatpush1.msra.mxu0 %v426
    %461 = vmatprep.subr.mxu0 0.0
    %462 = vmatpush1.msra.mxu0 %v429
    %463 = vmatprep.subr.mxu0 0.0
    %464 = vmatpush1.msra.mxu0 0.0
    %465 = vmatprep.subr.mxu0 0.0
    %466 = vmatpush1.msra.mxu0 0.0
    %467 = vmatprep.subr.mxu0 0.0
    %468 = vmatpush1.msra.mxu0 0.0
    %469 = vmatprep.subr.mxu0 0.0
    %470 = vmatpush1.msra.mxu0 0.0
    %471 = vmatprep.subr.mxu0 0.0
    %472 = vmatpush1.msra.mxu0 0.0
    %473 = vmatprep.subr.mxu0 0.0
    %474 = vmatpush1.msra.mxu0 0.0
    %475 = vmatprep.subr.mxu0 0.0
    %476 = vmatpush1.msra.mxu0 0.0
    %477 = vmatprep.subr.mxu0 0.0
    %478 = vmatpush1.msra.mxu0 0.0
    %479 = vmatprep.subr.mxu0 0.0
    %480 = vmatpush1.msra.mxu0 0.0
    %481 = vmatprep.subr.mxu0 0.0
    %482 = vmatpush1.msra.mxu0 0.0
    %483 = vmatprep.subr.mxu0 0.0
    %484 = vmatpush1.msra.mxu0 0.0
    %485 = vmatprep.subr.mxu0 0.0
    %486 = vmatpush1.msra.mxu0 0.0
    %487 = vmatprep.subr.mxu0 0.0
    %488 = vmatpush1.msra.mxu0 0.0
    %489 = vmatprep.subr.mxu0 0.0
    %490 = vmatpush1.msra.mxu0 0.0
    %491 = vmatprep.subr.mxu0 0.0
    %492 = vmatpush1.msra.mxu0 0.0
    %493 = vmatprep.subr.mxu0 0.0
    %494 = vmatpush1.msra.mxu0 0.0
    %495 = vmatprep.mubr.f32.mxu0 0.0
    %496 = vmatmul.mubr.f32.gmra.mrb[0].mxu0 %v335
    %v497 = vpop.f32.mrb[0].mxu0
    %v498 = vadd.f32 0.0, %v497
    %v499 = vpop.f32.mrb[0].mxu0
    %500 = vdwg.mxu0
    %v501 = vmax.f32 %v408, %v498
    %s502 = scalar_lea.vmem [#allocation11], 256
    %v503 = vld [vmem:[%s502] sm:$0xff]
    %v504 = vld [vmem:[%s502 + $0x8] sm:$0xff]
    %v505 = vld [vmem:[%s502 + $0x10] sm:$0xff]
    %v506 = vld [vmem:[%s502 + $0x18] sm:$0xff]
    %v507 = vld [vmem:[%s502 + $0x20] sm:$0xff]
    %v508 = vld [vmem:[%s502 + $0x28] sm:$0xff]
    %v509 = vld [vmem:[%s502 + $0x30] sm:$0xff]
    %v510 = vld [vmem:[%s502 + $0x38] sm:$0xff]
    %v511 = vld [vmem:[%s502 + $0x40] sm:$0xff]
    %v512 = vld [vmem:[%s502 + $0x48] sm:$0xff]
    %v513 = vld [vmem:[%s502 + $0x50] sm:$0xff]
    %v514 = vld [vmem:[%s502 + $0x58] sm:$0xff]
    %v515 = vld [vmem:[%s502 + $0x60] sm:$0xff]
    %v516 = vld [vmem:[%s502 + $0x68] sm:$0xff]
    %v517 = vld [vmem:[%s502 + $0x70] sm:$0xff]
    %v518 = vld [vmem:[%s502 + $0x78] sm:$0x7f]
    %v520 = vsel %vm337, %v518, 0
    %522 = vmatprep.subr.mxu0 0.0
    %523 = vmatpush1.msra.mxu0 %v503
    %524 = vmatprep.subr.mxu0 0.0
    %525 = vmatpush1.msra.mxu0 %v504
    %526 = vmatprep.subr.mxu0 0.0
    %527 = vmatpush1.msra.mxu0 %v505
    %528 = vmatprep.subr.mxu0 0.0
    %529 = vmatpush1.msra.mxu0 %v506
    %530 = vmatprep.subr.mxu0 0.0
    %531 = vmatpush1.msra.mxu0 %v507
    %532 = vmatprep.subr.mxu0 0.0
    %533 = vmatpush1.msra.mxu0 %v508
    %534 = vmatprep.subr.mxu0 0.0
    %535 = vmatpush1.msra.mxu0 %v509
    %536 = vmatprep.subr.mxu0 0.0
    %537 = vmatpush1.msra.mxu0 %v510
    %538 = vmatprep.subr.mxu0 0.0
    %539 = vmatpush1.msra.mxu0 %v511
    %540 = vmatprep.subr.mxu0 0.0
    %541 = vmatpush1.msra.mxu0 %v512
    %542 = vmatprep.subr.mxu0 0.0
    %543 = vmatpush1.msra.mxu0 %v513
    %544 = vmatprep.subr.mxu0 0.0
    %545 = vmatpush1.msra.mxu0 %v514
    %546 = vmatprep.subr.mxu0 0.0
    %547 = vmatpush1.msra.mxu0 %v515
    %548 = vmatprep.subr.mxu0 0.0
    %549 = vmatpush1.msra.mxu0 %v516
    %550 = vmatprep.subr.mxu0 0.0
    %551 = vmatpush1.msra.mxu0 %v517
    %552 = vmatprep.subr.mxu0 0.0
    %553 = vmatpush1.msra.mxu0 %v520
    %554 = vmatprep.subr.mxu0 0.0
    %555 = vmatpush1.msra.mxu0 0.0
    %556 = vmatprep.subr.mxu0 0.0
    %557 = vmatpush1.msra.mxu0 0.0
    %558 = vmatprep.subr.mxu0 0.0
    %559 = vmatpush1.msra.mxu0 0.0
    %560 = vmatprep.subr.mxu0 0.0
    %561 = vmatpush1.msra.mxu0 0.0
    %562 = vmatprep.subr.mxu0 0.0
    %563 = vmatpush1.msra.mxu0 0.0
    %564 = vmatprep.subr.mxu0 0.0
    %565 = vmatpush1.msra.mxu0 0.0
    %566 = vmatprep.subr.mxu0 0.0
    %567 = vmatpush1.msra.mxu0 0.0
    %568 = vmatprep.subr.mxu0 0.0
    %569 = vmatpush1.msra.mxu0 0.0
    %570 = vmatprep.subr.mxu0 0.0
    %571 = vmatpush1.msra.mxu0 0.0
    %572 = vmatprep.subr.mxu0 0.0
    %573 = vmatpush1.msra.mxu0 0.0
    %574 = vmatprep.subr.mxu0 0.0
    %575 = vmatpush1.msra.mxu0 0.0
    %576 = vmatprep.subr.mxu0 0.0
    %577 = vmatpush1.msra.mxu0 0.0
    %578 = vmatprep.subr.mxu0 0.0
    %579 = vmatpush1.msra.mxu0 0.0
    %580 = vmatprep.subr.mxu0 0.0
    %581 = vmatpush1.msra.mxu0 0.0
    %582 = vmatprep.subr.mxu0 0.0
    %583 = vmatpush1.msra.mxu0 0.0
    %584 = vmatprep.subr.mxu0 0.0
    %585 = vmatpush1.msra.mxu0 0.0
    %586 = vmatprep.mubr.f32.mxu0 0.0
    %587 = vmatmul.mubr.f32.gmra.mrb[0].mxu0 %v335
    %v588 = vpop.f32.mrb[0].mxu0
    %v589 = vadd.f32 0.0, %v588
    %v590 = vpop.f32.mrb[0].mxu0
    %591 = vdwg.mxu0
    %v592 = vmax.f32 %v501, %v589
    %v593 = vld [vmem:[#allocation12] sm:$0xff]
    %v594 = vld [vmem:[#allocation12 + $0x8] sm:$0xff]
    %v595 = vld [vmem:[#allocation12 + $0x10] sm:$0xff]
    %v596 = vld [vmem:[#allocation12 + $0x18] sm:$0xff]
    %v597 = vld [vmem:[#allocation12 + $0x20] sm:$0xff]
    %v598 = vld [vmem:[#allocation12 + $0x28] sm:$0xff]
    %v599 = vld [vmem:[#allocation12 + $0x30] sm:$0xff]
    %v600 = vld [vmem:[#allocation12 + $0x38] sm:$0x7f]
    %s601 = sld [smem:[#allocation15 + $0x1]]
    %v602 = vstv %s601
    %vm603 = vcmask 515072
    %v605 = vsel %vm603, %v592, 0
    %v608 = vsel %vm337, %v600, 0
    %610 = vmatprep.subr.mxu0 0.0
    %611 = vmatpush1.msra.mxu0 %v593
    %612 = vmatprep.subr.mxu0 0.0
    %613 = vmatpush1.msra.mxu0 %v594
    %614 = vmatprep.subr.mxu0 0.0
    %615 = vmatpush1.msra.mxu0 %v595
    %616 = vmatprep.subr.mxu0 0.0
    %617 = vmatpush1.msra.mxu0 %v596
    %618 = vmatprep.subr.mxu0 0.0
    %619 = vmatpush1.msra.mxu0 %v597
    %620 = vmatprep.subr.mxu0 0.0
    %621 = vmatpush1.msra.mxu0 %v598
    %622 = vmatprep.subr.mxu0 0.0
    %623 = vmatpush1.msra.mxu0 %v599
    %624 = vmatprep.subr.mxu0 0.0
    %625 = vmatpush1.msra.mxu0 %v608
    %626 = vmatprep.subr.mxu0 0.0
    %627 = vmatpush1.msra.mxu0 0.0
    %628 = vmatprep.subr.mxu0 0.0
    %629 = vmatpush1.msra.mxu0 0.0
    %630 = vmatprep.subr.mxu0 0.0
    %631 = vmatpush1.msra.mxu0 0.0
    %632 = vmatprep.subr.mxu0 0.0
    %633 = vmatpush1.msra.mxu0 0.0
    %634 = vmatprep.subr.mxu0 0.0
    %635 = vmatpush1.msra.mxu0 0.0
    %636 = vmatprep.subr.mxu0 0.0
    %637 = vmatpush1.msra.mxu0 0.0
    %638 = vmatprep.subr.mxu0 0.0
    %639 = vmatpush1.msra.mxu0 0.0
    %640 = vmatprep.subr.mxu0 0.0
    %641 = vmatpush1.msra.mxu0 0.0
    %642 = vmatprep.subr.mxu0 0.0
    %643 = vmatpush1.msra.mxu0 0.0
    %644 = vmatprep.subr.mxu0 0.0
    %645 = vmatpush1.msra.mxu0 0.0
    %646 = vmatprep.subr.mxu0 0.0
    %647 = vmatpush1.msra.mxu0 0.0
    %648 = vmatprep.subr.mxu0 0.0
    %649 = vmatpush1.msra.mxu0 0.0
    %650 = vmatprep.subr.mxu0 0.0
    %651 = vmatpush1.msra.mxu0 0.0
    %652 = vmatprep.subr.mxu0 0.0
    %653 = vmatpush1.msra.mxu0 0.0
    %654 = vmatprep.subr.mxu0 0.0
    %655 = vmatpush1.msra.mxu0 0.0
    %656 = vmatprep.subr.mxu0 0.0
    %657 = vmatpush1.msra.mxu0 0.0
    %658 = vmatprep.subr.mxu0 0.0
    %659 = vmatpush1.msra.mxu0 0.0
    %660 = vmatprep.subr.mxu0 0.0
    %661 = vmatpush1.msra.mxu0 0.0
    %662 = vmatprep.subr.mxu0 0.0
    %663 = vmatpush1.msra.mxu0 0.0
    %664 = vmatprep.subr.mxu0 0.0
    %665 = vmatpush1.msra.mxu0 0.0
    %666 = vmatprep.subr.mxu0 0.0
    %667 = vmatpush1.msra.mxu0 0.0
    %668 = vmatprep.subr.mxu0 0.0
    %669 = vmatpush1.msra.mxu0 0.0
    %670 = vmatprep.subr.mxu0 0.0
    %671 = vmatpush1.msra.mxu0 0.0
    %672 = vmatprep.subr.mxu0 0.0
    %673 = vmatpush1.msra.mxu0 0.0
    %674 = vmatprep.mubr.f32.mxu0 0.0
    %675 = vmatmul.mubr.f32.gmra.mrb[0].mxu0 %v605
    %v676 = vpop.f32.mrb[0].mxu0
    %v677 = vadd.f32 %v602, %v676
    %v678 = vpop.f32.mrb[0].mxu0
    %679 = vdwg.mxu0
    %v680 = vld [vmem:[#allocation14] sm:$0xff]
    %v681 = vld [vmem:[#allocation14 + $0x8] sm:$0xff]
    %v682 = vld [vmem:[#allocation14 + $0x10] sm:$0xff]
    %v683 = vld [vmem:[#allocation14 + $0x18] sm:$0x7f]
    %vm684 = vcmask 252928
    %v686 = vsel %vm684, %v677, 0
    %v689 = vsel %vm337, %v683, 0
    %691 = vmatprep.subr.mxu0 0.0
    %692 = vmatpush1.msra.mxu0 %v680
    %693 = vmatprep.subr.mxu0 0.0
    %694 = vmatpush1.msra.mxu0 %v681
    %695 = vmatprep.subr.mxu0 0.0
    %696 = vmatpush1.msra.mxu0 %v682
    %697 = vmatprep.subr.mxu0 0.0
    %698 = vmatpush1.msra.mxu0 %v689
    %699 = vmatprep.subr.mxu0 0.0
    %700 = vmatpush1.msra.mxu0 0.0
    %701 = vmatprep.subr.mxu0 0.0
    %702 = vmatpush1.msra.mxu0 0.0
    %703 = vmatprep.subr.mxu0 0.0
    %704 = vmatpush1.msra.mxu0 0.0
    %705 = vmatprep.subr.mxu0 0.0
    %706 = vmatpush1.msra.mxu0 0.0
    %707 = vmatprep.subr.mxu0 0.0
    %708 = vmatpush1.msra.mxu0 0.0
    %709 = vmatprep.subr.mxu0 0.0
    %710 = vmatpush1.msra.mxu0 0.0
    %711 = vmatprep.subr.mxu0 0.0
    %712 = vmatpush1.msra.mxu0 0.0
    %713 = vmatprep.subr.mxu0 0.0
    %714 = vmatpush1.msra.mxu0 0.0
    %715 = vmatprep.subr.mxu0 0.0
    %716 = vmatpush1.msra.mxu0 0.0
    %717 = vmatprep.subr.mxu0 0.0
    %718 = vmatpush1.msra.mxu0 0.0
    %719 = vmatprep.subr.mxu0 0.0
    %720 = vmatpush1.msra.mxu0 0.0
    %721 = vmatprep.subr.mxu0 0.0
    %722 = vmatpush1.msra.mxu0 0.0
    %723 = vmatprep.subr.mxu0 0.0
    %724 = vmatpush1.msra.mxu0 0.0
    %725 = vmatprep.subr.mxu0 0.0
    %726 = vmatpush1.msra.mxu0 0.0
    %727 = vmatprep.subr.mxu0 0.0
    %728 = vmatpush1.msra.mxu0 0.0
    %729 = vmatprep.subr.mxu0 0.0
    %730 = vmatpush1.msra.mxu0 0.0
    %731 = vmatprep.subr.mxu0 0.0
    %732 = vmatpush1.msra.mxu0 0.0
    %733 = vmatprep.subr.mxu0 0.0
    %734 = vmatpush1.msra.mxu0 0.0
    %735 = vmatprep.subr.mxu0 0.0
    %736 = vmatpush1.msra.mxu0 0.0
    %737 = vmatprep.subr.mxu0 0.0
    %738 = vmatpush1.msra.mxu0 0.0
    %739 = vmatprep.subr.mxu0 0.0
    %740 = vmatpush1.msra.mxu0 0.0
    %741 = vmatprep.subr.mxu0 0.0
    %742 = vmatpush1.msra.mxu0 0.0
    %743 = vmatprep.subr.mxu0 0.0
    %744 = vmatpush1.msra.mxu0 0.0
    %745 = vmatprep.subr.mxu0 0.0
    %746 = vmatpush1.msra.mxu0 0.0
    %747 = vmatprep.subr.mxu0 0.0
    %748 = vmatpush1.msra.mxu0 0.0
    %749 = vmatprep.subr.mxu0 0.0
    %750 = vmatpush1.msra.mxu0 0.0
    %751 = vmatprep.subr.mxu0 0.0
    %752 = vmatpush1.msra.mxu0 0.0
    %753 = vmatprep.subr.mxu0 0.0
    %754 = vmatpush1.msra.mxu0 0.0
    %755 = vmatprep.mubr.f32.mxu0 0.0
    %756 = vmatmul.mubr.f32.gmra.mrb[0].mxu0 %v686
    %v757 = vpop.f32.mrb[0].mxu0
    %v758 = vadd.f32 0.0, %v757
    %v759 = vpop.f32.mrb[0].mxu0
    %760 = vdwg.mxu0
    %s761 = scalar_lea.vmem [#allocation14], 32
    %v762 = vld [vmem:[%s761] sm:$0xff]
    %v763 = vld [vmem:[%s761 + $0x8] sm:$0xff]
    %v764 = vld [vmem:[%s761 + $0x10] sm:$0xff]
    %v765 = vld [vmem:[%s761 + $0x18] sm:$0x7f]
    %v767 = vsel %vm337, %v765, 0
    %769 = vmatprep.subr.mxu0 0.0
    %770 = vmatpush1.msra.mxu0 %v762
    %771 = vmatprep.subr.mxu0 0.0
    %772 = vmatpush1.msra.mxu0 %v763
    %773 = vmatprep.subr.mxu0 0.0
    %774 = vmatpush1.msra.mxu0 %v764
    %775 = vmatprep.subr.mxu0 0.0
    %776 = vmatpush1.msra.mxu0 %v767
    %777 = vmatprep.subr.mxu0 0.0
    %778 = vmatpush1.msra.mxu0 0.0
    %779 = vmatprep.subr.mxu0 0.0
    %780 = vmatpush1.msra.mxu0 0.0
    %781 = vmatprep.subr.mxu0 0.0
    %782 = vmatpush1.msra.mxu0 0.0
    %783 = vmatprep.subr.mxu0 0.0
    %784 = vmatpush1.msra.mxu0 0.0
    %785 = vmatprep.subr.mxu0 0.0
    %786 = vmatpush1.msra.mxu0 0.0
    %787 = vmatprep.subr.mxu0 0.0
    %788 = vmatpush1.msra.mxu0 0.0
    %789 = vmatprep.subr.mxu0 0.0
    %790 = vmatpush1.msra.mxu0 0.0
    %791 = vmatprep.subr.mxu0 0.0
    %792 = vmatpush1.msra.mxu0 0.0
    %793 = vmatprep.subr.mxu0 0.0
    %794 = vmatpush1.msra.mxu0 0.0
    %795 = vmatprep.subr.mxu0 0.0
    %796 = vmatpush1.msra.mxu0 0.0
    %797 = vmatprep.subr.mxu0 0.0
    %798 = vmatpush1.msra.mxu0 0.0
    %799 = vmatprep.subr.mxu0 0.0
    %800 = vmatpush1.msra.mxu0 0.0
    %801 = vmatprep.subr.mxu0 0.0
    %802 = vmatpush1.msra.mxu0 0.0
    %803 = vmatprep.subr.mxu0 0.0
    %804 = vmatpush1.msra.mxu0 0.0
    %805 = vmatprep.subr.mxu0 0.0
    %806 = vmatpush1.msra.mxu0 0.0
    %807 = vmatprep.subr.mxu0 0.0
    %808 = vmatpush1.msra.mxu0 0.0
    %809 = vmatprep.subr.mxu0 0.0
    %810 = vmatpush1.msra.mxu0 0.0
    %811 = vmatprep.subr.mxu0 0.0
    %812 = vmatpush1.msra.mxu0 0.0
    %813 = vmatprep.subr.mxu0 0.0
    %814 = vmatpush1.msra.mxu0 0.0
    %815 = vmatprep.subr.mxu0 0.0
    %816 = vmatpush1.msra.mxu0 0.0
    %817 = vmatprep.subr.mxu0 0.0
    %818 = vmatpush1.msra.mxu0 0.0
    %819 = vmatprep.subr.mxu0 0.0
    %820 = vmatpush1.msra.mxu0 0.0
    %821 = vmatprep.subr.mxu0 0.0
    %822 = vmatpush1.msra.mxu0 0.0
    %823 = vmatprep.subr.mxu0 0.0
    %824 = vmatpush1.msra.mxu0 0.0
    %825 = vmatprep.subr.mxu0 0.0
    %826 = vmatpush1.msra.mxu0 0.0
    %827 = vmatprep.subr.mxu0 0.0
    %828 = vmatpush1.msra.mxu0 0.0
    %829 = vmatprep.subr.mxu0 0.0
    %830 = vmatpush1.msra.mxu0 0.0
    %831 = vmatprep.subr.mxu0 0.0
    %832 = vmatpush1.msra.mxu0 0.0
    %833 = vmatprep.mubr.f32.mxu0 0.0
    %834 = vmatmul.mubr.f32.gmra.mrb[0].mxu0 %v686
    %v835 = vpop.f32.mrb[0].mxu0
    %v836 = vadd.f32 0.0, %v835
    %v837 = vpop.f32.mrb[0].mxu0
    %838 = vdwg.mxu0
    %v839 = vmax.f32 %v758, %v836
    %s840 = scalar_lea.vmem [#allocation14], 64
    %v841 = vld [vmem:[%s840] sm:$0xff]
    %v842 = vld [vmem:[%s840 + $0x8] sm:$0xff]
    %v843 = vld [vmem:[%s840 + $0x10] sm:$0xff]
    %v844 = vld [vmem:[%s840 + $0x18] sm:$0x7f]
    %v846 = vsel %vm337, %v844, 0
    %848 = vmatprep.subr.mxu0 0.0
    %849 = vmatpush1.msra.mxu0 %v841
    %850 = vmatprep.subr.mxu0 0.0
    %851 = vmatpush1.msra.mxu0 %v842
    %852 = vmatprep.subr.mxu0 0.0
    %853 = vmatpush1.msra.mxu0 %v843
    %854 = vmatprep.subr.mxu0 0.0
    %855 = vmatpush1.msra.mxu0 %v846
    %856 = vmatprep.subr.mxu0 0.0
    %857 = vmatpush1.msra.mxu0 0.0
    %858 = vmatprep.subr.mxu0 0.0
    %859 = vmatpush1.msra.mxu0 0.0
    %860 = vmatprep.subr.mxu0 0.0
    %861 = vmatpush1.msra.mxu0 0.0
    %862 = vmatprep.subr.mxu0 0.0
    %863 = vmatpush1.msra.mxu0 0.0
    %864 = vmatprep.subr.mxu0 0.0
    %865 = vmatpush1.msra.mxu0 0.0
    %866 = vmatprep.subr.mxu0 0.0
    %867 = vmatpush1.msra.mxu0 0.0
    %868 = vmatprep.subr.mxu0 0.0
    %869 = vmatpush1.msra.mxu0 0.0
    %870 = vmatprep.subr.mxu0 0.0
    %871 = vmatpush1.msra.mxu0 0.0
    %872 = vmatprep.subr.mxu0 0.0
    %873 = vmatpush1.msra.mxu0 0.0
    %874 = vmatprep.subr.mxu0 0.0
    %875 = vmatpush1.msra.mxu0 0.0
    %876 = vmatprep.subr.mxu0 0.0
    %877 = vmatpush1.msra.mxu0 0.0
    %878 = vmatprep.subr.mxu0 0.0
    %879 = vmatpush1.msra.mxu0 0.0
    %880 = vmatprep.subr.mxu0 0.0
    %881 = vmatpush1.msra.mxu0 0.0
    %882 = vmatprep.subr.mxu0 0.0
    %883 = vmatpush1.msra.mxu0 0.0
    %884 = vmatprep.subr.mxu0 0.0
    %885 = vmatpush1.msra.mxu0 0.0
    %886 = vmatprep.subr.mxu0 0.0
    %887 = vmatpush1.msra.mxu0 0.0
    %888 = vmatprep.subr.mxu0 0.0
    %889 = vmatpush1.msra.mxu0 0.0
    %890 = vmatprep.subr.mxu0 0.0
    %891 = vmatpush1.msra.mxu0 0.0
    %892 = vmatprep.subr.mxu0 0.0
    %893 = vmatpush1.msra.mxu0 0.0
    %894 = vmatprep.subr.mxu0 0.0
    %895 = vmatpush1.msra.mxu0 0.0
    %896 = vmatprep.subr.mxu0 0.0
    %897 = vmatpush1.msra.mxu0 0.0
    %898 = vmatprep.subr.mxu0 0.0
    %899 = vmatpush1.msra.mxu0 0.0
    %900 = vmatprep.subr.mxu0 0.0
    %901 = vmatpush1.msra.mxu0 0.0
    %902 = vmatprep.subr.mxu0 0.0
    %903 = vmatpush1.msra.mxu0 0.0
    %904 = vmatprep.subr.mxu0 0.0
    %905 = vmatpush1.msra.mxu0 0.0
    %906 = vmatprep.subr.mxu0 0.0
    %907 = vmatpush1.msra.mxu0 0.0
    %908 = vmatprep.subr.mxu0 0.0
    %909 = vmatpush1.msra.mxu0 0.0
    %910 = vmatprep.subr.mxu0 0.0
    %911 = vmatpush1.msra.mxu0 0.0
    %912 = vmatprep.mubr.f32.mxu0 0.0
    %913 = vmatmul.mubr.f32.gmra.mrb[0].mxu0 %v686
    %v914 = vpop.f32.mrb[0].mxu0
    %v915 = vadd.f32 0.0, %v914
    %v916 = vpop.f32.mrb[0].mxu0
    %917 = vdwg.mxu0
    %v918 = vmax.f32 %v839, %v915
    %v919 = vld [vmem:[%s6] sm:$0xf]
    %v920 = vld [vmem:[%s7] sm:$0xf]
    %v921 = vld [vmem:[%s8] sm:$0xf]
    %923 = vset.pattern.permute.xlu0 0
    %924 = vperm.xlu0 %923, %v918
    %v925 = vpop.permute.xlu0 %924
    %v928 = vlaneseq
    %v929 = vshrl.u32 %v928, 7
    %v930 = vsub.s32 0, %v929
    %v931 = vrot.slane %v919, %v930
    %v932 = vlaneseq
    %v933 = vshrl.u32 %v932, 7
    %v934 = vsub.s32 1, %v933
    %v935 = vrot.slane %v919, %v934
    %v936 = vlaneseq
    %v937 = vshrl.u32 %v936, 7
    %v938 = vsub.s32 2, %v937
    %v939 = vrot.slane %v919, %v938
    %v940 = vlaneseq
    %v941 = vshrl.u32 %v940, 7
    %v942 = vsub.s32 3, %v941
    %v943 = vrot.slane %v919, %v942
    %v948 = vmul.f32 %v925, %v931
    %v949 = vmul.f32 %v925, %v935
    %v950 = vmul.f32 %v925, %v939
    %v951 = vmul.f32 %v925, %v943
    %952 = vset.pattern.permute.xlu0 14
    %953 = vperm.xlu0 %952, %v918
    %v954 = vpop.permute.xlu0 %953
    %v957 = vlaneseq
    %v958 = vshrl.u32 %v957, 7
    %v959 = vsub.s32 0, %v958
    %v960 = vrot.slane %v920, %v959
    %v961 = vlaneseq
    %v962 = vshrl.u32 %v961, 7
    %v963 = vsub.s32 1, %v962
    %v964 = vrot.slane %v920, %v963
    %v965 = vlaneseq
    %v966 = vshrl.u32 %v965, 7
    %v967 = vsub.s32 2, %v966
    %v968 = vrot.slane %v920, %v967
    %v969 = vlaneseq
    %v970 = vshrl.u32 %v969, 7
    %v971 = vsub.s32 3, %v970
    %v972 = vrot.slane %v920, %v971
    %v977 = vmul.f32 %v954, %v960
    %v978 = vmul.f32 %v954, %v964
    %v979 = vmul.f32 %v954, %v968
    %v980 = vmul.f32 %v954, %v972
    %v981 = vadd.f32 %v948, %v977
    %v982 = vadd.f32 %v949, %v978
    %v983 = vadd.f32 %v950, %v979
    %v984 = vadd.f32 %v951, %v980
    %v986 = vlaneseq
    %v987 = vshrl.u32 %v986, 7
    %v988 = vsub.s32 0, %v987
    %v989 = vrot.slane %v921, %v988
    %v990 = vlaneseq
    %v991 = vshrl.u32 %v990, 7
    %v992 = vsub.s32 1, %v991
    %v993 = vrot.slane %v921, %v992
    %v994 = vlaneseq
    %v995 = vshrl.u32 %v994, 7
    %v996 = vsub.s32 2, %v995
    %v997 = vrot.slane %v921, %v996
    %v998 = vlaneseq
    %v999 = vshrl.u32 %v998, 7
    %v1000 = vsub.s32 3, %v999
    %v1001 = vrot.slane %v921, %v1000
    %v1006 = vadd.f32 %v981, %v989
    %v1007 = vadd.f32 %v982, %v993
    %v1008 = vadd.f32 %v983, %v997
    %v1009 = vadd.f32 %v984, %v1001
    %1010 = vst [vmem:[#allocation3] sm:$0x3] %v1006
    %1011 = vst [vmem:[#allocation3 + $0x8] sm:$0x3] %v1007
    %1012 = vst [vmem:[#allocation3 + $0x10] sm:$0x3] %v1008
    %1013 = vst [vmem:[#allocation3 + $0x18] sm:$0x3] %v1009
    %1014 = vset.pattern.permute.xlu0 1
    %1015 = vperm.xlu0 %1014, %v918
    %v1016 = vpop.permute.xlu0 %1015
    %v1018 = vmul.f32 %v1016, %v931
    %v1019 = vmul.f32 %v1016, %v935
    %v1020 = vmul.f32 %v1016, %v939
    %v1021 = vmul.f32 %v1016, %v943
    %1022 = vset.pattern.permute.xlu0 13
    %1023 = vperm.xlu0 %1022, %v918
    %v1024 = vpop.permute.xlu0 %1023
    %v1026 = vmul.f32 %v1024, %v960
    %v1027 = vmul.f32 %v1024, %v964
    %v1028 = vmul.f32 %v1024, %v968
    %v1029 = vmul.f32 %v1024, %v972
    %v1030 = vadd.f32 %v1018, %v1026
    %v1031 = vadd.f32 %v1019, %v1027
    %v1032 = vadd.f32 %v1020, %v1028
    %v1033 = vadd.f32 %v1021, %v1029
    %v1034 = vadd.f32 %v1030, %v989
    %v1035 = vadd.f32 %v1031, %v993
    %v1036 = vadd.f32 %v1032, %v997
    %v1037 = vadd.f32 %v1033, %v1001
    %v1042 = vrot.slane %v1034, 6
    %v1043 = vrot.slane %v1035, 6
    %v1044 = vrot.slane %v1036, 6
    %v1045 = vrot.slane %v1037, 6
    %1050 = vst [vmem:[#allocation3] sm:$0xc] %v1042
    %1051 = vst [vmem:[#allocation3 + $0x8] sm:$0xc] %v1043
    %1052 = vst [vmem:[#allocation3 + $0x10] sm:$0xc] %v1044
    %1053 = vst [vmem:[#allocation3 + $0x18] sm:$0xc] %v1045
    %1054 = vset.pattern.permute.xlu0 2
    %1055 = vperm.xlu0 %1054, %v918
    %v1056 = vpop.permute.xlu0 %1055
    %v1058 = vmul.f32 %v1056, %v931
    %v1059 = vmul.f32 %v1056, %v935
    %v1060 = vmul.f32 %v1056, %v939
    %v1061 = vmul.f32 %v1056, %v943
    %1062 = vset.pattern.permute.xlu0 12
    %1063 = vperm.xlu0 %1062, %v918
    %v1064 = vpop.permute.xlu0 %1063
    %v1066 = vmul.f32 %v1064, %v960
    %v1067 = vmul.f32 %v1064, %v964
    %v1068 = vmul.f32 %v1064, %v968
    %v1069 = vmul.f32 %v1064, %v972
    %v1070 = vadd.f32 %v1058, %v1066
    %v1071 = vadd.f32 %v1059, %v1067
    %v1072 = vadd.f32 %v1060, %v1068
    %v1073 = vadd.f32 %v1061, %v1069
    %v1074 = vadd.f32 %v1070, %v989
    %v1075 = vadd.f32 %v1071, %v993
    %v1076 = vadd.f32 %v1072, %v997
    %v1077 = vadd.f32 %v1073, %v1001
    %v1082 = vrot.slane %v1074, 4
    %v1083 = vrot.slane %v1075, 4
    %v1084 = vrot.slane %v1076, 4
    %v1085 = vrot.slane %v1077, 4
    %1090 = vst [vmem:[#allocation3] sm:$0x30] %v1082
    %1091 = vst [vmem:[#allocation3 + $0x8] sm:$0x30] %v1083
    %1092 = vst [vmem:[#allocation3 + $0x10] sm:$0x30] %v1084
    %1093 = vst [vmem:[#allocation3 + $0x18] sm:$0x30] %v1085
    %1094 = vset.pattern.permute.xlu0 3
    %1095 = vperm.xlu0 %1094, %v918
    %v1096 = vpop.permute.xlu0 %1095
    %v1098 = vmul.f32 %v1096, %v931
    %v1099 = vmul.f32 %v1096, %v935
    %v1100 = vmul.f32 %v1096, %v939
    %v1101 = vmul.f32 %v1096, %v943
    %1102 = vset.pattern.permute.xlu0 11
    %1103 = vperm.xlu0 %1102, %v918
    %v1104 = vpop.permute.xlu0 %1103
    %v1106 = vmul.f32 %v1104, %v960
    %v1107 = vmul.f32 %v1104, %v964
    %v1108 = vmul.f32 %v1104, %v968
    %v1109 = vmul.f32 %v1104, %v972
    %v1110 = vadd.f32 %v1098, %v1106
    %v1111 = vadd.f32 %v1099, %v1107
    %v1112 = vadd.f32 %v1100, %v1108
    %v1113 = vadd.f32 %v1101, %v1109
    %v1114 = vadd.f32 %v1110, %v989
    %v1115 = vadd.f32 %v1111, %v993
    %v1116 = vadd.f32 %v1112, %v997
    %v1117 = vadd.f32 %v1113, %v1001
    %v1122 = vrot.slane %v1114, 2
    %v1123 = vrot.slane %v1115, 2
    %v1124 = vrot.slane %v1116, 2
    %v1125 = vrot.slane %v1117, 2
    %1130 = vst [vmem:[#allocation3] sm:$0xc0] %v1122
    %1131 = vst [vmem:[#allocation3 + $0x8] sm:$0xc0] %v1123
    %1132 = vst [vmem:[#allocation3 + $0x10] sm:$0xc0] %v1124
    %1133 = vst [vmem:[#allocation3 + $0x18] sm:$0xc0] %v1125
    %1134 = vset.pattern.permute.xlu0 4
    %1135 = vperm.xlu0 %1134, %v918
    %v1136 = vpop.permute.xlu0 %1135
    %v1138 = vmul.f32 %v1136, %v931
    %v1139 = vmul.f32 %v1136, %v935
    %v1140 = vmul.f32 %v1136, %v939
    %v1141 = vmul.f32 %v1136, %v943
    %1142 = vset.pattern.permute.xlu0 10
    %1143 = vperm.xlu0 %1142, %v918
    %v1144 = vpop.permute.xlu0 %1143
    %v1146 = vmul.f32 %v1144, %v960
    %v1147 = vmul.f32 %v1144, %v964
    %v1148 = vmul.f32 %v1144, %v968
    %v1149 = vmul.f32 %v1144, %v972
    %v1150 = vadd.f32 %v1138, %v1146
    %v1151 = vadd.f32 %v1139, %v1147
    %v1152 = vadd.f32 %v1140, %v1148
    %v1153 = vadd.f32 %v1141, %v1149
    %v1154 = vadd.f32 %v1150, %v989
    %v1155 = vadd.f32 %v1151, %v993
    %v1156 = vadd.f32 %v1152, %v997
    %v1157 = vadd.f32 %v1153, %v1001
    %1158 = vst [vmem:[#allocation3 + $0x20] sm:$0x3] %v1154
    %1159 = vst [vmem:[#allocation3 + $0x28] sm:$0x3] %v1155
    %1160 = vst [vmem:[#allocation3 + $0x30] sm:$0x3] %v1156
    %1161 = vst [vmem:[#allocation3 + $0x38] sm:$0x3] %v1157
    %1162 = vset.pattern.permute.xlu0 5
    %1163 = vperm.xlu0 %1162, %v918
    %v1164 = vpop.permute.xlu0 %1163
    %v1166 = vmul.f32 %v1164, %v931
    %v1167 = vmul.f32 %v1164, %v935
    %v1168 = vmul.f32 %v1164, %v939
    %v1169 = vmul.f32 %v1164, %v943
    %1170 = vset.pattern.permute.xlu0 9
    %1171 = vperm.xlu0 %1170, %v918
    %v1172 = vpop.permute.xlu0 %1171
    %v1174 = vmul.f32 %v1172, %v960
    %v1175 = vmul.f32 %v1172, %v964
    %v1176 = vmul.f32 %v1172, %v968
    %v1177 = vmul.f32 %v1172, %v972
    %v1178 = vadd.f32 %v1166, %v1174
    %v1179 = vadd.f32 %v1167, %v1175
    %v1180 = vadd.f32 %v1168, %v1176
    %v1181 = vadd.f32 %v1169, %v1177
    %v1182 = vadd.f32 %v1178, %v989
    %v1183 = vadd.f32 %v1179, %v993
    %v1184 = vadd.f32 %v1180, %v997
    %v1185 = vadd.f32 %v1181, %v1001
    %v1190 = vrot.slane %v1182, 6
    %v1191 = vrot.slane %v1183, 6
    %v1192 = vrot.slane %v1184, 6
    %v1193 = vrot.slane %v1185, 6
    %1198 = vst [vmem:[#allocation3 + $0x20] sm:$0xc] %v1190
    %1199 = vst [vmem:[#allocation3 + $0x28] sm:$0xc] %v1191
    %1200 = vst [vmem:[#allocation3 + $0x30] sm:$0xc] %v1192
    %1201 = vst [vmem:[#allocation3 + $0x38] sm:$0xc] %v1193
    %1202 = vset.pattern.permute.xlu0 6
    %1203 = vperm.xlu0 %1202, %v918
    %v1204 = vpop.permute.xlu0 %1203
    %v1206 = vmul.f32 %v1204, %v931
    %v1207 = vmul.f32 %v1204, %v935
    %v1208 = vmul.f32 %v1204, %v939
    %v1209 = vmul.f32 %v1204, %v943
    %1210 = vset.pattern.permute.xlu0 8
    %1211 = vperm.xlu0 %1210, %v918
    %v1212 = vpop.permute.xlu0 %1211
    %v1214 = vmul.f32 %v1212, %v960
    %v1215 = vmul.f32 %v1212, %v964
    %v1216 = vmul.f32 %v1212, %v968
    %v1217 = vmul.f32 %v1212, %v972
    %v1218 = vadd.f32 %v1206, %v1214
    %v1219 = vadd.f32 %v1207, %v1215
    %v1220 = vadd.f32 %v1208, %v1216
    %v1221 = vadd.f32 %v1209, %v1217
    %v1222 = vadd.f32 %v1218, %v989
    %v1223 = vadd.f32 %v1219, %v993
    %v1224 = vadd.f32 %v1220, %v997
    %v1225 = vadd.f32 %v1221, %v1001
    %v1230 = vrot.slane %v1222, 4
    %v1231 = vrot.slane %v1223, 4
    %v1232 = vrot.slane %v1224, 4
    %v1233 = vrot.slane %v1225, 4
    %1238 = vst [vmem:[#allocation3 + $0x20] sm:$0x30] %v1230
    %1239 = vst [vmem:[#allocation3 + $0x28] sm:$0x30] %v1231
    %1240 = vst [vmem:[#allocation3 + $0x30] sm:$0x30] %v1232
    %1241 = vst [vmem:[#allocation3 + $0x38] sm:$0x30] %v1233
    %1242 = vset.pattern.permute.xlu0 7
    %1243 = vperm.xlu0 %1242, %v918
    %v1244 = vpop.permute.xlu0 %1243
    %v1246 = vmul.f32 %v1244, %v931
    %v1247 = vmul.f32 %v1244, %v935
    %v1248 = vmul.f32 %v1244, %v939
    %v1249 = vmul.f32 %v1244, %v943
    %v1250 = vmul.f32 %v1244, %v960
    %v1251 = vmul.f32 %v1244, %v964
    %v1252 = vmul.f32 %v1244, %v968
    %v1253 = vmul.f32 %v1244, %v972
    %v1254 = vadd.f32 %v1246, %v1250
    %v1255 = vadd.f32 %v1247, %v1251
    %v1256 = vadd.f32 %v1248, %v1252
    %v1257 = vadd.f32 %v1249, %v1253
    %v1258 = vadd.f32 %v1254, %v989
    %v1259 = vadd.f32 %v1255, %v993
    %v1260 = vadd.f32 %v1256, %v997
    %v1261 = vadd.f32 %v1257, %v1001
    %v1266 = vrot.slane %v1258, 2
    %v1267 = vrot.slane %v1259, 2
    %v1268 = vrot.slane %v1260, 2
    %v1269 = vrot.slane %v1261, 2
    %1274 = vst [vmem:[#allocation3 + $0x20] sm:$0xc0] %v1266
    %1275 = vst [vmem:[#allocation3 + $0x28] sm:$0xc0] %v1267
    %1276 = vst [vmem:[#allocation3 + $0x30] sm:$0xc0] %v1268
    %1277 = vst [vmem:[#allocation3 + $0x38] sm:$0xc0] %v1269
    %v1278 = vmul.f32 %v1212, %v931
    %v1279 = vmul.f32 %v1212, %v935
    %v1280 = vmul.f32 %v1212, %v939
    %v1281 = vmul.f32 %v1212, %v943
    %v1282 = vmul.f32 %v1204, %v960
    %v1283 = vmul.f32 %v1204, %v964
    %v1284 = vmul.f32 %v1204, %v968
    %v1285 = vmul.f32 %v1204, %v972
    %v1286 = vadd.f32 %v1278, %v1282
    %v1287 = vadd.f32 %v1279, %v1283
    %v1288 = vadd.f32 %v1280, %v1284
    %v1289 = vadd.f32 %v1281, %v1285
    %v1290 = vadd.f32 %v1286, %v989
    %v1291 = vadd.f32 %v1287, %v993
    %v1292 = vadd.f32 %v1288, %v997
    %v1293 = vadd.f32 %v1289, %v1001
    %1294 = vst [vmem:[#allocation3 + $0x40] sm:$0x3] %v1290
    %1295 = vst [vmem:[#allocation3 + $0x48] sm:$0x3] %v1291
    %1296 = vst [vmem:[#allocation3 + $0x50] sm:$0x3] %v1292
    %1297 = vst [vmem:[#allocation3 + $0x58] sm:$0x3] %v1293
    %v1298 = vmul.f32 %v1172, %v931
    %v1299 = vmul.f32 %v1172, %v935
    %v1300 = vmul.f32 %v1172, %v939
    %v1301 = vmul.f32 %v1172, %v943
    %v1302 = vmul.f32 %v1164, %v960
    %v1303 = vmul.f32 %v1164, %v964
    %v1304 = vmul.f32 %v1164, %v968
    %v1305 = vmul.f32 %v1164, %v972
    %v1306 = vadd.f32 %v1298, %v1302
    %v1307 = vadd.f32 %v1299, %v1303
    %v1308 = vadd.f32 %v1300, %v1304
    %v1309 = vadd.f32 %v1301, %v1305
    %v1310 = vadd.f32 %v1306, %v989
    %v1311 = vadd.f32 %v1307, %v993
    %v1312 = vadd.f32 %v1308, %v997
    %v1313 = vadd.f32 %v1309, %v1001
    %v1318 = vrot.slane %v1310, 6
    %v1319 = vrot.slane %v1311, 6
    %v1320 = vrot.slane %v1312, 6
    %v1321 = vrot.slane %v1313, 6
    %1326 = vst [vmem:[#allocation3 + $0x40] sm:$0xc] %v1318
    %1327 = vst [vmem:[#allocation3 + $0x48] sm:$0xc] %v1319
    %1328 = vst [vmem:[#allocation3 + $0x50] sm:$0xc] %v1320
    %1329 = vst [vmem:[#allocation3 + $0x58] sm:$0xc] %v1321
    %v1330 = vmul.f32 %v1144, %v931
    %v1331 = vmul.f32 %v1144, %v935
    %v1332 = vmul.f32 %v1144, %v939
    %v1333 = vmul.f32 %v1144, %v943
    %v1334 = vmul.f32 %v1136, %v960
    %v1335 = vmul.f32 %v1136, %v964
    %v1336 = vmul.f32 %v1136, %v968
    %v1337 = vmul.f32 %v1136, %v972
    %v1338 = vadd.f32 %v1330, %v1334
    %v1339 = vadd.f32 %v1331, %v1335
    %v1340 = vadd.f32 %v1332, %v1336
    %v1341 = vadd.f32 %v1333, %v1337
    %v1342 = vadd.f32 %v1338, %v989
    %v1343 = vadd.f32 %v1339, %v993
    %v1344 = vadd.f32 %v1340, %v997
    %v1345 = vadd.f32 %v1341, %v1001
    %v1350 = vrot.slane %v1342, 4
    %v1351 = vrot.slane %v1343, 4
    %v1352 = vrot.slane %v1344, 4
    %v1353 = vrot.slane %v1345, 4
    %1358 = vst [vmem:[#allocation3 + $0x40] sm:$0x30] %v1350
    %1359 = vst [vmem:[#allocation3 + $0x48] sm:$0x30] %v1351
    %1360 = vst [vmem:[#allocation3 + $0x50] sm:$0x30] %v1352
    %1361 = vst [vmem:[#allocation3 + $0x58] sm:$0x30] %v1353
    %v1362 = vmul.f32 %v1104, %v931
    %v1363 = vmul.f32 %v1104, %v935
    %v1364 = vmul.f32 %v1104, %v939
    %v1365 = vmul.f32 %v1104, %v943
    %v1366 = vmul.f32 %v1096, %v960
    %v1367 = vmul.f32 %v1096, %v964
    %v1368 = vmul.f32 %v1096, %v968
    %v1369 = vmul.f32 %v1096, %v972
    %v1370 = vadd.f32 %v1362, %v1366
    %v1371 = vadd.f32 %v1363, %v1367
    %v1372 = vadd.f32 %v1364, %v1368
    %v1373 = vadd.f32 %v1365, %v1369
    %v1374 = vadd.f32 %v1370, %v989
    %v1375 = vadd.f32 %v1371, %v993
    %v1376 = vadd.f32 %v1372, %v997
    %v1377 = vadd.f32 %v1373, %v1001
    %v1382 = vrot.slane %v1374, 2
    %v1383 = vrot.slane %v1375, 2
    %v1384 = vrot.slane %v1376, 2
    %v1385 = vrot.slane %v1377, 2
    %1390 = vst [vmem:[#allocation3 + $0x40] sm:$0xc0] %v1382
    %1391 = vst [vmem:[#allocation3 + $0x48] sm:$0xc0] %v1383
    %1392 = vst [vmem:[#allocation3 + $0x50] sm:$0xc0] %v1384
    %1393 = vst [vmem:[#allocation3 + $0x58] sm:$0xc0] %v1385
    %v1394 = vmul.f32 %v1064, %v931
    %v1395 = vmul.f32 %v1064, %v935
    %v1396 = vmul.f32 %v1064, %v939
    %v1397 = vmul.f32 %v1064, %v943
    %v1398 = vmul.f32 %v1056, %v960
    %v1399 = vmul.f32 %v1056, %v964
    %v1400 = vmul.f32 %v1056, %v968
    %v1401 = vmul.f32 %v1056, %v972
    %v1402 = vadd.f32 %v1394, %v1398
    %v1403 = vadd.f32 %v1395, %v1399
    %v1404 = vadd.f32 %v1396, %v1400
    %v1405 = vadd.f32 %v1397, %v1401
    %v1406 = vadd.f32 %v1402, %v989
    %v1407 = vadd.f32 %v1403, %v993
    %v1408 = vadd.f32 %v1404, %v997
    %v1409 = vadd.f32 %v1405, %v1001
    %1410 = vst [vmem:[#allocation3 + $0x60] sm:$0x3] %v1406
    %1411 = vst [vmem:[#allocation3 + $0x68] sm:$0x3] %v1407
    %1412 = vst [vmem:[#allocation3 + $0x70] sm:$0x3] %v1408
    %1413 = vst [vmem:[#allocation3 + $0x78] sm:$0x3] %v1409
    %v1414 = vmul.f32 %v1024, %v931
    %v1415 = vmul.f32 %v1024, %v935
    %v1416 = vmul.f32 %v1024, %v939
    %v1417 = vmul.f32 %v1024, %v943
    %v1418 = vmul.f32 %v1016, %v960
    %v1419 = vmul.f32 %v1016, %v964
    %v1420 = vmul.f32 %v1016, %v968
    %v1421 = vmul.f32 %v1016, %v972
    %v1422 = vadd.f32 %v1414, %v1418
    %v1423 = vadd.f32 %v1415, %v1419
    %v1424 = vadd.f32 %v1416, %v1420
    %v1425 = vadd.f32 %v1417, %v1421
    %v1426 = vadd.f32 %v1422, %v989
    %v1427 = vadd.f32 %v1423, %v993
    %v1428 = vadd.f32 %v1424, %v997
    %v1429 = vadd.f32 %v1425, %v1001
    %v1434 = vrot.slane %v1426, 6
    %v1435 = vrot.slane %v1427, 6
    %v1436 = vrot.slane %v1428, 6
    %v1437 = vrot.slane %v1429, 6
    %1442 = vst [vmem:[#allocation3 + $0x60] sm:$0xc] %v1434
    %1443 = vst [vmem:[#allocation3 + $0x68] sm:$0xc] %v1435
    %1444 = vst [vmem:[#allocation3 + $0x70] sm:$0xc] %v1436
    %1445 = vst [vmem:[#allocation3 + $0x78] sm:$0xc] %v1437
    %v1446 = vmul.f32 %v954, %v931
    %v1447 = vmul.f32 %v954, %v935
    %v1448 = vmul.f32 %v954, %v939
    %v1449 = vmul.f32 %v954, %v943
    %v1450 = vmul.f32 %v925, %v960
    %v1451 = vmul.f32 %v925, %v964
    %v1452 = vmul.f32 %v925, %v968
    %v1453 = vmul.f32 %v925, %v972
    %v1454 = vadd.f32 %v1446, %v1450
    %v1455 = vadd.f32 %v1447, %v1451
    %v1456 = vadd.f32 %v1448, %v1452
    %v1457 = vadd.f32 %v1449, %v1453
    %v1458 = vadd.f32 %v1454, %v989
    %v1459 = vadd.f32 %v1455, %v993
    %v1460 = vadd.f32 %v1456, %v997
    %v1461 = vadd.f32 %v1457, %v1001
    %v1466 = vrot.slane %v1458, 4
    %v1467 = vrot.slane %v1459, 4
    %v1468 = vrot.slane %v1460, 4
    %v1469 = vrot.slane %v1461, 4
    %1474 = vst [vmem:[#allocation3 + $0x60] sm:$0x30] %v1466
    %1475 = vst [vmem:[#allocation3 + $0x68] sm:$0x30] %v1467
    %1476 = vst [vmem:[#allocation3 + $0x70] sm:$0x30] %v1468
    %1477 = vst [vmem:[#allocation3 + $0x78] sm:$0x30] %v1469
    %v1478 = vld [vmem:[#allocation16] sm:$0xff]
    %v1479 = vld [vmem:[#allocation16 + $0x8] sm:$0xff]
    %v1480 = vld [vmem:[#allocation16 + $0x10] sm:$0xff]
    %v1481 = vld [vmem:[#allocation16 + $0x18] sm:$0xff]
    %v1482 = vld [vmem:[#allocation16 + $0x20] sm:$0xff]
    %v1483 = vld [vmem:[#allocation16 + $0x28] sm:$0xff]
    %v1484 = vld [vmem:[#allocation16 + $0x30] sm:$0xff]
    %v1485 = vld [vmem:[#allocation16 + $0x38] sm:$0xff]
    %v1486 = vld [vmem:[#allocation16 + $0x40] sm:$0xff]
    %v1487 = vld [vmem:[#allocation16 + $0x48] sm:$0xff]
    %v1488 = vld [vmem:[#allocation16 + $0x50] sm:$0xff]
    %v1489 = vld [vmem:[#allocation16 + $0x58] sm:$0xff]
    %v1490 = vld [vmem:[#allocation16 + $0x60] sm:$0xff]
    %v1491 = vld [vmem:[#allocation16 + $0x68] sm:$0xff]
    %v1492 = vld [vmem:[#allocation16 + $0x70] sm:$0xff]
    %v1493 = vld [vmem:[#allocation16 + $0x78] sm:$0xff]
    %v1494 = vld [vmem:[#allocation16 + $0x80] sm:$0xff]
    %v1495 = vld [vmem:[#allocation16 + $0x88] sm:$0xff]
    %v1496 = vld [vmem:[#allocation16 + $0x90] sm:$0xff]
    %v1497 = vld [vmem:[#allocation16 + $0x98] sm:$0xff]
    %v1498 = vld [vmem:[#allocation16 + $0xa0] sm:$0xff]
    %v1499 = vld [vmem:[#allocation16 + $0xa8] sm:$0xff]
    %v1500 = vld [vmem:[#allocation16 + $0xb0] sm:$0xff]
    %v1501 = vld [vmem:[#allocation16 + $0xb8] sm:$0xff]
    %v1502 = vld [vmem:[#allocation16 + $0xc0] sm:$0xff]
    %v1503 = vld [vmem:[#allocation16 + $0xc8] sm:$0xff]
    %v1504 = vld [vmem:[#allocation16 + $0xd0] sm:$0xff]
    %v1505 = vld [vmem:[#allocation16 + $0xd8] sm:$0xff]
    %v1506 = vld [vmem:[#allocation16 + $0xe0] sm:$0xff]
    %v1507 = vld [vmem:[#allocation16 + $0xe8] sm:$0xff]
    %v1508 = vld [vmem:[#allocation16 + $0xf0] sm:$0xff]
    %v1509 = vld [vmem:[#allocation16 + $0xf8] sm:$0xff]
    %v1510 = vld [vmem:[#allocation3] sm:$0x3]
    %v1511 = vld [vmem:[#allocation3 + $0x8] sm:$0x3]
    %v1512 = vld [vmem:[#allocation3 + $0x10] sm:$0x3]
    %v1513 = vld [vmem:[#allocation3 + $0x18] sm:$0x3]
    %vm1514 = vcmask 523264
    %v1516 = vsel %vm1514, 0.0, 0
    %1518 = vmatprep.subr.mxu0 %v1479
    %1519 = vmatpush1.msra.mxu0 %v1478
    %1520 = vmatprep.subr.mxu0 %v1483
    %1521 = vmatpush1.msra.mxu0 %v1482
    %1522 = vmatprep.subr.mxu0 %v1487
    %1523 = vmatpush1.msra.mxu0 %v1486
    %1524 = vmatprep.subr.mxu0 %v1491
    %1525 = vmatpush1.msra.mxu0 %v1490
    %1526 = vmatprep.subr.mxu0 %v1495
    %1527 = vmatpush1.msra.mxu0 %v1494
    %1528 = vmatprep.subr.mxu0 %v1499
    %1529 = vmatpush1.msra.mxu0 %v1498
    %1530 = vmatprep.subr.mxu0 %v1503
    %1531 = vmatpush1.msra.mxu0 %v1502
    %1532 = vmatprep.subr.mxu0 %v1507
    %1533 = vmatpush1.msra.mxu0 %v1506
    %1534 = vmatprep.subr.mxu0 0.0
    %1535 = vmatpush1.msra.mxu0 0.0
    %1536 = vmatprep.subr.mxu0 0.0
    %1537 = vmatpush1.msra.mxu0 0.0
    %1538 = vmatprep.subr.mxu0 0.0
    %1539 = vmatpush1.msra.mxu0 0.0
    %1540 = vmatprep.subr.mxu0 0.0
    %1541 = vmatpush1.msra.mxu0 0.0
    %1542 = vmatprep.subr.mxu0 0.0
    %1543 = vmatpush1.msra.mxu0 0.0
    %1544 = vmatprep.subr.mxu0 0.0
    %1545 = vmatpush1.msra.mxu0 0.0
    %1546 = vmatprep.subr.mxu0 0.0
    %1547 = vmatpush1.msra.mxu0 0.0
    %1548 = vmatprep.subr.mxu0 0.0
    %1549 = vmatpush1.msra.mxu0 0.0
    %1550 = vmatprep.subr.mxu0 0.0
    %1551 = vmatpush1.msra.mxu0 0.0
    %1552 = vmatprep.subr.mxu0 0.0
    %1553 = vmatpush1.msra.mxu0 0.0
    %1554 = vmatprep.subr.mxu0 0.0
    %1555 = vmatpush1.msra.mxu0 0.0
    %1556 = vmatprep.subr.mxu0 0.0
    %1557 = vmatpush1.msra.mxu0 0.0
    %1558 = vmatprep.subr.mxu0 0.0
    %1559 = vmatpush1.msra.mxu0 0.0
    %1560 = vmatprep.subr.mxu0 0.0
    %1561 = vmatpush1.msra.mxu0 0.0
    %1562 = vmatprep.subr.mxu0 0.0
    %1563 = vmatpush1.msra.mxu0 0.0
    %1564 = vmatprep.subr.mxu0 0.0
    %1565 = vmatpush1.msra.mxu0 0.0
    %1566 = vmatprep.subr.mxu0 0.0
    %1567 = vmatpush1.msra.mxu0 0.0
    %1568 = vmatprep.subr.mxu0 0.0
    %1569 = vmatpush1.msra.mxu0 0.0
    %1570 = vmatprep.subr.mxu0 0.0
    %1571 = vmatpush1.msra.mxu0 0.0
    %1572 = vmatprep.subr.mxu0 0.0
    %1573 = vmatpush1.msra.mxu0 0.0
    %1574 = vmatprep.subr.mxu0 0.0
    %1575 = vmatpush1.msra.mxu0 0.0
    %1576 = vmatprep.subr.mxu0 0.0
    %1577 = vmatpush1.msra.mxu0 0.0
    %1578 = vmatprep.subr.mxu0 0.0
    %1579 = vmatpush1.msra.mxu0 0.0
    %1580 = vmatprep.subr.mxu0 0.0
    %1581 = vmatpush1.msra.mxu0 0.0
    %1582 = vmatprep.mubr.f32.mxu0 0.0
    %1583 = vmatmul.mubr.f32.gmra.mrb[0].mxu0 %v1516
    %v1584 = vpop.f32.mrb[0].mxu0
    %v1585 = vadd.f32 0.0, %v1584
    %v1586 = vpop.f32.mrb[0].mxu0
    %v1587 = vadd.f32 0.0, %v1586
    %1588 = vdwg.mxu0
    %1589 = vmatprep.subr.mxu0 %v1481
    %1590 = vmatpush1.msra.mxu0 %v1480
    %1591 = vmatprep.subr.mxu0 %v1485
    %1592 = vmatpush1.msra.mxu0 %v1484
    %1593 = vmatprep.subr.mxu0 %v1489
    %1594 = vmatpush1.msra.mxu0 %v1488
    %1595 = vmatprep.subr.mxu0 %v1493
    %1596 = vmatpush1.msra.mxu0 %v1492
    %1597 = vmatprep.subr.mxu0 %v1497
    %1598 = vmatpush1.msra.mxu0 %v1496
    %1599 = vmatprep.subr.mxu0 %v1501
    %1600 = vmatpush1.msra.mxu0 %v1500
    %1601 = vmatprep.subr.mxu0 %v1505
    %1602 = vmatpush1.msra.mxu0 %v1504
    %1603 = vmatprep.subr.mxu0 %v1509
    %1604 = vmatpush1.msra.mxu0 %v1508
    %1605 = vmatprep.subr.mxu0 0.0
    %1606 = vmatpush1.msra.mxu0 0.0
    %1607 = vmatprep.subr.mxu0 0.0
    %1608 = vmatpush1.msra.mxu0 0.0
    %1609 = vmatprep.subr.mxu0 0.0
    %1610 = vmatpush1.msra.mxu0 0.0
    %1611 = vmatprep.subr.mxu0 0.0
    %1612 = vmatpush1.msra.mxu0 0.0
    %1613 = vmatprep.subr.mxu0 0.0
    %1614 = vmatpush1.msra.mxu0 0.0
    %1615 = vmatprep.subr.mxu0 0.0
    %1616 = vmatpush1.msra.mxu0 0.0
    %1617 = vmatprep.subr.mxu0 0.0
    %1618 = vmatpush1.msra.mxu0 0.0
    %1619 = vmatprep.subr.mxu0 0.0
    %1620 = vmatpush1.msra.mxu0 0.0
    %1621 = vmatprep.subr.mxu0 0.0
    %1622 = vmatpush1.msra.mxu0 0.0
    %1623 = vmatprep.subr.mxu0 0.0
    %1624 = vmatpush1.msra.mxu0 0.0
    %1625 = vmatprep.subr.mxu0 0.0
    %1626 = vmatpush1.msra.mxu0 0.0
    %1627 = vmatprep.subr.mxu0 0.0
    %1628 = vmatpush1.msra.mxu0 0.0
    %1629 = vmatprep.subr.mxu0 0.0
    %1630 = vmatpush1.msra.mxu0 0.0
    %1631 = vmatprep.subr.mxu0 0.0
    %1632 = vmatpush1.msra.mxu0 0.0
    %1633 = vmatprep.subr.mxu0 0.0
    %1634 = vmatpush1.msra.mxu0 0.0
    %1635 = vmatprep.subr.mxu0 0.0
    %1636 = vmatpush1.msra.mxu0 0.0
    %1637 = vmatprep.subr.mxu0 0.0
    %1638 = vmatpush1.msra.mxu0 0.0
    %1639 = vmatprep.subr.mxu0 0.0
    %1640 = vmatpush1.msra.mxu0 0.0
    %1641 = vmatprep.subr.mxu0 0.0
    %1642 = vmatpush1.msra.mxu0 0.0
    %1643 = vmatprep.subr.mxu0 0.0
    %1644 = vmatpush1.msra.mxu0 0.0
    %1645 = vmatprep.subr.mxu0 0.0
    %1646 = vmatpush1.msra.mxu0 0.0
    %1647 = vmatprep.subr.mxu0 0.0
    %1648 = vmatpush1.msra.mxu0 0.0
    %1649 = vmatprep.subr.mxu0 0.0
    %1650 = vmatpush1.msra.mxu0 0.0
    %1651 = vmatprep.subr.mxu0 0.0
    %1652 = vmatpush1.msra.mxu0 0.0
    %1653 = vmatprep.mubr.f32.mxu0 0.0
    %1654 = vmatmul.mubr.f32.gmra.mrb[0].mxu0 %v1516
    %v1655 = vpop.f32.mrb[0].mxu0
    %v1656 = vadd.f32 0.0, %v1655
    %v1657 = vpop.f32.mrb[0].mxu0
    %v1658 = vadd.f32 0.0, %v1657
    %1659 = vdwg.mxu0
    %v1660 = vadd.f32 %v1510, %v1585
    %v1661 = vadd.f32 %v1511, %v1587
    %v1662 = vadd.f32 %v1512, %v1656
    %v1663 = vadd.f32 %v1513, %v1658
    %v1664 = vxor.u32 %v1660, 2147483648
    %v1665 = vmul.f32 %v1664, 1.442695
    %v1666 = vpow.pop %v1665
    %v1667 = vadd.f32 %v1666, 1.0
    %v1668 = vrcp.pop %v1667
    %v1669 = vmul.f32 1.0, %v1668
    %v1670 = vxor.u32 %v1661, 2147483648
    %v1671 = vmul.f32 %v1670, 1.442695
    %v1672 = vpow.pop %v1671
    %v1673 = vadd.f32 %v1672, 1.0
    %v1674 = vrcp.pop %v1673
    %v1675 = vmul.f32 1.0, %v1674
    %v1676 = vxor.u32 %v1662, 2147483648
    %v1677 = vmul.f32 %v1676, 1.442695
    %v1678 = vpow.pop %v1677
    %v1679 = vadd.f32 %v1678, 1.0
    %v1680 = vrcp.pop %v1679
    %v1681 = vmul.f32 1.0, %v1680
    %v1682 = vtanh.pop %v1663
    %v1683 = vmul.f32 %v1675, 0.0
    %v1684 = vmul.f32 %v1669, %v1682
    %v1685 = vadd.f32 %v1683, %v1684
    %v1686 = vtanh.pop %v1685
    %v1687 = vmul.f32 %v1681, %v1686
    %vm1688 = vcmask 517120
    %1689 = vst.msk [vmem:[#allocation2] sm:$0x3] %vm1688, %v1687
    %v1690 = vld [vmem:[#allocation3] sm:$0xc]
    %v1691 = vld [vmem:[#allocation3 + $0x8] sm:$0xc]
    %v1692 = vld [vmem:[#allocation3 + $0x10] sm:$0xc]
    %v1693 = vld [vmem:[#allocation3 + $0x18] sm:$0xc]
    %v1695 = vsel %vm1514, %v1687, 0
    %1697 = vmatprep.subr.mxu0 %v1479
    %1698 = vmatpush1.msra.mxu0 %v1478
    %1699 = vmatprep.subr.mxu0 %v1483
    %1700 = vmatpush1.msra.mxu0 %v1482
    %1701 = vmatprep.subr.mxu0 %v1487
    %1702 = vmatpush1.msra.mxu0 %v1486
    %1703 = vmatprep.subr.mxu0 %v1491
    %1704 = vmatpush1.msra.mxu0 %v1490
    %1705 = vmatprep.subr.mxu0 %v1495
    %1706 = vmatpush1.msra.mxu0 %v1494
    %1707 = vmatprep.subr.mxu0 %v1499
    %1708 = vmatpush1.msra.mxu0 %v1498
    %1709 = vmatprep.subr.mxu0 %v1503
    %1710 = vmatpush1.msra.mxu0 %v1502
    %1711 = vmatprep.subr.mxu0 %v1507
    %1712 = vmatpush1.msra.mxu0 %v1506
    %1713 = vmatprep.subr.mxu0 0.0
    %1714 = vmatpush1.msra.mxu0 0.0
    %1715 = vmatprep.subr.mxu0 0.0
    %1716 = vmatpush1.msra.mxu0 0.0
    %1717 = vmatprep.subr.mxu0 0.0
    %1718 = vmatpush1.msra.mxu0 0.0
    %1719 = vmatprep.subr.mxu0 0.0
    %1720 = vmatpush1.msra.mxu0 0.0
    %1721 = vmatprep.subr.mxu0 0.0
    %1722 = vmatpush1.msra.mxu0 0.0
    %1723 = vmatprep.subr.mxu0 0.0
    %1724 = vmatpush1.msra.mxu0 0.0
    %1725 = vmatprep.subr.mxu0 0.0
    %1726 = vmatpush1.msra.mxu0 0.0
    %1727 = vmatprep.subr.mxu0 0.0
    %1728 = vmatpush1.msra.mxu0 0.0
    %1729 = vmatprep.subr.mxu0 0.0
    %1730 = vmatpush1.msra.mxu0 0.0
    %1731 = vmatprep.subr.mxu0 0.0
    %1732 = vmatpush1.msra.mxu0 0.0
    %1733 = vmatprep.subr.mxu0 0.0
    %1734 = vmatpush1.msra.mxu0 0.0
    %1735 = vmatprep.subr.mxu0 0.0
    %1736 = vmatpush1.msra.mxu0 0.0
    %1737 = vmatprep.subr.mxu0 0.0
    %1738 = vmatpush1.msra.mxu0 0.0
    %1739 = vmatprep.subr.mxu0 0.0
    %1740 = vmatpush1.msra.mxu0 0.0
    %1741 = vmatprep.subr.mxu0 0.0
    %1742 = vmatpush1.msra.mxu0 0.0
    %1743 = vmatprep.subr.mxu0 0.0
    %1744 = vmatpush1.msra.mxu0 0.0
    %1745 = vmatprep.subr.mxu0 0.0
    %1746 = vmatpush1.msra.mxu0 0.0
    %1747 = vmatprep.subr.mxu0 0.0
    %1748 = vmatpush1.msra.mxu0 0.0
    %1749 = vmatprep.subr.mxu0 0.0
    %1750 = vmatpush1.msra.mxu0 0.0
    %1751 = vmatprep.subr.mxu0 0.0
    %1752 = vmatpush1.msra.mxu0 0.0
    %1753 = vmatprep.subr.mxu0 0.0
    %1754 = vmatpush1.msra.mxu0 0.0
    %1755 = vmatprep.subr.mxu0 0.0
    %1756 = vmatpush1.msra.mxu0 0.0
    %1757 = vmatprep.subr.mxu0 0.0
    %1758 = vmatpush1.msra.mxu0 0.0
    %1759 = vmatprep.subr.mxu0 0.0
    %1760 = vmatpush1.msra.mxu0 0.0
    %1761 = vmatprep.mubr.f32.mxu0 0.0
    %1762 = vmatmul.mubr.f32.gmra.mrb[0].mxu0 %v1695
    %v1763 = vpop.f32.mrb[0].mxu0
    %v1764 = vadd.f32 0.0, %v1763
    %v1765 = vpop.f32.mrb[0].mxu0
    %v1766 = vadd.f32 0.0, %v1765
    %1767 = vdwg.mxu0
    %1768 = vmatprep.subr.mxu0 %v1481
    %1769 = vmatpush1.msra.mxu0 %v1480
    %1770 = vmatprep.subr.mxu0 %v1485
    %1771 = vmatpush1.msra.mxu0 %v1484
    %1772 = vmatprep.subr.mxu0 %v1489
    %1773 = vmatpush1.msra.mxu0 %v1488
    %1774 = vmatprep.subr.mxu0 %v1493
    %1775 = vmatpush1.msra.mxu0 %v1492
    %1776 = vmatprep.subr.mxu0 %v1497
    %1777 = vmatpush1.msra.mxu0 %v1496
    %1778 = vmatprep.subr.mxu0 %v1501
    %1779 = vmatpush1.msra.mxu0 %v1500
    %1780 = vmatprep.subr.mxu0 %v1505
    %1781 = vmatpush1.msra.mxu0 %v1504
    %1782 = vmatprep.subr.mxu0 %v1509
    %1783 = vmatpush1.msra.mxu0 %v1508
    %1784 = vmatprep.subr.mxu0 0.0
    %1785 = vmatpush1.msra.mxu0 0.0
    %1786 = vmatprep.subr.mxu0 0.0
    %1787 = vmatpush1.msra.mxu0 0.0
    %1788 = vmatprep.subr.mxu0 0.0
    %1789 = vmatpush1.msra.mxu0 0.0
    %1790 = vmatprep.subr.mxu0 0.0
    %1791 = vmatpush1.msra.mxu0 0.0
    %1792 = vmatprep.subr.mxu0 0.0
    %1793 = vmatpush1.msra.mxu0 0.0
    %1794 = vmatprep.subr.mxu0 0.0
    %1795 = vmatpush1.msra.mxu0 0.0
    %1796 = vmatprep.subr.mxu0 0.0
    %1797 = vmatpush1.msra.mxu0 0.0
    %1798 = vmatprep.subr.mxu0 0.0
    %1799 = vmatpush1.msra.mxu0 0.0
    %1800 = vmatprep.subr.mxu0 0.0
    %1801 = vmatpush1.msra.mxu0 0.0
    %1802 = vmatprep.subr.mxu0 0.0
    %1803 = vmatpush1.msra.mxu0 0.0
    %1804 = vmatprep.subr.mxu0 0.0
    %1805 = vmatpush1.msra.mxu0 0.0
    %1806 = vmatprep.subr.mxu0 0.0
    %1807 = vmatpush1.msra.mxu0 0.0
    %1808 = vmatprep.subr.mxu0 0.0
    %1809 = vmatpush1.msra.mxu0 0.0
    %1810 = vmatprep.subr.mxu0 0.0
    %1811 = vmatpush1.msra.mxu0 0.0
    %1812 = vmatprep.subr.mxu0 0.0
    %1813 = vmatpush1.msra.mxu0 0.0
    %1814 = vmatprep.subr.mxu0 0.0
    %1815 = vmatpush1.msra.mxu0 0.0
    %1816 = vmatprep.subr.mxu0 0.0
    %1817 = vmatpush1.msra.mxu0 0.0
    %1818 = vmatprep.subr.mxu0 0.0
    %1819 = vmatpush1.msra.mxu0 0.0
    %1820 = vmatprep.subr.mxu0 0.0
    %1821 = vmatpush1.msra.mxu0 0.0
    %1822 = vmatprep.subr.mxu0 0.0
    %1823 = vmatpush1.msra.mxu0 0.0
    %1824 = vmatprep.subr.mxu0 0.0
    %1825 = vmatpush1.msra.mxu0 0.0
    %1826 = vmatprep.subr.mxu0 0.0
    %1827 = vmatpush1.msra.mxu0 0.0
    %1828 = vmatprep.subr.mxu0 0.0
    %1829 = vmatpush1.msra.mxu0 0.0
    %1830 = vmatprep.subr.mxu0 0.0
    %1831 = vmatpush1.msra.mxu0 0.0
    %1832 = vmatprep.mubr.f32.mxu0 0.0
    %1833 = vmatmul.mubr.f32.gmra.mrb[0].mxu0 %v1695
    %v1834 = vpop.f32.mrb[0].mxu0
    %v1835 = vadd.f32 0.0, %v1834
    %v1836 = vpop.f32.mrb[0].mxu0
    %v1837 = vadd.f32 0.0, %v1836
    %1838 = vdwg.mxu0
    %v1843 = vrot.slane %v1764, 6
    %v1844 = vrot.slane %v1766, 6
    %v1845 = vrot.slane %v1835, 6
    %v1846 = vrot.slane %v1837, 6
    %v1851 = vadd.f32 %v1690, %v1843
    %v1852 = vadd.f32 %v1691, %v1844
    %v1853 = vadd.f32 %v1692, %v1845
    %v1854 = vadd.f32 %v1693, %v1846
    %v1855 = vxor.u32 %v1851, 2147483648
    %v1856 = vmul.f32 %v1855, 1.442695
    %v1857 = vpow.pop %v1856
    %v1858 = vadd.f32 %v1857, 1.0
    %v1859 = vrcp.pop %v1858
    %v1860 = vmul.f32 1.0, %v1859
    %v1861 = vxor.u32 %v1852, 2147483648
    %v1862 = vmul.f32 %v1861, 1.442695
    %v1863 = vpow.pop %v1862
    %v1864 = vadd.f32 %v1863, 1.0
    %v1865 = vrcp.pop %v1864
    %v1866 = vmul.f32 1.0, %v1865
    %v1867 = vxor.u32 %v1853, 2147483648
    %v1868 = vmul.f32 %v1867, 1.442695
    %v1869 = vpow.pop %v1868
    %v1870 = vadd.f32 %v1869, 1.0
    %v1871 = vrcp.pop %v1870
    %v1872 = vmul.f32 1.0, %v1871
    %v1873 = vtanh.pop %v1854
    %v1875 = vrot.slane %v1685, 6
    %v1877 = vmul.f32 %v1866, %v1875
    %v1878 = vmul.f32 %v1860, %v1873
    %v1879 = vadd.f32 %v1877, %v1878
    %v1880 = vtanh.pop %v1879
    %v1881 = vmul.f32 %v1872, %v1880
    %vm1882 = vcmask 519170
    %1883 = vst.msk [vmem:[#allocation2] sm:$0xc] %vm1882, %v1881
    %v1884 = vld [vmem:[#allocation3] sm:$0x30]
    %v1885 = vld [vmem:[#allocation3 + $0x8] sm:$0x30]
    %v1886 = vld [vmem:[#allocation3 + $0x10] sm:$0x30]
    %v1887 = vld [vmem:[#allocation3 + $0x18] sm:$0x30]
    %v1889 = vrot.slane %v1881, 2
    %v1890 = vsel %vm1514, %v1889, 0
    %1892 = vmatprep.subr.mxu0 %v1479
    %1893 = vmatpush1.msra.mxu0 %v1478
    %1894 = vmatprep.subr.mxu0 %v1483
    %1895 = vmatpush1.msra.mxu0 %v1482
    %1896 = vmatprep.subr.mxu0 %v1487
    %1897 = vmatpush1.msra.mxu0 %v1486
    %1898 = vmatprep.subr.mxu0 %v1491
    %1899 = vmatpush1.msra.mxu0 %v1490
    %1900 = vmatprep.subr.mxu0 %v1495
    %1901 = vmatpush1.msra.mxu0 %v1494
    %1902 = vmatprep.subr.mxu0 %v1499
    %1903 = vmatpush1.msra.mxu0 %v1498
    %1904 = vmatprep.subr.mxu0 %v1503
    %1905 = vmatpush1.msra.mxu0 %v1502
    %1906 = vmatprep.subr.mxu0 %v1507
    %1907 = vmatpush1.msra.mxu0 %v1506
    %1908 = vmatprep.subr.mxu0 0.0
    %1909 = vmatpush1.msra.mxu0 0.0
    %1910 = vmatprep.subr.mxu0 0.0
    %1911 = vmatpush1.msra.mxu0 0.0
    %1912 = vmatprep.subr.mxu0 0.0
    %1913 = vmatpush1.msra.mxu0 0.0
    %1914 = vmatprep.subr.mxu0 0.0
    %1915 = vmatpush1.msra.mxu0 0.0
    %1916 = vmatprep.subr.mxu0 0.0
    %1917 = vmatpush1.msra.mxu0 0.0
    %1918 = vmatprep.subr.mxu0 0.0
    %1919 = vmatpush1.msra.mxu0 0.0
    %1920 = vmatprep.subr.mxu0 0.0
    %1921 = vmatpush1.msra.mxu0 0.0
    %1922 = vmatprep.subr.mxu0 0.0
    %1923 = vmatpush1.msra.mxu0 0.0
    %1924 = vmatprep.subr.mxu0 0.0
    %1925 = vmatpush1.msra.mxu0 0.0
    %1926 = vmatprep.subr.mxu0 0.0
    %1927 = vmatpush1.msra.mxu0 0.0
    %1928 = vmatprep.subr.mxu0 0.0
    %1929 = vmatpush1.msra.mxu0 0.0
    %1930 = vmatprep.subr.mxu0 0.0
    %1931 = vmatpush1.msra.mxu0 0.0
    %1932 = vmatprep.subr.mxu0 0.0
    %1933 = vmatpush1.msra.mxu0 0.0
    %1934 = vmatprep.subr.mxu0 0.0
    %1935 = vmatpush1.msra.mxu0 0.0
    %1936 = vmatprep.subr.mxu0 0.0
    %1937 = vmatpush1.msra.mxu0 0.0
    %1938 = vmatprep.subr.mxu0 0.0
    %1939 = vmatpush1.msra.mxu0 0.0
    %1940 = vmatprep.subr.mxu0 0.0
    %1941 = vmatpush1.msra.mxu0 0.0
    %1942 = vmatprep.subr.mxu0 0.0
    %1943 = vmatpush1.msra.mxu0 0.0
    %1944 = vmatprep.subr.mxu0 0.0
    %1945 = vmatpush1.msra.mxu0 0.0
    %1946 = vmatprep.subr.mxu0 0.0
    %1947 = vmatpush1.msra.mxu0 0.0
    %1948 = vmatprep.subr.mxu0 0.0
    %1949 = vmatpush1.msra.mxu0 0.0
    %1950 = vmatprep.subr.mxu0 0.0
    %1951 = vmatpush1.msra.mxu0 0.0
    %1952 = vmatprep.subr.mxu0 0.0
    %1953 = vmatpush1.msra.mxu0 0.0
    %1954 = vmatprep.subr.mxu0 0.0
    %1955 = vmatpush1.msra.mxu0 0.0
    %1956 = vmatprep.mubr.f32.mxu0 0.0
    %1957 = vmatmul.mubr.f32.gmra.mrb[0].mxu0 %v1890
    %v1958 = vpop.f32.mrb[0].mxu0
    %v1959 = vadd.f32 0.0, %v1958
    %v1960 = vpop.f32.mrb[0].mxu0
    %v1961 = vadd.f32 0.0, %v1960
    %1962 = vdwg.mxu0
    %1963 = vmatprep.subr.mxu0 %v1481
    %1964 = vmatpush1.msra.mxu0 %v1480
    %1965 = vmatprep.subr.mxu0 %v1485
    %1966 = vmatpush1.msra.mxu0 %v1484
    %1967 = vmatprep.subr.mxu0 %v1489
    %1968 = vmatpush1.msra.mxu0 %v1488
    %1969 = vmatprep.subr.mxu0 %v1493
    %1970 = vmatpush1.msra.mxu0 %v1492
    %1971 = vmatprep.subr.mxu0 %v1497
    %1972 = vmatpush1.msra.mxu0 %v1496
    %1973 = vmatprep.subr.mxu0 %v1501
    %1974 = vmatpush1.msra.mxu0 %v1500
    %1975 = vmatprep.subr.mxu0 %v1505
    %1976 = vmatpush1.msra.mxu0 %v1504
    %1977 = vmatprep.subr.mxu0 %v1509
    %1978 = vmatpush1.msra.mxu0 %v1508
    %1979 = vmatprep.subr.mxu0 0.0
    %1980 = vmatpush1.msra.mxu0 0.0
    %1981 = vmatprep.subr.mxu0 0.0
    %1982 = vmatpush1.msra.mxu0 0.0
    %1983 = vmatprep.subr.mxu0 0.0
    %1984 = vmatpush1.msra.mxu0 0.0
    %1985 = vmatprep.subr.mxu0 0.0
    %1986 = vmatpush1.msra.mxu0 0.0
    %1987 = vmatprep.subr.mxu0 0.0
    %1988 = vmatpush1.msra.mxu0 0.0
    %1989 = vmatprep.subr.mxu0 0.0
    %1990 = vmatpush1.msra.mxu0 0.0
    %1991 = vmatprep.subr.mxu0 0.0
    %1992 = vmatpush1.msra.mxu0 0.0
    %1993 = vmatprep.subr.mxu0 0.0
    %1994 = vmatpush1.msra.mxu0 0.0
    %1995 = vmatprep.subr.mxu0 0.0
    %1996 = vmatpush1.msra.mxu0 0.0
    %1997 = vmatprep.subr.mxu0 0.0
    %1998 = vmatpush1.msra.mxu0 0.0
    %1999 = vmatprep.subr.mxu0 0.0
    %2000 = vmatpush1.msra.mxu0 0.0
    %2001 = vmatprep.subr.mxu0 0.0
    %2002 = vmatpush1.msra.mxu0 0.0
    %2003 = vmatprep.subr.mxu0 0.0
    %2004 = vmatpush1.msra.mxu0 0.0
    %2005 = vmatprep.subr.mxu0 0.0
    %2006 = vmatpush1.msra.mxu0 0.0
    %2007 = vmatprep.subr.mxu0 0.0
    %2008 = vmatpush1.msra.mxu0 0.0
    %2009 = vmatprep.subr.mxu0 0.0
    %2010 = vmatpush1.msra.mxu0 0.0
    %2011 = vmatprep.subr.mxu0 0.0
    %2012 = vmatpush1.msra.mxu0 0.0
    %2013 = vmatprep.subr.mxu0 0.0
    %2014 = vmatpush1.msra.mxu0 0.0
    %2015 = vmatprep.subr.mxu0 0.0
    %2016 = vmatpush1.msra.mxu0 0.0
    %2017 = vmatprep.subr.mxu0 0.0
    %2018 = vmatpush1.msra.mxu0 0.0
    %2019 = vmatprep.subr.mxu0 0.0
    %2020 = vmatpush1.msra.mxu0 0.0
    %2021 = vmatprep.subr.mxu0 0.0
    %2022 = vmatpush1.msra.mxu0 0.0
    %2023 = vmatprep.subr.mxu0 0.0
    %2024 = vmatpush1.msra.mxu0 0.0
    %2025 = vmatprep.subr.mxu0 0.0
    %2026 = vmatpush1.msra.mxu0 0.0
    %2027 = vmatprep.mubr.f32.mxu0 0.0
    %2028 = vmatmul.mubr.f32.gmra.mrb[0].mxu0 %v1890
    %v2029 = vpop.f32.mrb[0].mxu0
    %v2030 = vadd.f32 0.0, %v2029
    %v2031 = vpop.f32.mrb[0].mxu0
    %v2032 = vadd.f32 0.0, %v2031
    %2033 = vdwg.mxu0
    %v2038 = vrot.slane %v1959, 4
    %v2039 = vrot.slane %v1961, 4
    %v2040 = vrot.slane %v2030, 4
    %v2041 = vrot.slane %v2032, 4
    %v2046 = vadd.f32 %v1884, %v2038
    %v2047 = vadd.f32 %v1885, %v2039
    %v2048 = vadd.f32 %v1886, %v2040
    %v2049 = vadd.f32 %v1887, %v2041
    %v2050 = vxor.u32 %v2046, 2147483648
    %v2051 = vmul.f32 %v2050, 1.442695
    %v2052 = vpow.pop %v2051
    %v2053 = vadd.f32 %v2052, 1.0
    %v2054 = vrcp.pop %v2053
    %v2055 = vmul.f32 1.0, %v2054
    %v2056 = vxor.u32 %v2047, 2147483648
    %v2057 = vmul.f32 %v2056, 1.442695
    %v2058 = vpow.pop %v2057
    %v2059 = vadd.f32 %v2058, 1.0
    %v2060 = vrcp.pop %v2059
    %v2061 = vmul.f32 1.0, %v2060
    %v2062 = vxor.u32 %v2048, 2147483648
    %v2063 = vmul.f32 %v2062, 1.442695
    %v2064 = vpow.pop %v2063
    %v2065 = vadd.f32 %v2064, 1.0
    %v2066 = vrcp.pop %v2065
    %v2067 = vmul.f32 1.0, %v2066
    %v2068 = vtanh.pop %v2049
    %v2070 = vrot.slane %v1879, 6
    %v2072 = vmul.f32 %v2061, %v2070
    %v2073 = vmul.f32 %v2055, %v2068
    %v2074 = vadd.f32 %v2072, %v2073
    %v2075 = vtanh.pop %v2074
    %v2076 = vmul.f32 %v2067, %v2075
    %vm2077 = vcmask 521220
    %2078 = vst.msk [vmem:[#allocation2] sm:$0x30] %vm2077, %v2076
    %v2079 = vld [vmem:[#allocation3] sm:$0xc0]
    %v2080 = vld [vmem:[#allocation3 + $0x8] sm:$0xc0]
    %v2081 = vld [vmem:[#allocation3 + $0x10] sm:$0xc0]
    %v2082 = vld [vmem:[#allocation3 + $0x18] sm:$0xc0]
    %v2084 = vrot.slane %v2076, 4
    %v2085 = vsel %vm1514, %v2084, 0
    %2087 = vmatprep.subr.mxu0 %v1479
    %2088 = vmatpush1.msra.mxu0 %v1478
    %2089 = vmatprep.subr.mxu0 %v1483
    %2090 = vmatpush1.msra.mxu0 %v1482
    %2091 = vmatprep.subr.mxu0 %v1487
    %2092 = vmatpush1.msra.mxu0 %v1486
    %2093 = vmatprep.subr.mxu0 %v1491
    %2094 = vmatpush1.msra.mxu0 %v1490
    %2095 = vmatprep.subr.mxu0 %v1495
    %2096 = vmatpush1.msra.mxu0 %v1494
    %2097 = vmatprep.subr.mxu0 %v1499
    %2098 = vmatpush1.msra.mxu0 %v1498
    %2099 = vmatprep.subr.mxu0 %v1503
    %2100 = vmatpush1.msra.mxu0 %v1502
    %2101 = vmatprep.subr.mxu0 %v1507
    %2102 = vmatpush1.msra.mxu0 %v1506
    %2103 = vmatprep.subr.mxu0 0.0
    %2104 = vmatpush1.msra.mxu0 0.0
    %2105 = vmatprep.subr.mxu0 0.0
    %2106 = vmatpush1.msra.mxu0 0.0
    %2107 = vmatprep.subr.mxu0 0.0
    %2108 = vmatpush1.msra.mxu0 0.0
    %2109 = vmatprep.subr.mxu0 0.0
    %2110 = vmatpush1.msra.mxu0 0.0
    %2111 = vmatprep.subr.mxu0 0.0
    %2112 = vmatpush1.msra.mxu0 0.0
    %2113 = vmatprep.subr.mxu0 0.0
    %2114 = vmatpush1.msra.mxu0 0.0
    %2115 = vmatprep.subr.mxu0 0.0
    %2116 = vmatpush1.msra.mxu0 0.0
    %2117 = vmatprep.subr.mxu0 0.0
    %2118 = vmatpush1.msra.mxu0 0.0
    %2119 = vmatprep.subr.mxu0 0.0
    %2120 = vmatpush1.msra.mxu0 0.0
    %2121 = vmatprep.subr.mxu0 0.0
    %2122 = vmatpush1.msra.mxu0 0.0
    %2123 = vmatprep.subr.mxu0 0.0
    %2124 = vmatpush1.msra.mxu0 0.0
    %2125 = vmatprep.subr.mxu0 0.0
    %2126 = vmatpush1.msra.mxu0 0.0
    %2127 = vmatprep.subr.mxu0 0.0
    %2128 = vmatpush1.msra.mxu0 0.0
    %2129 = vmatprep.subr.mxu0 0.0
    %2130 = vmatpush1.msra.mxu0 0.0
    %2131 = vmatprep.subr.mxu0 0.0
    %2132 = vmatpush1.msra.mxu0 0.0
    %2133 = vmatprep.subr.mxu0 0.0
    %2134 = vmatpush1.msra.mxu0 0.0
    %2135 = vmatprep.subr.mxu0 0.0
    %2136 = vmatpush1.msra.mxu0 0.0
    %2137 = vmatprep.subr.mxu0 0.0
    %2138 = vmatpush1.msra.mxu0 0.0
    %2139 = vmatprep.subr.mxu0 0.0
    %2140 = vmatpush1.msra.mxu0 0.0
    %2141 = vmatprep.subr.mxu0 0.0
    %2142 = vmatpush1.msra.mxu0 0.0
    %2143 = vmatprep.subr.mxu0 0.0
    %2144 = vmatpush1.msra.mxu0 0.0
    %2145 = vmatprep.subr.mxu0 0.0
    %2146 = vmatpush1.msra.mxu0 0.0
    %2147 = vmatprep.subr.mxu0 0.0
    %2148 = vmatpush1.msra.mxu0 0.0
    %2149 = vmatprep.subr.mxu0 0.0
    %2150 = vmatpush1.msra.mxu0 0.0
    %2151 = vmatprep.mubr.f32.mxu0 0.0
    %2152 = vmatmul.mubr.f32.gmra.mrb[0].mxu0 %v2085
    %v2153 = vpop.f32.mrb[0].mxu0
    %v2154 = vadd.f32 0.0, %v2153
    %v2155 = vpop.f32.mrb[0].mxu0
    %v2156 = vadd.f32 0.0, %v2155
    %2157 = vdwg.mxu0
    %2158 = vmatprep.subr.mxu0 %v1481
    %2159 = vmatpush1.msra.mxu0 %v1480
    %2160 = vmatprep.subr.mxu0 %v1485
    %2161 = vmatpush1.msra.mxu0 %v1484
    %2162 = vmatprep.subr.mxu0 %v1489
    %2163 = vmatpush1.msra.mxu0 %v1488
    %2164 = vmatprep.subr.mxu0 %v1493
    %2165 = vmatpush1.msra.mxu0 %v1492
    %2166 = vmatprep.subr.mxu0 %v1497
    %2167 = vmatpush1.msra.mxu0 %v1496
    %2168 = vmatprep.subr.mxu0 %v1501
    %2169 = vmatpush1.msra.mxu0 %v1500
    %2170 = vmatprep.subr.mxu0 %v1505
    %2171 = vmatpush1.msra.mxu0 %v1504
    %2172 = vmatprep.subr.mxu0 %v1509
    %2173 = vmatpush1.msra.mxu0 %v1508
    %2174 = vmatprep.subr.mxu0 0.0
    %2175 = vmatpush1.msra.mxu0 0.0
    %2176 = vmatprep.subr.mxu0 0.0
    %2177 = vmatpush1.msra.mxu0 0.0
    %2178 = vmatprep.subr.mxu0 0.0
    %2179 = vmatpush1.msra.mxu0 0.0
    %2180 = vmatprep.subr.mxu0 0.0
    %2181 = vmatpush1.msra.mxu0 0.0
    %2182 = vmatprep.subr.mxu0 0.0
    %2183 = vmatpush1.msra.mxu0 0.0
    %2184 = vmatprep.subr.mxu0 0.0
    %2185 = vmatpush1.msra.mxu0 0.0
    %2186 = vmatprep.subr.mxu0 0.0
    %2187 = vmatpush1.msra.mxu0 0.0
    %2188 = vmatprep.subr.mxu0 0.0
    %2189 = vmatpush1.msra.mxu0 0.0
    %2190 = vmatprep.subr.mxu0 0.0
    %2191 = vmatpush1.msra.mxu0 0.0
    %2192 = vmatprep.subr.mxu0 0.0
    %2193 = vmatpush1.msra.mxu0 0.0
    %2194 = vmatprep.subr.mxu0 0.0
    %2195 = vmatpush1.msra.mxu0 0.0
    %2196 = vmatprep.subr.mxu0 0.0
    %2197 = vmatpush1.msra.mxu0 0.0
    %2198 = vmatprep.subr.mxu0 0.0
    %2199 = vmatpush1.msra.mxu0 0.0
    %2200 = vmatprep.subr.mxu0 0.0
    %2201 = vmatpush1.msra.mxu0 0.0
    %2202 = vmatprep.subr.mxu0 0.0
    %2203 = vmatpush1.msra.mxu0 0.0
    %2204 = vmatprep.subr.mxu0 0.0
    %2205 = vmatpush1.msra.mxu0 0.0
    %2206 = vmatprep.subr.mxu0 0.0
    %2207 = vmatpush1.msra.mxu0 0.0
    %2208 = vmatprep.subr.mxu0 0.0
    %2209 = vmatpush1.msra.mxu0 0.0
    %2210 = vmatprep.subr.mxu0 0.0
    %2211 = vmatpush1.msra.mxu0 0.0
    %2212 = vmatprep.subr.mxu0 0.0
    %2213 = vmatpush1.msra.mxu0 0.0
    %2214 = vmatprep.subr.mxu0 0.0
    %2215 = vmatpush1.msra.mxu0 0.0
    %2216 = vmatprep.subr.mxu0 0.0
    %2217 = vmatpush1.msra.mxu0 0.0
    %2218 = vmatprep.subr.mxu0 0.0
    %2219 = vmatpush1.msra.mxu0 0.0
    %2220 = vmatprep.subr.mxu0 0.0
    %2221 = vmatpush1.msra.mxu0 0.0
    %2222 = vmatprep.mubr.f32.mxu0 0.0
    %2223 = vmatmul.mubr.f32.gmra.mrb[0].mxu0 %v2085
    %v2224 = vpop.f32.mrb[0].mxu0
    %v2225 = vadd.f32 0.0, %v2224
    %v2226 = vpop.f32.mrb[0].mxu0
    %v2227 = vadd.f32 0.0, %v2226
    %2228 = vdwg.mxu0
    %v2233 = vrot.slane %v2154, 2
    %v2234 = vrot.slane %v2156, 2
    %v2235 = vrot.slane %v2225, 2
    %v2236 = vrot.slane %v2227, 2
    %v2241 = vadd.f32 %v2079, %v2233
    %v2242 = vadd.f32 %v2080, %v2234
    %v2243 = vadd.f32 %v2081, %v2235
    %v2244 = vadd.f32 %v2082, %v2236
    %v2245 = vxor.u32 %v2241, 2147483648
    %v2246 = vmul.f32 %v2245, 1.442695
    %v2247 = vpow.pop %v2246
    %v2248 = vadd.f32 %v2247, 1.0
    %v2249 = vrcp.pop %v2248
    %v2250 = vmul.f32 1.0, %v2249
    %v2251 = vxor.u32 %v2242, 2147483648
    %v2252 = vmul.f32 %v2251, 1.442695
    %v2253 = vpow.pop %v2252
    %v2254 = vadd.f32 %v2253, 1.0
    %v2255 = vrcp.pop %v2254
    %v2256 = vmul.f32 1.0, %v2255
    %v2257 = vxor.u32 %v2243, 2147483648
    %v2258 = vmul.f32 %v2257, 1.442695
    %v2259 = vpow.pop %v2258
    %v2260 = vadd.f32 %v2259, 1.0
    %v2261 = vrcp.pop %v2260
    %v2262 = vmul.f32 1.0, %v2261
    %v2263 = vtanh.pop %v2244
    %v2265 = vrot.slane %v2074, 6
    %v2267 = vmul.f32 %v2256, %v2265
    %v2268 = vmul.f32 %v2250, %v2263
    %v2269 = vadd.f32 %v2267, %v2268
    %v2270 = vtanh.pop %v2269
    %v2271 = vmul.f32 %v2262, %v2270
    %vm2272 = vcmask 523270
    %2273 = vst.msk [vmem:[#allocation2] sm:$0xc0] %vm2272, %v2271
    %v2274 = vld [vmem:[#allocation3 + $0x20] sm:$0x3]
    %v2275 = vld [vmem:[#allocation3 + $0x28] sm:$0x3]
    %v2276 = vld [vmem:[#allocation3 + $0x30] sm:$0x3]
    %v2277 = vld [vmem:[#allocation3 + $0x38] sm:$0x3]
    %v2279 = vrot.slane %v2271, 6
    %v2280 = vsel %vm1514, %v2279, 0
    %2282 = vmatprep.subr.mxu0 %v1479
    %2283 = vmatpush1.msra.mxu0 %v1478
    %2284 = vmatprep.subr.mxu0 %v1483
    %2285 = vmatpush1.msra.mxu0 %v1482
    %2286 = vmatprep.subr.mxu0 %v1487
    %2287 = vmatpush1.msra.mxu0 %v1486
    %2288 = vmatprep.subr.mxu0 %v1491
    %2289 = vmatpush1.msra.mxu0 %v1490
    %2290 = vmatprep.subr.mxu0 %v1495
    %2291 = vmatpush1.msra.mxu0 %v1494
    %2292 = vmatprep.subr.mxu0 %v1499
    %2293 = vmatpush1.msra.mxu0 %v1498
    %2294 = vmatprep.subr.mxu0 %v1503
    %2295 = vmatpush1.msra.mxu0 %v1502
    %2296 = vmatprep.subr.mxu0 %v1507
    %2297 = vmatpush1.msra.mxu0 %v1506
    %2298 = vmatprep.subr.mxu0 0.0
    %2299 = vmatpush1.msra.mxu0 0.0
    %2300 = vmatprep.subr.mxu0 0.0
    %2301 = vmatpush1.msra.mxu0 0.0
    %2302 = vmatprep.subr.mxu0 0.0
    %2303 = vmatpush1.msra.mxu0 0.0
    %2304 = vmatprep.subr.mxu0 0.0
    %2305 = vmatpush1.msra.mxu0 0.0
    %2306 = vmatprep.subr.mxu0 0.0
    %2307 = vmatpush1.msra.mxu0 0.0
    %2308 = vmatprep.subr.mxu0 0.0
    %2309 = vmatpush1.msra.mxu0 0.0
    %2310 = vmatprep.subr.mxu0 0.0
    %2311 = vmatpush1.msra.mxu0 0.0
    %2312 = vmatprep.subr.mxu0 0.0
    %2313 = vmatpush1.msra.mxu0 0.0
    %2314 = vmatprep.subr.mxu0 0.0
    %2315 = vmatpush1.msra.mxu0 0.0
    %2316 = vmatprep.subr.mxu0 0.0
    %2317 = vmatpush1.msra.mxu0 0.0
    %2318 = vmatprep.subr.mxu0 0.0
    %2319 = vmatpush1.msra.mxu0 0.0
    %2320 = vmatprep.subr.mxu0 0.0
    %2321 = vmatpush1.msra.mxu0 0.0
    %2322 = vmatprep.subr.mxu0 0.0
    %2323 = vmatpush1.msra.mxu0 0.0
    %2324 = vmatprep.subr.mxu0 0.0
    %2325 = vmatpush1.msra.mxu0 0.0
    %2326 = vmatprep.subr.mxu0 0.0
    %2327 = vmatpush1.msra.mxu0 0.0
    %2328 = vmatprep.subr.mxu0 0.0
    %2329 = vmatpush1.msra.mxu0 0.0
    %2330 = vmatprep.subr.mxu0 0.0
    %2331 = vmatpush1.msra.mxu0 0.0
    %2332 = vmatprep.subr.mxu0 0.0
    %2333 = vmatpush1.msra.mxu0 0.0
    %2334 = vmatprep.subr.mxu0 0.0
    %2335 = vmatpush1.msra.mxu0 0.0
    %2336 = vmatprep.subr.mxu0 0.0
    %2337 = vmatpush1.msra.mxu0 0.0
    %2338 = vmatprep.subr.mxu0 0.0
    %2339 = vmatpush1.msra.mxu0 0.0
    %2340 = vmatprep.subr.mxu0 0.0
    %2341 = vmatpush1.msra.mxu0 0.0
    %2342 = vmatprep.subr.mxu0 0.0
    %2343 = vmatpush1.msra.mxu0 0.0
    %2344 = vmatprep.subr.mxu0 0.0
    %2345 = vmatpush1.msra.mxu0 0.0
    %2346 = vmatprep.mubr.f32.mxu0 0.0
    %2347 = vmatmul.mubr.f32.gmra.mrb[0].mxu0 %v2280
    %v2348 = vpop.f32.mrb[0].mxu0
    %v2349 = vadd.f32 0.0, %v2348
    %v2350 = vpop.f32.mrb[0].mxu0
    %v2351 = vadd.f32 0.0, %v2350
    %2352 = vdwg.mxu0
    %2353 = vmatprep.subr.mxu0 %v1481
    %2354 = vmatpush1.msra.mxu0 %v1480
    %2355 = vmatprep.subr.mxu0 %v1485
    %2356 = vmatpush1.msra.mxu0 %v1484
    %2357 = vmatprep.subr.mxu0 %v1489
    %2358 = vmatpush1.msra.mxu0 %v1488
    %2359 = vmatprep.subr.mxu0 %v1493
    %2360 = vmatpush1.msra.mxu0 %v1492
    %2361 = vmatprep.subr.mxu0 %v1497
    %2362 = vmatpush1.msra.mxu0 %v1496
    %2363 = vmatprep.subr.mxu0 %v1501
    %2364 = vmatpush1.msra.mxu0 %v1500
    %2365 = vmatprep.subr.mxu0 %v1505
    %2366 = vmatpush1.msra.mxu0 %v1504
    %2367 = vmatprep.subr.mxu0 %v1509
    %2368 = vmatpush1.msra.mxu0 %v1508
    %2369 = vmatprep.subr.mxu0 0.0
    %2370 = vmatpush1.msra.mxu0 0.0
    %2371 = vmatprep.subr.mxu0 0.0
    %2372 = vmatpush1.msra.mxu0 0.0
    %2373 = vmatprep.subr.mxu0 0.0
    %2374 = vmatpush1.msra.mxu0 0.0
    %2375 = vmatprep.subr.mxu0 0.0
    %2376 = vmatpush1.msra.mxu0 0.0
    %2377 = vmatprep.subr.mxu0 0.0
    %2378 = vmatpush1.msra.mxu0 0.0
    %2379 = vmatprep.subr.mxu0 0.0
    %2380 = vmatpush1.msra.mxu0 0.0
    %2381 = vmatprep.subr.mxu0 0.0
    %2382 = vmatpush1.msra.mxu0 0.0
    %2383 = vmatprep.subr.mxu0 0.0
    %2384 = vmatpush1.msra.mxu0 0.0
    %2385 = vmatprep.subr.mxu0 0.0
    %2386 = vmatpush1.msra.mxu0 0.0
    %2387 = vmatprep.subr.mxu0 0.0
    %2388 = vmatpush1.msra.mxu0 0.0
    %2389 = vmatprep.subr.mxu0 0.0
    %2390 = vmatpush1.msra.mxu0 0.0
    %2391 = vmatprep.subr.mxu0 0.0
    %2392 = vmatpush1.msra.mxu0 0.0
    %2393 = vmatprep.subr.mxu0 0.0
    %2394 = vmatpush1.msra.mxu0 0.0
    %2395 = vmatprep.subr.mxu0 0.0
    %2396 = vmatpush1.msra.mxu0 0.0
    %2397 = vmatprep.subr.mxu0 0.0
    %2398 = vmatpush1.msra.mxu0 0.0
    %2399 = vmatprep.subr.mxu0 0.0
    %2400 = vmatpush1.msra.mxu0 0.0
    %2401 = vmatprep.subr.mxu0 0.0
    %2402 = vmatpush1.msra.mxu0 0.0
    %2403 = vmatprep.subr.mxu0 0.0
    %2404 = vmatpush1.msra.mxu0 0.0
    %2405 = vmatprep.subr.mxu0 0.0
    %2406 = vmatpush1.msra.mxu0 0.0
    %2407 = vmatprep.subr.mxu0 0.0
    %2408 = vmatpush1.msra.mxu0 0.0
    %2409 = vmatprep.subr.mxu0 0.0
    %2410 = vmatpush1.msra.mxu0 0.0
    %2411 = vmatprep.subr.mxu0 0.0
    %2412 = vmatpush1.msra.mxu0 0.0
    %2413 = vmatprep.subr.mxu0 0.0
    %2414 = vmatpush1.msra.mxu0 0.0
    %2415 = vmatprep.subr.mxu0 0.0
    %2416 = vmatpush1.msra.mxu0 0.0
    %2417 = vmatprep.mubr.f32.mxu0 0.0
    %2418 = vmatmul.mubr.f32.gmra.mrb[0].mxu0 %v2280
    %v2419 = vpop.f32.mrb[0].mxu0
    %v2420 = vadd.f32 0.0, %v2419
    %v2421 = vpop.f32.mrb[0].mxu0
    %v2422 = vadd.f32 0.0, %v2421
    %2423 = vdwg.mxu0
    %v2424 = vadd.f32 %v2274, %v2349
    %v2425 = vadd.f32 %v2275, %v2351
    %v2426 = vadd.f32 %v2276, %v2420
    %v2427 = vadd.f32 %v2277, %v2422
    %v2428 = vxor.u32 %v2424, 2147483648
    %v2429 = vmul.f32 %v2428, 1.442695
    %v2430 = vpow.pop %v2429
    %v2431 = vadd.f32 %v2430, 1.0
    %v2432 = vrcp.pop %v2431
    %v2433 = vmul.f32 1.0, %v2432
    %v2434 = vxor.u32 %v2425, 2147483648
    %v2435 = vmul.f32 %v2434, 1.442695
    %v2436 = vpow.pop %v2435
    %v2437 = vadd.f32 %v2436, 1.0
    %v2438 = vrcp.pop %v2437
    %v2439 = vmul.f32 1.0, %v2438
    %v2440 = vxor.u32 %v2426, 2147483648
    %v2441 = vmul.f32 %v2440, 1.442695
    %v2442 = vpow.pop %v2441
    %v2443 = vadd.f32 %v2442, 1.0
    %v2444 = vrcp.pop %v2443
    %v2445 = vmul.f32 1.0, %v2444
    %v2446 = vtanh.pop %v2427
    %v2448 = vrot.slane %v2269, 6
    %v2450 = vmul.f32 %v2439, %v2448
    %v2451 = vmul.f32 %v2433, %v2446
    %v2452 = vadd.f32 %v2450, %v2451
    %v2453 = vtanh.pop %v2452
    %v2454 = vmul.f32 %v2445, %v2453
    %2455 = vst.msk [vmem:[#allocation2 + $0x8] sm:$0x3] %vm1688, %v2454
    %v2456 = vld [vmem:[#allocation3 + $0x20] sm:$0xc]
    %v2457 = vld [vmem:[#allocation3 + $0x28] sm:$0xc]
    %v2458 = vld [vmem:[#allocation3 + $0x30] sm:$0xc]
    %v2459 = vld [vmem:[#allocation3 + $0x38] sm:$0xc]
    %v2461 = vsel %vm1514, %v2454, 0
    %2463 = vmatprep.subr.mxu0 %v1479
    %2464 = vmatpush1.msra.mxu0 %v1478
    %2465 = vmatprep.subr.mxu0 %v1483
    %2466 = vmatpush1.msra.mxu0 %v1482
    %2467 = vmatprep.subr.mxu0 %v1487
    %2468 = vmatpush1.msra.mxu0 %v1486
    %2469 = vmatprep.subr.mxu0 %v1491
    %2470 = vmatpush1.msra.mxu0 %v1490
    %2471 = vmatprep.subr.mxu0 %v1495
    %2472 = vmatpush1.msra.mxu0 %v1494
    %2473 = vmatprep.subr.mxu0 %v1499
    %2474 = vmatpush1.msra.mxu0 %v1498
    %2475 = vmatprep.subr.mxu0 %v1503
    %2476 = vmatpush1.msra.mxu0 %v1502
    %2477 = vmatprep.subr.mxu0 %v1507
    %2478 = vmatpush1.msra.mxu0 %v1506
    %2479 = vmatprep.subr.mxu0 0.0
    %2480 = vmatpush1.msra.mxu0 0.0
    %2481 = vmatprep.subr.mxu0 0.0
    %2482 = vmatpush1.msra.mxu0 0.0
    %2483 = vmatprep.subr.mxu0 0.0
    %2484 = vmatpush1.msra.mxu0 0.0
    %2485 = vmatprep.subr.mxu0 0.0
    %2486 = vmatpush1.msra.mxu0 0.0
    %2487 = vmatprep.subr.mxu0 0.0
    %2488 = vmatpush1.msra.mxu0 0.0
    %2489 = vmatprep.subr.mxu0 0.0
    %2490 = vmatpush1.msra.mxu0 0.0
    %2491 = vmatprep.subr.mxu0 0.0
    %2492 = vmatpush1.msra.mxu0 0.0
    %2493 = vmatprep.subr.mxu0 0.0
    %2494 = vmatpush1.msra.mxu0 0.0
    %2495 = vmatprep.subr.mxu0 0.0
    %2496 = vmatpush1.msra.mxu0 0.0
    %2497 = vmatprep.subr.mxu0 0.0
    %2498 = vmatpush1.msra.mxu0 0.0
    %2499 = vmatprep.subr.mxu0 0.0
    %2500 = vmatpush1.msra.mxu0 0.0
    %2501 = vmatprep.subr.mxu0 0.0
    %2502 = vmatpush1.msra.mxu0 0.0
    %2503 = vmatprep.subr.mxu0 0.0
    %2504 = vmatpush1.msra.mxu0 0.0
    %2505 = vmatprep.subr.mxu0 0.0
    %2506 = vmatpush1.msra.mxu0 0.0
    %2507 = vmatprep.subr.mxu0 0.0
    %2508 = vmatpush1.msra.mxu0 0.0
    %2509 = vmatprep.subr.mxu0 0.0
    %2510 = vmatpush1.msra.mxu0 0.0
    %2511 = vmatprep.subr.mxu0 0.0
    %2512 = vmatpush1.msra.mxu0 0.0
    %2513 = vmatprep.subr.mxu0 0.0
    %2514 = vmatpush1.msra.mxu0 0.0
    %2515 = vmatprep.subr.mxu0 0.0
    %2516 = vmatpush1.msra.mxu0 0.0
    %2517 = vmatprep.subr.mxu0 0.0
    %2518 = vmatpush1.msra.mxu0 0.0
    %2519 = vmatprep.subr.mxu0 0.0
    %2520 = vmatpush1.msra.mxu0 0.0
    %2521 = vmatprep.subr.mxu0 0.0
    %2522 = vmatpush1.msra.mxu0 0.0
    %2523 = vmatprep.subr.mxu0 0.0
    %2524 = vmatpush1.msra.mxu0 0.0
    %2525 = vmatprep.subr.mxu0 0.0
    %2526 = vmatpush1.msra.mxu0 0.0
    %2527 = vmatprep.mubr.f32.mxu0 0.0
    %2528 = vmatmul.mubr.f32.gmra.mrb[0].mxu0 %v2461
    %v2529 = vpop.f32.mrb[0].mxu0
    %v2530 = vadd.f32 0.0, %v2529
    %v2531 = vpop.f32.mrb[0].mxu0
    %v2532 = vadd.f32 0.0, %v2531
    %2533 = vdwg.mxu0
    %2534 = vmatprep.subr.mxu0 %v1481
    %2535 = vmatpush1.msra.mxu0 %v1480
    %2536 = vmatprep.subr.mxu0 %v1485
    %2537 = vmatpush1.msra.mxu0 %v1484
    %2538 = vmatprep.subr.mxu0 %v1489
    %2539 = vmatpush1.msra.mxu0 %v1488
    %2540 = vmatprep.subr.mxu0 %v1493
    %2541 = vmatpush1.msra.mxu0 %v1492
    %2542 = vmatprep.subr.mxu0 %v1497
    %2543 = vmatpush1.msra.mxu0 %v1496
    %2544 = vmatprep.subr.mxu0 %v1501
    %2545 = vmatpush1.msra.mxu0 %v1500
    %2546 = vmatprep.subr.mxu0 %v1505
    %2547 = vmatpush1.msra.mxu0 %v1504
    %2548 = vmatprep.subr.mxu0 %v1509
    %2549 = vmatpush1.msra.mxu0 %v1508
    %2550 = vmatprep.subr.mxu0 0.0
    %2551 = vmatpush1.msra.mxu0 0.0
    %2552 = vmatprep.subr.mxu0 0.0
    %2553 = vmatpush1.msra.mxu0 0.0
    %2554 = vmatprep.subr.mxu0 0.0
    %2555 = vmatpush1.msra.mxu0 0.0
    %2556 = vmatprep.subr.mxu0 0.0
    %2557 = vmatpush1.msra.mxu0 0.0
    %2558 = vmatprep.subr.mxu0 0.0
    %2559 = vmatpush1.msra.mxu0 0.0
    %2560 = vmatprep.subr.mxu0 0.0
    %2561 = vmatpush1.msra.mxu0 0.0
    %2562 = vmatprep.subr.mxu0 0.0
    %2563 = vmatpush1.msra.mxu0 0.0
    %2564 = vmatprep.subr.mxu0 0.0
    %2565 = vmatpush1.msra.mxu0 0.0
    %2566 = vmatprep.subr.mxu0 0.0
    %2567 = vmatpush1.msra.mxu0 0.0
    %2568 = vmatprep.subr.mxu0 0.0
    %2569 = vmatpush1.msra.mxu0 0.0
    %2570 = vmatprep.subr.mxu0 0.0
    %2571 = vmatpush1.msra.mxu0 0.0
    %2572 = vmatprep.subr.mxu0 0.0
    %2573 = vmatpush1.msra.mxu0 0.0
    %2574 = vmatprep.subr.mxu0 0.0
    %2575 = vmatpush1.msra.mxu0 0.0
    %2576 = vmatprep.subr.mxu0 0.0
    %2577 = vmatpush1.msra.mxu0 0.0
    %2578 = vmatprep.subr.mxu0 0.0
    %2579 = vmatpush1.msra.mxu0 0.0
    %2580 = vmatprep.subr.mxu0 0.0
    %2581 = vmatpush1.msra.mxu0 0.0
    %2582 = vmatprep.subr.mxu0 0.0
    %2583 = vmatpush1.msra.mxu0 0.0
    %2584 = vmatprep.subr.mxu0 0.0
    %2585 = vmatpush1.msra.mxu0 0.0
    %2586 = vmatprep.subr.mxu0 0.0
    %2587 = vmatpush1.msra.mxu0 0.0
    %2588 = vmatprep.subr.mxu0 0.0
    %2589 = vmatpush1.msra.mxu0 0.0
    %2590 = vmatprep.subr.mxu0 0.0
    %2591 = vmatpush1.msra.mxu0 0.0
    %2592 = vmatprep.subr.mxu0 0.0
    %2593 = vmatpush1.msra.mxu0 0.0
    %2594 = vmatprep.subr.mxu0 0.0
    %2595 = vmatpush1.msra.mxu0 0.0
    %2596 = vmatprep.subr.mxu0 0.0
    %2597 = vmatpush1.msra.mxu0 0.0
    %2598 = vmatprep.mubr.f32.mxu0 0.0
    %2599 = vmatmul.mubr.f32.gmra.mrb[0].mxu0 %v2461
    %v2600 = vpop.f32.mrb[0].mxu0
    %v2601 = vadd.f32 0.0, %v2600
    %v2602 = vpop.f32.mrb[0].mxu0
    %v2603 = vadd.f32 0.0, %v2602
    %2604 = vdwg.mxu0
    %v2609 = vrot.slane %v2530, 6
    %v2610 = vrot.slane %v2532, 6
    %v2611 = vrot.slane %v2601, 6
    %v2612 = vrot.slane %v2603, 6
    %v2617 = vadd.f32 %v2456, %v2609
    %v2618 = vadd.f32 %v2457, %v2610
    %v2619 = vadd.f32 %v2458, %v2611
    %v2620 = vadd.f32 %v2459, %v2612
    %v2621 = vxor.u32 %v2617, 2147483648
    %v2622 = vmul.f32 %v2621, 1.442695
    %v2623 = vpow.pop %v2622
    %v2624 = vadd.f32 %v2623, 1.0
    %v2625 = vrcp.pop %v2624
    %v2626 = vmul.f32 1.0, %v2625
    %v2627 = vxor.u32 %v2618, 2147483648
    %v2628 = vmul.f32 %v2627, 1.442695
    %v2629 = vpow.pop %v2628
    %v2630 = vadd.f32 %v2629, 1.0
    %v2631 = vrcp.pop %v2630
    %v2632 = vmul.f32 1.0, %v2631
    %v2633 = vxor.u32 %v2619, 2147483648
    %v2634 = vmul.f32 %v2633, 1.442695
    %v2635 = vpow.pop %v2634
    %v2636 = vadd.f32 %v2635, 1.0
    %v2637 = vrcp.pop %v2636
    %v2638 = vmul.f32 1.0, %v2637
    %v2639 = vtanh.pop %v2620
    %v2641 = vrot.slane %v2452, 6
    %v2643 = vmul.f32 %v2632, %v2641
    %v2644 = vmul.f32 %v2626, %v2639
    %v2645 = vadd.f32 %v2643, %v2644
    %v2646 = vtanh.pop %v2645
    %v2647 = vmul.f32 %v2638, %v2646
    %2648 = vst.msk [vmem:[#allocation2 + $0x8] sm:$0xc] %vm1882, %v2647
    %v2649 = vld [vmem:[#allocation3 + $0x20] sm:$0x30]
    %v2650 = vld [vmem:[#allocation3 + $0x28] sm:$0x30]
    %v2651 = vld [vmem:[#allocation3 + $0x30] sm:$0x30]
    %v2652 = vld [vmem:[#allocation3 + $0x38] sm:$0x30]
    %v2654 = vrot.slane %v2647, 2
    %v2655 = vsel %vm1514, %v2654, 0
    %2657 = vmatprep.subr.mxu0 %v1479
    %2658 = vmatpush1.msra.mxu0 %v1478
    %2659 = vmatprep.subr.mxu0 %v1483
    %2660 = vmatpush1.msra.mxu0 %v1482
    %2661 = vmatprep.subr.mxu0 %v1487
    %2662 = vmatpush1.msra.mxu0 %v1486
    %2663 = vmatprep.subr.mxu0 %v1491
    %2664 = vmatpush1.msra.mxu0 %v1490
    %2665 = vmatprep.subr.mxu0 %v1495
    %2666 = vmatpush1.msra.mxu0 %v1494
    %2667 = vmatprep.subr.mxu0 %v1499
    %2668 = vmatpush1.msra.mxu0 %v1498
    %2669 = vmatprep.subr.mxu0 %v1503
    %2670 = vmatpush1.msra.mxu0 %v1502
    %2671 = vmatprep.subr.mxu0 %v1507
    %2672 = vmatpush1.msra.mxu0 %v1506
    %2673 = vmatprep.subr.mxu0 0.0
    %2674 = vmatpush1.msra.mxu0 0.0
    %2675 = vmatprep.subr.mxu0 0.0
    %2676 = vmatpush1.msra.mxu0 0.0
    %2677 = vmatprep.subr.mxu0 0.0
    %2678 = vmatpush1.msra.mxu0 0.0
    %2679 = vmatprep.subr.mxu0 0.0
    %2680 = vmatpush1.msra.mxu0 0.0
    %2681 = vmatprep.subr.mxu0 0.0
    %2682 = vmatpush1.msra.mxu0 0.0
    %2683 = vmatprep.subr.mxu0 0.0
    %2684 = vmatpush1.msra.mxu0 0.0
    %2685 = vmatprep.subr.mxu0 0.0
    %2686 = vmatpush1.msra.mxu0 0.0
    %2687 = vmatprep.subr.mxu0 0.0
    %2688 = vmatpush1.msra.mxu0 0.0
    %2689 = vmatprep.subr.mxu0 0.0
    %2690 = vmatpush1.msra.mxu0 0.0
    %2691 = vmatprep.subr.mxu0 0.0
    %2692 = vmatpush1.msra.mxu0 0.0
    %2693 = vmatprep.subr.mxu0 0.0
    %2694 = vmatpush1.msra.mxu0 0.0
    %2695 = vmatprep.subr.mxu0 0.0
    %2696 = vmatpush1.msra.mxu0 0.0
    %2697 = vmatprep.subr.mxu0 0.0
    %2698 = vmatpush1.msra.mxu0 0.0
    %2699 = vmatprep.subr.mxu0 0.0
    %2700 = vmatpush1.msra.mxu0 0.0
    %2701 = vmatprep.subr.mxu0 0.0
    %2702 = vmatpush1.msra.mxu0 0.0
    %2703 = vmatprep.subr.mxu0 0.0
    %2704 = vmatpush1.msra.mxu0 0.0
    %2705 = vmatprep.subr.mxu0 0.0
    %2706 = vmatpush1.msra.mxu0 0.0
    %2707 = vmatprep.subr.mxu0 0.0
    %2708 = vmatpush1.msra.mxu0 0.0
    %2709 = vmatprep.subr.mxu0 0.0
    %2710 = vmatpush1.msra.mxu0 0.0
    %2711 = vmatprep.subr.mxu0 0.0
    %2712 = vmatpush1.msra.mxu0 0.0
    %2713 = vmatprep.subr.mxu0 0.0
    %2714 = vmatpush1.msra.mxu0 0.0
    %2715 = vmatprep.subr.mxu0 0.0
    %2716 = vmatpush1.msra.mxu0 0.0
    %2717 = vmatprep.subr.mxu0 0.0
    %2718 = vmatpush1.msra.mxu0 0.0
    %2719 = vmatprep.subr.mxu0 0.0
    %2720 = vmatpush1.msra.mxu0 0.0
    %2721 = vmatprep.mubr.f32.mxu0 0.0
    %2722 = vmatmul.mubr.f32.gmra.mrb[0].mxu0 %v2655
    %v2723 = vpop.f32.mrb[0].mxu0
    %v2724 = vadd.f32 0.0, %v2723
    %v2725 = vpop.f32.mrb[0].mxu0
    %v2726 = vadd.f32 0.0, %v2725
    %2727 = vdwg.mxu0
    %2728 = vmatprep.subr.mxu0 %v1481
    %2729 = vmatpush1.msra.mxu0 %v1480
    %2730 = vmatprep.subr.mxu0 %v1485
    %2731 = vmatpush1.msra.mxu0 %v1484
    %2732 = vmatprep.subr.mxu0 %v1489
    %2733 = vmatpush1.msra.mxu0 %v1488
    %2734 = vmatprep.subr.mxu0 %v1493
    %2735 = vmatpush1.msra.mxu0 %v1492
    %2736 = vmatprep.subr.mxu0 %v1497
    %2737 = vmatpush1.msra.mxu0 %v1496
    %2738 = vmatprep.subr.mxu0 %v1501
    %2739 = vmatpush1.msra.mxu0 %v1500
    %2740 = vmatprep.subr.mxu0 %v1505
    %2741 = vmatpush1.msra.mxu0 %v1504
    %2742 = vmatprep.subr.mxu0 %v1509
    %2743 = vmatpush1.msra.mxu0 %v1508
    %2744 = vmatprep.subr.mxu0 0.0
    %2745 = vmatpush1.msra.mxu0 0.0
    %2746 = vmatprep.subr.mxu0 0.0
    %2747 = vmatpush1.msra.mxu0 0.0
    %2748 = vmatprep.subr.mxu0 0.0
    %2749 = vmatpush1.msra.mxu0 0.0
    %2750 = vmatprep.subr.mxu0 0.0
    %2751 = vmatpush1.msra.mxu0 0.0
    %2752 = vmatprep.subr.mxu0 0.0
    %2753 = vmatpush1.msra.mxu0 0.0
    %2754 = vmatprep.subr.mxu0 0.0
    %2755 = vmatpush1.msra.mxu0 0.0
    %2756 = vmatprep.subr.mxu0 0.0
    %2757 = vmatpush1.msra.mxu0 0.0
    %2758 = vmatprep.subr.mxu0 0.0
    %2759 = vmatpush1.msra.mxu0 0.0
    %2760 = vmatprep.subr.mxu0 0.0
    %2761 = vmatpush1.msra.mxu0 0.0
    %2762 = vmatprep.subr.mxu0 0.0
    %2763 = vmatpush1.msra.mxu0 0.0
    %2764 = vmatprep.subr.mxu0 0.0
    %2765 = vmatpush1.msra.mxu0 0.0
    %2766 = vmatprep.subr.mxu0 0.0
    %2767 = vmatpush1.msra.mxu0 0.0
    %2768 = vmatprep.subr.mxu0 0.0
    %2769 = vmatpush1.msra.mxu0 0.0
    %2770 = vmatprep.subr.mxu0 0.0
    %2771 = vmatpush1.msra.mxu0 0.0
    %2772 = vmatprep.subr.mxu0 0.0
    %2773 = vmatpush1.msra.mxu0 0.0
    %2774 = vmatprep.subr.mxu0 0.0
    %2775 = vmatpush1.msra.mxu0 0.0
    %2776 = vmatprep.subr.mxu0 0.0
    %2777 = vmatpush1.msra.mxu0 0.0
    %2778 = vmatprep.subr.mxu0 0.0
    %2779 = vmatpush1.msra.mxu0 0.0
    %2780 = vmatprep.subr.mxu0 0.0
    %2781 = vmatpush1.msra.mxu0 0.0
    %2782 = vmatprep.subr.mxu0 0.0
    %2783 = vmatpush1.msra.mxu0 0.0
    %2784 = vmatprep.subr.mxu0 0.0
    %2785 = vmatpush1.msra.mxu0 0.0
    %2786 = vmatprep.subr.mxu0 0.0
    %2787 = vmatpush1.msra.mxu0 0.0
    %2788 = vmatprep.subr.mxu0 0.0
    %2789 = vmatpush1.msra.mxu0 0.0
    %2790 = vmatprep.subr.mxu0 0.0
    %2791 = vmatpush1.msra.mxu0 0.0
    %2792 = vmatprep.mubr.f32.mxu0 0.0
    %2793 = vmatmul.mubr.f32.gmra.mrb[0].mxu0 %v2655
    %v2794 = vpop.f32.mrb[0].mxu0
    %v2795 = vadd.f32 0.0, %v2794
    %v2796 = vpop.f32.mrb[0].mxu0
    %v2797 = vadd.f32 0.0, %v2796
    %2798 = vdwg.mxu0
    %v2803 = vrot.slane %v2724, 4
    %v2804 = vrot.slane %v2726, 4
    %v2805 = vrot.slane %v2795, 4
    %v2806 = vrot.slane %v2797, 4
    %v2811 = vadd.f32 %v2649, %v2803
    %v2812 = vadd.f32 %v2650, %v2804
    %v2813 = vadd.f32 %v2651, %v2805
    %v2814 = vadd.f32 %v2652, %v2806
    %v2815 = vxor.u32 %v2811, 2147483648
    %v2816 = vmul.f32 %v2815, 1.442695
    %v2817 = vpow.pop %v2816
    %v2818 = vadd.f32 %v2817, 1.0
    %v2819 = vrcp.pop %v2818
    %v2820 = vmul.f32 1.0, %v2819
    %v2821 = vxor.u32 %v2812, 2147483648
    %v2822 = vmul.f32 %v2821, 1.442695
    %v2823 = vpow.pop %v2822
    %v2824 = vadd.f32 %v2823, 1.0
    %v2825 = vrcp.pop %v2824
    %v2826 = vmul.f32 1.0, %v2825
    %v2827 = vxor.u32 %v2813, 2147483648
    %v2828 = vmul.f32 %v2827, 1.442695
    %v2829 = vpow.pop %v2828
    %v2830 = vadd.f32 %v2829, 1.0
    %v2831 = vrcp.pop %v2830
    %v2832 = vmul.f32 1.0, %v2831
    %v2833 = vtanh.pop %v2814
    %v2835 = vrot.slane %v2645, 6
    %v2837 = vmul.f32 %v2826, %v2835
    %v2838 = vmul.f32 %v2820, %v2833
    %v2839 = vadd.f32 %v2837, %v2838
    %v2840 = vtanh.pop %v2839
    %v2841 = vmul.f32 %v2832, %v2840
    %2842 = vst.msk [vmem:[#allocation2 + $0x8] sm:$0x30] %vm2077, %v2841
    %v2843 = vld [vmem:[#allocation3 + $0x20] sm:$0xc0]
    %v2844 = vld [vmem:[#allocation3 + $0x28] sm:$0xc0]
    %v2845 = vld [vmem:[#allocation3 + $0x30] sm:$0xc0]
    %v2846 = vld [vmem:[#allocation3 + $0x38] sm:$0xc0]
    %v2848 = vrot.slane %v2841, 4
    %v2849 = vsel %vm1514, %v2848, 0
    %2851 = vmatprep.subr.mxu0 %v1479
    %2852 = vmatpush1.msra.mxu0 %v1478
    %2853 = vmatprep.subr.mxu0 %v1483
    %2854 = vmatpush1.msra.mxu0 %v1482
    %2855 = vmatprep.subr.mxu0 %v1487
    %2856 = vmatpush1.msra.mxu0 %v1486
    %2857 = vmatprep.subr.mxu0 %v1491
    %2858 = vmatpush1.msra.mxu0 %v1490
    %2859 = vmatprep.subr.mxu0 %v1495
    %2860 = vmatpush1.msra.mxu0 %v1494
    %2861 = vmatprep.subr.mxu0 %v1499
    %2862 = vmatpush1.msra.mxu0 %v1498
    %2863 = vmatprep.subr.mxu0 %v1503
    %2864 = vmatpush1.msra.mxu0 %v1502
    %2865 = vmatprep.subr.mxu0 %v1507
    %2866 = vmatpush1.msra.mxu0 %v1506
    %2867 = vmatprep.subr.mxu0 0.0
    %2868 = vmatpush1.msra.mxu0 0.0
    %2869 = vmatprep.subr.mxu0 0.0
    %2870 = vmatpush1.msra.mxu0 0.0
    %2871 = vmatprep.subr.mxu0 0.0
    %2872 = vmatpush1.msra.mxu0 0.0
    %2873 = vmatprep.subr.mxu0 0.0
    %2874 = vmatpush1.msra.mxu0 0.0
    %2875 = vmatprep.subr.mxu0 0.0
    %2876 = vmatpush1.msra.mxu0 0.0
    %2877 = vmatprep.subr.mxu0 0.0
    %2878 = vmatpush1.msra.mxu0 0.0
    %2879 = vmatprep.subr.mxu0 0.0
    %2880 = vmatpush1.msra.mxu0 0.0
    %2881 = vmatprep.subr.mxu0 0.0
    %2882 = vmatpush1.msra.mxu0 0.0
    %2883 = vmatprep.subr.mxu0 0.0
    %2884 = vmatpush1.msra.mxu0 0.0
    %2885 = vmatprep.subr.mxu0 0.0
    %2886 = vmatpush1.msra.mxu0 0.0
    %2887 = vmatprep.subr.mxu0 0.0
    %2888 = vmatpush1.msra.mxu0 0.0
    %2889 = vmatprep.subr.mxu0 0.0
    %2890 = vmatpush1.msra.mxu0 0.0
    %2891 = vmatprep.subr.mxu0 0.0
    %2892 = vmatpush1.msra.mxu0 0.0
    %2893 = vmatprep.subr.mxu0 0.0
    %2894 = vmatpush1.msra.mxu0 0.0
    %2895 = vmatprep.subr.mxu0 0.0
    %2896 = vmatpush1.msra.mxu0 0.0
    %2897 = vmatprep.subr.mxu0 0.0
    %2898 = vmatpush1.msra.mxu0 0.0
    %2899 = vmatprep.subr.mxu0 0.0
    %2900 = vmatpush1.msra.mxu0 0.0
    %2901 = vmatprep.subr.mxu0 0.0
    %2902 = vmatpush1.msra.mxu0 0.0
    %2903 = vmatprep.subr.mxu0 0.0
    %2904 = vmatpush1.msra.mxu0 0.0
    %2905 = vmatprep.subr.mxu0 0.0
    %2906 = vmatpush1.msra.mxu0 0.0
    %2907 = vmatprep.subr.mxu0 0.0
    %2908 = vmatpush1.msra.mxu0 0.0
    %2909 = vmatprep.subr.mxu0 0.0
    %2910 = vmatpush1.msra.mxu0 0.0
    %2911 = vmatprep.subr.mxu0 0.0
    %2912 = vmatpush1.msra.mxu0 0.0
    %2913 = vmatprep.subr.mxu0 0.0
    %2914 = vmatpush1.msra.mxu0 0.0
    %2915 = vmatprep.mubr.f32.mxu0 0.0
    %2916 = vmatmul.mubr.f32.gmra.mrb[0].mxu0 %v2849
    %v2917 = vpop.f32.mrb[0].mxu0
    %v2918 = vadd.f32 0.0, %v2917
    %v2919 = vpop.f32.mrb[0].mxu0
    %v2920 = vadd.f32 0.0, %v2919
    %2921 = vdwg.mxu0
    %2922 = vmatprep.subr.mxu0 %v1481
    %2923 = vmatpush1.msra.mxu0 %v1480
    %2924 = vmatprep.subr.mxu0 %v1485
    %2925 = vmatpush1.msra.mxu0 %v1484
    %2926 = vmatprep.subr.mxu0 %v1489
    %2927 = vmatpush1.msra.mxu0 %v1488
    %2928 = vmatprep.subr.mxu0 %v1493
    %2929 = vmatpush1.msra.mxu0 %v1492
    %2930 = vmatprep.subr.mxu0 %v1497
    %2931 = vmatpush1.msra.mxu0 %v1496
    %2932 = vmatprep.subr.mxu0 %v1501
    %2933 = vmatpush1.msra.mxu0 %v1500
    %2934 = vmatprep.subr.mxu0 %v1505
    %2935 = vmatpush1.msra.mxu0 %v1504
    %2936 = vmatprep.subr.mxu0 %v1509
    %2937 = vmatpush1.msra.mxu0 %v1508
    %2938 = vmatprep.subr.mxu0 0.0
    %2939 = vmatpush1.msra.mxu0 0.0
    %2940 = vmatprep.subr.mxu0 0.0
    %2941 = vmatpush1.msra.mxu0 0.0
    %2942 = vmatprep.subr.mxu0 0.0
    %2943 = vmatpush1.msra.mxu0 0.0
    %2944 = vmatprep.subr.mxu0 0.0
    %2945 = vmatpush1.msra.mxu0 0.0
    %2946 = vmatprep.subr.mxu0 0.0
    %2947 = vmatpush1.msra.mxu0 0.0
    %2948 = vmatprep.subr.mxu0 0.0
    %2949 = vmatpush1.msra.mxu0 0.0
    %2950 = vmatprep.subr.mxu0 0.0
    %2951 = vmatpush1.msra.mxu0 0.0
    %2952 = vmatprep.subr.mxu0 0.0
    %2953 = vmatpush1.msra.mxu0 0.0
    %2954 = vmatprep.subr.mxu0 0.0
    %2955 = vmatpush1.msra.mxu0 0.0
    %2956 = vmatprep.subr.mxu0 0.0
    %2957 = vmatpush1.msra.mxu0 0.0
    %2958 = vmatprep.subr.mxu0 0.0
    %2959 = vmatpush1.msra.mxu0 0.0
    %2960 = vmatprep.subr.mxu0 0.0
    %2961 = vmatpush1.msra.mxu0 0.0
    %2962 = vmatprep.subr.mxu0 0.0
    %2963 = vmatpush1.msra.mxu0 0.0
    %2964 = vmatprep.subr.mxu0 0.0
    %2965 = vmatpush1.msra.mxu0 0.0
    %2966 = vmatprep.subr.mxu0 0.0
    %2967 = vmatpush1.msra.mxu0 0.0
    %2968 = vmatprep.subr.mxu0 0.0
    %2969 = vmatpush1.msra.mxu0 0.0
    %2970 = vmatprep.subr.mxu0 0.0
    %2971 = vmatpush1.msra.mxu0 0.0
    %2972 = vmatprep.subr.mxu0 0.0
    %2973 = vmatpush1.msra.mxu0 0.0
    %2974 = vmatprep.subr.mxu0 0.0
    %2975 = vmatpush1.msra.mxu0 0.0
    %2976 = vmatprep.subr.mxu0 0.0
    %2977 = vmatpush1.msra.mxu0 0.0
    %2978 = vmatprep.subr.mxu0 0.0
    %2979 = vmatpush1.msra.mxu0 0.0
    %2980 = vmatprep.subr.mxu0 0.0
    %2981 = vmatpush1.msra.mxu0 0.0
    %2982 = vmatprep.subr.mxu0 0.0
    %2983 = vmatpush1.msra.mxu0 0.0
    %2984 = vmatprep.subr.mxu0 0.0
    %2985 = vmatpush1.msra.mxu0 0.0
    %2986 = vmatprep.mubr.f32.mxu0 0.0
    %2987 = vmatmul.mubr.f32.gmra.mrb[0].mxu0 %v2849
    %v2988 = vpop.f32.mrb[0].mxu0
    %v2989 = vadd.f32 0.0, %v2988
    %v2990 = vpop.f32.mrb[0].mxu0
    %v2991 = vadd.f32 0.0, %v2990
    %2992 = vdwg.mxu0
    %v2997 = vrot.slane %v2918, 2
    %v2998 = vrot.slane %v2920, 2
    %v2999 = vrot.slane %v2989, 2
    %v3000 = vrot.slane %v2991, 2
    %v3005 = vadd.f32 %v2843, %v2997
    %v3006 = vadd.f32 %v2844, %v2998
    %v3007 = vadd.f32 %v2845, %v2999
    %v3008 = vadd.f32 %v2846, %v3000
    %v3009 = vxor.u32 %v3005, 2147483648
    %v3010 = vmul.f32 %v3009, 1.442695
    %v3011 = vpow.pop %v3010
    %v3012 = vadd.f32 %v3011, 1.0
    %v3013 = vrcp.pop %v3012
    %v3014 = vmul.f32 1.0, %v3013
    %v3015 = vxor.u32 %v3006, 2147483648
    %v3016 = vmul.f32 %v3015, 1.442695
    %v3017 = vpow.pop %v3016
    %v3018 = vadd.f32 %v3017, 1.0
    %v3019 = vrcp.pop %v3018
    %v3020 = vmul.f32 1.0, %v3019
    %v3021 = vxor.u32 %v3007, 2147483648
    %v3022 = vmul.f32 %v3021, 1.442695
    %v3023 = vpow.pop %v3022
    %v3024 = vadd.f32 %v3023, 1.0
    %v3025 = vrcp.pop %v3024
    %v3026 = vmul.f32 1.0, %v3025
    %v3027 = vtanh.pop %v3008
    %v3029 = vrot.slane %v2839, 6
    %v3031 = vmul.f32 %v3020, %v3029
    %v3032 = vmul.f32 %v3014, %v3027
    %v3033 = vadd.f32 %v3031, %v3032
    %v3034 = vtanh.pop %v3033
    %v3035 = vmul.f32 %v3026, %v3034
    %3036 = vst.msk [vmem:[#allocation2 + $0x8] sm:$0xc0] %vm2272, %v3035
    %v3037 = vld [vmem:[#allocation3 + $0x40] sm:$0x3]
    %v3038 = vld [vmem:[#allocation3 + $0x48] sm:$0x3]
    %v3039 = vld [vmem:[#allocation3 + $0x50] sm:$0x3]
    %v3040 = vld [vmem:[#allocation3 + $0x58] sm:$0x3]
    %v3042 = vrot.slane %v3035, 6
    %v3043 = vsel %vm1514, %v3042, 0
    %3045 = vmatprep.subr.mxu0 %v1479
    %3046 = vmatpush1.msra.mxu0 %v1478
    %3047 = vmatprep.subr.mxu0 %v1483
    %3048 = vmatpush1.msra.mxu0 %v1482
    %3049 = vmatprep.subr.mxu0 %v1487
    %3050 = vmatpush1.msra.mxu0 %v1486
    %3051 = vmatprep.subr.mxu0 %v1491
    %3052 = vmatpush1.msra.mxu0 %v1490
    %3053 = vmatprep.subr.mxu0 %v1495
    %3054 = vmatpush1.msra.mxu0 %v1494
    %3055 = vmatprep.subr.mxu0 %v1499
    %3056 = vmatpush1.msra.mxu0 %v1498
    %3057 = vmatprep.subr.mxu0 %v1503
    %3058 = vmatpush1.msra.mxu0 %v1502
    %3059 = vmatprep.subr.mxu0 %v1507
    %3060 = vmatpush1.msra.mxu0 %v1506
    %3061 = vmatprep.subr.mxu0 0.0
    %3062 = vmatpush1.msra.mxu0 0.0
    %3063 = vmatprep.subr.mxu0 0.0
    %3064 = vmatpush1.msra.mxu0 0.0
    %3065 = vmatprep.subr.mxu0 0.0
    %3066 = vmatpush1.msra.mxu0 0.0
    %3067 = vmatprep.subr.mxu0 0.0
    %3068 = vmatpush1.msra.mxu0 0.0
    %3069 = vmatprep.subr.mxu0 0.0
    %3070 = vmatpush1.msra.mxu0 0.0
    %3071 = vmatprep.subr.mxu0 0.0
    %3072 = vmatpush1.msra.mxu0 0.0
    %3073 = vmatprep.subr.mxu0 0.0
    %3074 = vmatpush1.msra.mxu0 0.0
    %3075 = vmatprep.subr.mxu0 0.0
    %3076 = vmatpush1.msra.mxu0 0.0
    %3077 = vmatprep.subr.mxu0 0.0
    %3078 = vmatpush1.msra.mxu0 0.0
    %3079 = vmatprep.subr.mxu0 0.0
    %3080 = vmatpush1.msra.mxu0 0.0
    %3081 = vmatprep.subr.mxu0 0.0
    %3082 = vmatpush1.msra.mxu0 0.0
    %3083 = vmatprep.subr.mxu0 0.0
    %3084 = vmatpush1.msra.mxu0 0.0
    %3085 = vmatprep.subr.mxu0 0.0
    %3086 = vmatpush1.msra.mxu0 0.0
    %3087 = vmatprep.subr.mxu0 0.0
    %3088 = vmatpush1.msra.mxu0 0.0
    %3089 = vmatprep.subr.mxu0 0.0
    %3090 = vmatpush1.msra.mxu0 0.0
    %3091 = vmatprep.subr.mxu0 0.0
    %3092 = vmatpush1.msra.mxu0 0.0
    %3093 = vmatprep.subr.mxu0 0.0
    %3094 = vmatpush1.msra.mxu0 0.0
    %3095 = vmatprep.subr.mxu0 0.0
    %3096 = vmatpush1.msra.mxu0 0.0
    %3097 = vmatprep.subr.mxu0 0.0
    %3098 = vmatpush1.msra.mxu0 0.0
    %3099 = vmatprep.subr.mxu0 0.0
    %3100 = vmatpush1.msra.mxu0 0.0
    %3101 = vmatprep.subr.mxu0 0.0
    %3102 = vmatpush1.msra.mxu0 0.0
    %3103 = vmatprep.subr.mxu0 0.0
    %3104 = vmatpush1.msra.mxu0 0.0
    %3105 = vmatprep.subr.mxu0 0.0
    %3106 = vmatpush1.msra.mxu0 0.0
    %3107 = vmatprep.subr.mxu0 0.0
    %3108 = vmatpush1.msra.mxu0 0.0
    %3109 = vmatprep.mubr.f32.mxu0 0.0
    %3110 = vmatmul.mubr.f32.gmra.mrb[0].mxu0 %v3043
    %v3111 = vpop.f32.mrb[0].mxu0
    %v3112 = vadd.f32 0.0, %v3111
    %v3113 = vpop.f32.mrb[0].mxu0
    %v3114 = vadd.f32 0.0, %v3113
    %3115 = vdwg.mxu0
    %3116 = vmatprep.subr.mxu0 %v1481
    %3117 = vmatpush1.msra.mxu0 %v1480
    %3118 = vmatprep.subr.mxu0 %v1485
    %3119 = vmatpush1.msra.mxu0 %v1484
    %3120 = vmatprep.subr.mxu0 %v1489
    %3121 = vmatpush1.msra.mxu0 %v1488
    %3122 = vmatprep.subr.mxu0 %v1493
    %3123 = vmatpush1.msra.mxu0 %v1492
    %3124 = vmatprep.subr.mxu0 %v1497
    %3125 = vmatpush1.msra.mxu0 %v1496
    %3126 = vmatprep.subr.mxu0 %v1501
    %3127 = vmatpush1.msra.mxu0 %v1500
    %3128 = vmatprep.subr.mxu0 %v1505
    %3129 = vmatpush1.msra.mxu0 %v1504
    %3130 = vmatprep.subr.mxu0 %v1509
    %3131 = vmatpush1.msra.mxu0 %v1508
    %3132 = vmatprep.subr.mxu0 0.0
    %3133 = vmatpush1.msra.mxu0 0.0
    %3134 = vmatprep.subr.mxu0 0.0
    %3135 = vmatpush1.msra.mxu0 0.0
    %3136 = vmatprep.subr.mxu0 0.0
    %3137 = vmatpush1.msra.mxu0 0.0
    %3138 = vmatprep.subr.mxu0 0.0
    %3139 = vmatpush1.msra.mxu0 0.0
    %3140 = vmatprep.subr.mxu0 0.0
    %3141 = vmatpush1.msra.mxu0 0.0
    %3142 = vmatprep.subr.mxu0 0.0
    %3143 = vmatpush1.msra.mxu0 0.0
    %3144 = vmatprep.subr.mxu0 0.0
    %3145 = vmatpush1.msra.mxu0 0.0
    %3146 = vmatprep.subr.mxu0 0.0
    %3147 = vmatpush1.msra.mxu0 0.0
    %3148 = vmatprep.subr.mxu0 0.0
    %3149 = vmatpush1.msra.mxu0 0.0
    %3150 = vmatprep.subr.mxu0 0.0
    %3151 = vmatpush1.msra.mxu0 0.0
    %3152 = vmatprep.subr.mxu0 0.0
    %3153 = vmatpush1.msra.mxu0 0.0
    %3154 = vmatprep.subr.mxu0 0.0
    %3155 = vmatpush1.msra.mxu0 0.0
    %3156 = vmatprep.subr.mxu0 0.0
    %3157 = vmatpush1.msra.mxu0 0.0
    %3158 = vmatprep.subr.mxu0 0.0
    %3159 = vmatpush1.msra.mxu0 0.0
    %3160 = vmatprep.subr.mxu0 0.0
    %3161 = vmatpush1.msra.mxu0 0.0
    %3162 = vmatprep.subr.mxu0 0.0
    %3163 = vmatpush1.msra.mxu0 0.0
    %3164 = vmatprep.subr.mxu0 0.0
    %3165 = vmatpush1.msra.mxu0 0.0
    %3166 = vmatprep.subr.mxu0 0.0
    %3167 = vmatpush1.msra.mxu0 0.0
    %3168 = vmatprep.subr.mxu0 0.0
    %3169 = vmatpush1.msra.mxu0 0.0
    %3170 = vmatprep.subr.mxu0 0.0
    %3171 = vmatpush1.msra.mxu0 0.0
    %3172 = vmatprep.subr.mxu0 0.0
    %3173 = vmatpush1.msra.mxu0 0.0
    %3174 = vmatprep.subr.mxu0 0.0
    %3175 = vmatpush1.msra.mxu0 0.0
    %3176 = vmatprep.subr.mxu0 0.0
    %3177 = vmatpush1.msra.mxu0 0.0
    %3178 = vmatprep.subr.mxu0 0.0
    %3179 = vmatpush1.msra.mxu0 0.0
    %3180 = vmatprep.mubr.f32.mxu0 0.0
    %3181 = vmatmul.mubr.f32.gmra.mrb[0].mxu0 %v3043
    %v3182 = vpop.f32.mrb[0].mxu0
    %v3183 = vadd.f32 0.0, %v3182
    %v3184 = vpop.f32.mrb[0].mxu0
    %v3185 = vadd.f32 0.0, %v3184
    %3186 = vdwg.mxu0
    %v3187 = vadd.f32 %v3037, %v3112
    %v3188 = vadd.f32 %v3038, %v3114
    %v3189 = vadd.f32 %v3039, %v3183
    %v3190 = vadd.f32 %v3040, %v3185
    %v3191 = vxor.u32 %v3187, 2147483648
    %v3192 = vmul.f32 %v3191, 1.442695
    %v3193 = vpow.pop %v3192
    %v3194 = vadd.f32 %v3193, 1.0
    %v3195 = vrcp.pop %v3194
    %v3196 = vmul.f32 1.0, %v3195
    %v3197 = vxor.u32 %v3188, 2147483648
    %v3198 = vmul.f32 %v3197, 1.442695
    %v3199 = vpow.pop %v3198
    %v3200 = vadd.f32 %v3199, 1.0
    %v3201 = vrcp.pop %v3200
    %v3202 = vmul.f32 1.0, %v3201
    %v3203 = vxor.u32 %v3189, 2147483648
    %v3204 = vmul.f32 %v3203, 1.442695
    %v3205 = vpow.pop %v3204
    %v3206 = vadd.f32 %v3205, 1.0
    %v3207 = vrcp.pop %v3206
    %v3208 = vmul.f32 1.0, %v3207
    %v3209 = vtanh.pop %v3190
    %v3211 = vrot.slane %v3033, 6
    %v3213 = vmul.f32 %v3202, %v3211
    %v3214 = vmul.f32 %v3196, %v3209
    %v3215 = vadd.f32 %v3213, %v3214
    %v3216 = vtanh.pop %v3215
    %v3217 = vmul.f32 %v3208, %v3216
    %3218 = vst.msk [vmem:[#allocation2 + $0x10] sm:$0x3] %vm1688, %v3217
    %v3219 = vld [vmem:[#allocation3 + $0x40] sm:$0xc]
    %v3220 = vld [vmem:[#allocation3 + $0x48] sm:$0xc]
    %v3221 = vld [vmem:[#allocation3 + $0x50] sm:$0xc]
    %v3222 = vld [vmem:[#allocation3 + $0x58] sm:$0xc]
    %v3224 = vsel %vm1514, %v3217, 0
    %3226 = vmatprep.subr.mxu0 %v1479
    %3227 = vmatpush1.msra.mxu0 %v1478
    %3228 = vmatprep.subr.mxu0 %v1483
    %3229 = vmatpush1.msra.mxu0 %v1482
    %3230 = vmatprep.subr.mxu0 %v1487
    %3231 = vmatpush1.msra.mxu0 %v1486
    %3232 = vmatprep.subr.mxu0 %v1491
    %3233 = vmatpush1.msra.mxu0 %v1490
    %3234 = vmatprep.subr.mxu0 %v1495
    %3235 = vmatpush1.msra.mxu0 %v1494
    %3236 = vmatprep.subr.mxu0 %v1499
    %3237 = vmatpush1.msra.mxu0 %v1498
    %3238 = vmatprep.subr.mxu0 %v1503
    %3239 = vmatpush1.msra.mxu0 %v1502
    %3240 = vmatprep.subr.mxu0 %v1507
    %3241 = vmatpush1.msra.mxu0 %v1506
    %3242 = vmatprep.subr.mxu0 0.0
    %3243 = vmatpush1.msra.mxu0 0.0
    %3244 = vmatprep.subr.mxu0 0.0
    %3245 = vmatpush1.msra.mxu0 0.0
    %3246 = vmatprep.subr.mxu0 0.0
    %3247 = vmatpush1.msra.mxu0 0.0
    %3248 = vmatprep.subr.mxu0 0.0
    %3249 = vmatpush1.msra.mxu0 0.0
    %3250 = vmatprep.subr.mxu0 0.0
    %3251 = vmatpush1.msra.mxu0 0.0
    %3252 = vmatprep.subr.mxu0 0.0
    %3253 = vmatpush1.msra.mxu0 0.0
    %3254 = vmatprep.subr.mxu0 0.0
    %3255 = vmatpush1.msra.mxu0 0.0
    %3256 = vmatprep.subr.mxu0 0.0
    %3257 = vmatpush1.msra.mxu0 0.0
    %3258 = vmatprep.subr.mxu0 0.0
    %3259 = vmatpush1.msra.mxu0 0.0
    %3260 = vmatprep.subr.mxu0 0.0
    %3261 = vmatpush1.msra.mxu0 0.0
    %3262 = vmatprep.subr.mxu0 0.0
    %3263 = vmatpush1.msra.mxu0 0.0
    %3264 = vmatprep.subr.mxu0 0.0
    %3265 = vmatpush1.msra.mxu0 0.0
    %3266 = vmatprep.subr.mxu0 0.0
    %3267 = vmatpush1.msra.mxu0 0.0
    %3268 = vmatprep.subr.mxu0 0.0
    %3269 = vmatpush1.msra.mxu0 0.0
    %3270 = vmatprep.subr.mxu0 0.0
    %3271 = vmatpush1.msra.mxu0 0.0
    %3272 = vmatprep.subr.mxu0 0.0
    %3273 = vmatpush1.msra.mxu0 0.0
    %3274 = vmatprep.subr.mxu0 0.0
    %3275 = vmatpush1.msra.mxu0 0.0
    %3276 = vmatprep.subr.mxu0 0.0
    %3277 = vmatpush1.msra.mxu0 0.0
    %3278 = vmatprep.subr.mxu0 0.0
    %3279 = vmatpush1.msra.mxu0 0.0
    %3280 = vmatprep.subr.mxu0 0.0
    %3281 = vmatpush1.msra.mxu0 0.0
    %3282 = vmatprep.subr.mxu0 0.0
    %3283 = vmatpush1.msra.mxu0 0.0
    %3284 = vmatprep.subr.mxu0 0.0
    %3285 = vmatpush1.msra.mxu0 0.0
    %3286 = vmatprep.subr.mxu0 0.0
    %3287 = vmatpush1.msra.mxu0 0.0
    %3288 = vmatprep.subr.mxu0 0.0
    %3289 = vmatpush1.msra.mxu0 0.0
    %3290 = vmatprep.mubr.f32.mxu0 0.0
    %3291 = vmatmul.mubr.f32.gmra.mrb[0].mxu0 %v3224
    %v3292 = vpop.f32.mrb[0].mxu0
    %v3293 = vadd.f32 0.0, %v3292
    %v3294 = vpop.f32.mrb[0].mxu0
    %v3295 = vadd.f32 0.0, %v3294
    %3296 = vdwg.mxu0
    %3297 = vmatprep.subr.mxu0 %v1481
    %3298 = vmatpush1.msra.mxu0 %v1480
    %3299 = vmatprep.subr.mxu0 %v1485
    %3300 = vmatpush1.msra.mxu0 %v1484
    %3301 = vmatprep.subr.mxu0 %v1489
    %3302 = vmatpush1.msra.mxu0 %v1488
    %3303 = vmatprep.subr.mxu0 %v1493
    %3304 = vmatpush1.msra.mxu0 %v1492
    %3305 = vmatprep.subr.mxu0 %v1497
    %3306 = vmatpush1.msra.mxu0 %v1496
    %3307 = vmatprep.subr.mxu0 %v1501
    %3308 = vmatpush1.msra.mxu0 %v1500
    %3309 = vmatprep.subr.mxu0 %v1505
    %3310 = vmatpush1.msra.mxu0 %v1504
    %3311 = vmatprep.subr.mxu0 %v1509
    %3312 = vmatpush1.msra.mxu0 %v1508
    %3313 = vmatprep.subr.mxu0 0.0
    %3314 = vmatpush1.msra.mxu0 0.0
    %3315 = vmatprep.subr.mxu0 0.0
    %3316 = vmatpush1.msra.mxu0 0.0
    %3317 = vmatprep.subr.mxu0 0.0
    %3318 = vmatpush1.msra.mxu0 0.0
    %3319 = vmatprep.subr.mxu0 0.0
    %3320 = vmatpush1.msra.mxu0 0.0
    %3321 = vmatprep.subr.mxu0 0.0
    %3322 = vmatpush1.msra.mxu0 0.0
    %3323 = vmatprep.subr.mxu0 0.0
    %3324 = vmatpush1.msra.mxu0 0.0
    %3325 = vmatprep.subr.mxu0 0.0
    %3326 = vmatpush1.msra.mxu0 0.0
    %3327 = vmatprep.subr.mxu0 0.0
    %3328 = vmatpush1.msra.mxu0 0.0
    %3329 = vmatprep.subr.mxu0 0.0
    %3330 = vmatpush1.msra.mxu0 0.0
    %3331 = vmatprep.subr.mxu0 0.0
    %3332 = vmatpush1.msra.mxu0 0.0
    %3333 = vmatprep.subr.mxu0 0.0
    %3334 = vmatpush1.msra.mxu0 0.0
    %3335 = vmatprep.subr.mxu0 0.0
    %3336 = vmatpush1.msra.mxu0 0.0
    %3337 = vmatprep.subr.mxu0 0.0
    %3338 = vmatpush1.msra.mxu0 0.0
    %3339 = vmatprep.subr.mxu0 0.0
    %3340 = vmatpush1.msra.mxu0 0.0
    %3341 = vmatprep.subr.mxu0 0.0
    %3342 = vmatpush1.msra.mxu0 0.0
    %3343 = vmatprep.subr.mxu0 0.0
    %3344 = vmatpush1.msra.mxu0 0.0
    %3345 = vmatprep.subr.mxu0 0.0
    %3346 = vmatpush1.msra.mxu0 0.0
    %3347 = vmatprep.subr.mxu0 0.0
    %3348 = vmatpush1.msra.mxu0 0.0
    %3349 = vmatprep.subr.mxu0 0.0
    %3350 = vmatpush1.msra.mxu0 0.0
    %3351 = vmatprep.subr.mxu0 0.0
    %3352 = vmatpush1.msra.mxu0 0.0
    %3353 = vmatprep.subr.mxu0 0.0
    %3354 = vmatpush1.msra.mxu0 0.0
    %3355 = vmatprep.subr.mxu0 0.0
    %3356 = vmatpush1.msra.mxu0 0.0
    %3357 = vmatprep.subr.mxu0 0.0
    %3358 = vmatpush1.msra.mxu0 0.0
    %3359 = vmatprep.subr.mxu0 0.0
    %3360 = vmatpush1.msra.mxu0 0.0
    %3361 = vmatprep.mubr.f32.mxu0 0.0
    %3362 = vmatmul.mubr.f32.gmra.mrb[0].mxu0 %v3224
    %v3363 = vpop.f32.mrb[0].mxu0
    %v3364 = vadd.f32 0.0, %v3363
    %v3365 = vpop.f32.mrb[0].mxu0
    %v3366 = vadd.f32 0.0, %v3365
    %3367 = vdwg.mxu0
    %v3372 = vrot.slane %v3293, 6
    %v3373 = vrot.slane %v3295, 6
    %v3374 = vrot.slane %v3364, 6
    %v3375 = vrot.slane %v3366, 6
    %v3380 = vadd.f32 %v3219, %v3372
    %v3381 = vadd.f32 %v3220, %v3373
    %v3382 = vadd.f32 %v3221, %v3374
    %v3383 = vadd.f32 %v3222, %v3375
    %v3384 = vxor.u32 %v3380, 2147483648
    %v3385 = vmul.f32 %v3384, 1.442695
    %v3386 = vpow.pop %v3385
    %v3387 = vadd.f32 %v3386, 1.0
    %v3388 = vrcp.pop %v3387
    %v3389 = vmul.f32 1.0, %v3388
    %v3390 = vxor.u32 %v3381, 2147483648
    %v3391 = vmul.f32 %v3390, 1.442695
    %v3392 = vpow.pop %v3391
    %v3393 = vadd.f32 %v3392, 1.0
    %v3394 = vrcp.pop %v3393
    %v3395 = vmul.f32 1.0, %v3394
    %v3396 = vxor.u32 %v3382, 2147483648
    %v3397 = vmul.f32 %v3396, 1.442695
    %v3398 = vpow.pop %v3397
    %v3399 = vadd.f32 %v3398, 1.0
    %v3400 = vrcp.pop %v3399
    %v3401 = vmul.f32 1.0, %v3400
    %v3402 = vtanh.pop %v3383
    %v3404 = vrot.slane %v3215, 6
    %v3406 = vmul.f32 %v3395, %v3404
    %v3407 = vmul.f32 %v3389, %v3402
    %v3408 = vadd.f32 %v3406, %v3407
    %v3409 = vtanh.pop %v3408
    %v3410 = vmul.f32 %v3401, %v3409
    %3411 = vst.msk [vmem:[#allocation2 + $0x10] sm:$0xc] %vm1882, %v3410
    %v3412 = vld [vmem:[#allocation3 + $0x40] sm:$0x30]
    %v3413 = vld [vmem:[#allocation3 + $0x48] sm:$0x30]
    %v3414 = vld [vmem:[#allocation3 + $0x50] sm:$0x30]
    %v3415 = vld [vmem:[#allocation3 + $0x58] sm:$0x30]
    %v3417 = vrot.slane %v3410, 2
    %v3418 = vsel %vm1514, %v3417, 0
    %3420 = vmatprep.subr.mxu0 %v1479
    %3421 = vmatpush1.msra.mxu0 %v1478
    %3422 = vmatprep.subr.mxu0 %v1483
    %3423 = vmatpush1.msra.mxu0 %v1482
    %3424 = vmatprep.subr.mxu0 %v1487
    %3425 = vmatpush1.msra.mxu0 %v1486
    %3426 = vmatprep.subr.mxu0 %v1491
    %3427 = vmatpush1.msra.mxu0 %v1490
    %3428 = vmatprep.subr.mxu0 %v1495
    %3429 = vmatpush1.msra.mxu0 %v1494
    %3430 = vmatprep.subr.mxu0 %v1499
    %3431 = vmatpush1.msra.mxu0 %v1498
    %3432 = vmatprep.subr.mxu0 %v1503
    %3433 = vmatpush1.msra.mxu0 %v1502
    %3434 = vmatprep.subr.mxu0 %v1507
    %3435 = vmatpush1.msra.mxu0 %v1506
    %3436 = vmatprep.subr.mxu0 0.0
    %3437 = vmatpush1.msra.mxu0 0.0
    %3438 = vmatprep.subr.mxu0 0.0
    %3439 = vmatpush1.msra.mxu0 0.0
    %3440 = vmatprep.subr.mxu0 0.0
    %3441 = vmatpush1.msra.mxu0 0.0
    %3442 = vmatprep.subr.mxu0 0.0
    %3443 = vmatpush1.msra.mxu0 0.0
    %3444 = vmatprep.subr.mxu0 0.0
    %3445 = vmatpush1.msra.mxu0 0.0
    %3446 = vmatprep.subr.mxu0 0.0
    %3447 = vmatpush1.msra.mxu0 0.0
    %3448 = vmatprep.subr.mxu0 0.0
    %3449 = vmatpush1.msra.mxu0 0.0
    %3450 = vmatprep.subr.mxu0 0.0
    %3451 = vmatpush1.msra.mxu0 0.0
    %3452 = vmatprep.subr.mxu0 0.0
    %3453 = vmatpush1.msra.mxu0 0.0
    %3454 = vmatprep.subr.mxu0 0.0
    %3455 = vmatpush1.msra.mxu0 0.0
    %3456 = vmatprep.subr.mxu0 0.0
    %3457 = vmatpush1.msra.mxu0 0.0
    %3458 = vmatprep.subr.mxu0 0.0
    %3459 = vmatpush1.msra.mxu0 0.0
    %3460 = vmatprep.subr.mxu0 0.0
    %3461 = vmatpush1.msra.mxu0 0.0
    %3462 = vmatprep.subr.mxu0 0.0
    %3463 = vmatpush1.msra.mxu0 0.0
    %3464 = vmatprep.subr.mxu0 0.0
    %3465 = vmatpush1.msra.mxu0 0.0
    %3466 = vmatprep.subr.mxu0 0.0
    %3467 = vmatpush1.msra.mxu0 0.0
    %3468 = vmatprep.subr.mxu0 0.0
    %3469 = vmatpush1.msra.mxu0 0.0
    %3470 = vmatprep.subr.mxu0 0.0
    %3471 = vmatpush1.msra.mxu0 0.0
    %3472 = vmatprep.subr.mxu0 0.0
    %3473 = vmatpush1.msra.mxu0 0.0
    %3474 = vmatprep.subr.mxu0 0.0
    %3475 = vmatpush1.msra.mxu0 0.0
    %3476 = vmatprep.subr.mxu0 0.0
    %3477 = vmatpush1.msra.mxu0 0.0
    %3478 = vmatprep.subr.mxu0 0.0
    %3479 = vmatpush1.msra.mxu0 0.0
    %3480 = vmatprep.subr.mxu0 0.0
    %3481 = vmatpush1.msra.mxu0 0.0
    %3482 = vmatprep.subr.mxu0 0.0
    %3483 = vmatpush1.msra.mxu0 0.0
    %3484 = vmatprep.mubr.f32.mxu0 0.0
    %3485 = vmatmul.mubr.f32.gmra.mrb[0].mxu0 %v3418
    %v3486 = vpop.f32.mrb[0].mxu0
    %v3487 = vadd.f32 0.0, %v3486
    %v3488 = vpop.f32.mrb[0].mxu0
    %v3489 = vadd.f32 0.0, %v3488
    %3490 = vdwg.mxu0
    %3491 = vmatprep.subr.mxu0 %v1481
    %3492 = vmatpush1.msra.mxu0 %v1480
    %3493 = vmatprep.subr.mxu0 %v1485
    %3494 = vmatpush1.msra.mxu0 %v1484
    %3495 = vmatprep.subr.mxu0 %v1489
    %3496 = vmatpush1.msra.mxu0 %v1488
    %3497 = vmatprep.subr.mxu0 %v1493
    %3498 = vmatpush1.msra.mxu0 %v1492
    %3499 = vmatprep.subr.mxu0 %v1497
    %3500 = vmatpush1.msra.mxu0 %v1496
    %3501 = vmatprep.subr.mxu0 %v1501
    %3502 = vmatpush1.msra.mxu0 %v1500
    %3503 = vmatprep.subr.mxu0 %v1505
    %3504 = vmatpush1.msra.mxu0 %v1504
    %3505 = vmatprep.subr.mxu0 %v1509
    %3506 = vmatpush1.msra.mxu0 %v1508
    %3507 = vmatprep.subr.mxu0 0.0
    %3508 = vmatpush1.msra.mxu0 0.0
    %3509 = vmatprep.subr.mxu0 0.0
    %3510 = vmatpush1.msra.mxu0 0.0
    %3511 = vmatprep.subr.mxu0 0.0
    %3512 = vmatpush1.msra.mxu0 0.0
    %3513 = vmatprep.subr.mxu0 0.0
    %3514 = vmatpush1.msra.mxu0 0.0
    %3515 = vmatprep.subr.mxu0 0.0
    %3516 = vmatpush1.msra.mxu0 0.0
    %3517 = vmatprep.subr.mxu0 0.0
    %3518 = vmatpush1.msra.mxu0 0.0
    %3519 = vmatprep.subr.mxu0 0.0
    %3520 = vmatpush1.msra.mxu0 0.0
    %3521 = vmatprep.subr.mxu0 0.0
    %3522 = vmatpush1.msra.mxu0 0.0
    %3523 = vmatprep.subr.mxu0 0.0
    %3524 = vmatpush1.msra.mxu0 0.0
    %3525 = vmatprep.subr.mxu0 0.0
    %3526 = vmatpush1.msra.mxu0 0.0
    %3527 = vmatprep.subr.mxu0 0.0
    %3528 = vmatpush1.msra.mxu0 0.0
    %3529 = vmatprep.subr.mxu0 0.0
    %3530 = vmatpush1.msra.mxu0 0.0
    %3531 = vmatprep.subr.mxu0 0.0
    %3532 = vmatpush1.msra.mxu0 0.0
    %3533 = vmatprep.subr.mxu0 0.0
    %3534 = vmatpush1.msra.mxu0 0.0
    %3535 = vmatprep.subr.mxu0 0.0
    %3536 = vmatpush1.msra.mxu0 0.0
    %3537 = vmatprep.subr.mxu0 0.0
    %3538 = vmatpush1.msra.mxu0 0.0
    %3539 = vmatprep.subr.mxu0 0.0
    %3540 = vmatpush1.msra.mxu0 0.0
    %3541 = vmatprep.subr.mxu0 0.0
    %3542 = vmatpush1.msra.mxu0 0.0
    %3543 = vmatprep.subr.mxu0 0.0
    %3544 = vmatpush1.msra.mxu0 0.0
    %3545 = vmatprep.subr.mxu0 0.0
    %3546 = vmatpush1.msra.mxu0 0.0
    %3547 = vmatprep.subr.mxu0 0.0
    %3548 = vmatpush1.msra.mxu0 0.0
    %3549 = vmatprep.subr.mxu0 0.0
    %3550 = vmatpush1.msra.mxu0 0.0
    %3551 = vmatprep.subr.mxu0 0.0
    %3552 = vmatpush1.msra.mxu0 0.0
    %3553 = vmatprep.subr.mxu0 0.0
    %3554 = vmatpush1.msra.mxu0 0.0
    %3555 = vmatprep.mubr.f32.mxu0 0.0
    %3556 = vmatmul.mubr.f32.gmra.mrb[0].mxu0 %v3418
    %v3557 = vpop.f32.mrb[0].mxu0
    %v3558 = vadd.f32 0.0, %v3557
    %v3559 = vpop.f32.mrb[0].mxu0
    %v3560 = vadd.f32 0.0, %v3559
    %3561 = vdwg.mxu0
    %v3566 = vrot.slane %v3487, 4
    %v3567 = vrot.slane %v3489, 4
    %v3568 = vrot.slane %v3558, 4
    %v3569 = vrot.slane %v3560, 4
    %v3574 = vadd.f32 %v3412, %v3566
    %v3575 = vadd.f32 %v3413, %v3567
    %v3576 = vadd.f32 %v3414, %v3568
    %v3577 = vadd.f32 %v3415, %v3569
    %v3578 = vxor.u32 %v3574, 2147483648
    %v3579 = vmul.f32 %v3578, 1.442695
    %v3580 = vpow.pop %v3579
    %v3581 = vadd.f32 %v3580, 1.0
    %v3582 = vrcp.pop %v3581
    %v3583 = vmul.f32 1.0, %v3582
    %v3584 = vxor.u32 %v3575, 2147483648
    %v3585 = vmul.f32 %v3584, 1.442695
    %v3586 = vpow.pop %v3585
    %v3587 = vadd.f32 %v3586, 1.0
    %v3588 = vrcp.pop %v3587
    %v3589 = vmul.f32 1.0, %v3588
    %v3590 = vxor.u32 %v3576, 2147483648
    %v3591 = vmul.f32 %v3590, 1.442695
    %v3592 = vpow.pop %v3591
    %v3593 = vadd.f32 %v3592, 1.0
    %v3594 = vrcp.pop %v3593
    %v3595 = vmul.f32 1.0, %v3594
    %v3596 = vtanh.pop %v3577
    %v3598 = vrot.slane %v3408, 6
    %v3600 = vmul.f32 %v3589, %v3598
    %v3601 = vmul.f32 %v3583, %v3596
    %v3602 = vadd.f32 %v3600, %v3601
    %v3603 = vtanh.pop %v3602
    %v3604 = vmul.f32 %v3595, %v3603
    %3605 = vst.msk [vmem:[#allocation2 + $0x10] sm:$0x30] %vm2077, %v3604
    %v3606 = vld [vmem:[#allocation3 + $0x40] sm:$0xc0]
    %v3607 = vld [vmem:[#allocation3 + $0x48] sm:$0xc0]
    %v3608 = vld [vmem:[#allocation3 + $0x50] sm:$0xc0]
    %v3609 = vld [vmem:[#allocation3 + $0x58] sm:$0xc0]
    %v3611 = vrot.slane %v3604, 4
    %v3612 = vsel %vm1514, %v3611, 0
    %3614 = vmatprep.subr.mxu0 %v1479
    %3615 = vmatpush1.msra.mxu0 %v1478
    %3616 = vmatprep.subr.mxu0 %v1483
    %3617 = vmatpush1.msra.mxu0 %v1482
    %3618 = vmatprep.subr.mxu0 %v1487
    %3619 = vmatpush1.msra.mxu0 %v1486
    %3620 = vmatprep.subr.mxu0 %v1491
    %3621 = vmatpush1.msra.mxu0 %v1490
    %3622 = vmatprep.subr.mxu0 %v1495
    %3623 = vmatpush1.msra.mxu0 %v1494
    %3624 = vmatprep.subr.mxu0 %v1499
    %3625 = vmatpush1.msra.mxu0 %v1498
    %3626 = vmatprep.subr.mxu0 %v1503
    %3627 = vmatpush1.msra.mxu0 %v1502
    %3628 = vmatprep.subr.mxu0 %v1507
    %3629 = vmatpush1.msra.mxu0 %v1506
    %3630 = vmatprep.subr.mxu0 0.0
    %3631 = vmatpush1.msra.mxu0 0.0
    %3632 = vmatprep.subr.mxu0 0.0
    %3633 = vmatpush1.msra.mxu0 0.0
    %3634 = vmatprep.subr.mxu0 0.0
    %3635 = vmatpush1.msra.mxu0 0.0
    %3636 = vmatprep.subr.mxu0 0.0
    %3637 = vmatpush1.msra.mxu0 0.0
    %3638 = vmatprep.subr.mxu0 0.0
    %3639 = vmatpush1.msra.mxu0 0.0
    %3640 = vmatprep.subr.mxu0 0.0
    %3641 = vmatpush1.msra.mxu0 0.0
    %3642 = vmatprep.subr.mxu0 0.0
    %3643 = vmatpush1.msra.mxu0 0.0
    %3644 = vmatprep.subr.mxu0 0.0
    %3645 = vmatpush1.msra.mxu0 0.0
    %3646 = vmatprep.subr.mxu0 0.0
    %3647 = vmatpush1.msra.mxu0 0.0
    %3648 = vmatprep.subr.mxu0 0.0
    %3649 = vmatpush1.msra.mxu0 0.0
    %3650 = vmatprep.subr.mxu0 0.0
    %3651 = vmatpush1.msra.mxu0 0.0
    %3652 = vmatprep.subr.mxu0 0.0
    %3653 = vmatpush1.msra.mxu0 0.0
    %3654 = vmatprep.subr.mxu0 0.0
    %3655 = vmatpush1.msra.mxu0 0.0
    %3656 = vmatprep.subr.mxu0 0.0
    %3657 = vmatpush1.msra.mxu0 0.0
    %3658 = vmatprep.subr.mxu0 0.0
    %3659 = vmatpush1.msra.mxu0 0.0
    %3660 = vmatprep.subr.mxu0 0.0
    %3661 = vmatpush1.msra.mxu0 0.0
    %3662 = vmatprep.subr.mxu0 0.0
    %3663 = vmatpush1.msra.mxu0 0.0
    %3664 = vmatprep.subr.mxu0 0.0
    %3665 = vmatpush1.msra.mxu0 0.0
    %3666 = vmatprep.subr.mxu0 0.0
    %3667 = vmatpush1.msra.mxu0 0.0
    %3668 = vmatprep.subr.mxu0 0.0
    %3669 = vmatpush1.msra.mxu0 0.0
    %3670 = vmatprep.subr.mxu0 0.0
    %3671 = vmatpush1.msra.mxu0 0.0
    %3672 = vmatprep.subr.mxu0 0.0
    %3673 = vmatpush1.msra.mxu0 0.0
    %3674 = vmatprep.subr.mxu0 0.0
    %3675 = vmatpush1.msra.mxu0 0.0
    %3676 = vmatprep.subr.mxu0 0.0
    %3677 = vmatpush1.msra.mxu0 0.0
    %3678 = vmatprep.mubr.f32.mxu0 0.0
    %3679 = vmatmul.mubr.f32.gmra.mrb[0].mxu0 %v3612
    %v3680 = vpop.f32.mrb[0].mxu0
    %v3681 = vadd.f32 0.0, %v3680
    %v3682 = vpop.f32.mrb[0].mxu0
    %v3683 = vadd.f32 0.0, %v3682
    %3684 = vdwg.mxu0
    %3685 = vmatprep.subr.mxu0 %v1481
    %3686 = vmatpush1.msra.mxu0 %v1480
    %3687 = vmatprep.subr.mxu0 %v1485
    %3688 = vmatpush1.msra.mxu0 %v1484
    %3689 = vmatprep.subr.mxu0 %v1489
    %3690 = vmatpush1.msra.mxu0 %v1488
    %3691 = vmatprep.subr.mxu0 %v1493
    %3692 = vmatpush1.msra.mxu0 %v1492
    %3693 = vmatprep.subr.mxu0 %v1497
    %3694 = vmatpush1.msra.mxu0 %v1496
    %3695 = vmatprep.subr.mxu0 %v1501
    %3696 = vmatpush1.msra.mxu0 %v1500
    %3697 = vmatprep.subr.mxu0 %v1505
    %3698 = vmatpush1.msra.mxu0 %v1504
    %3699 = vmatprep.subr.mxu0 %v1509
    %3700 = vmatpush1.msra.mxu0 %v1508
    %3701 = vmatprep.subr.mxu0 0.0
    %3702 = vmatpush1.msra.mxu0 0.0
    %3703 = vmatprep.subr.mxu0 0.0
    %3704 = vmatpush1.msra.mxu0 0.0
    %3705 = vmatprep.subr.mxu0 0.0
    %3706 = vmatpush1.msra.mxu0 0.0
    %3707 = vmatprep.subr.mxu0 0.0
    %3708 = vmatpush1.msra.mxu0 0.0
    %3709 = vmatprep.subr.mxu0 0.0
    %3710 = vmatpush1.msra.mxu0 0.0
    %3711 = vmatprep.subr.mxu0 0.0
    %3712 = vmatpush1.msra.mxu0 0.0
    %3713 = vmatprep.subr.mxu0 0.0
    %3714 = vmatpush1.msra.mxu0 0.0
    %3715 = vmatprep.subr.mxu0 0.0
    %3716 = vmatpush1.msra.mxu0 0.0
    %3717 = vmatprep.subr.mxu0 0.0
    %3718 = vmatpush1.msra.mxu0 0.0
    %3719 = vmatprep.subr.mxu0 0.0
    %3720 = vmatpush1.msra.mxu0 0.0
    %3721 = vmatprep.subr.mxu0 0.0
    %3722 = vmatpush1.msra.mxu0 0.0
    %3723 = vmatprep.subr.mxu0 0.0
    %3724 = vmatpush1.msra.mxu0 0.0
    %3725 = vmatprep.subr.mxu0 0.0
    %3726 = vmatpush1.msra.mxu0 0.0
    %3727 = vmatprep.subr.mxu0 0.0
    %3728 = vmatpush1.msra.mxu0 0.0
    %3729 = vmatprep.subr.mxu0 0.0
    %3730 = vmatpush1.msra.mxu0 0.0
    %3731 = vmatprep.subr.mxu0 0.0
    %3732 = vmatpush1.msra.mxu0 0.0
    %3733 = vmatprep.subr.mxu0 0.0
    %3734 = vmatpush1.msra.mxu0 0.0
    %3735 = vmatprep.subr.mxu0 0.0
    %3736 = vmatpush1.msra.mxu0 0.0
    %3737 = vmatprep.subr.mxu0 0.0
    %3738 = vmatpush1.msra.mxu0 0.0
    %3739 = vmatprep.subr.mxu0 0.0
    %3740 = vmatpush1.msra.mxu0 0.0
    %3741 = vmatprep.subr.mxu0 0.0
    %3742 = vmatpush1.msra.mxu0 0.0
    %3743 = vmatprep.subr.mxu0 0.0
    %3744 = vmatpush1.msra.mxu0 0.0
    %3745 = vmatprep.subr.mxu0 0.0
    %3746 = vmatpush1.msra.mxu0 0.0
    %3747 = vmatprep.subr.mxu0 0.0
    %3748 = vmatpush1.msra.mxu0 0.0
    %3749 = vmatprep.mubr.f32.mxu0 0.0
    %3750 = vmatmul.mubr.f32.gmra.mrb[0].mxu0 %v3612
    %v3751 = vpop.f32.mrb[0].mxu0
    %v3752 = vadd.f32 0.0, %v3751
    %v3753 = vpop.f32.mrb[0].mxu0
    %v3754 = vadd.f32 0.0, %v3753
    %3755 = vdwg.mxu0
    %v3760 = vrot.slane %v3681, 2
    %v3761 = vrot.slane %v3683, 2
    %v3762 = vrot.slane %v3752, 2
    %v3763 = vrot.slane %v3754, 2
    %v3768 = vadd.f32 %v3606, %v3760
    %v3769 = vadd.f32 %v3607, %v3761
    %v3770 = vadd.f32 %v3608, %v3762
    %v3771 = vadd.f32 %v3609, %v3763
    %v3772 = vxor.u32 %v3768, 2147483648
    %v3773 = vmul.f32 %v3772, 1.442695
    %v3774 = vpow.pop %v3773
    %v3775 = vadd.f32 %v3774, 1.0
    %v3776 = vrcp.pop %v3775
    %v3777 = vmul.f32 1.0, %v3776
    %v3778 = vxor.u32 %v3769, 2147483648
    %v3779 = vmul.f32 %v3778, 1.442695
    %v3780 = vpow.pop %v3779
    %v3781 = vadd.f32 %v3780, 1.0
    %v3782 = vrcp.pop %v3781
    %v3783 = vmul.f32 1.0, %v3782
    %v3784 = vxor.u32 %v3770, 2147483648
    %v3785 = vmul.f32 %v3784, 1.442695
    %v3786 = vpow.pop %v3785
    %v3787 = vadd.f32 %v3786, 1.0
    %v3788 = vrcp.pop %v3787
    %v3789 = vmul.f32 1.0, %v3788
    %v3790 = vtanh.pop %v3771
    %v3792 = vrot.slane %v3602, 6
    %v3794 = vmul.f32 %v3783, %v3792
    %v3795 = vmul.f32 %v3777, %v3790
    %v3796 = vadd.f32 %v3794, %v3795
    %v3797 = vtanh.pop %v3796
    %v3798 = vmul.f32 %v3789, %v3797
    %3799 = vst.msk [vmem:[#allocation2 + $0x10] sm:$0xc0] %vm2272, %v3798
    %v3800 = vld [vmem:[#allocation3 + $0x60] sm:$0x3]
    %v3801 = vld [vmem:[#allocation3 + $0x68] sm:$0x3]
    %v3802 = vld [vmem:[#allocation3 + $0x70] sm:$0x3]
    %v3803 = vld [vmem:[#allocation3 + $0x78] sm:$0x3]
    %v3805 = vrot.slane %v3798, 6
    %v3806 = vsel %vm1514, %v3805, 0
    %3808 = vmatprep.subr.mxu0 %v1479
    %3809 = vmatpush1.msra.mxu0 %v1478
    %3810 = vmatprep.subr.mxu0 %v1483
    %3811 = vmatpush1.msra.mxu0 %v1482
    %3812 = vmatprep.subr.mxu0 %v1487
    %3813 = vmatpush1.msra.mxu0 %v1486
    %3814 = vmatprep.subr.mxu0 %v1491
    %3815 = vmatpush1.msra.mxu0 %v1490
    %3816 = vmatprep.subr.mxu0 %v1495
    %3817 = vmatpush1.msra.mxu0 %v1494
    %3818 = vmatprep.subr.mxu0 %v1499
    %3819 = vmatpush1.msra.mxu0 %v1498
    %3820 = vmatprep.subr.mxu0 %v1503
    %3821 = vmatpush1.msra.mxu0 %v1502
    %3822 = vmatprep.subr.mxu0 %v1507
    %3823 = vmatpush1.msra.mxu0 %v1506
    %3824 = vmatprep.subr.mxu0 0.0
    %3825 = vmatpush1.msra.mxu0 0.0
    %3826 = vmatprep.subr.mxu0 0.0
    %3827 = vmatpush1.msra.mxu0 0.0
    %3828 = vmatprep.subr.mxu0 0.0
    %3829 = vmatpush1.msra.mxu0 0.0
    %3830 = vmatprep.subr.mxu0 0.0
    %3831 = vmatpush1.msra.mxu0 0.0
    %3832 = vmatprep.subr.mxu0 0.0
    %3833 = vmatpush1.msra.mxu0 0.0
    %3834 = vmatprep.subr.mxu0 0.0
    %3835 = vmatpush1.msra.mxu0 0.0
    %3836 = vmatprep.subr.mxu0 0.0
    %3837 = vmatpush1.msra.mxu0 0.0
    %3838 = vmatprep.subr.mxu0 0.0
    %3839 = vmatpush1.msra.mxu0 0.0
    %3840 = vmatprep.subr.mxu0 0.0
    %3841 = vmatpush1.msra.mxu0 0.0
    %3842 = vmatprep.subr.mxu0 0.0
    %3843 = vmatpush1.msra.mxu0 0.0
    %3844 = vmatprep.subr.mxu0 0.0
    %3845 = vmatpush1.msra.mxu0 0.0
    %3846 = vmatprep.subr.mxu0 0.0
    %3847 = vmatpush1.msra.mxu0 0.0
    %3848 = vmatprep.subr.mxu0 0.0
    %3849 = vmatpush1.msra.mxu0 0.0
    %3850 = vmatprep.subr.mxu0 0.0
    %3851 = vmatpush1.msra.mxu0 0.0
    %3852 = vmatprep.subr.mxu0 0.0
    %3853 = vmatpush1.msra.mxu0 0.0
    %3854 = vmatprep.subr.mxu0 0.0
    %3855 = vmatpush1.msra.mxu0 0.0
    %3856 = vmatprep.subr.mxu0 0.0
    %3857 = vmatpush1.msra.mxu0 0.0
    %3858 = vmatprep.subr.mxu0 0.0
    %3859 = vmatpush1.msra.mxu0 0.0
    %3860 = vmatprep.subr.mxu0 0.0
    %3861 = vmatpush1.msra.mxu0 0.0
    %3862 = vmatprep.subr.mxu0 0.0
    %3863 = vmatpush1.msra.mxu0 0.0
    %3864 = vmatprep.subr.mxu0 0.0
    %3865 = vmatpush1.msra.mxu0 0.0
    %3866 = vmatprep.subr.mxu0 0.0
    %3867 = vmatpush1.msra.mxu0 0.0
    %3868 = vmatprep.subr.mxu0 0.0
    %3869 = vmatpush1.msra.mxu0 0.0
    %3870 = vmatprep.subr.mxu0 0.0
    %3871 = vmatpush1.msra.mxu0 0.0
    %3872 = vmatprep.mubr.f32.mxu0 0.0
    %3873 = vmatmul.mubr.f32.gmra.mrb[0].mxu0 %v3806
    %v3874 = vpop.f32.mrb[0].mxu0
    %v3875 = vadd.f32 0.0, %v3874
    %v3876 = vpop.f32.mrb[0].mxu0
    %v3877 = vadd.f32 0.0, %v3876
    %3878 = vdwg.mxu0
    %3879 = vmatprep.subr.mxu0 %v1481
    %3880 = vmatpush1.msra.mxu0 %v1480
    %3881 = vmatprep.subr.mxu0 %v1485
    %3882 = vmatpush1.msra.mxu0 %v1484
    %3883 = vmatprep.subr.mxu0 %v1489
    %3884 = vmatpush1.msra.mxu0 %v1488
    %3885 = vmatprep.subr.mxu0 %v1493
    %3886 = vmatpush1.msra.mxu0 %v1492
    %3887 = vmatprep.subr.mxu0 %v1497
    %3888 = vmatpush1.msra.mxu0 %v1496
    %3889 = vmatprep.subr.mxu0 %v1501
    %3890 = vmatpush1.msra.mxu0 %v1500
    %3891 = vmatprep.subr.mxu0 %v1505
    %3892 = vmatpush1.msra.mxu0 %v1504
    %3893 = vmatprep.subr.mxu0 %v1509
    %3894 = vmatpush1.msra.mxu0 %v1508
    %3895 = vmatprep.subr.mxu0 0.0
    %3896 = vmatpush1.msra.mxu0 0.0
    %3897 = vmatprep.subr.mxu0 0.0
    %3898 = vmatpush1.msra.mxu0 0.0
    %3899 = vmatprep.subr.mxu0 0.0
    %3900 = vmatpush1.msra.mxu0 0.0
    %3901 = vmatprep.subr.mxu0 0.0
    %3902 = vmatpush1.msra.mxu0 0.0
    %3903 = vmatprep.subr.mxu0 0.0
    %3904 = vmatpush1.msra.mxu0 0.0
    %3905 = vmatprep.subr.mxu0 0.0
    %3906 = vmatpush1.msra.mxu0 0.0
    %3907 = vmatprep.subr.mxu0 0.0
    %3908 = vmatpush1.msra.mxu0 0.0
    %3909 = vmatprep.subr.mxu0 0.0
    %3910 = vmatpush1.msra.mxu0 0.0
    %3911 = vmatprep.subr.mxu0 0.0
    %3912 = vmatpush1.msra.mxu0 0.0
    %3913 = vmatprep.subr.mxu0 0.0
    %3914 = vmatpush1.msra.mxu0 0.0
    %3915 = vmatprep.subr.mxu0 0.0
    %3916 = vmatpush1.msra.mxu0 0.0
    %3917 = vmatprep.subr.mxu0 0.0
    %3918 = vmatpush1.msra.mxu0 0.0
    %3919 = vmatprep.subr.mxu0 0.0
    %3920 = vmatpush1.msra.mxu0 0.0
    %3921 = vmatprep.subr.mxu0 0.0
    %3922 = vmatpush1.msra.mxu0 0.0
    %3923 = vmatprep.subr.mxu0 0.0
    %3924 = vmatpush1.msra.mxu0 0.0
    %3925 = vmatprep.subr.mxu0 0.0
    %3926 = vmatpush1.msra.mxu0 0.0
    %3927 = vmatprep.subr.mxu0 0.0
    %3928 = vmatpush1.msra.mxu0 0.0
    %3929 = vmatprep.subr.mxu0 0.0
    %3930 = vmatpush1.msra.mxu0 0.0
    %3931 = vmatprep.subr.mxu0 0.0
    %3932 = vmatpush1.msra.mxu0 0.0
    %3933 = vmatprep.subr.mxu0 0.0
    %3934 = vmatpush1.msra.mxu0 0.0
    %3935 = vmatprep.subr.mxu0 0.0
    %3936 = vmatpush1.msra.mxu0 0.0
    %3937 = vmatprep.subr.mxu0 0.0
    %3938 = vmatpush1.msra.mxu0 0.0
    %3939 = vmatprep.subr.mxu0 0.0
    %3940 = vmatpush1.msra.mxu0 0.0
    %3941 = vmatprep.subr.mxu0 0.0
    %3942 = vmatpush1.msra.mxu0 0.0
    %3943 = vmatprep.mubr.f32.mxu0 0.0
    %3944 = vmatmul.mubr.f32.gmra.mrb[0].mxu0 %v3806
    %v3945 = vpop.f32.mrb[0].mxu0
    %v3946 = vadd.f32 0.0, %v3945
    %v3947 = vpop.f32.mrb[0].mxu0
    %v3948 = vadd.f32 0.0, %v3947
    %3949 = vdwg.mxu0
    %v3950 = vadd.f32 %v3800, %v3875
    %v3951 = vadd.f32 %v3801, %v3877
    %v3952 = vadd.f32 %v3802, %v3946
    %v3953 = vadd.f32 %v3803, %v3948
    %v3954 = vxor.u32 %v3950, 2147483648
    %v3955 = vmul.f32 %v3954, 1.442695
    %v3956 = vpow.pop %v3955
    %v3957 = vadd.f32 %v3956, 1.0
    %v3958 = vrcp.pop %v3957
    %v3959 = vmul.f32 1.0, %v3958
    %v3960 = vxor.u32 %v3951, 2147483648
    %v3961 = vmul.f32 %v3960, 1.442695
    %v3962 = vpow.pop %v3961
    %v3963 = vadd.f32 %v3962, 1.0
    %v3964 = vrcp.pop %v3963
    %v3965 = vmul.f32 1.0, %v3964
    %v3966 = vxor.u32 %v3952, 2147483648
    %v3967 = vmul.f32 %v3966, 1.442695
    %v3968 = vpow.pop %v3967
    %v3969 = vadd.f32 %v3968, 1.0
    %v3970 = vrcp.pop %v3969
    %v3971 = vmul.f32 1.0, %v3970
    %v3972 = vtanh.pop %v3953
    %v3974 = vrot.slane %v3796, 6
    %v3976 = vmul.f32 %v3965, %v3974
    %v3977 = vmul.f32 %v3959, %v3972
    %v3978 = vadd.f32 %v3976, %v3977
    %v3979 = vtanh.pop %v3978
    %v3980 = vmul.f32 %v3971, %v3979
    %3981 = vst.msk [vmem:[#allocation2 + $0x18] sm:$0x3] %vm1688, %v3980
    %v3982 = vld [vmem:[#allocation3 + $0x60] sm:$0xc]
    %v3983 = vld [vmem:[#allocation3 + $0x68] sm:$0xc]
    %v3984 = vld [vmem:[#allocation3 + $0x70] sm:$0xc]
    %v3985 = vld [vmem:[#allocation3 + $0x78] sm:$0xc]
    %v3987 = vsel %vm1514, %v3980, 0
    %3989 = vmatprep.subr.mxu0 %v1479
    %3990 = vmatpush1.msra.mxu0 %v1478
    %3991 = vmatprep.subr.mxu0 %v1483
    %3992 = vmatpush1.msra.mxu0 %v1482
    %3993 = vmatprep.subr.mxu0 %v1487
    %3994 = vmatpush1.msra.mxu0 %v1486
    %3995 = vmatprep.subr.mxu0 %v1491
    %3996 = vmatpush1.msra.mxu0 %v1490
    %3997 = vmatprep.subr.mxu0 %v1495
    %3998 = vmatpush1.msra.mxu0 %v1494
    %3999 = vmatprep.subr.mxu0 %v1499
    %4000 = vmatpush1.msra.mxu0 %v1498
    %4001 = vmatprep.subr.mxu0 %v1503
    %4002 = vmatpush1.msra.mxu0 %v1502
    %4003 = vmatprep.subr.mxu0 %v1507
    %4004 = vmatpush1.msra.mxu0 %v1506
    %4005 = vmatprep.subr.mxu0 0.0
    %4006 = vmatpush1.msra.mxu0 0.0
    %4007 = vmatprep.subr.mxu0 0.0
    %4008 = vmatpush1.msra.mxu0 0.0
    %4009 = vmatprep.subr.mxu0 0.0
    %4010 = vmatpush1.msra.mxu0 0.0
    %4011 = vmatprep.subr.mxu0 0.0
    %4012 = vmatpush1.msra.mxu0 0.0
    %4013 = vmatprep.subr.mxu0 0.0
    %4014 = vmatpush1.msra.mxu0 0.0
    %4015 = vmatprep.subr.mxu0 0.0
    %4016 = vmatpush1.msra.mxu0 0.0
    %4017 = vmatprep.subr.mxu0 0.0
    %4018 = vmatpush1.msra.mxu0 0.0
    %4019 = vmatprep.subr.mxu0 0.0
    %4020 = vmatpush1.msra.mxu0 0.0
    %4021 = vmatprep.subr.mxu0 0.0
    %4022 = vmatpush1.msra.mxu0 0.0
    %4023 = vmatprep.subr.mxu0 0.0
    %4024 = vmatpush1.msra.mxu0 0.0
    %4025 = vmatprep.subr.mxu0 0.0
    %4026 = vmatpush1.msra.mxu0 0.0
    %4027 = vmatprep.subr.mxu0 0.0
    %4028 = vmatpush1.msra.mxu0 0.0
    %4029 = vmatprep.subr.mxu0 0.0
    %4030 = vmatpush1.msra.mxu0 0.0
    %4031 = vmatprep.subr.mxu0 0.0
    %4032 = vmatpush1.msra.mxu0 0.0
    %4033 = vmatprep.subr.mxu0 0.0
    %4034 = vmatpush1.msra.mxu0 0.0
    %4035 = vmatprep.subr.mxu0 0.0
    %4036 = vmatpush1.msra.mxu0 0.0
    %4037 = vmatprep.subr.mxu0 0.0
    %4038 = vmatpush1.msra.mxu0 0.0
    %4039 = vmatprep.subr.mxu0 0.0
    %4040 = vmatpush1.msra.mxu0 0.0
    %4041 = vmatprep.subr.mxu0 0.0
    %4042 = vmatpush1.msra.mxu0 0.0
    %4043 = vmatprep.subr.mxu0 0.0
    %4044 = vmatpush1.msra.mxu0 0.0
    %4045 = vmatprep.subr.mxu0 0.0
    %4046 = vmatpush1.msra.mxu0 0.0
    %4047 = vmatprep.subr.mxu0 0.0
    %4048 = vmatpush1.msra.mxu0 0.0
    %4049 = vmatprep.subr.mxu0 0.0
    %4050 = vmatpush1.msra.mxu0 0.0
    %4051 = vmatprep.subr.mxu0 0.0
    %4052 = vmatpush1.msra.mxu0 0.0
    %4053 = vmatprep.mubr.f32.mxu0 0.0
    %4054 = vmatmul.mubr.f32.gmra.mrb[0].mxu0 %v3987
    %v4055 = vpop.f32.mrb[0].mxu0
    %v4056 = vadd.f32 0.0, %v4055
    %v4057 = vpop.f32.mrb[0].mxu0
    %v4058 = vadd.f32 0.0, %v4057
    %4059 = vdwg.mxu0
    %4060 = vmatprep.subr.mxu0 %v1481
    %4061 = vmatpush1.msra.mxu0 %v1480
    %4062 = vmatprep.subr.mxu0 %v1485
    %4063 = vmatpush1.msra.mxu0 %v1484
    %4064 = vmatprep.subr.mxu0 %v1489
    %4065 = vmatpush1.msra.mxu0 %v1488
    %4066 = vmatprep.subr.mxu0 %v1493
    %4067 = vmatpush1.msra.mxu0 %v1492
    %4068 = vmatprep.subr.mxu0 %v1497
    %4069 = vmatpush1.msra.mxu0 %v1496
    %4070 = vmatprep.subr.mxu0 %v1501
    %4071 = vmatpush1.msra.mxu0 %v1500
    %4072 = vmatprep.subr.mxu0 %v1505
    %4073 = vmatpush1.msra.mxu0 %v1504
    %4074 = vmatprep.subr.mxu0 %v1509
    %4075 = vmatpush1.msra.mxu0 %v1508
    %4076 = vmatprep.subr.mxu0 0.0
    %4077 = vmatpush1.msra.mxu0 0.0
    %4078 = vmatprep.subr.mxu0 0.0
    %4079 = vmatpush1.msra.mxu0 0.0
    %4080 = vmatprep.subr.mxu0 0.0
    %4081 = vmatpush1.msra.mxu0 0.0
    %4082 = vmatprep.subr.mxu0 0.0
    %4083 = vmatpush1.msra.mxu0 0.0
    %4084 = vmatprep.subr.mxu0 0.0
    %4085 = vmatpush1.msra.mxu0 0.0
    %4086 = vmatprep.subr.mxu0 0.0
    %4087 = vmatpush1.msra.mxu0 0.0
    %4088 = vmatprep.subr.mxu0 0.0
    %4089 = vmatpush1.msra.mxu0 0.0
    %4090 = vmatprep.subr.mxu0 0.0
    %4091 = vmatpush1.msra.mxu0 0.0
    %4092 = vmatprep.subr.mxu0 0.0
    %4093 = vmatpush1.msra.mxu0 0.0
    %4094 = vmatprep.subr.mxu0 0.0
    %4095 = vmatpush1.msra.mxu0 0.0
    %4096 = vmatprep.subr.mxu0 0.0
    %4097 = vmatpush1.msra.mxu0 0.0
    %4098 = vmatprep.subr.mxu0 0.0
    %4099 = vmatpush1.msra.mxu0 0.0
    %4100 = vmatprep.subr.mxu0 0.0
    %4101 = vmatpush1.msra.mxu0 0.0
    %4102 = vmatprep.subr.mxu0 0.0
    %4103 = vmatpush1.msra.mxu0 0.0
    %4104 = vmatprep.subr.mxu0 0.0
    %4105 = vmatpush1.msra.mxu0 0.0
    %4106 = vmatprep.subr.mxu0 0.0
    %4107 = vmatpush1.msra.mxu0 0.0
    %4108 = vmatprep.subr.mxu0 0.0
    %4109 = vmatpush1.msra.mxu0 0.0
    %4110 = vmatprep.subr.mxu0 0.0
    %4111 = vmatpush1.msra.mxu0 0.0
    %4112 = vmatprep.subr.mxu0 0.0
    %4113 = vmatpush1.msra.mxu0 0.0
    %4114 = vmatprep.subr.mxu0 0.0
    %4115 = vmatpush1.msra.mxu0 0.0
    %4116 = vmatprep.subr.mxu0 0.0
    %4117 = vmatpush1.msra.mxu0 0.0
    %4118 = vmatprep.subr.mxu0 0.0
    %4119 = vmatpush1.msra.mxu0 0.0
    %4120 = vmatprep.subr.mxu0 0.0
    %4121 = vmatpush1.msra.mxu0 0.0
    %4122 = vmatprep.subr.mxu0 0.0
    %4123 = vmatpush1.msra.mxu0 0.0
    %4124 = vmatprep.mubr.f32.mxu0 0.0
    %4125 = vmatmul.mubr.f32.gmra.mrb[0].mxu0 %v3987
    %v4126 = vpop.f32.mrb[0].mxu0
    %v4127 = vadd.f32 0.0, %v4126
    %v4128 = vpop.f32.mrb[0].mxu0
    %v4129 = vadd.f32 0.0, %v4128
    %4130 = vdwg.mxu0
    %v4135 = vrot.slane %v4056, 6
    %v4136 = vrot.slane %v4058, 6
    %v4137 = vrot.slane %v4127, 6
    %v4138 = vrot.slane %v4129, 6
    %v4143 = vadd.f32 %v3982, %v4135
    %v4144 = vadd.f32 %v3983, %v4136
    %v4145 = vadd.f32 %v3984, %v4137
    %v4146 = vadd.f32 %v3985, %v4138
    %v4147 = vxor.u32 %v4143, 2147483648
    %v4148 = vmul.f32 %v4147, 1.442695
    %v4149 = vpow.pop %v4148
    %v4150 = vadd.f32 %v4149, 1.0
    %v4151 = vrcp.pop %v4150
    %v4152 = vmul.f32 1.0, %v4151
    %v4153 = vxor.u32 %v4144, 2147483648
    %v4154 = vmul.f32 %v4153, 1.442695
    %v4155 = vpow.pop %v4154
    %v4156 = vadd.f32 %v4155, 1.0
    %v4157 = vrcp.pop %v4156
    %v4158 = vmul.f32 1.0, %v4157
    %v4159 = vxor.u32 %v4145, 2147483648
    %v4160 = vmul.f32 %v4159, 1.442695
    %v4161 = vpow.pop %v4160
    %v4162 = vadd.f32 %v4161, 1.0
    %v4163 = vrcp.pop %v4162
    %v4164 = vmul.f32 1.0, %v4163
    %v4165 = vtanh.pop %v4146
    %v4167 = vrot.slane %v3978, 6
    %v4169 = vmul.f32 %v4158, %v4167
    %v4170 = vmul.f32 %v4152, %v4165
    %v4171 = vadd.f32 %v4169, %v4170
    %v4172 = vtanh.pop %v4171
    %v4173 = vmul.f32 %v4164, %v4172
    %4174 = vst.msk [vmem:[#allocation2 + $0x18] sm:$0xc] %vm1882, %v4173
    %v4175 = vld [vmem:[#allocation3 + $0x60] sm:$0x30]
    %v4176 = vld [vmem:[#allocation3 + $0x68] sm:$0x30]
    %v4177 = vld [vmem:[#allocation3 + $0x70] sm:$0x30]
    %v4178 = vld [vmem:[#allocation3 + $0x78] sm:$0x30]
    %v4180 = vrot.slane %v4173, 2
    %v4181 = vsel %vm1514, %v4180, 0
    %4183 = vmatprep.subr.mxu0 %v1479
    %4184 = vmatpush1.msra.mxu0 %v1478
    %4185 = vmatprep.subr.mxu0 %v1483
    %4186 = vmatpush1.msra.mxu0 %v1482
    %4187 = vmatprep.subr.mxu0 %v1487
    %4188 = vmatpush1.msra.mxu0 %v1486
    %4189 = vmatprep.subr.mxu0 %v1491
    %4190 = vmatpush1.msra.mxu0 %v1490
    %4191 = vmatprep.subr.mxu0 %v1495
    %4192 = vmatpush1.msra.mxu0 %v1494
    %4193 = vmatprep.subr.mxu0 %v1499
    %4194 = vmatpush1.msra.mxu0 %v1498
    %4195 = vmatprep.subr.mxu0 %v1503
    %4196 = vmatpush1.msra.mxu0 %v1502
    %4197 = vmatprep.subr.mxu0 %v1507
    %4198 = vmatpush1.msra.mxu0 %v1506
    %4199 = vmatprep.subr.mxu0 0.0
    %4200 = vmatpush1.msra.mxu0 0.0
    %4201 = vmatprep.subr.mxu0 0.0
    %4202 = vmatpush1.msra.mxu0 0.0
    %4203 = vmatprep.subr.mxu0 0.0
    %4204 = vmatpush1.msra.mxu0 0.0
    %4205 = vmatprep.subr.mxu0 0.0
    %4206 = vmatpush1.msra.mxu0 0.0
    %4207 = vmatprep.subr.mxu0 0.0
    %4208 = vmatpush1.msra.mxu0 0.0
    %4209 = vmatprep.subr.mxu0 0.0
    %4210 = vmatpush1.msra.mxu0 0.0
    %4211 = vmatprep.subr.mxu0 0.0
    %4212 = vmatpush1.msra.mxu0 0.0
    %4213 = vmatprep.subr.mxu0 0.0
    %4214 = vmatpush1.msra.mxu0 0.0
    %4215 = vmatprep.subr.mxu0 0.0
    %4216 = vmatpush1.msra.mxu0 0.0
    %4217 = vmatprep.subr.mxu0 0.0
    %4218 = vmatpush1.msra.mxu0 0.0
    %4219 = vmatprep.subr.mxu0 0.0
    %4220 = vmatpush1.msra.mxu0 0.0
    %4221 = vmatprep.subr.mxu0 0.0
    %4222 = vmatpush1.msra.mxu0 0.0
    %4223 = vmatprep.subr.mxu0 0.0
    %4224 = vmatpush1.msra.mxu0 0.0
    %4225 = vmatprep.subr.mxu0 0.0
    %4226 = vmatpush1.msra.mxu0 0.0
    %4227 = vmatprep.subr.mxu0 0.0
    %4228 = vmatpush1.msra.mxu0 0.0
    %4229 = vmatprep.subr.mxu0 0.0
    %4230 = vmatpush1.msra.mxu0 0.0
    %4231 = vmatprep.subr.mxu0 0.0
    %4232 = vmatpush1.msra.mxu0 0.0
    %4233 = vmatprep.subr.mxu0 0.0
    %4234 = vmatpush1.msra.mxu0 0.0
    %4235 = vmatprep.subr.mxu0 0.0
    %4236 = vmatpush1.msra.mxu0 0.0
    %4237 = vmatprep.subr.mxu0 0.0
    %4238 = vmatpush1.msra.mxu0 0.0
    %4239 = vmatprep.subr.mxu0 0.0
    %4240 = vmatpush1.msra.mxu0 0.0
    %4241 = vmatprep.subr.mxu0 0.0
    %4242 = vmatpush1.msra.mxu0 0.0
    %4243 = vmatprep.subr.mxu0 0.0
    %4244 = vmatpush1.msra.mxu0 0.0
    %4245 = vmatprep.subr.mxu0 0.0
    %4246 = vmatpush1.msra.mxu0 0.0
    %4247 = vmatprep.mubr.f32.mxu0 0.0
    %4248 = vmatmul.mubr.f32.gmra.mrb[0].mxu0 %v4181
    %v4249 = vpop.f32.mrb[0].mxu0
    %v4250 = vadd.f32 0.0, %v4249
    %v4251 = vpop.f32.mrb[0].mxu0
    %v4252 = vadd.f32 0.0, %v4251
    %4253 = vdwg.mxu0
    %4254 = vmatprep.subr.mxu0 %v1481
    %4255 = vmatpush1.msra.mxu0 %v1480
    %4256 = vmatprep.subr.mxu0 %v1485
    %4257 = vmatpush1.msra.mxu0 %v1484
    %4258 = vmatprep.subr.mxu0 %v1489
    %4259 = vmatpush1.msra.mxu0 %v1488
    %4260 = vmatprep.subr.mxu0 %v1493
    %4261 = vmatpush1.msra.mxu0 %v1492
    %4262 = vmatprep.subr.mxu0 %v1497
    %4263 = vmatpush1.msra.mxu0 %v1496
    %4264 = vmatprep.subr.mxu0 %v1501
    %4265 = vmatpush1.msra.mxu0 %v1500
    %4266 = vmatprep.subr.mxu0 %v1505
    %4267 = vmatpush1.msra.mxu0 %v1504
    %4268 = vmatprep.subr.mxu0 %v1509
    %4269 = vmatpush1.msra.mxu0 %v1508
    %4270 = vmatprep.subr.mxu0 0.0
    %4271 = vmatpush1.msra.mxu0 0.0
    %4272 = vmatprep.subr.mxu0 0.0
    %4273 = vmatpush1.msra.mxu0 0.0
    %4274 = vmatprep.subr.mxu0 0.0
    %4275 = vmatpush1.msra.mxu0 0.0
    %4276 = vmatprep.subr.mxu0 0.0
    %4277 = vmatpush1.msra.mxu0 0.0
    %4278 = vmatprep.subr.mxu0 0.0
    %4279 = vmatpush1.msra.mxu0 0.0
    %4280 = vmatprep.subr.mxu0 0.0
    %4281 = vmatpush1.msra.mxu0 0.0
    %4282 = vmatprep.subr.mxu0 0.0
    %4283 = vmatpush1.msra.mxu0 0.0
    %4284 = vmatprep.subr.mxu0 0.0
    %4285 = vmatpush1.msra.mxu0 0.0
    %4286 = vmatprep.subr.mxu0 0.0
    %4287 = vmatpush1.msra.mxu0 0.0
    %4288 = vmatprep.subr.mxu0 0.0
    %4289 = vmatpush1.msra.mxu0 0.0
    %4290 = vmatprep.subr.mxu0 0.0
    %4291 = vmatpush1.msra.mxu0 0.0
    %4292 = vmatprep.subr.mxu0 0.0
    %4293 = vmatpush1.msra.mxu0 0.0
    %4294 = vmatprep.subr.mxu0 0.0
    %4295 = vmatpush1.msra.mxu0 0.0
    %4296 = vmatprep.subr.mxu0 0.0
    %4297 = vmatpush1.msra.mxu0 0.0
    %4298 = vmatprep.subr.mxu0 0.0
    %4299 = vmatpush1.msra.mxu0 0.0
    %4300 = vmatprep.subr.mxu0 0.0
    %4301 = vmatpush1.msra.mxu0 0.0
    %4302 = vmatprep.subr.mxu0 0.0
    %4303 = vmatpush1.msra.mxu0 0.0
    %4304 = vmatprep.subr.mxu0 0.0
    %4305 = vmatpush1.msra.mxu0 0.0
    %4306 = vmatprep.subr.mxu0 0.0
    %4307 = vmatpush1.msra.mxu0 0.0
    %4308 = vmatprep.subr.mxu0 0.0
    %4309 = vmatpush1.msra.mxu0 0.0
    %4310 = vmatprep.subr.mxu0 0.0
    %4311 = vmatpush1.msra.mxu0 0.0
    %4312 = vmatprep.subr.mxu0 0.0
    %4313 = vmatpush1.msra.mxu0 0.0
    %4314 = vmatprep.subr.mxu0 0.0
    %4315 = vmatpush1.msra.mxu0 0.0
    %4316 = vmatprep.subr.mxu0 0.0
    %4317 = vmatpush1.msra.mxu0 0.0
    %4318 = vmatprep.mubr.f32.mxu0 0.0
    %4319 = vmatmul.mubr.f32.gmra.mrb[0].mxu0 %v4181
    %v4320 = vpop.f32.mrb[0].mxu0
    %v4321 = vadd.f32 0.0, %v4320
    %v4322 = vpop.f32.mrb[0].mxu0
    %v4323 = vadd.f32 0.0, %v4322
    %4324 = vdwg.mxu0
    %v4329 = vrot.slane %v4250, 4
    %v4330 = vrot.slane %v4252, 4
    %v4331 = vrot.slane %v4321, 4
    %v4332 = vrot.slane %v4323, 4
    %v4337 = vadd.f32 %v4175, %v4329
    %v4338 = vadd.f32 %v4176, %v4330
    %v4339 = vadd.f32 %v4177, %v4331
    %v4340 = vadd.f32 %v4178, %v4332
    %v4341 = vxor.u32 %v4337, 2147483648
    %v4342 = vmul.f32 %v4341, 1.442695
    %v4343 = vpow.pop %v4342
    %v4344 = vadd.f32 %v4343, 1.0
    %v4345 = vrcp.pop %v4344
    %v4346 = vmul.f32 1.0, %v4345
    %v4347 = vxor.u32 %v4338, 2147483648
    %v4348 = vmul.f32 %v4347, 1.442695
    %v4349 = vpow.pop %v4348
    %v4350 = vadd.f32 %v4349, 1.0
    %v4351 = vrcp.pop %v4350
    %v4352 = vmul.f32 1.0, %v4351
    %v4353 = vxor.u32 %v4339, 2147483648
    %v4354 = vmul.f32 %v4353, 1.442695
    %v4355 = vpow.pop %v4354
    %v4356 = vadd.f32 %v4355, 1.0
    %v4357 = vrcp.pop %v4356
    %v4358 = vmul.f32 1.0, %v4357
    %v4359 = vtanh.pop %v4340
    %v4361 = vrot.slane %v4171, 6
    %v4363 = vmul.f32 %v4352, %v4361
    %v4364 = vmul.f32 %v4346, %v4359
    %v4365 = vadd.f32 %v4363, %v4364
    %v4366 = vtanh.pop %v4365
    %v4367 = vmul.f32 %v4358, %v4366
    %4368 = vst.msk [vmem:[#allocation2 + $0x18] sm:$0x30] %vm2077, %v4367
    %v4369 = vld [vmem:[#allocation2] sm:$0xff]
    %v4370 = vld [vmem:[#allocation2 + $0x8] sm:$0xff]
    %v4371 = vld [vmem:[#allocation2 + $0x10] sm:$0xff]
    %v4372 = vld [vmem:[#allocation2 + $0x18] sm:$0x3f]
    %v4373 = vld [vmem:[#allocation18] sm:$0xff]
    %v4374 = vld [vmem:[#allocation18 + $0x8] sm:$0xff]
    %v4375 = vld [vmem:[#allocation18 + $0x10] sm:$0xff]
    %v4376 = vld [vmem:[#allocation18 + $0x18] sm:$0xff]
    %v4377 = vld [vmem:[#allocation18 + $0x20] sm:$0xff]
    %v4378 = vld [vmem:[#allocation18 + $0x28] sm:$0xff]
    %v4379 = vld [vmem:[#allocation18 + $0x30] sm:$0xff]
    %v4380 = vld [vmem:[#allocation18 + $0x38] sm:$0xff]
    %v4381 = vld [vmem:[#allocation18 + $0x40] sm:$0xff]
    %v4382 = vld [vmem:[#allocation18 + $0x48] sm:$0xff]
    %v4383 = vld [vmem:[#allocation18 + $0x50] sm:$0xff]
    %v4384 = vld [vmem:[#allocation18 + $0x58] sm:$0xff]
    %v4385 = vld [vmem:[#allocation18 + $0x60] sm:$0xff]
    %v4386 = vld [vmem:[#allocation18 + $0x68] sm:$0xff]
    %v4387 = vld [vmem:[#allocation18 + $0x70] sm:$0xff]
    %v4388 = vld [vmem:[#allocation18 + $0x78] sm:$0xff]
    %v4389 = vld [vmem:[#allocation18 + $0x80] sm:$0xff]
    %v4390 = vld [vmem:[#allocation18 + $0x88] sm:$0xff]
    %v4391 = vld [vmem:[#allocation18 + $0x90] sm:$0xff]
    %v4392 = vld [vmem:[#allocation18 + $0x98] sm:$0xff]
    %v4393 = vld [vmem:[#allocation18 + $0xa0] sm:$0xff]
    %v4394 = vld [vmem:[#allocation18 + $0xa8] sm:$0xff]
    %v4395 = vld [vmem:[#allocation18 + $0xb0] sm:$0xff]
    %v4396 = vld [vmem:[#allocation18 + $0xb8] sm:$0xff]
    %v4397 = vld [vmem:[#allocation18 + $0xc0] sm:$0xff]
    %v4398 = vld [vmem:[#allocation18 + $0xc8] sm:$0xff]
    %v4399 = vld [vmem:[#allocation18 + $0xd0] sm:$0xff]
    %v4400 = vld [vmem:[#allocation18 + $0xd8] sm:$0xff]
    %v4401 = vld [vmem:[#allocation18 + $0xe0] sm:$0xff]
    %v4402 = vld [vmem:[#allocation18 + $0xe8] sm:$0xff]
    %v4403 = vld [vmem:[#allocation18 + $0xf0] sm:$0xff]
    %v4404 = vld [vmem:[#allocation18 + $0xf8] sm:$0xff]
    %v4405 = vld [vmem:[%s12] sm:$0xf]
    %v4407 = vlaneseq
    %v4408 = vshrl.u32 %v4407, 7
    %v4409 = vsub.s32 0, %v4408
    %v4410 = vrot.slane %v4405, %v4409
    %v4411 = vlaneseq
    %v4412 = vshrl.u32 %v4411, 7
    %v4413 = vsub.s32 1, %v4412
    %v4414 = vrot.slane %v4405, %v4413
    %v4415 = vlaneseq
    %v4416 = vshrl.u32 %v4415, 7
    %v4417 = vsub.s32 2, %v4416
    %v4418 = vrot.slane %v4405, %v4417
    %v4419 = vlaneseq
    %v4420 = vshrl.u32 %v4419, 7
    %v4421 = vsub.s32 3, %v4420
    %v4422 = vrot.slane %v4405, %v4421
    %v4428 = vsel %vm1514, %v4369, 0
    %v4431 = vsel %vm1514, %v4370, 0
    %v4434 = vsel %vm1514, %v4371, 0
    %v4437 = vsel %vm1514, %v4372, 0
    %4439 = vmatprep.subr.mxu0 %v4374
    %4440 = vmatpush1.msra.mxu0 %v4373
    %4441 = vmatprep.subr.mxu0 %v4378
    %4442 = vmatpush1.msra.mxu0 %v4377
    %4443 = vmatprep.subr.mxu0 %v4382
    %4444 = vmatpush1.msra.mxu0 %v4381
    %4445 = vmatprep.subr.mxu0 %v4386
    %4446 = vmatpush1.msra.mxu0 %v4385
    %4447 = vmatprep.subr.mxu0 %v4390
    %4448 = vmatpush1.msra.mxu0 %v4389
    %4449 = vmatprep.subr.mxu0 %v4394
    %4450 = vmatpush1.msra.mxu0 %v4393
    %4451 = vmatprep.subr.mxu0 %v4398
    %4452 = vmatpush1.msra.mxu0 %v4397
    %4453 = vmatprep.subr.mxu0 %v4402
    %4454 = vmatpush1.msra.mxu0 %v4401
    %4455 = vmatprep.subr.mxu0 0.0
    %4456 = vmatpush1.msra.mxu0 0.0
    %4457 = vmatprep.subr.mxu0 0.0
    %4458 = vmatpush1.msra.mxu0 0.0
    %4459 = vmatprep.subr.mxu0 0.0
    %4460 = vmatpush1.msra.mxu0 0.0
    %4461 = vmatprep.subr.mxu0 0.0
    %4462 = vmatpush1.msra.mxu0 0.0
    %4463 = vmatprep.subr.mxu0 0.0
    %4464 = vmatpush1.msra.mxu0 0.0
    %4465 = vmatprep.subr.mxu0 0.0
    %4466 = vmatpush1.msra.mxu0 0.0
    %4467 = vmatprep.subr.mxu0 0.0
    %4468 = vmatpush1.msra.mxu0 0.0
    %4469 = vmatprep.subr.mxu0 0.0
    %4470 = vmatpush1.msra.mxu0 0.0
    %4471 = vmatprep.subr.mxu0 0.0
    %4472 = vmatpush1.msra.mxu0 0.0
    %4473 = vmatprep.subr.mxu0 0.0
    %4474 = vmatpush1.msra.mxu0 0.0
    %4475 = vmatprep.subr.mxu0 0.0
    %4476 = vmatpush1.msra.mxu0 0.0
    %4477 = vmatprep.subr.mxu0 0.0
    %4478 = vmatpush1.msra.mxu0 0.0
    %4479 = vmatprep.subr.mxu0 0.0
    %4480 = vmatpush1.msra.mxu0 0.0
    %4481 = vmatprep.subr.mxu0 0.0
    %4482 = vmatpush1.msra.mxu0 0.0
    %4483 = vmatprep.subr.mxu0 0.0
    %4484 = vmatpush1.msra.mxu0 0.0
    %4485 = vmatprep.subr.mxu0 0.0
    %4486 = vmatpush1.msra.mxu0 0.0
    %4487 = vmatprep.subr.mxu0 0.0
    %4488 = vmatpush1.msra.mxu0 0.0
    %4489 = vmatprep.subr.mxu0 0.0
    %4490 = vmatpush1.msra.mxu0 0.0
    %4491 = vmatprep.subr.mxu0 0.0
    %4492 = vmatpush1.msra.mxu0 0.0
    %4493 = vmatprep.subr.mxu0 0.0
    %4494 = vmatpush1.msra.mxu0 0.0
    %4495 = vmatprep.subr.mxu0 0.0
    %4496 = vmatpush1.msra.mxu0 0.0
    %4497 = vmatprep.subr.mxu0 0.0
    %4498 = vmatpush1.msra.mxu0 0.0
    %4499 = vmatprep.subr.mxu0 0.0
    %4500 = vmatpush1.msra.mxu0 0.0
    %4501 = vmatprep.subr.mxu0 0.0
    %4502 = vmatpush1.msra.mxu0 0.0
    %4503 = vmatprep.mubr.f32.mxu0 0.0
    %4504 = vmatmul.mubr.f32.gmra.mrb[0].mxu0 %v4428
    %v4505 = vpop.f32.mrb[0].mxu0
    %v4506 = vadd.f32 %v4410, %v4505
    %v4507 = vpop.f32.mrb[0].mxu0
    %v4508 = vadd.f32 %v4414, %v4507
    %4509 = vmatprep.mubr.f32.mxu0 0.0
    %4510 = vmatmul.mubr.f32.gmra.mrb[0].mxu0 %v4431
    %v4511 = vpop.f32.mrb[0].mxu0
    %v4512 = vadd.f32 %v4410, %v4511
    %v4513 = vpop.f32.mrb[0].mxu0
    %v4514 = vadd.f32 %v4414, %v4513
    %4515 = vmatprep.mubr.f32.mxu0 0.0
    %4516 = vmatmul.mubr.f32.gmra.mrb[0].mxu0 %v4434
    %v4517 = vpop.f32.mrb[0].mxu0
    %v4518 = vadd.f32 %v4410, %v4517
    %v4519 = vpop.f32.mrb[0].mxu0
    %v4520 = vadd.f32 %v4414, %v4519
    %4521 = vmatprep.mubr.f32.mxu0 0.0
    %4522 = vmatmul.mubr.f32.gmra.mrb[0].mxu0 %v4437
    %v4523 = vpop.f32.mrb[0].mxu0
    %v4524 = vadd.f32 %v4410, %v4523
    %v4525 = vpop.f32.mrb[0].mxu0
    %v4526 = vadd.f32 %v4414, %v4525
    %4527 = vdwg.mxu0
    %4528 = vmatprep.subr.mxu0 %v4376
    %4529 = vmatpush1.msra.mxu0 %v4375
    %4530 = vmatprep.subr.mxu0 %v4380
    %4531 = vmatpush1.msra.mxu0 %v4379
    %4532 = vmatprep.subr.mxu0 %v4384
    %4533 = vmatpush1.msra.mxu0 %v4383
    %4534 = vmatprep.subr.mxu0 %v4388
    %4535 = vmatpush1.msra.mxu0 %v4387
    %4536 = vmatprep.subr.mxu0 %v4392
    %4537 = vmatpush1.msra.mxu0 %v4391
    %4538 = vmatprep.subr.mxu0 %v4396
    %4539 = vmatpush1.msra.mxu0 %v4395
    %4540 = vmatprep.subr.mxu0 %v4400
    %4541 = vmatpush1.msra.mxu0 %v4399
    %4542 = vmatprep.subr.mxu0 %v4404
    %4543 = vmatpush1.msra.mxu0 %v4403
    %4544 = vmatprep.subr.mxu0 0.0
    %4545 = vmatpush1.msra.mxu0 0.0
    %4546 = vmatprep.subr.mxu0 0.0
    %4547 = vmatpush1.msra.mxu0 0.0
    %4548 = vmatprep.subr.mxu0 0.0
    %4549 = vmatpush1.msra.mxu0 0.0
    %4550 = vmatprep.subr.mxu0 0.0
    %4551 = vmatpush1.msra.mxu0 0.0
    %4552 = vmatprep.subr.mxu0 0.0
    %4553 = vmatpush1.msra.mxu0 0.0
    %4554 = vmatprep.subr.mxu0 0.0
    %4555 = vmatpush1.msra.mxu0 0.0
    %4556 = vmatprep.subr.mxu0 0.0
    %4557 = vmatpush1.msra.mxu0 0.0
    %4558 = vmatprep.subr.mxu0 0.0
    %4559 = vmatpush1.msra.mxu0 0.0
    %4560 = vmatprep.subr.mxu0 0.0
    %4561 = vmatpush1.msra.mxu0 0.0
    %4562 = vmatprep.subr.mxu0 0.0
    %4563 = vmatpush1.msra.mxu0 0.0
    %4564 = vmatprep.subr.mxu0 0.0
    %4565 = vmatpush1.msra.mxu0 0.0
    %4566 = vmatprep.subr.mxu0 0.0
    %4567 = vmatpush1.msra.mxu0 0.0
    %4568 = vmatprep.subr.mxu0 0.0
    %4569 = vmatpush1.msra.mxu0 0.0
    %4570 = vmatprep.subr.mxu0 0.0
    %4571 = vmatpush1.msra.mxu0 0.0
    %4572 = vmatprep.subr.mxu0 0.0
    %4573 = vmatpush1.msra.mxu0 0.0
    %4574 = vmatprep.subr.mxu0 0.0
    %4575 = vmatpush1.msra.mxu0 0.0
    %4576 = vmatprep.subr.mxu0 0.0
    %4577 = vmatpush1.msra.mxu0 0.0
    %4578 = vmatprep.subr.mxu0 0.0
    %4579 = vmatpush1.msra.mxu0 0.0
    %4580 = vmatprep.subr.mxu0 0.0
    %4581 = vmatpush1.msra.mxu0 0.0
    %4582 = vmatprep.subr.mxu0 0.0
    %4583 = vmatpush1.msra.mxu0 0.0
    %4584 = vmatprep.subr.mxu0 0.0
    %4585 = vmatpush1.msra.mxu0 0.0
    %4586 = vmatprep.subr.mxu0 0.0
    %4587 = vmatpush1.msra.mxu0 0.0
    %4588 = vmatprep.subr.mxu0 0.0
    %4589 = vmatpush1.msra.mxu0 0.0
    %4590 = vmatprep.subr.mxu0 0.0
    %4591 = vmatpush1.msra.mxu0 0.0
    %4592 = vmatprep.mubr.f32.mxu0 0.0
    %4593 = vmatmul.mubr.f32.gmra.mrb[0].mxu0 %v4428
    %v4594 = vpop.f32.mrb[0].mxu0
    %v4595 = vadd.f32 %v4418, %v4594
    %v4596 = vpop.f32.mrb[0].mxu0
    %v4597 = vadd.f32 %v4422, %v4596
    %4598 = vmatprep.mubr.f32.mxu0 0.0
    %4599 = vmatmul.mubr.f32.gmra.mrb[0].mxu0 %v4431
    %v4600 = vpop.f32.mrb[0].mxu0
    %v4601 = vadd.f32 %v4418, %v4600
    %v4602 = vpop.f32.mrb[0].mxu0
    %v4603 = vadd.f32 %v4422, %v4602
    %4604 = vmatprep.mubr.f32.mxu0 0.0
    %4605 = vmatmul.mubr.f32.gmra.mrb[0].mxu0 %v4434
    %v4606 = vpop.f32.mrb[0].mxu0
    %v4607 = vadd.f32 %v4418, %v4606
    %v4608 = vpop.f32.mrb[0].mxu0
    %v4609 = vadd.f32 %v4422, %v4608
    %4610 = vmatprep.mubr.f32.mxu0 0.0
    %4611 = vmatmul.mubr.f32.gmra.mrb[0].mxu0 %v4437
    %v4612 = vpop.f32.mrb[0].mxu0
    %v4613 = vadd.f32 %v4418, %v4612
    %v4614 = vpop.f32.mrb[0].mxu0
    %v4615 = vadd.f32 %v4422, %v4614
    %4616 = vdwg.mxu0
    %4617 = vst [vmem:[#allocation3] sm:$0xff] %v4506
    %4618 = vst [vmem:[#allocation3 + $0x8] sm:$0xff] %v4508
    %4619 = vst [vmem:[#allocation3 + $0x10] sm:$0xff] %v4595
    %4620 = vst [vmem:[#allocation3 + $0x18] sm:$0xff] %v4597
    %4621 = vst [vmem:[#allocation3 + $0x20] sm:$0xff] %v4512
    %4622 = vst [vmem:[#allocation3 + $0x28] sm:$0xff] %v4514
    %4623 = vst [vmem:[#allocation3 + $0x30] sm:$0xff] %v4601
    %4624 = vst [vmem:[#allocation3 + $0x38] sm:$0xff] %v4603
    %4625 = vst [vmem:[#allocation3 + $0x40] sm:$0xff] %v4518
    %4626 = vst [vmem:[#allocation3 + $0x48] sm:$0xff] %v4520
    %4627 = vst [vmem:[#allocation3 + $0x50] sm:$0xff] %v4607
    %4628 = vst [vmem:[#allocation3 + $0x58] sm:$0xff] %v4609
    %4629 = vst [vmem:[#allocation3 + $0x60] sm:$0x3f] %v4524
    %4630 = vst [vmem:[#allocation3 + $0x68] sm:$0x3f] %v4526
    %4631 = vst [vmem:[#allocation3 + $0x70] sm:$0x3f] %v4613
    %4632 = vst [vmem:[#allocation3 + $0x78] sm:$0x3f] %v4615
    %v4633 = vld [vmem:[#allocation19] sm:$0xff]
    %v4634 = vld [vmem:[#allocation19 + $0x8] sm:$0xff]
    %v4635 = vld [vmem:[#allocation19 + $0x10] sm:$0xff]
    %v4636 = vld [vmem:[#allocation19 + $0x18] sm:$0xff]
    %v4637 = vld [vmem:[#allocation19 + $0x20] sm:$0xff]
    %v4638 = vld [vmem:[#allocation19 + $0x28] sm:$0xff]
    %v4639 = vld [vmem:[#allocation19 + $0x30] sm:$0xff]
    %v4640 = vld [vmem:[#allocation19 + $0x38] sm:$0xff]
    %v4641 = vld [vmem:[#allocation19 + $0x40] sm:$0xff]
    %v4642 = vld [vmem:[#allocation19 + $0x48] sm:$0xff]
    %v4643 = vld [vmem:[#allocation19 + $0x50] sm:$0xff]
    %v4644 = vld [vmem:[#allocation19 + $0x58] sm:$0xff]
    %v4645 = vld [vmem:[#allocation19 + $0x60] sm:$0xff]
    %v4646 = vld [vmem:[#allocation19 + $0x68] sm:$0xff]
    %v4647 = vld [vmem:[#allocation19 + $0x70] sm:$0xff]
    %v4648 = vld [vmem:[#allocation19 + $0x78] sm:$0xff]
    %v4649 = vld [vmem:[#allocation19 + $0x80] sm:$0xff]
    %v4650 = vld [vmem:[#allocation19 + $0x88] sm:$0xff]
    %v4651 = vld [vmem:[#allocation19 + $0x90] sm:$0xff]
    %v4652 = vld [vmem:[#allocation19 + $0x98] sm:$0xff]
    %v4653 = vld [vmem:[#allocation19 + $0xa0] sm:$0xff]
    %v4654 = vld [vmem:[#allocation19 + $0xa8] sm:$0xff]
    %v4655 = vld [vmem:[#allocation19 + $0xb0] sm:$0xff]
    %v4656 = vld [vmem:[#allocation19 + $0xb8] sm:$0xff]
    %v4657 = vld [vmem:[#allocation19 + $0xc0] sm:$0xff]
    %v4658 = vld [vmem:[#allocation19 + $0xc8] sm:$0xff]
    %v4659 = vld [vmem:[#allocation19 + $0xd0] sm:$0xff]
    %v4660 = vld [vmem:[#allocation19 + $0xd8] sm:$0xff]
    %v4661 = vld [vmem:[#allocation19 + $0xe0] sm:$0xff]
    %v4662 = vld [vmem:[#allocation19 + $0xe8] sm:$0xff]
    %v4663 = vld [vmem:[#allocation19 + $0xf0] sm:$0xff]
    %v4664 = vld [vmem:[#allocation19 + $0xf8] sm:$0xff]
    %4665 = vmatprep.subr.mxu0 %v4634
    %4666 = vmatpush1.msra.mxu0 %v4633
    %4667 = vmatprep.subr.mxu0 %v4638
    %4668 = vmatpush1.msra.mxu0 %v4637
    %4669 = vmatprep.subr.mxu0 %v4642
    %4670 = vmatpush1.msra.mxu0 %v4641
    %4671 = vmatprep.subr.mxu0 %v4646
    %4672 = vmatpush1.msra.mxu0 %v4645
    %4673 = vmatprep.subr.mxu0 %v4650
    %4674 = vmatpush1.msra.mxu0 %v4649
    %4675 = vmatprep.subr.mxu0 %v4654
    %4676 = vmatpush1.msra.mxu0 %v4653
    %4677 = vmatprep.subr.mxu0 %v4658
    %4678 = vmatpush1.msra.mxu0 %v4657
    %4679 = vmatprep.subr.mxu0 %v4662
    %4680 = vmatpush1.msra.mxu0 %v4661
    %4681 = vmatprep.subr.mxu0 0.0
    %4682 = vmatpush1.msra.mxu0 0.0
    %4683 = vmatprep.subr.mxu0 0.0
    %4684 = vmatpush1.msra.mxu0 0.0
    %4685 = vmatprep.subr.mxu0 0.0
    %4686 = vmatpush1.msra.mxu0 0.0
    %4687 = vmatprep.subr.mxu0 0.0
    %4688 = vmatpush1.msra.mxu0 0.0
    %4689 = vmatprep.subr.mxu0 0.0
    %4690 = vmatpush1.msra.mxu0 0.0
    %4691 = vmatprep.subr.mxu0 0.0
    %4692 = vmatpush1.msra.mxu0 0.0
    %4693 = vmatprep.subr.mxu0 0.0
    %4694 = vmatpush1.msra.mxu0 0.0
    %4695 = vmatprep.subr.mxu0 0.0
    %4696 = vmatpush1.msra.mxu0 0.0
    %4697 = vmatprep.subr.mxu0 0.0
    %4698 = vmatpush1.msra.mxu0 0.0
    %4699 = vmatprep.subr.mxu0 0.0
    %4700 = vmatpush1.msra.mxu0 0.0
    %4701 = vmatprep.subr.mxu0 0.0
    %4702 = vmatpush1.msra.mxu0 0.0
    %4703 = vmatprep.subr.mxu0 0.0
    %4704 = vmatpush1.msra.mxu0 0.0
    %4705 = vmatprep.subr.mxu0 0.0
    %4706 = vmatpush1.msra.mxu0 0.0
    %4707 = vmatprep.subr.mxu0 0.0
    %4708 = vmatpush1.msra.mxu0 0.0
    %4709 = vmatprep.subr.mxu0 0.0
    %4710 = vmatpush1.msra.mxu0 0.0
    %4711 = vmatprep.subr.mxu0 0.0
    %4712 = vmatpush1.msra.mxu0 0.0
    %4713 = vmatprep.subr.mxu0 0.0
    %4714 = vmatpush1.msra.mxu0 0.0
    %4715 = vmatprep.subr.mxu0 0.0
    %4716 = vmatpush1.msra.mxu0 0.0
    %4717 = vmatprep.subr.mxu0 0.0
    %4718 = vmatpush1.msra.mxu0 0.0
    %4719 = vmatprep.subr.mxu0 0.0
    %4720 = vmatpush1.msra.mxu0 0.0
    %4721 = vmatprep.subr.mxu0 0.0
    %4722 = vmatpush1.msra.mxu0 0.0
    %4723 = vmatprep.subr.mxu0 0.0
    %4724 = vmatpush1.msra.mxu0 0.0
    %4725 = vmatprep.subr.mxu0 0.0
    %4726 = vmatpush1.msra.mxu0 0.0
    %4727 = vmatprep.subr.mxu0 0.0
    %4728 = vmatpush1.msra.mxu0 0.0
    %4729 = vmatprep.mubr.f32.mxu0 0.0
    %4730 = vmatmul.mubr.f32.gmra.mrb[0].mxu0 %v4428
    %v4731 = vpop.f32.mrb[0].mxu0
    %v4732 = vadd.f32 0.0, %v4731
    %v4733 = vpop.f32.mrb[0].mxu0
    %v4734 = vadd.f32 0.0, %v4733
    %4735 = vmatprep.mubr.f32.mxu0 0.0
    %4736 = vmatmul.mubr.f32.gmra.mrb[0].mxu0 %v4431
    %v4737 = vpop.f32.mrb[0].mxu0
    %v4738 = vadd.f32 0.0, %v4737
    %v4739 = vpop.f32.mrb[0].mxu0
    %v4740 = vadd.f32 0.0, %v4739
    %4741 = vmatprep.mubr.f32.mxu0 0.0
    %4742 = vmatmul.mubr.f32.gmra.mrb[0].mxu0 %v4434
    %v4743 = vpop.f32.mrb[0].mxu0
    %v4744 = vadd.f32 0.0, %v4743
    %v4745 = vpop.f32.mrb[0].mxu0
    %v4746 = vadd.f32 0.0, %v4745
    %4747 = vmatprep.mubr.f32.mxu0 0.0
    %4748 = vmatmul.mubr.f32.gmra.mrb[0].mxu0 %v4437
    %v4749 = vpop.f32.mrb[0].mxu0
    %v4750 = vadd.f32 0.0, %v4749
    %v4751 = vpop.f32.mrb[0].mxu0
    %v4752 = vadd.f32 0.0, %v4751
    %4753 = vdwg.mxu0
    %4754 = vmatprep.subr.mxu0 %v4636
    %4755 = vmatpush1.msra.mxu0 %v4635
    %4756 = vmatprep.subr.mxu0 %v4640
    %4757 = vmatpush1.msra.mxu0 %v4639
    %4758 = vmatprep.subr.mxu0 %v4644
    %4759 = vmatpush1.msra.mxu0 %v4643
    %4760 = vmatprep.subr.mxu0 %v4648
    %4761 = vmatpush1.msra.mxu0 %v4647
    %4762 = vmatprep.subr.mxu0 %v4652
    %4763 = vmatpush1.msra.mxu0 %v4651
    %4764 = vmatprep.subr.mxu0 %v4656
    %4765 = vmatpush1.msra.mxu0 %v4655
    %4766 = vmatprep.subr.mxu0 %v4660
    %4767 = vmatpush1.msra.mxu0 %v4659
    %4768 = vmatprep.subr.mxu0 %v4664
    %4769 = vmatpush1.msra.mxu0 %v4663
    %4770 = vmatprep.subr.mxu0 0.0
    %4771 = vmatpush1.msra.mxu0 0.0
    %4772 = vmatprep.subr.mxu0 0.0
    %4773 = vmatpush1.msra.mxu0 0.0
    %4774 = vmatprep.subr.mxu0 0.0
    %4775 = vmatpush1.msra.mxu0 0.0
    %4776 = vmatprep.subr.mxu0 0.0
    %4777 = vmatpush1.msra.mxu0 0.0
    %4778 = vmatprep.subr.mxu0 0.0
    %4779 = vmatpush1.msra.mxu0 0.0
    %4780 = vmatprep.subr.mxu0 0.0
    %4781 = vmatpush1.msra.mxu0 0.0
    %4782 = vmatprep.subr.mxu0 0.0
    %4783 = vmatpush1.msra.mxu0 0.0
    %4784 = vmatprep.subr.mxu0 0.0
    %4785 = vmatpush1.msra.mxu0 0.0
    %4786 = vmatprep.subr.mxu0 0.0
    %4787 = vmatpush1.msra.mxu0 0.0
    %4788 = vmatprep.subr.mxu0 0.0
    %4789 = vmatpush1.msra.mxu0 0.0
    %4790 = vmatprep.subr.mxu0 0.0
    %4791 = vmatpush1.msra.mxu0 0.0
    %4792 = vmatprep.subr.mxu0 0.0
    %4793 = vmatpush1.msra.mxu0 0.0
    %4794 = vmatprep.subr.mxu0 0.0
    %4795 = vmatpush1.msra.mxu0 0.0
    %4796 = vmatprep.subr.mxu0 0.0
    %4797 = vmatpush1.msra.mxu0 0.0
    %4798 = vmatprep.subr.mxu0 0.0
    %4799 = vmatpush1.msra.mxu0 0.0
    %4800 = vmatprep.subr.mxu0 0.0
    %4801 = vmatpush1.msra.mxu0 0.0
    %4802 = vmatprep.subr.mxu0 0.0
    %4803 = vmatpush1.msra.mxu0 0.0
    %4804 = vmatprep.subr.mxu0 0.0
    %4805 = vmatpush1.msra.mxu0 0.0
    %4806 = vmatprep.subr.mxu0 0.0
    %4807 = vmatpush1.msra.mxu0 0.0
    %4808 = vmatprep.subr.mxu0 0.0
    %4809 = vmatpush1.msra.mxu0 0.0
    %4810 = vmatprep.subr.mxu0 0.0
    %4811 = vmatpush1.msra.mxu0 0.0
    %4812 = vmatprep.subr.mxu0 0.0
    %4813 = vmatpush1.msra.mxu0 0.0
    %4814 = vmatprep.subr.mxu0 0.0
    %4815 = vmatpush1.msra.mxu0 0.0
    %4816 = vmatprep.subr.mxu0 0.0
    %4817 = vmatpush1.msra.mxu0 0.0
    %4818 = vmatprep.mubr.f32.mxu0 0.0
    %4819 = vmatmul.mubr.f32.gmra.mrb[0].mxu0 %v4428
    %v4820 = vpop.f32.mrb[0].mxu0
    %v4821 = vadd.f32 0.0, %v4820
    %v4822 = vpop.f32.mrb[0].mxu0
    %v4823 = vadd.f32 0.0, %v4822
    %4824 = vmatprep.mubr.f32.mxu0 0.0
    %4825 = vmatmul.mubr.f32.gmra.mrb[0].mxu0 %v4431
    %v4826 = vpop.f32.mrb[0].mxu0
    %v4827 = vadd.f32 0.0, %v4826
    %v4828 = vpop.f32.mrb[0].mxu0
    %v4829 = vadd.f32 0.0, %v4828
    %4830 = vmatprep.mubr.f32.mxu0 0.0
    %4831 = vmatmul.mubr.f32.gmra.mrb[0].mxu0 %v4434
    %v4832 = vpop.f32.mrb[0].mxu0
    %v4833 = vadd.f32 0.0, %v4832
    %v4834 = vpop.f32.mrb[0].mxu0
    %v4835 = vadd.f32 0.0, %v4834
    %4836 = vmatprep.mubr.f32.mxu0 0.0
    %4837 = vmatmul.mubr.f32.gmra.mrb[0].mxu0 %v4437
    %v4838 = vpop.f32.mrb[0].mxu0
    %v4839 = vadd.f32 0.0, %v4838
    %v4840 = vpop.f32.mrb[0].mxu0
    %v4841 = vadd.f32 0.0, %v4840
    %4842 = vdwg.mxu0
    %4843 = vst [vmem:[#allocation4] sm:$0xff] %v4732
    %4844 = vst [vmem:[#allocation4 + $0x8] sm:$0xff] %v4734
    %4845 = vst [vmem:[#allocation4 + $0x10] sm:$0xff] %v4821
    %4846 = vst [vmem:[#allocation4 + $0x18] sm:$0xff] %v4823
    %4847 = vst [vmem:[#allocation4 + $0x20] sm:$0xff] %v4738
    %4848 = vst [vmem:[#allocation4 + $0x28] sm:$0xff] %v4740
    %4849 = vst [vmem:[#allocation4 + $0x30] sm:$0xff] %v4827
    %4850 = vst [vmem:[#allocation4 + $0x38] sm:$0xff] %v4829
    %4851 = vst [vmem:[#allocation4 + $0x40] sm:$0xff] %v4744
    %4852 = vst [vmem:[#allocation4 + $0x48] sm:$0xff] %v4746
    %4853 = vst [vmem:[#allocation4 + $0x50] sm:$0xff] %v4833
    %4854 = vst [vmem:[#allocation4 + $0x58] sm:$0xff] %v4835
    %4855 = vst [vmem:[#allocation4 + $0x60] sm:$0x3f] %v4750
    %4856 = vst [vmem:[#allocation4 + $0x68] sm:$0x3f] %v4752
    %4857 = vst [vmem:[#allocation4 + $0x70] sm:$0x3f] %v4839
    %4858 = vst [vmem:[#allocation4 + $0x78] sm:$0x3f] %v4841
    %v4859 = vld [vmem:[#allocation21] sm:$0xff]
    %v4860 = vld [vmem:[#allocation21 + $0x8] sm:$0xff]
    %v4861 = vld [vmem:[#allocation21 + $0x10] sm:$0xff]
    %v4862 = vld [vmem:[#allocation21 + $0x18] sm:$0xff]
    %v4863 = vld [vmem:[#allocation21 + $0x20] sm:$0xff]
    %v4864 = vld [vmem:[#allocation21 + $0x28] sm:$0xff]
    %v4865 = vld [vmem:[#allocation21 + $0x30] sm:$0xff]
    %v4866 = vld [vmem:[#allocation21 + $0x38] sm:$0xff]
    %v4867 = vld [vmem:[#allocation21 + $0x40] sm:$0xff]
    %v4868 = vld [vmem:[#allocation21 + $0x48] sm:$0xff]
    %v4869 = vld [vmem:[#allocation21 + $0x50] sm:$0xff]
    %v4870 = vld [vmem:[#allocation21 + $0x58] sm:$0xff]
    %v4871 = vld [vmem:[#allocation21 + $0x60] sm:$0xff]
    %v4872 = vld [vmem:[#allocation21 + $0x68] sm:$0xff]
    %v4873 = vld [vmem:[#allocation21 + $0x70] sm:$0xff]
    %v4874 = vld [vmem:[#allocation21 + $0x78] sm:$0xff]
    %v4875 = vld [vmem:[#allocation21 + $0x80] sm:$0xff]
    %v4876 = vld [vmem:[#allocation21 + $0x88] sm:$0xff]
    %v4877 = vld [vmem:[#allocation21 + $0x90] sm:$0xff]
    %v4878 = vld [vmem:[#allocation21 + $0x98] sm:$0xff]
    %v4879 = vld [vmem:[#allocation21 + $0xa0] sm:$0xff]
    %v4880 = vld [vmem:[#allocation21 + $0xa8] sm:$0xff]
    %v4881 = vld [vmem:[#allocation21 + $0xb0] sm:$0xff]
    %v4882 = vld [vmem:[#allocation21 + $0xb8] sm:$0xff]
    %v4883 = vld [vmem:[#allocation21 + $0xc0] sm:$0xff]
    %v4884 = vld [vmem:[#allocation21 + $0xc8] sm:$0xff]
    %v4885 = vld [vmem:[#allocation21 + $0xd0] sm:$0xff]
    %v4886 = vld [vmem:[#allocation21 + $0xd8] sm:$0xff]
    %v4887 = vld [vmem:[#allocation21 + $0xe0] sm:$0xff]
    %v4888 = vld [vmem:[#allocation21 + $0xe8] sm:$0xff]
    %v4889 = vld [vmem:[#allocation21 + $0xf0] sm:$0xff]
    %v4890 = vld [vmem:[#allocation21 + $0xf8] sm:$0xff]
    %v4891 = vld [vmem:[#allocation3] sm:$0x3]
    %v4892 = vld [vmem:[#allocation3 + $0x8] sm:$0x3]
    %v4893 = vld [vmem:[#allocation3 + $0x10] sm:$0x3]
    %v4894 = vld [vmem:[#allocation3 + $0x18] sm:$0x3]
    %v4895 = vld [vmem:[#allocation4 + $0x60] sm:$0x30]
    %v4896 = vld [vmem:[#allocation4 + $0x68] sm:$0x30]
    %v4897 = vld [vmem:[#allocation4 + $0x70] sm:$0x30]
    %v4898 = vld [vmem:[#allocation4 + $0x78] sm:$0x30]
    %v4903 = vrot.slane %v4895, 4
    %v4904 = vrot.slane %v4896, 4
    %v4905 = vrot.slane %v4897, 4
    %v4906 = vrot.slane %v4898, 4
    %v4911 = vadd.f32 %v4891, %v4903
    %v4912 = vadd.f32 %v4892, %v4904
    %v4913 = vadd.f32 %v4893, %v4905
    %v4914 = vadd.f32 %v4894, %v4906
    %4915 = vmatprep.subr.mxu0 %v4860
    %4916 = vmatpush1.msra.mxu0 %v4859
    %4917 = vmatprep.subr.mxu0 %v4864
    %4918 = vmatpush1.msra.mxu0 %v4863
    %4919 = vmatprep.subr.mxu0 %v4868
    %4920 = vmatpush1.msra.mxu0 %v4867
    %4921 = vmatprep.subr.mxu0 %v4872
    %4922 = vmatpush1.msra.mxu0 %v4871
    %4923 = vmatprep.subr.mxu0 %v4876
    %4924 = vmatpush1.msra.mxu0 %v4875
    %4925 = vmatprep.subr.mxu0 %v4880
    %4926 = vmatpush1.msra.mxu0 %v4879
    %4927 = vmatprep.subr.mxu0 %v4884
    %4928 = vmatpush1.msra.mxu0 %v4883
    %4929 = vmatprep.subr.mxu0 %v4888
    %4930 = vmatpush1.msra.mxu0 %v4887
    %4931 = vmatprep.subr.mxu0 0.0
    %4932 = vmatpush1.msra.mxu0 0.0
    %4933 = vmatprep.subr.mxu0 0.0
    %4934 = vmatpush1.msra.mxu0 0.0
    %4935 = vmatprep.subr.mxu0 0.0
    %4936 = vmatpush1.msra.mxu0 0.0
    %4937 = vmatprep.subr.mxu0 0.0
    %4938 = vmatpush1.msra.mxu0 0.0
    %4939 = vmatprep.subr.mxu0 0.0
    %4940 = vmatpush1.msra.mxu0 0.0
    %4941 = vmatprep.subr.mxu0 0.0
    %4942 = vmatpush1.msra.mxu0 0.0
    %4943 = vmatprep.subr.mxu0 0.0
    %4944 = vmatpush1.msra.mxu0 0.0
    %4945 = vmatprep.subr.mxu0 0.0
    %4946 = vmatpush1.msra.mxu0 0.0
    %4947 = vmatprep.subr.mxu0 0.0
    %4948 = vmatpush1.msra.mxu0 0.0
    %4949 = vmatprep.subr.mxu0 0.0
    %4950 = vmatpush1.msra.mxu0 0.0
    %4951 = vmatprep.subr.mxu0 0.0
    %4952 = vmatpush1.msra.mxu0 0.0
    %4953 = vmatprep.subr.mxu0 0.0
    %4954 = vmatpush1.msra.mxu0 0.0
    %4955 = vmatprep.subr.mxu0 0.0
    %4956 = vmatpush1.msra.mxu0 0.0
    %4957 = vmatprep.subr.mxu0 0.0
    %4958 = vmatpush1.msra.mxu0 0.0
    %4959 = vmatprep.subr.mxu0 0.0
    %4960 = vmatpush1.msra.mxu0 0.0
    %4961 = vmatprep.subr.mxu0 0.0
    %4962 = vmatpush1.msra.mxu0 0.0
    %4963 = vmatprep.subr.mxu0 0.0
    %4964 = vmatpush1.msra.mxu0 0.0
    %4965 = vmatprep.subr.mxu0 0.0
    %4966 = vmatpush1.msra.mxu0 0.0
    %4967 = vmatprep.subr.mxu0 0.0
    %4968 = vmatpush1.msra.mxu0 0.0
    %4969 = vmatprep.subr.mxu0 0.0
    %4970 = vmatpush1.msra.mxu0 0.0
    %4971 = vmatprep.subr.mxu0 0.0
    %4972 = vmatpush1.msra.mxu0 0.0
    %4973 = vmatprep.subr.mxu0 0.0
    %4974 = vmatpush1.msra.mxu0 0.0
    %4975 = vmatprep.subr.mxu0 0.0
    %4976 = vmatpush1.msra.mxu0 0.0
    %4977 = vmatprep.subr.mxu0 0.0
    %4978 = vmatpush1.msra.mxu0 0.0
    %4979 = vmatprep.mubr.f32.mxu0 0.0
    %4980 = vmatmul.mubr.f32.gmra.mrb[0].mxu0 %v1516
    %v4981 = vpop.f32.mrb[0].mxu0
    %v4982 = vadd.f32 0.0, %v4981
    %v4983 = vpop.f32.mrb[0].mxu0
    %v4984 = vadd.f32 0.0, %v4983
    %4985 = vdwg.mxu0
    %4986 = vmatprep.subr.mxu0 %v4862
    %4987 = vmatpush1.msra.mxu0 %v4861
    %4988 = vmatprep.subr.mxu0 %v4866
    %4989 = vmatpush1.msra.mxu0 %v4865
    %4990 = vmatprep.subr.mxu0 %v4870
    %4991 = vmatpush1.msra.mxu0 %v4869
    %4992 = vmatprep.subr.mxu0 %v4874
    %4993 = vmatpush1.msra.mxu0 %v4873
    %4994 = vmatprep.subr.mxu0 %v4878
    %4995 = vmatpush1.msra.mxu0 %v4877
    %4996 = vmatprep.subr.mxu0 %v4882
    %4997 = vmatpush1.msra.mxu0 %v4881
    %4998 = vmatprep.subr.mxu0 %v4886
    %4999 = vmatpush1.msra.mxu0 %v4885
    %5000 = vmatprep.subr.mxu0 %v4890
    %5001 = vmatpush1.msra.mxu0 %v4889
    %5002 = vmatprep.subr.mxu0 0.0
    %5003 = vmatpush1.msra.mxu0 0.0
    %5004 = vmatprep.subr.mxu0 0.0
    %5005 = vmatpush1.msra.mxu0 0.0
    %5006 = vmatprep.subr.mxu0 0.0
    %5007 = vmatpush1.msra.mxu0 0.0
    %5008 = vmatprep.subr.mxu0 0.0
    %5009 = vmatpush1.msra.mxu0 0.0
    %5010 = vmatprep.subr.mxu0 0.0
    %5011 = vmatpush1.msra.mxu0 0.0
    %5012 = vmatprep.subr.mxu0 0.0
    %5013 = vmatpush1.msra.mxu0 0.0
    %5014 = vmatprep.subr.mxu0 0.0
    %5015 = vmatpush1.msra.mxu0 0.0
    %5016 = vmatprep.subr.mxu0 0.0
    %5017 = vmatpush1.msra.mxu0 0.0
    %5018 = vmatprep.subr.mxu0 0.0
    %5019 = vmatpush1.msra.mxu0 0.0
    %5020 = vmatprep.subr.mxu0 0.0
    %5021 = vmatpush1.msra.mxu0 0.0
    %5022 = vmatprep.subr.mxu0 0.0
    %5023 = vmatpush1.msra.mxu0 0.0
    %5024 = vmatprep.subr.mxu0 0.0
    %5025 = vmatpush1.msra.mxu0 0.0
    %5026 = vmatprep.subr.mxu0 0.0
    %5027 = vmatpush1.msra.mxu0 0.0
    %5028 = vmatprep.subr.mxu0 0.0
    %5029 = vmatpush1.msra.mxu0 0.0
    %5030 = vmatprep.subr.mxu0 0.0
    %5031 = vmatpush1.msra.mxu0 0.0
    %5032 = vmatprep.subr.mxu0 0.0
    %5033 = vmatpush1.msra.mxu0 0.0
    %5034 = vmatprep.subr.mxu0 0.0
    %5035 = vmatpush1.msra.mxu0 0.0
    %5036 = vmatprep.subr.mxu0 0.0
    %5037 = vmatpush1.msra.mxu0 0.0
    %5038 = vmatprep.subr.mxu0 0.0
    %5039 = vmatpush1.msra.mxu0 0.0
    %5040 = vmatprep.subr.mxu0 0.0
    %5041 = vmatpush1.msra.mxu0 0.0
    %5042 = vmatprep.subr.mxu0 0.0
    %5043 = vmatpush1.msra.mxu0 0.0
    %5044 = vmatprep.subr.mxu0 0.0
    %5045 = vmatpush1.msra.mxu0 0.0
    %5046 = vmatprep.subr.mxu0 0.0
    %5047 = vmatpush1.msra.mxu0 0.0
    %5048 = vmatprep.subr.mxu0 0.0
    %5049 = vmatpush1.msra.mxu0 0.0
    %5050 = vmatprep.mubr.f32.mxu0 0.0
    %5051 = vmatmul.mubr.f32.gmra.mrb[0].mxu0 %v1516
    %v5052 = vpop.f32.mrb[0].mxu0
    %v5053 = vadd.f32 0.0, %v5052
    %v5054 = vpop.f32.mrb[0].mxu0
    %v5055 = vadd.f32 0.0, %v5054
    %5056 = vdwg.mxu0
    %v5057 = vadd.f32 %v4911, %v4982
    %v5058 = vadd.f32 %v4912, %v4984
    %v5059 = vadd.f32 %v4913, %v5053
    %v5060 = vadd.f32 %v4914, %v5055
    %v5061 = vxor.u32 %v5057, 2147483648
    %v5062 = vmul.f32 %v5061, 1.442695
    %v5063 = vpow.pop %v5062
    %v5064 = vadd.f32 %v5063, 1.0
    %v5065 = vrcp.pop %v5064
    %v5066 = vmul.f32 1.0, %v5065
    %v5067 = vxor.u32 %v5058, 2147483648
    %v5068 = vmul.f32 %v5067, 1.442695
    %v5069 = vpow.pop %v5068
    %v5070 = vadd.f32 %v5069, 1.0
    %v5071 = vrcp.pop %v5070
    %v5072 = vmul.f32 1.0, %v5071
    %v5073 = vxor.u32 %v5059, 2147483648
    %v5074 = vmul.f32 %v5073, 1.442695
    %v5075 = vpow.pop %v5074
    %v5076 = vadd.f32 %v5075, 1.0
    %v5077 = vrcp.pop %v5076
    %v5078 = vmul.f32 1.0, %v5077
    %v5079 = vtanh.pop %v5060
    %v5080 = vmul.f32 %v5072, 0.0
    %v5081 = vmul.f32 %v5066, %v5079
    %v5082 = vadd.f32 %v5080, %v5081
    %v5083 = vtanh.pop %v5082
    %v5084 = vmul.f32 %v5078, %v5083
    %v5085 = vld [vmem:[#allocation3] sm:$0xc]
    %v5086 = vld [vmem:[#allocation3 + $0x8] sm:$0xc]
    %v5087 = vld [vmem:[#allocation3 + $0x10] sm:$0xc]
    %v5088 = vld [vmem:[#allocation3 + $0x18] sm:$0xc]
    %v5089 = vld [vmem:[#allocation4 + $0x60] sm:$0xc]
    %v5090 = vld [vmem:[#allocation4 + $0x68] sm:$0xc]
    %v5091 = vld [vmem:[#allocation4 + $0x70] sm:$0xc]
    %v5092 = vld [vmem:[#allocation4 + $0x78] sm:$0xc]
    %v5093 = vadd.f32 %v5085, %v5089
    %v5094 = vadd.f32 %v5086, %v5090
    %v5095 = vadd.f32 %v5087, %v5091
    %v5096 = vadd.f32 %v5088, %v5092
    %v5098 = vsel %vm1514, %v5084, 0
    %5100 = vmatprep.subr.mxu0 %v4860
    %5101 = vmatpush1.msra.mxu0 %v4859
    %5102 = vmatprep.subr.mxu0 %v4864
    %5103 = vmatpush1.msra.mxu0 %v4863
    %5104 = vmatprep.subr.mxu0 %v4868
    %5105 = vmatpush1.msra.mxu0 %v4867
    %5106 = vmatprep.subr.mxu0 %v4872
    %5107 = vmatpush1.msra.mxu0 %v4871
    %5108 = vmatprep.subr.mxu0 %v4876
    %5109 = vmatpush1.msra.mxu0 %v4875
    %5110 = vmatprep.subr.mxu0 %v4880
    %5111 = vmatpush1.msra.mxu0 %v4879
    %5112 = vmatprep.subr.mxu0 %v4884
    %5113 = vmatpush1.msra.mxu0 %v4883
    %5114 = vmatprep.subr.mxu0 %v4888
    %5115 = vmatpush1.msra.mxu0 %v4887
    %5116 = vmatprep.subr.mxu0 0.0
    %5117 = vmatpush1.msra.mxu0 0.0
    %5118 = vmatprep.subr.mxu0 0.0
    %5119 = vmatpush1.msra.mxu0 0.0
    %5120 = vmatprep.subr.mxu0 0.0
    %5121 = vmatpush1.msra.mxu0 0.0
    %5122 = vmatprep.subr.mxu0 0.0
    %5123 = vmatpush1.msra.mxu0 0.0
    %5124 = vmatprep.subr.mxu0 0.0
    %5125 = vmatpush1.msra.mxu0 0.0
    %5126 = vmatprep.subr.mxu0 0.0
    %5127 = vmatpush1.msra.mxu0 0.0
    %5128 = vmatprep.subr.mxu0 0.0
    %5129 = vmatpush1.msra.mxu0 0.0
    %5130 = vmatprep.subr.mxu0 0.0
    %5131 = vmatpush1.msra.mxu0 0.0
    %5132 = vmatprep.subr.mxu0 0.0
    %5133 = vmatpush1.msra.mxu0 0.0
    %5134 = vmatprep.subr.mxu0 0.0
    %5135 = vmatpush1.msra.mxu0 0.0
    %5136 = vmatprep.subr.mxu0 0.0
    %5137 = vmatpush1.msra.mxu0 0.0
    %5138 = vmatprep.subr.mxu0 0.0
    %5139 = vmatpush1.msra.mxu0 0.0
    %5140 = vmatprep.subr.mxu0 0.0
    %5141 = vmatpush1.msra.mxu0 0.0
    %5142 = vmatprep.subr.mxu0 0.0
    %5143 = vmatpush1.msra.mxu0 0.0
    %5144 = vmatprep.subr.mxu0 0.0
    %5145 = vmatpush1.msra.mxu0 0.0
    %5146 = vmatprep.subr.mxu0 0.0
    %5147 = vmatpush1.msra.mxu0 0.0
    %5148 = vmatprep.subr.mxu0 0.0
    %5149 = vmatpush1.msra.mxu0 0.0
    %5150 = vmatprep.subr.mxu0 0.0
    %5151 = vmatpush1.msra.mxu0 0.0
    %5152 = vmatprep.subr.mxu0 0.0
    %5153 = vmatpush1.msra.mxu0 0.0
    %5154 = vmatprep.subr.mxu0 0.0
    %5155 = vmatpush1.msra.mxu0 0.0
    %5156 = vmatprep.subr.mxu0 0.0
    %5157 = vmatpush1.msra.mxu0 0.0
    %5158 = vmatprep.subr.mxu0 0.0
    %5159 = vmatpush1.msra.mxu0 0.0
    %5160 = vmatprep.subr.mxu0 0.0
    %5161 = vmatpush1.msra.mxu0 0.0
    %5162 = vmatprep.subr.mxu0 0.0
    %5163 = vmatpush1.msra.mxu0 0.0
    %5164 = vmatprep.mubr.f32.mxu0 0.0
    %5165 = vmatmul.mubr.f32.gmra.mrb[0].mxu0 %v5098
    %v5166 = vpop.f32.mrb[0].mxu0
    %v5167 = vadd.f32 0.0, %v5166
    %v5168 = vpop.f32.mrb[0].mxu0
    %v5169 = vadd.f32 0.0, %v5168
    %5170 = vdwg.mxu0
    %5171 = vmatprep.subr.mxu0 %v4862
    %5172 = vmatpush1.msra.mxu0 %v4861
    %5173 = vmatprep.subr.mxu0 %v4866
    %5174 = vmatpush1.msra.mxu0 %v4865
    %5175 = vmatprep.subr.mxu0 %v4870
    %5176 = vmatpush1.msra.mxu0 %v4869
    %5177 = vmatprep.subr.mxu0 %v4874
    %5178 = vmatpush1.msra.mxu0 %v4873
    %5179 = vmatprep.subr.mxu0 %v4878
    %5180 = vmatpush1.msra.mxu0 %v4877
    %5181 = vmatprep.subr.mxu0 %v4882
    %5182 = vmatpush1.msra.mxu0 %v4881
    %5183 = vmatprep.subr.mxu0 %v4886
    %5184 = vmatpush1.msra.mxu0 %v4885
    %5185 = vmatprep.subr.mxu0 %v4890
    %5186 = vmatpush1.msra.mxu0 %v4889
    %5187 = vmatprep.subr.mxu0 0.0
    %5188 = vmatpush1.msra.mxu0 0.0
    %5189 = vmatprep.subr.mxu0 0.0
    %5190 = vmatpush1.msra.mxu0 0.0
    %5191 = vmatprep.subr.mxu0 0.0
    %5192 = vmatpush1.msra.mxu0 0.0
    %5193 = vmatprep.subr.mxu0 0.0
    %5194 = vmatpush1.msra.mxu0 0.0
    %5195 = vmatprep.subr.mxu0 0.0
    %5196 = vmatpush1.msra.mxu0 0.0
    %5197 = vmatprep.subr.mxu0 0.0
    %5198 = vmatpush1.msra.mxu0 0.0
    %5199 = vmatprep.subr.mxu0 0.0
    %5200 = vmatpush1.msra.mxu0 0.0
    %5201 = vmatprep.subr.mxu0 0.0
    %5202 = vmatpush1.msra.mxu0 0.0
    %5203 = vmatprep.subr.mxu0 0.0
    %5204 = vmatpush1.msra.mxu0 0.0
    %5205 = vmatprep.subr.mxu0 0.0
    %5206 = vmatpush1.msra.mxu0 0.0
    %5207 = vmatprep.subr.mxu0 0.0
    %5208 = vmatpush1.msra.mxu0 0.0
    %5209 = vmatprep.subr.mxu0 0.0
    %5210 = vmatpush1.msra.mxu0 0.0
    %5211 = vmatprep.subr.mxu0 0.0
    %5212 = vmatpush1.msra.mxu0 0.0
    %5213 = vmatprep.subr.mxu0 0.0
    %5214 = vmatpush1.msra.mxu0 0.0
    %5215 = vmatprep.subr.mxu0 0.0
    %5216 = vmatpush1.msra.mxu0 0.0
    %5217 = vmatprep.subr.mxu0 0.0
    %5218 = vmatpush1.msra.mxu0 0.0
    %5219 = vmatprep.subr.mxu0 0.0
    %5220 = vmatpush1.msra.mxu0 0.0
    %5221 = vmatprep.subr.mxu0 0.0
    %5222 = vmatpush1.msra.mxu0 0.0
    %5223 = vmatprep.subr.mxu0 0.0
    %5224 = vmatpush1.msra.mxu0 0.0
    %5225 = vmatprep.subr.mxu0 0.0
    %5226 = vmatpush1.msra.mxu0 0.0
    %5227 = vmatprep.subr.mxu0 0.0
    %5228 = vmatpush1.msra.mxu0 0.0
    %5229 = vmatprep.subr.mxu0 0.0
    %5230 = vmatpush1.msra.mxu0 0.0
    %5231 = vmatprep.subr.mxu0 0.0
    %5232 = vmatpush1.msra.mxu0 0.0
    %5233 = vmatprep.subr.mxu0 0.0
    %5234 = vmatpush1.msra.mxu0 0.0
    %5235 = vmatprep.mubr.f32.mxu0 0.0
    %5236 = vmatmul.mubr.f32.gmra.mrb[0].mxu0 %v5098
    %v5237 = vpop.f32.mrb[0].mxu0
    %v5238 = vadd.f32 0.0, %v5237
    %v5239 = vpop.f32.mrb[0].mxu0
    %v5240 = vadd.f32 0.0, %v5239
    %5241 = vdwg.mxu0
    %v5246 = vrot.slane %v5167, 6
    %v5247 = vrot.slane %v5169, 6
    %v5248 = vrot.slane %v5238, 6
    %v5249 = vrot.slane %v5240, 6
    %v5254 = vadd.f32 %v5093, %v5246
    %v5255 = vadd.f32 %v5094, %v5247
    %v5256 = vadd.f32 %v5095, %v5248
    %v5257 = vadd.f32 %v5096, %v5249
    %v5258 = vxor.u32 %v5254, 2147483648
    %v5259 = vmul.f32 %v5258, 1.442695
    %v5260 = vpow.pop %v5259
    %v5261 = vadd.f32 %v5260, 1.0
    %v5262 = vrcp.pop %v5261
    %v5263 = vmul.f32 1.0, %v5262
    %v5264 = vxor.u32 %v5255, 2147483648
    %v5265 = vmul.f32 %v5264, 1.442695
    %v5266 = vpow.pop %v5265
    %v5267 = vadd.f32 %v5266, 1.0
    %v5268 = vrcp.pop %v5267
    %v5269 = vmul.f32 1.0, %v5268
    %v5270 = vxor.u32 %v5256, 2147483648
    %v5271 = vmul.f32 %v5270, 1.442695
    %v5272 = vpow.pop %v5271
    %v5273 = vadd.f32 %v5272, 1.0
    %v5274 = vrcp.pop %v5273
    %v5275 = vmul.f32 1.0, %v5274
    %v5276 = vtanh.pop %v5257
    %v5278 = vrot.slane %v5082, 6
    %v5280 = vmul.f32 %v5269, %v5278
    %v5281 = vmul.f32 %v5263, %v5276
    %v5282 = vadd.f32 %v5280, %v5281
    %v5283 = vtanh.pop %v5282
    %v5284 = vmul.f32 %v5275, %v5283
    %v5285 = vld [vmem:[#allocation3] sm:$0x30]
    %v5286 = vld [vmem:[#allocation3 + $0x8] sm:$0x30]
    %v5287 = vld [vmem:[#allocation3 + $0x10] sm:$0x30]
    %v5288 = vld [vmem:[#allocation3 + $0x18] sm:$0x30]
    %v5289 = vld [vmem:[#allocation4 + $0x60] sm:$0x3]
    %v5290 = vld [vmem:[#allocation4 + $0x68] sm:$0x3]
    %v5291 = vld [vmem:[#allocation4 + $0x70] sm:$0x3]
    %v5292 = vld [vmem:[#allocation4 + $0x78] sm:$0x3]
    %v5297 = vrot.slane %v5289, 4
    %v5298 = vrot.slane %v5290, 4
    %v5299 = vrot.slane %v5291, 4
    %v5300 = vrot.slane %v5292, 4
    %v5305 = vadd.f32 %v5285, %v5297
    %v5306 = vadd.f32 %v5286, %v5298
    %v5307 = vadd.f32 %v5287, %v5299
    %v5308 = vadd.f32 %v5288, %v5300
    %v5310 = vrot.slane %v5284, 2
    %v5311 = vsel %vm1514, %v5310, 0
    %5313 = vmatprep.subr.mxu0 %v4860
    %5314 = vmatpush1.msra.mxu0 %v4859
    %5315 = vmatprep.subr.mxu0 %v4864
    %5316 = vmatpush1.msra.mxu0 %v4863
    %5317 = vmatprep.subr.mxu0 %v4868
    %5318 = vmatpush1.msra.mxu0 %v4867
    %5319 = vmatprep.subr.mxu0 %v4872
    %5320 = vmatpush1.msra.mxu0 %v4871
    %5321 = vmatprep.subr.mxu0 %v4876
    %5322 = vmatpush1.msra.mxu0 %v4875
    %5323 = vmatprep.subr.mxu0 %v4880
    %5324 = vmatpush1.msra.mxu0 %v4879
    %5325 = vmatprep.subr.mxu0 %v4884
    %5326 = vmatpush1.msra.mxu0 %v4883
    %5327 = vmatprep.subr.mxu0 %v4888
    %5328 = vmatpush1.msra.mxu0 %v4887
    %5329 = vmatprep.subr.mxu0 0.0
    %5330 = vmatpush1.msra.mxu0 0.0
    %5331 = vmatprep.subr.mxu0 0.0
    %5332 = vmatpush1.msra.mxu0 0.0
    %5333 = vmatprep.subr.mxu0 0.0
    %5334 = vmatpush1.msra.mxu0 0.0
    %5335 = vmatprep.subr.mxu0 0.0
    %5336 = vmatpush1.msra.mxu0 0.0
    %5337 = vmatprep.subr.mxu0 0.0
    %5338 = vmatpush1.msra.mxu0 0.0
    %5339 = vmatprep.subr.mxu0 0.0
    %5340 = vmatpush1.msra.mxu0 0.0
    %5341 = vmatprep.subr.mxu0 0.0
    %5342 = vmatpush1.msra.mxu0 0.0
    %5343 = vmatprep.subr.mxu0 0.0
    %5344 = vmatpush1.msra.mxu0 0.0
    %5345 = vmatprep.subr.mxu0 0.0
    %5346 = vmatpush1.msra.mxu0 0.0
    %5347 = vmatprep.subr.mxu0 0.0
    %5348 = vmatpush1.msra.mxu0 0.0
    %5349 = vmatprep.subr.mxu0 0.0
    %5350 = vmatpush1.msra.mxu0 0.0
    %5351 = vmatprep.subr.mxu0 0.0
    %5352 = vmatpush1.msra.mxu0 0.0
    %5353 = vmatprep.subr.mxu0 0.0
    %5354 = vmatpush1.msra.mxu0 0.0
    %5355 = vmatprep.subr.mxu0 0.0
    %5356 = vmatpush1.msra.mxu0 0.0
    %5357 = vmatprep.subr.mxu0 0.0
    %5358 = vmatpush1.msra.mxu0 0.0
    %5359 = vmatprep.subr.mxu0 0.0
    %5360 = vmatpush1.msra.mxu0 0.0
    %5361 = vmatprep.subr.mxu0 0.0
    %5362 = vmatpush1.msra.mxu0 0.0
    %5363 = vmatprep.subr.mxu0 0.0
    %5364 = vmatpush1.msra.mxu0 0.0
    %5365 = vmatprep.subr.mxu0 0.0
    %5366 = vmatpush1.msra.mxu0 0.0
    %5367 = vmatprep.subr.mxu0 0.0
    %5368 = vmatpush1.msra.mxu0 0.0
    %5369 = vmatprep.subr.mxu0 0.0
    %5370 = vmatpush1.msra.mxu0 0.0
    %5371 = vmatprep.subr.mxu0 0.0
    %5372 = vmatpush1.msra.mxu0 0.0
    %5373 = vmatprep.subr.mxu0 0.0
    %5374 = vmatpush1.msra.mxu0 0.0
    %5375 = vmatprep.subr.mxu0 0.0
    %5376 = vmatpush1.msra.mxu0 0.0
    %5377 = vmatprep.mubr.f32.mxu0 0.0
    %5378 = vmatmul.mubr.f32.gmra.mrb[0].mxu0 %v5311
    %v5379 = vpop.f32.mrb[0].mxu0
    %v5380 = vadd.f32 0.0, %v5379
    %v5381 = vpop.f32.mrb[0].mxu0
    %v5382 = vadd.f32 0.0, %v5381
    %5383 = vdwg.mxu0
    %5384 = vmatprep.subr.mxu0 %v4862
    %5385 = vmatpush1.msra.mxu0 %v4861
    %5386 = vmatprep.subr.mxu0 %v4866
    %5387 = vmatpush1.msra.mxu0 %v4865
    %5388 = vmatprep.subr.mxu0 %v4870
    %5389 = vmatpush1.msra.mxu0 %v4869
    %5390 = vmatprep.subr.mxu0 %v4874
    %5391 = vmatpush1.msra.mxu0 %v4873
    %5392 = vmatprep.subr.mxu0 %v4878
    %5393 = vmatpush1.msra.mxu0 %v4877
    %5394 = vmatprep.subr.mxu0 %v4882
    %5395 = vmatpush1.msra.mxu0 %v4881
    %5396 = vmatprep.subr.mxu0 %v4886
    %5397 = vmatpush1.msra.mxu0 %v4885
    %5398 = vmatprep.subr.mxu0 %v4890
    %5399 = vmatpush1.msra.mxu0 %v4889
    %5400 = vmatprep.subr.mxu0 0.0
    %5401 = vmatpush1.msra.mxu0 0.0
    %5402 = vmatprep.subr.mxu0 0.0
    %5403 = vmatpush1.msra.mxu0 0.0
    %5404 = vmatprep.subr.mxu0 0.0
    %5405 = vmatpush1.msra.mxu0 0.0
    %5406 = vmatprep.subr.mxu0 0.0
    %5407 = vmatpush1.msra.mxu0 0.0
    %5408 = vmatprep.subr.mxu0 0.0
    %5409 = vmatpush1.msra.mxu0 0.0
    %5410 = vmatprep.subr.mxu0 0.0
    %5411 = vmatpush1.msra.mxu0 0.0
    %5412 = vmatprep.subr.mxu0 0.0
    %5413 = vmatpush1.msra.mxu0 0.0
    %5414 = vmatprep.subr.mxu0 0.0
    %5415 = vmatpush1.msra.mxu0 0.0
    %5416 = vmatprep.subr.mxu0 0.0
    %5417 = vmatpush1.msra.mxu0 0.0
    %5418 = vmatprep.subr.mxu0 0.0
    %5419 = vmatpush1.msra.mxu0 0.0
    %5420 = vmatprep.subr.mxu0 0.0
    %5421 = vmatpush1.msra.mxu0 0.0
    %5422 = vmatprep.subr.mxu0 0.0
    %5423 = vmatpush1.msra.mxu0 0.0
    %5424 = vmatprep.subr.mxu0 0.0
    %5425 = vmatpush1.msra.mxu0 0.0
    %5426 = vmatprep.subr.mxu0 0.0
    %5427 = vmatpush1.msra.mxu0 0.0
    %5428 = vmatprep.subr.mxu0 0.0
    %5429 = vmatpush1.msra.mxu0 0.0
    %5430 = vmatprep.subr.mxu0 0.0
    %5431 = vmatpush1.msra.mxu0 0.0
    %5432 = vmatprep.subr.mxu0 0.0
    %5433 = vmatpush1.msra.mxu0 0.0
    %5434 = vmatprep.subr.mxu0 0.0
    %5435 = vmatpush1.msra.mxu0 0.0
    %5436 = vmatprep.subr.mxu0 0.0
    %5437 = vmatpush1.msra.mxu0 0.0
    %5438 = vmatprep.subr.mxu0 0.0
    %5439 = vmatpush1.msra.mxu0 0.0
    %5440 = vmatprep.subr.mxu0 0.0
    %5441 = vmatpush1.msra.mxu0 0.0
    %5442 = vmatprep.subr.mxu0 0.0
    %5443 = vmatpush1.msra.mxu0 0.0
    %5444 = vmatprep.subr.mxu0 0.0
    %5445 = vmatpush1.msra.mxu0 0.0
    %5446 = vmatprep.subr.mxu0 0.0
    %5447 = vmatpush1.msra.mxu0 0.0
    %5448 = vmatprep.mubr.f32.mxu0 0.0
    %5449 = vmatmul.mubr.f32.gmra.mrb[0].mxu0 %v5311
    %v5450 = vpop.f32.mrb[0].mxu0
    %v5451 = vadd.f32 0.0, %v5450
    %v5452 = vpop.f32.mrb[0].mxu0
    %v5453 = vadd.f32 0.0, %v5452
    %5454 = vdwg.mxu0
    %v5459 = vrot.slane %v5380, 4
    %v5460 = vrot.slane %v5382, 4
    %v5461 = vrot.slane %v5451, 4
    %v5462 = vrot.slane %v5453, 4
    %v5467 = vadd.f32 %v5305, %v5459
    %v5468 = vadd.f32 %v5306, %v5460
    %v5469 = vadd.f32 %v5307, %v5461
    %v5470 = vadd.f32 %v5308, %v5462
    %v5471 = vxor.u32 %v5467, 2147483648
    %v5472 = vmul.f32 %v5471, 1.442695
    %v5473 = vpow.pop %v5472
    %v5474 = vadd.f32 %v5473, 1.0
    %v5475 = vrcp.pop %v5474
    %v5476 = vmul.f32 1.0, %v5475
    %v5477 = vxor.u32 %v5468, 2147483648
    %v5478 = vmul.f32 %v5477, 1.442695
    %v5479 = vpow.pop %v5478
    %v5480 = vadd.f32 %v5479, 1.0
    %v5481 = vrcp.pop %v5480
    %v5482 = vmul.f32 1.0, %v5481
    %v5483 = vxor.u32 %v5469, 2147483648
    %v5484 = vmul.f32 %v5483, 1.442695
    %v5485 = vpow.pop %v5484
    %v5486 = vadd.f32 %v5485, 1.0
    %v5487 = vrcp.pop %v5486
    %v5488 = vmul.f32 1.0, %v5487
    %v5489 = vtanh.pop %v5470
    %v5491 = vrot.slane %v5282, 6
    %v5493 = vmul.f32 %v5482, %v5491
    %v5494 = vmul.f32 %v5476, %v5489
    %v5495 = vadd.f32 %v5493, %v5494
    %v5496 = vtanh.pop %v5495
    %v5497 = vmul.f32 %v5488, %v5496
    %v5498 = vld [vmem:[#allocation3] sm:$0xc0]
    %v5499 = vld [vmem:[#allocation3 + $0x8] sm:$0xc0]
    %v5500 = vld [vmem:[#allocation3 + $0x10] sm:$0xc0]
    %v5501 = vld [vmem:[#allocation3 + $0x18] sm:$0xc0]
    %v5502 = vld [vmem:[#allocation4 + $0x40] sm:$0xc0]
    %v5503 = vld [vmem:[#allocation4 + $0x48] sm:$0xc0]
    %v5504 = vld [vmem:[#allocation4 + $0x50] sm:$0xc0]
    %v5505 = vld [vmem:[#allocation4 + $0x58] sm:$0xc0]
    %v5506 = vadd.f32 %v5498, %v5502
    %v5507 = vadd.f32 %v5499, %v5503
    %v5508 = vadd.f32 %v5500, %v5504
    %v5509 = vadd.f32 %v5501, %v5505
    %v5511 = vrot.slane %v5497, 4
    %v5512 = vsel %vm1514, %v5511, 0
    %5514 = vmatprep.subr.mxu0 %v4860
    %5515 = vmatpush1.msra.mxu0 %v4859
    %5516 = vmatprep.subr.mxu0 %v4864
    %5517 = vmatpush1.msra.mxu0 %v4863
    %5518 = vmatprep.subr.mxu0 %v4868
    %5519 = vmatpush1.msra.mxu0 %v4867
    %5520 = vmatprep.subr.mxu0 %v4872
    %5521 = vmatpush1.msra.mxu0 %v4871
    %5522 = vmatprep.subr.mxu0 %v4876
    %5523 = vmatpush1.msra.mxu0 %v4875
    %5524 = vmatprep.subr.mxu0 %v4880
    %5525 = vmatpush1.msra.mxu0 %v4879
    %5526 = vmatprep.subr.mxu0 %v4884
    %5527 = vmatpush1.msra.mxu0 %v4883
    %5528 = vmatprep.subr.mxu0 %v4888
    %5529 = vmatpush1.msra.mxu0 %v4887
    %5530 = vmatprep.subr.mxu0 0.0
    %5531 = vmatpush1.msra.mxu0 0.0
    %5532 = vmatprep.subr.mxu0 0.0
    %5533 = vmatpush1.msra.mxu0 0.0
    %5534 = vmatprep.subr.mxu0 0.0
    %5535 = vmatpush1.msra.mxu0 0.0
    %5536 = vmatprep.subr.mxu0 0.0
    %5537 = vmatpush1.msra.mxu0 0.0
    %5538 = vmatprep.subr.mxu0 0.0
    %5539 = vmatpush1.msra.mxu0 0.0
    %5540 = vmatprep.subr.mxu0 0.0
    %5541 = vmatpush1.msra.mxu0 0.0
    %5542 = vmatprep.subr.mxu0 0.0
    %5543 = vmatpush1.msra.mxu0 0.0
    %5544 = vmatprep.subr.mxu0 0.0
    %5545 = vmatpush1.msra.mxu0 0.0
    %5546 = vmatprep.subr.mxu0 0.0
    %5547 = vmatpush1.msra.mxu0 0.0
    %5548 = vmatprep.subr.mxu0 0.0
    %5549 = vmatpush1.msra.mxu0 0.0
    %5550 = vmatprep.subr.mxu0 0.0
    %5551 = vmatpush1.msra.mxu0 0.0
    %5552 = vmatprep.subr.mxu0 0.0
    %5553 = vmatpush1.msra.mxu0 0.0
    %5554 = vmatprep.subr.mxu0 0.0
    %5555 = vmatpush1.msra.mxu0 0.0
    %5556 = vmatprep.subr.mxu0 0.0
    %5557 = vmatpush1.msra.mxu0 0.0
    %5558 = vmatprep.subr.mxu0 0.0
    %5559 = vmatpush1.msra.mxu0 0.0
    %5560 = vmatprep.subr.mxu0 0.0
    %5561 = vmatpush1.msra.mxu0 0.0
    %5562 = vmatprep.subr.mxu0 0.0
    %5563 = vmatpush1.msra.mxu0 0.0
    %5564 = vmatprep.subr.mxu0 0.0
    %5565 = vmatpush1.msra.mxu0 0.0
    %5566 = vmatprep.subr.mxu0 0.0
    %5567 = vmatpush1.msra.mxu0 0.0
    %5568 = vmatprep.subr.mxu0 0.0
    %5569 = vmatpush1.msra.mxu0 0.0
    %5570 = vmatprep.subr.mxu0 0.0
    %5571 = vmatpush1.msra.mxu0 0.0
    %5572 = vmatprep.subr.mxu0 0.0
    %5573 = vmatpush1.msra.mxu0 0.0
    %5574 = vmatprep.subr.mxu0 0.0
    %5575 = vmatpush1.msra.mxu0 0.0
    %5576 = vmatprep.subr.mxu0 0.0
    %5577 = vmatpush1.msra.mxu0 0.0
    %5578 = vmatprep.mubr.f32.mxu0 0.0
    %5579 = vmatmul.mubr.f32.gmra.mrb[0].mxu0 %v5512
    %v5580 = vpop.f32.mrb[0].mxu0
    %v5581 = vadd.f32 0.0, %v5580
    %v5582 = vpop.f32.mrb[0].mxu0
    %v5583 = vadd.f32 0.0, %v5582
    %5584 = vdwg.mxu0
    %5585 = vmatprep.subr.mxu0 %v4862
    %5586 = vmatpush1.msra.mxu0 %v4861
    %5587 = vmatprep.subr.mxu0 %v4866
    %5588 = vmatpush1.msra.mxu0 %v4865
    %5589 = vmatprep.subr.mxu0 %v4870
    %5590 = vmatpush1.msra.mxu0 %v4869
    %5591 = vmatprep.subr.mxu0 %v4874
    %5592 = vmatpush1.msra.mxu0 %v4873
    %5593 = vmatprep.subr.mxu0 %v4878
    %5594 = vmatpush1.msra.mxu0 %v4877
    %5595 = vmatprep.subr.mxu0 %v4882
    %5596 = vmatpush1.msra.mxu0 %v4881
    %5597 = vmatprep.subr.mxu0 %v4886
    %5598 = vmatpush1.msra.mxu0 %v4885
    %5599 = vmatprep.subr.mxu0 %v4890
    %5600 = vmatpush1.msra.mxu0 %v4889
    %5601 = vmatprep.subr.mxu0 0.0
    %5602 = vmatpush1.msra.mxu0 0.0
    %5603 = vmatprep.subr.mxu0 0.0
    %5604 = vmatpush1.msra.mxu0 0.0
    %5605 = vmatprep.subr.mxu0 0.0
    %5606 = vmatpush1.msra.mxu0 0.0
    %5607 = vmatprep.subr.mxu0 0.0
    %5608 = vmatpush1.msra.mxu0 0.0
    %5609 = vmatprep.subr.mxu0 0.0
    %5610 = vmatpush1.msra.mxu0 0.0
    %5611 = vmatprep.subr.mxu0 0.0
    %5612 = vmatpush1.msra.mxu0 0.0
    %5613 = vmatprep.subr.mxu0 0.0
    %5614 = vmatpush1.msra.mxu0 0.0
    %5615 = vmatprep.subr.mxu0 0.0
    %5616 = vmatpush1.msra.mxu0 0.0
    %5617 = vmatprep.subr.mxu0 0.0
    %5618 = vmatpush1.msra.mxu0 0.0
    %5619 = vmatprep.subr.mxu0 0.0
    %5620 = vmatpush1.msra.mxu0 0.0
    %5621 = vmatprep.subr.mxu0 0.0
    %5622 = vmatpush1.msra.mxu0 0.0
    %5623 = vmatprep.subr.mxu0 0.0
    %5624 = vmatpush1.msra.mxu0 0.0
    %5625 = vmatprep.subr.mxu0 0.0
    %5626 = vmatpush1.msra.mxu0 0.0
    %5627 = vmatprep.subr.mxu0 0.0
    %5628 = vmatpush1.msra.mxu0 0.0
    %5629 = vmatprep.subr.mxu0 0.0
    %5630 = vmatpush1.msra.mxu0 0.0
    %5631 = vmatprep.subr.mxu0 0.0
    %5632 = vmatpush1.msra.mxu0 0.0
    %5633 = vmatprep.subr.mxu0 0.0
    %5634 = vmatpush1.msra.mxu0 0.0
    %5635 = vmatprep.subr.mxu0 0.0
    %5636 = vmatpush1.msra.mxu0 0.0
    %5637 = vmatprep.subr.mxu0 0.0
    %5638 = vmatpush1.msra.mxu0 0.0
    %5639 = vmatprep.subr.mxu0 0.0
    %5640 = vmatpush1.msra.mxu0 0.0
    %5641 = vmatprep.subr.mxu0 0.0
    %5642 = vmatpush1.msra.mxu0 0.0
    %5643 = vmatprep.subr.mxu0 0.0
    %5644 = vmatpush1.msra.mxu0 0.0
    %5645 = vmatprep.subr.mxu0 0.0
    %5646 = vmatpush1.msra.mxu0 0.0
    %5647 = vmatprep.subr.mxu0 0.0
    %5648 = vmatpush1.msra.mxu0 0.0
    %5649 = vmatprep.mubr.f32.mxu0 0.0
    %5650 = vmatmul.mubr.f32.gmra.mrb[0].mxu0 %v5512
    %v5651 = vpop.f32.mrb[0].mxu0
    %v5652 = vadd.f32 0.0, %v5651
    %v5653 = vpop.f32.mrb[0].mxu0
    %v5654 = vadd.f32 0.0, %v5653
    %5655 = vdwg.mxu0
    %v5660 = vrot.slane %v5581, 2
    %v5661 = vrot.slane %v5583, 2
    %v5662 = vrot.slane %v5652, 2
    %v5663 = vrot.slane %v5654, 2
    %v5668 = vadd.f32 %v5506, %v5660
    %v5669 = vadd.f32 %v5507, %v5661
    %v5670 = vadd.f32 %v5508, %v5662
    %v5671 = vadd.f32 %v5509, %v5663
    %v5672 = vxor.u32 %v5668, 2147483648
    %v5673 = vmul.f32 %v5672, 1.442695
    %v5674 = vpow.pop %v5673
    %v5675 = vadd.f32 %v5674, 1.0
    %v5676 = vrcp.pop %v5675
    %v5677 = vmul.f32 1.0, %v5676
    %v5678 = vxor.u32 %v5669, 2147483648
    %v5679 = vmul.f32 %v5678, 1.442695
    %v5680 = vpow.pop %v5679
    %v5681 = vadd.f32 %v5680, 1.0
    %v5682 = vrcp.pop %v5681
    %v5683 = vmul.f32 1.0, %v5682
    %v5684 = vxor.u32 %v5670, 2147483648
    %v5685 = vmul.f32 %v5684, 1.442695
    %v5686 = vpow.pop %v5685
    %v5687 = vadd.f32 %v5686, 1.0
    %v5688 = vrcp.pop %v5687
    %v5689 = vmul.f32 1.0, %v5688
    %v5690 = vtanh.pop %v5671
    %v5692 = vrot.slane %v5495, 6
    %v5694 = vmul.f32 %v5683, %v5692
    %v5695 = vmul.f32 %v5677, %v5690
    %v5696 = vadd.f32 %v5694, %v5695
    %v5697 = vtanh.pop %v5696
    %v5698 = vmul.f32 %v5689, %v5697
    %v5699 = vld [vmem:[#allocation3 + $0x20] sm:$0x3]
    %v5700 = vld [vmem:[#allocation3 + $0x28] sm:$0x3]
    %v5701 = vld [vmem:[#allocation3 + $0x30] sm:$0x3]
    %v5702 = vld [vmem:[#allocation3 + $0x38] sm:$0x3]
    %v5703 = vld [vmem:[#allocation4 + $0x40] sm:$0x30]
    %v5704 = vld [vmem:[#allocation4 + $0x48] sm:$0x30]
    %v5705 = vld [vmem:[#allocation4 + $0x50] sm:$0x30]
    %v5706 = vld [vmem:[#allocation4 + $0x58] sm:$0x30]
    %v5711 = vrot.slane %v5703, 4
    %v5712 = vrot.slane %v5704, 4
    %v5713 = vrot.slane %v5705, 4
    %v5714 = vrot.slane %v5706, 4
    %v5719 = vadd.f32 %v5699, %v5711
    %v5720 = vadd.f32 %v5700, %v5712
    %v5721 = vadd.f32 %v5701, %v5713
    %v5722 = vadd.f32 %v5702, %v5714
    %v5724 = vrot.slane %v5698, 6
    %v5725 = vsel %vm1514, %v5724, 0
    %5727 = vmatprep.subr.mxu0 %v4860
    %5728 = vmatpush1.msra.mxu0 %v4859
    %5729 = vmatprep.subr.mxu0 %v4864
    %5730 = vmatpush1.msra.mxu0 %v4863
    %5731 = vmatprep.subr.mxu0 %v4868
    %5732 = vmatpush1.msra.mxu0 %v4867
    %5733 = vmatprep.subr.mxu0 %v4872
    %5734 = vmatpush1.msra.mxu0 %v4871
    %5735 = vmatprep.subr.mxu0 %v4876
    %5736 = vmatpush1.msra.mxu0 %v4875
    %5737 = vmatprep.subr.mxu0 %v4880
    %5738 = vmatpush1.msra.mxu0 %v4879
    %5739 = vmatprep.subr.mxu0 %v4884
    %5740 = vmatpush1.msra.mxu0 %v4883
    %5741 = vmatprep.subr.mxu0 %v4888
    %5742 = vmatpush1.msra.mxu0 %v4887
    %5743 = vmatprep.subr.mxu0 0.0
    %5744 = vmatpush1.msra.mxu0 0.0
    %5745 = vmatprep.subr.mxu0 0.0
    %5746 = vmatpush1.msra.mxu0 0.0
    %5747 = vmatprep.subr.mxu0 0.0
    %5748 = vmatpush1.msra.mxu0 0.0
    %5749 = vmatprep.subr.mxu0 0.0
    %5750 = vmatpush1.msra.mxu0 0.0
    %5751 = vmatprep.subr.mxu0 0.0
    %5752 = vmatpush1.msra.mxu0 0.0
    %5753 = vmatprep.subr.mxu0 0.0
    %5754 = vmatpush1.msra.mxu0 0.0
    %5755 = vmatprep.subr.mxu0 0.0
    %5756 = vmatpush1.msra.mxu0 0.0
    %5757 = vmatprep.subr.mxu0 0.0
    %5758 = vmatpush1.msra.mxu0 0.0
    %5759 = vmatprep.subr.mxu0 0.0
    %5760 = vmatpush1.msra.mxu0 0.0
    %5761 = vmatprep.subr.mxu0 0.0
    %5762 = vmatpush1.msra.mxu0 0.0
    %5763 = vmatprep.subr.mxu0 0.0
    %5764 = vmatpush1.msra.mxu0 0.0
    %5765 = vmatprep.subr.mxu0 0.0
    %5766 = vmatpush1.msra.mxu0 0.0
    %5767 = vmatprep.subr.mxu0 0.0
    %5768 = vmatpush1.msra.mxu0 0.0
    %5769 = vmatprep.subr.mxu0 0.0
    %5770 = vmatpush1.msra.mxu0 0.0
    %5771 = vmatprep.subr.mxu0 0.0
    %5772 = vmatpush1.msra.mxu0 0.0
    %5773 = vmatprep.subr.mxu0 0.0
    %5774 = vmatpush1.msra.mxu0 0.0
    %5775 = vmatprep.subr.mxu0 0.0
    %5776 = vmatpush1.msra.mxu0 0.0
    %5777 = vmatprep.subr.mxu0 0.0
    %5778 = vmatpush1.msra.mxu0 0.0
    %5779 = vmatprep.subr.mxu0 0.0
    %5780 = vmatpush1.msra.mxu0 0.0
    %5781 = vmatprep.subr.mxu0 0.0
    %5782 = vmatpush1.msra.mxu0 0.0
    %5783 = vmatprep.subr.mxu0 0.0
    %5784 = vmatpush1.msra.mxu0 0.0
    %5785 = vmatprep.subr.mxu0 0.0
    %5786 = vmatpush1.msra.mxu0 0.0
    %5787 = vmatprep.subr.mxu0 0.0
    %5788 = vmatpush1.msra.mxu0 0.0
    %5789 = vmatprep.subr.mxu0 0.0
    %5790 = vmatpush1.msra.mxu0 0.0
    %5791 = vmatprep.mubr.f32.mxu0 0.0
    %5792 = vmatmul.mubr.f32.gmra.mrb[0].mxu0 %v5725
    %v5793 = vpop.f32.mrb[0].mxu0
    %v5794 = vadd.f32 0.0, %v5793
    %v5795 = vpop.f32.mrb[0].mxu0
    %v5796 = vadd.f32 0.0, %v5795
    %5797 = vdwg.mxu0
    %5798 = vmatprep.subr.mxu0 %v4862
    %5799 = vmatpush1.msra.mxu0 %v4861
    %5800 = vmatprep.subr.mxu0 %v4866
    %5801 = vmatpush1.msra.mxu0 %v4865
    %5802 = vmatprep.subr.mxu0 %v4870
    %5803 = vmatpush1.msra.mxu0 %v4869
    %5804 = vmatprep.subr.mxu0 %v4874
    %5805 = vmatpush1.msra.mxu0 %v4873
    %5806 = vmatprep.subr.mxu0 %v4878
    %5807 = vmatpush1.msra.mxu0 %v4877
    %5808 = vmatprep.subr.mxu0 %v4882
    %5809 = vmatpush1.msra.mxu0 %v4881
    %5810 = vmatprep.subr.mxu0 %v4886
    %5811 = vmatpush1.msra.mxu0 %v4885
    %5812 = vmatprep.subr.mxu0 %v4890
    %5813 = vmatpush1.msra.mxu0 %v4889
    %5814 = vmatprep.subr.mxu0 0.0
    %5815 = vmatpush1.msra.mxu0 0.0
    %5816 = vmatprep.subr.mxu0 0.0
    %5817 = vmatpush1.msra.mxu0 0.0
    %5818 = vmatprep.subr.mxu0 0.0
    %5819 = vmatpush1.msra.mxu0 0.0
    %5820 = vmatprep.subr.mxu0 0.0
    %5821 = vmatpush1.msra.mxu0 0.0
    %5822 = vmatprep.subr.mxu0 0.0
    %5823 = vmatpush1.msra.mxu0 0.0
    %5824 = vmatprep.subr.mxu0 0.0
    %5825 = vmatpush1.msra.mxu0 0.0
    %5826 = vmatprep.subr.mxu0 0.0
    %5827 = vmatpush1.msra.mxu0 0.0
    %5828 = vmatprep.subr.mxu0 0.0
    %5829 = vmatpush1.msra.mxu0 0.0
    %5830 = vmatprep.subr.mxu0 0.0
    %5831 = vmatpush1.msra.mxu0 0.0
    %5832 = vmatprep.subr.mxu0 0.0
    %5833 = vmatpush1.msra.mxu0 0.0
    %5834 = vmatprep.subr.mxu0 0.0
    %5835 = vmatpush1.msra.mxu0 0.0
    %5836 = vmatprep.subr.mxu0 0.0
    %5837 = vmatpush1.msra.mxu0 0.0
    %5838 = vmatprep.subr.mxu0 0.0
    %5839 = vmatpush1.msra.mxu0 0.0
    %5840 = vmatprep.subr.mxu0 0.0
    %5841 = vmatpush1.msra.mxu0 0.0
    %5842 = vmatprep.subr.mxu0 0.0
    %5843 = vmatpush1.msra.mxu0 0.0
    %5844 = vmatprep.subr.mxu0 0.0
    %5845 = vmatpush1.msra.mxu0 0.0
    %5846 = vmatprep.subr.mxu0 0.0
    %5847 = vmatpush1.msra.mxu0 0.0
    %5848 = vmatprep.subr.mxu0 0.0
    %5849 = vmatpush1.msra.mxu0 0.0
    %5850 = vmatprep.subr.mxu0 0.0
    %5851 = vmatpush1.msra.mxu0 0.0
    %5852 = vmatprep.subr.mxu0 0.0
    %5853 = vmatpush1.msra.mxu0 0.0
    %5854 = vmatprep.subr.mxu0 0.0
    %5855 = vmatpush1.msra.mxu0 0.0
    %5856 = vmatprep.subr.mxu0 0.0
    %5857 = vmatpush1.msra.mxu0 0.0
    %5858 = vmatprep.subr.mxu0 0.0
    %5859 = vmatpush1.msra.mxu0 0.0
    %5860 = vmatprep.subr.mxu0 0.0
    %5861 = vmatpush1.msra.mxu0 0.0
    %5862 = vmatprep.mubr.f32.mxu0 0.0
    %5863 = vmatmul.mubr.f32.gmra.mrb[0].mxu0 %v5725
    %v5864 = vpop.f32.mrb[0].mxu0
    %v5865 = vadd.f32 0.0, %v5864
    %v5866 = vpop.f32.mrb[0].mxu0
    %v5867 = vadd.f32 0.0, %v5866
    %5868 = vdwg.mxu0
    %v5869 = vadd.f32 %v5719, %v5794
    %v5870 = vadd.f32 %v5720, %v5796
    %v5871 = vadd.f32 %v5721, %v5865
    %v5872 = vadd.f32 %v5722, %v5867
    %v5873 = vxor.u32 %v5869, 2147483648
    %v5874 = vmul.f32 %v5873, 1.442695
    %v5875 = vpow.pop %v5874
    %v5876 = vadd.f32 %v5875, 1.0
    %v5877 = vrcp.pop %v5876
    %v5878 = vmul.f32 1.0, %v5877
    %v5879 = vxor.u32 %v5870, 2147483648
    %v5880 = vmul.f32 %v5879, 1.442695
    %v5881 = vpow.pop %v5880
    %v5882 = vadd.f32 %v5881, 1.0
    %v5883 = vrcp.pop %v5882
    %v5884 = vmul.f32 1.0, %v5883
    %v5885 = vxor.u32 %v5871, 2147483648
    %v5886 = vmul.f32 %v5885, 1.442695
    %v5887 = vpow.pop %v5886
    %v5888 = vadd.f32 %v5887, 1.0
    %v5889 = vrcp.pop %v5888
    %v5890 = vmul.f32 1.0, %v5889
    %v5891 = vtanh.pop %v5872
    %v5893 = vrot.slane %v5696, 6
    %v5895 = vmul.f32 %v5884, %v5893
    %v5896 = vmul.f32 %v5878, %v5891
    %v5897 = vadd.f32 %v5895, %v5896
    %v5898 = vtanh.pop %v5897
    %v5899 = vmul.f32 %v5890, %v5898
    %v5900 = vld [vmem:[#allocation3 + $0x20] sm:$0xc]
    %v5901 = vld [vmem:[#allocation3 + $0x28] sm:$0xc]
    %v5902 = vld [vmem:[#allocation3 + $0x30] sm:$0xc]
    %v5903 = vld [vmem:[#allocation3 + $0x38] sm:$0xc]
    %v5904 = vld [vmem:[#allocation4 + $0x40] sm:$0xc]
    %v5905 = vld [vmem:[#allocation4 + $0x48] sm:$0xc]
    %v5906 = vld [vmem:[#allocation4 + $0x50] sm:$0xc]
    %v5907 = vld [vmem:[#allocation4 + $0x58] sm:$0xc]
    %v5908 = vadd.f32 %v5900, %v5904
    %v5909 = vadd.f32 %v5901, %v5905
    %v5910 = vadd.f32 %v5902, %v5906
    %v5911 = vadd.f32 %v5903, %v5907
    %v5913 = vsel %vm1514, %v5899, 0
    %5915 = vmatprep.subr.mxu0 %v4860
    %5916 = vmatpush1.msra.mxu0 %v4859
    %5917 = vmatprep.subr.mxu0 %v4864
    %5918 = vmatpush1.msra.mxu0 %v4863
    %5919 = vmatprep.subr.mxu0 %v4868
    %5920 = vmatpush1.msra.mxu0 %v4867
    %5921 = vmatprep.subr.mxu0 %v4872
    %5922 = vmatpush1.msra.mxu0 %v4871
    %5923 = vmatprep.subr.mxu0 %v4876
    %5924 = vmatpush1.msra.mxu0 %v4875
    %5925 = vmatprep.subr.mxu0 %v4880
    %5926 = vmatpush1.msra.mxu0 %v4879
    %5927 = vmatprep.subr.mxu0 %v4884
    %5928 = vmatpush1.msra.mxu0 %v4883
    %5929 = vmatprep.subr.mxu0 %v4888
    %5930 = vmatpush1.msra.mxu0 %v4887
    %5931 = vmatprep.subr.mxu0 0.0
    %5932 = vmatpush1.msra.mxu0 0.0
    %5933 = vmatprep.subr.mxu0 0.0
    %5934 = vmatpush1.msra.mxu0 0.0
    %5935 = vmatprep.subr.mxu0 0.0
    %5936 = vmatpush1.msra.mxu0 0.0
    %5937 = vmatprep.subr.mxu0 0.0
    %5938 = vmatpush1.msra.mxu0 0.0
    %5939 = vmatprep.subr.mxu0 0.0
    %5940 = vmatpush1.msra.mxu0 0.0
    %5941 = vmatprep.subr.mxu0 0.0
    %5942 = vmatpush1.msra.mxu0 0.0
    %5943 = vmatprep.subr.mxu0 0.0
    %5944 = vmatpush1.msra.mxu0 0.0
    %5945 = vmatprep.subr.mxu0 0.0
    %5946 = vmatpush1.msra.mxu0 0.0
    %5947 = vmatprep.subr.mxu0 0.0
    %5948 = vmatpush1.msra.mxu0 0.0
    %5949 = vmatprep.subr.mxu0 0.0
    %5950 = vmatpush1.msra.mxu0 0.0
    %5951 = vmatprep.subr.mxu0 0.0
    %5952 = vmatpush1.msra.mxu0 0.0
    %5953 = vmatprep.subr.mxu0 0.0
    %5954 = vmatpush1.msra.mxu0 0.0
    %5955 = vmatprep.subr.mxu0 0.0
    %5956 = vmatpush1.msra.mxu0 0.0
    %5957 = vmatprep.subr.mxu0 0.0
    %5958 = vmatpush1.msra.mxu0 0.0
    %5959 = vmatprep.subr.mxu0 0.0
    %5960 = vmatpush1.msra.mxu0 0.0
    %5961 = vmatprep.subr.mxu0 0.0
    %5962 = vmatpush1.msra.mxu0 0.0
    %5963 = vmatprep.subr.mxu0 0.0
    %5964 = vmatpush1.msra.mxu0 0.0
    %5965 = vmatprep.subr.mxu0 0.0
    %5966 = vmatpush1.msra.mxu0 0.0
    %5967 = vmatprep.subr.mxu0 0.0
    %5968 = vmatpush1.msra.mxu0 0.0
    %5969 = vmatprep.subr.mxu0 0.0
    %5970 = vmatpush1.msra.mxu0 0.0
    %5971 = vmatprep.subr.mxu0 0.0
    %5972 = vmatpush1.msra.mxu0 0.0
    %5973 = vmatprep.subr.mxu0 0.0
    %5974 = vmatpush1.msra.mxu0 0.0
    %5975 = vmatprep.subr.mxu0 0.0
    %5976 = vmatpush1.msra.mxu0 0.0
    %5977 = vmatprep.subr.mxu0 0.0
    %5978 = vmatpush1.msra.mxu0 0.0
    %5979 = vmatprep.mubr.f32.mxu0 0.0
    %5980 = vmatmul.mubr.f32.gmra.mrb[0].mxu0 %v5913
    %v5981 = vpop.f32.mrb[0].mxu0
    %v5982 = vadd.f32 0.0, %v5981
    %v5983 = vpop.f32.mrb[0].mxu0
    %v5984 = vadd.f32 0.0, %v5983
    %5985 = vdwg.mxu0
    %5986 = vmatprep.subr.mxu0 %v4862
    %5987 = vmatpush1.msra.mxu0 %v4861
    %5988 = vmatprep.subr.mxu0 %v4866
    %5989 = vmatpush1.msra.mxu0 %v4865
    %5990 = vmatprep.subr.mxu0 %v4870
    %5991 = vmatpush1.msra.mxu0 %v4869
    %5992 = vmatprep.subr.mxu0 %v4874
    %5993 = vmatpush1.msra.mxu0 %v4873
    %5994 = vmatprep.subr.mxu0 %v4878
    %5995 = vmatpush1.msra.mxu0 %v4877
    %5996 = vmatprep.subr.mxu0 %v4882
    %5997 = vmatpush1.msra.mxu0 %v4881
    %5998 = vmatprep.subr.mxu0 %v4886
    %5999 = vmatpush1.msra.mxu0 %v4885
    %6000 = vmatprep.subr.mxu0 %v4890
    %6001 = vmatpush1.msra.mxu0 %v4889
    %6002 = vmatprep.subr.mxu0 0.0
    %6003 = vmatpush1.msra.mxu0 0.0
    %6004 = vmatprep.subr.mxu0 0.0
    %6005 = vmatpush1.msra.mxu0 0.0
    %6006 = vmatprep.subr.mxu0 0.0
    %6007 = vmatpush1.msra.mxu0 0.0
    %6008 = vmatprep.subr.mxu0 0.0
    %6009 = vmatpush1.msra.mxu0 0.0
    %6010 = vmatprep.subr.mxu0 0.0
    %6011 = vmatpush1.msra.mxu0 0.0
    %6012 = vmatprep.subr.mxu0 0.0
    %6013 = vmatpush1.msra.mxu0 0.0
    %6014 = vmatprep.subr.mxu0 0.0
    %6015 = vmatpush1.msra.mxu0 0.0
    %6016 = vmatprep.subr.mxu0 0.0
    %6017 = vmatpush1.msra.mxu0 0.0
    %6018 = vmatprep.subr.mxu0 0.0
    %6019 = vmatpush1.msra.mxu0 0.0
    %6020 = vmatprep.subr.mxu0 0.0
    %6021 = vmatpush1.msra.mxu0 0.0
    %6022 = vmatprep.subr.mxu0 0.0
    %6023 = vmatpush1.msra.mxu0 0.0
    %6024 = vmatprep.subr.mxu0 0.0
    %6025 = vmatpush1.msra.mxu0 0.0
    %6026 = vmatprep.subr.mxu0 0.0
    %6027 = vmatpush1.msra.mxu0 0.0
    %6028 = vmatprep.subr.mxu0 0.0
    %6029 = vmatpush1.msra.mxu0 0.0
    %6030 = vmatprep.subr.mxu0 0.0
    %6031 = vmatpush1.msra.mxu0 0.0
    %6032 = vmatprep.subr.mxu0 0.0
    %6033 = vmatpush1.msra.mxu0 0.0
    %6034 = vmatprep.subr.mxu0 0.0
    %6035 = vmatpush1.msra.mxu0 0.0
    %6036 = vmatprep.subr.mxu0 0.0
    %6037 = vmatpush1.msra.mxu0 0.0
    %6038 = vmatprep.subr.mxu0 0.0
    %6039 = vmatpush1.msra.mxu0 0.0
    %6040 = vmatprep.subr.mxu0 0.0
    %6041 = vmatpush1.msra.mxu0 0.0
    %6042 = vmatprep.subr.mxu0 0.0
    %6043 = vmatpush1.msra.mxu0 0.0
    %6044 = vmatprep.subr.mxu0 0.0
    %6045 = vmatpush1.msra.mxu0 0.0
    %6046 = vmatprep.subr.mxu0 0.0
    %6047 = vmatpush1.msra.mxu0 0.0
    %6048 = vmatprep.subr.mxu0 0.0
    %6049 = vmatpush1.msra.mxu0 0.0
    %6050 = vmatprep.mubr.f32.mxu0 0.0
    %6051 = vmatmul.mubr.f32.gmra.mrb[0].mxu0 %v5913
    %v6052 = vpop.f32.mrb[0].mxu0
    %v6053 = vadd.f32 0.0, %v6052
    %v6054 = vpop.f32.mrb[0].mxu0
    %v6055 = vadd.f32 0.0, %v6054
    %6056 = vdwg.mxu0
    %v6061 = vrot.slane %v5982, 6
    %v6062 = vrot.slane %v5984, 6
    %v6063 = vrot.slane %v6053, 6
    %v6064 = vrot.slane %v6055, 6
    %v6069 = vadd.f32 %v5908, %v6061
    %v6070 = vadd.f32 %v5909, %v6062
    %v6071 = vadd.f32 %v5910, %v6063
    %v6072 = vadd.f32 %v5911, %v6064
    %v6073 = vxor.u32 %v6069, 2147483648
    %v6074 = vmul.f32 %v6073, 1.442695
    %v6075 = vpow.pop %v6074
    %v6076 = vadd.f32 %v6075, 1.0
    %v6077 = vrcp.pop %v6076
    %v6078 = vmul.f32 1.0, %v6077
    %v6079 = vxor.u32 %v6070, 2147483648
    %v6080 = vmul.f32 %v6079, 1.442695
    %v6081 = vpow.pop %v6080
    %v6082 = vadd.f32 %v6081, 1.0
    %v6083 = vrcp.pop %v6082
    %v6084 = vmul.f32 1.0, %v6083
    %v6085 = vxor.u32 %v6071, 2147483648
    %v6086 = vmul.f32 %v6085, 1.442695
    %v6087 = vpow.pop %v6086
    %v6088 = vadd.f32 %v6087, 1.0
    %v6089 = vrcp.pop %v6088
    %v6090 = vmul.f32 1.0, %v6089
    %v6091 = vtanh.pop %v6072
    %v6093 = vrot.slane %v5897, 6
    %v6095 = vmul.f32 %v6084, %v6093
    %v6096 = vmul.f32 %v6078, %v6091
    %v6097 = vadd.f32 %v6095, %v6096
    %v6098 = vtanh.pop %v6097
    %v6099 = vmul.f32 %v6090, %v6098
    %v6100 = vld [vmem:[#allocation3 + $0x20] sm:$0x30]
    %v6101 = vld [vmem:[#allocation3 + $0x28] sm:$0x30]
    %v6102 = vld [vmem:[#allocation3 + $0x30] sm:$0x30]
    %v6103 = vld [vmem:[#allocation3 + $0x38] sm:$0x30]
    %v6104 = vld [vmem:[#allocation4 + $0x40] sm:$0x3]
    %v6105 = vld [vmem:[#allocation4 + $0x48] sm:$0x3]
    %v6106 = vld [vmem:[#allocation4 + $0x50] sm:$0x3]
    %v6107 = vld [vmem:[#allocation4 + $0x58] sm:$0x3]
    %v6112 = vrot.slane %v6104, 4
    %v6113 = vrot.slane %v6105, 4
    %v6114 = vrot.slane %v6106, 4
    %v6115 = vrot.slane %v6107, 4
    %v6120 = vadd.f32 %v6100, %v6112
    %v6121 = vadd.f32 %v6101, %v6113
    %v6122 = vadd.f32 %v6102, %v6114
    %v6123 = vadd.f32 %v6103, %v6115
    %v6125 = vrot.slane %v6099, 2
    %v6126 = vsel %vm1514, %v6125, 0
    %6128 = vmatprep.subr.mxu0 %v4860
    %6129 = vmatpush1.msra.mxu0 %v4859
    %6130 = vmatprep.subr.mxu0 %v4864
    %6131 = vmatpush1.msra.mxu0 %v4863
    %6132 = vmatprep.subr.mxu0 %v4868
    %6133 = vmatpush1.msra.mxu0 %v4867
    %6134 = vmatprep.subr.mxu0 %v4872
    %6135 = vmatpush1.msra.mxu0 %v4871
    %6136 = vmatprep.subr.mxu0 %v4876
    %6137 = vmatpush1.msra.mxu0 %v4875
    %6138 = vmatprep.subr.mxu0 %v4880
    %6139 = vmatpush1.msra.mxu0 %v4879
    %6140 = vmatprep.subr.mxu0 %v4884
    %6141 = vmatpush1.msra.mxu0 %v4883
    %6142 = vmatprep.subr.mxu0 %v4888
    %6143 = vmatpush1.msra.mxu0 %v4887
    %6144 = vmatprep.subr.mxu0 0.0
    %6145 = vmatpush1.msra.mxu0 0.0
    %6146 = vmatprep.subr.mxu0 0.0
    %6147 = vmatpush1.msra.mxu0 0.0
    %6148 = vmatprep.subr.mxu0 0.0
    %6149 = vmatpush1.msra.mxu0 0.0
    %6150 = vmatprep.subr.mxu0 0.0
    %6151 = vmatpush1.msra.mxu0 0.0
    %6152 = vmatprep.subr.mxu0 0.0
    %6153 = vmatpush1.msra.mxu0 0.0
    %6154 = vmatprep.subr.mxu0 0.0
    %6155 = vmatpush1.msra.mxu0 0.0
    %6156 = vmatprep.subr.mxu0 0.0
    %6157 = vmatpush1.msra.mxu0 0.0
    %6158 = vmatprep.subr.mxu0 0.0
    %6159 = vmatpush1.msra.mxu0 0.0
    %6160 = vmatprep.subr.mxu0 0.0
    %6161 = vmatpush1.msra.mxu0 0.0
    %6162 = vmatprep.subr.mxu0 0.0
    %6163 = vmatpush1.msra.mxu0 0.0
    %6164 = vmatprep.subr.mxu0 0.0
    %6165 = vmatpush1.msra.mxu0 0.0
    %6166 = vmatprep.subr.mxu0 0.0
    %6167 = vmatpush1.msra.mxu0 0.0
    %6168 = vmatprep.subr.mxu0 0.0
    %6169 = vmatpush1.msra.mxu0 0.0
    %6170 = vmatprep.subr.mxu0 0.0
    %6171 = vmatpush1.msra.mxu0 0.0
    %6172 = vmatprep.subr.mxu0 0.0
    %6173 = vmatpush1.msra.mxu0 0.0
    %6174 = vmatprep.subr.mxu0 0.0
    %6175 = vmatpush1.msra.mxu0 0.0
    %6176 = vmatprep.subr.mxu0 0.0
    %6177 = vmatpush1.msra.mxu0 0.0
    %6178 = vmatprep.subr.mxu0 0.0
    %6179 = vmatpush1.msra.mxu0 0.0
    %6180 = vmatprep.subr.mxu0 0.0
    %6181 = vmatpush1.msra.mxu0 0.0
    %6182 = vmatprep.subr.mxu0 0.0
    %6183 = vmatpush1.msra.mxu0 0.0
    %6184 = vmatprep.subr.mxu0 0.0
    %6185 = vmatpush1.msra.mxu0 0.0
    %6186 = vmatprep.subr.mxu0 0.0
    %6187 = vmatpush1.msra.mxu0 0.0
    %6188 = vmatprep.subr.mxu0 0.0
    %6189 = vmatpush1.msra.mxu0 0.0
    %6190 = vmatprep.subr.mxu0 0.0
    %6191 = vmatpush1.msra.mxu0 0.0
    %6192 = vmatprep.mubr.f32.mxu0 0.0
    %6193 = vmatmul.mubr.f32.gmra.mrb[0].mxu0 %v6126
    %v6194 = vpop.f32.mrb[0].mxu0
    %v6195 = vadd.f32 0.0, %v6194
    %v6196 = vpop.f32.mrb[0].mxu0
    %v6197 = vadd.f32 0.0, %v6196
    %6198 = vdwg.mxu0
    %6199 = vmatprep.subr.mxu0 %v4862
    %6200 = vmatpush1.msra.mxu0 %v4861
    %6201 = vmatprep.subr.mxu0 %v4866
    %6202 = vmatpush1.msra.mxu0 %v4865
    %6203 = vmatprep.subr.mxu0 %v4870
    %6204 = vmatpush1.msra.mxu0 %v4869
    %6205 = vmatprep.subr.mxu0 %v4874
    %6206 = vmatpush1.msra.mxu0 %v4873
    %6207 = vmatprep.subr.mxu0 %v4878
    %6208 = vmatpush1.msra.mxu0 %v4877
    %6209 = vmatprep.subr.mxu0 %v4882
    %6210 = vmatpush1.msra.mxu0 %v4881
    %6211 = vmatprep.subr.mxu0 %v4886
    %6212 = vmatpush1.msra.mxu0 %v4885
    %6213 = vmatprep.subr.mxu0 %v4890
    %6214 = vmatpush1.msra.mxu0 %v4889
    %6215 = vmatprep.subr.mxu0 0.0
    %6216 = vmatpush1.msra.mxu0 0.0
    %6217 = vmatprep.subr.mxu0 0.0
    %6218 = vmatpush1.msra.mxu0 0.0
    %6219 = vmatprep.subr.mxu0 0.0
    %6220 = vmatpush1.msra.mxu0 0.0
    %6221 = vmatprep.subr.mxu0 0.0
    %6222 = vmatpush1.msra.mxu0 0.0
    %6223 = vmatprep.subr.mxu0 0.0
    %6224 = vmatpush1.msra.mxu0 0.0
    %6225 = vmatprep.subr.mxu0 0.0
    %6226 = vmatpush1.msra.mxu0 0.0
    %6227 = vmatprep.subr.mxu0 0.0
    %6228 = vmatpush1.msra.mxu0 0.0
    %6229 = vmatprep.subr.mxu0 0.0
    %6230 = vmatpush1.msra.mxu0 0.0
    %6231 = vmatprep.subr.mxu0 0.0
    %6232 = vmatpush1.msra.mxu0 0.0
    %6233 = vmatprep.subr.mxu0 0.0
    %6234 = vmatpush1.msra.mxu0 0.0
    %6235 = vmatprep.subr.mxu0 0.0
    %6236 = vmatpush1.msra.mxu0 0.0
    %6237 = vmatprep.subr.mxu0 0.0
    %6238 = vmatpush1.msra.mxu0 0.0
    %6239 = vmatprep.subr.mxu0 0.0
    %6240 = vmatpush1.msra.mxu0 0.0
    %6241 = vmatprep.subr.mxu0 0.0
    %6242 = vmatpush1.msra.mxu0 0.0
    %6243 = vmatprep.subr.mxu0 0.0
    %6244 = vmatpush1.msra.mxu0 0.0
    %6245 = vmatprep.subr.mxu0 0.0
    %6246 = vmatpush1.msra.mxu0 0.0
    %6247 = vmatprep.subr.mxu0 0.0
    %6248 = vmatpush1.msra.mxu0 0.0
    %6249 = vmatprep.subr.mxu0 0.0
    %6250 = vmatpush1.msra.mxu0 0.0
    %6251 = vmatprep.subr.mxu0 0.0
    %6252 = vmatpush1.msra.mxu0 0.0
    %6253 = vmatprep.subr.mxu0 0.0
    %6254 = vmatpush1.msra.mxu0 0.0
    %6255 = vmatprep.subr.mxu0 0.0
    %6256 = vmatpush1.msra.mxu0 0.0
    %6257 = vmatprep.subr.mxu0 0.0
    %6258 = vmatpush1.msra.mxu0 0.0
    %6259 = vmatprep.subr.mxu0 0.0
    %6260 = vmatpush1.msra.mxu0 0.0
    %6261 = vmatprep.subr.mxu0 0.0
    %6262 = vmatpush1.msra.mxu0 0.0
    %6263 = vmatprep.mubr.f32.mxu0 0.0
    %6264 = vmatmul.mubr.f32.gmra.mrb[0].mxu0 %v6126
    %v6265 = vpop.f32.mrb[0].mxu0
    %v6266 = vadd.f32 0.0, %v6265
    %v6267 = vpop.f32.mrb[0].mxu0
    %v6268 = vadd.f32 0.0, %v6267
    %6269 = vdwg.mxu0
    %v6274 = vrot.slane %v6195, 4
    %v6275 = vrot.slane %v6197, 4
    %v6276 = vrot.slane %v6266, 4
    %v6277 = vrot.slane %v6268, 4
    %v6282 = vadd.f32 %v6120, %v6274
    %v6283 = vadd.f32 %v6121, %v6275
    %v6284 = vadd.f32 %v6122, %v6276
    %v6285 = vadd.f32 %v6123, %v6277
    %v6286 = vxor.u32 %v6282, 2147483648
    %v6287 = vmul.f32 %v6286, 1.442695
    %v6288 = vpow.pop %v6287
    %v6289 = vadd.f32 %v6288, 1.0
    %v6290 = vrcp.pop %v6289
    %v6291 = vmul.f32 1.0, %v6290
    %v6292 = vxor.u32 %v6283, 2147483648
    %v6293 = vmul.f32 %v6292, 1.442695
    %v6294 = vpow.pop %v6293
    %v6295 = vadd.f32 %v6294, 1.0
    %v6296 = vrcp.pop %v6295
    %v6297 = vmul.f32 1.0, %v6296
    %v6298 = vxor.u32 %v6284, 2147483648
    %v6299 = vmul.f32 %v6298, 1.442695
    %v6300 = vpow.pop %v6299
    %v6301 = vadd.f32 %v6300, 1.0
    %v6302 = vrcp.pop %v6301
    %v6303 = vmul.f32 1.0, %v6302
    %v6304 = vtanh.pop %v6285
    %v6306 = vrot.slane %v6097, 6
    %v6308 = vmul.f32 %v6297, %v6306
    %v6309 = vmul.f32 %v6291, %v6304
    %v6310 = vadd.f32 %v6308, %v6309
    %v6311 = vtanh.pop %v6310
    %v6312 = vmul.f32 %v6303, %v6311
    %v6313 = vld [vmem:[#allocation3 + $0x20] sm:$0xc0]
    %v6314 = vld [vmem:[#allocation3 + $0x28] sm:$0xc0]
    %v6315 = vld [vmem:[#allocation3 + $0x30] sm:$0xc0]
    %v6316 = vld [vmem:[#allocation3 + $0x38] sm:$0xc0]
    %v6317 = vld [vmem:[#allocation4 + $0x20] sm:$0xc0]
    %v6318 = vld [vmem:[#allocation4 + $0x28] sm:$0xc0]
    %v6319 = vld [vmem:[#allocation4 + $0x30] sm:$0xc0]
    %v6320 = vld [vmem:[#allocation4 + $0x38] sm:$0xc0]
    %v6321 = vadd.f32 %v6313, %v6317
    %v6322 = vadd.f32 %v6314, %v6318
    %v6323 = vadd.f32 %v6315, %v6319
    %v6324 = vadd.f32 %v6316, %v6320
    %v6326 = vrot.slane %v6312, 4
    %v6327 = vsel %vm1514, %v6326, 0
    %6329 = vmatprep.subr.mxu0 %v4860
    %6330 = vmatpush1.msra.mxu0 %v4859
    %6331 = vmatprep.subr.mxu0 %v4864
    %6332 = vmatpush1.msra.mxu0 %v4863
    %6333 = vmatprep.subr.mxu0 %v4868
    %6334 = vmatpush1.msra.mxu0 %v4867
    %6335 = vmatprep.subr.mxu0 %v4872
    %6336 = vmatpush1.msra.mxu0 %v4871
    %6337 = vmatprep.subr.mxu0 %v4876
    %6338 = vmatpush1.msra.mxu0 %v4875
    %6339 = vmatprep.subr.mxu0 %v4880
    %6340 = vmatpush1.msra.mxu0 %v4879
    %6341 = vmatprep.subr.mxu0 %v4884
    %6342 = vmatpush1.msra.mxu0 %v4883
    %6343 = vmatprep.subr.mxu0 %v4888
    %6344 = vmatpush1.msra.mxu0 %v4887
    %6345 = vmatprep.subr.mxu0 0.0
    %6346 = vmatpush1.msra.mxu0 0.0
    %6347 = vmatprep.subr.mxu0 0.0
    %6348 = vmatpush1.msra.mxu0 0.0
    %6349 = vmatprep.subr.mxu0 0.0
    %6350 = vmatpush1.msra.mxu0 0.0
    %6351 = vmatprep.subr.mxu0 0.0
    %6352 = vmatpush1.msra.mxu0 0.0
    %6353 = vmatprep.subr.mxu0 0.0
    %6354 = vmatpush1.msra.mxu0 0.0
    %6355 = vmatprep.subr.mxu0 0.0
    %6356 = vmatpush1.msra.mxu0 0.0
    %6357 = vmatprep.subr.mxu0 0.0
    %6358 = vmatpush1.msra.mxu0 0.0
    %6359 = vmatprep.subr.mxu0 0.0
    %6360 = vmatpush1.msra.mxu0 0.0
    %6361 = vmatprep.subr.mxu0 0.0
    %6362 = vmatpush1.msra.mxu0 0.0
    %6363 = vmatprep.subr.mxu0 0.0
    %6364 = vmatpush1.msra.mxu0 0.0
    %6365 = vmatprep.subr.mxu0 0.0
    %6366 = vmatpush1.msra.mxu0 0.0
    %6367 = vmatprep.subr.mxu0 0.0
    %6368 = vmatpush1.msra.mxu0 0.0
    %6369 = vmatprep.subr.mxu0 0.0
    %6370 = vmatpush1.msra.mxu0 0.0
    %6371 = vmatprep.subr.mxu0 0.0
    %6372 = vmatpush1.msra.mxu0 0.0
    %6373 = vmatprep.subr.mxu0 0.0
    %6374 = vmatpush1.msra.mxu0 0.0
    %6375 = vmatprep.subr.mxu0 0.0
    %6376 = vmatpush1.msra.mxu0 0.0
    %6377 = vmatprep.subr.mxu0 0.0
    %6378 = vmatpush1.msra.mxu0 0.0
    %6379 = vmatprep.subr.mxu0 0.0
    %6380 = vmatpush1.msra.mxu0 0.0
    %6381 = vmatprep.subr.mxu0 0.0
    %6382 = vmatpush1.msra.mxu0 0.0
    %6383 = vmatprep.subr.mxu0 0.0
    %6384 = vmatpush1.msra.mxu0 0.0
    %6385 = vmatprep.subr.mxu0 0.0
    %6386 = vmatpush1.msra.mxu0 0.0
    %6387 = vmatprep.subr.mxu0 0.0
    %6388 = vmatpush1.msra.mxu0 0.0
    %6389 = vmatprep.subr.mxu0 0.0
    %6390 = vmatpush1.msra.mxu0 0.0
    %6391 = vmatprep.subr.mxu0 0.0
    %6392 = vmatpush1.msra.mxu0 0.0
    %6393 = vmatprep.mubr.f32.mxu0 0.0
    %6394 = vmatmul.mubr.f32.gmra.mrb[0].mxu0 %v6327
    %v6395 = vpop.f32.mrb[0].mxu0
    %v6396 = vadd.f32 0.0, %v6395
    %v6397 = vpop.f32.mrb[0].mxu0
    %v6398 = vadd.f32 0.0, %v6397
    %6399 = vdwg.mxu0
    %6400 = vmatprep.subr.mxu0 %v4862
    %6401 = vmatpush1.msra.mxu0 %v4861
    %6402 = vmatprep.subr.mxu0 %v4866
    %6403 = vmatpush1.msra.mxu0 %v4865
    %6404 = vmatprep.subr.mxu0 %v4870
    %6405 = vmatpush1.msra.mxu0 %v4869
    %6406 = vmatprep.subr.mxu0 %v4874
    %6407 = vmatpush1.msra.mxu0 %v4873
    %6408 = vmatprep.subr.mxu0 %v4878
    %6409 = vmatpush1.msra.mxu0 %v4877
    %6410 = vmatprep.subr.mxu0 %v4882
    %6411 = vmatpush1.msra.mxu0 %v4881
    %6412 = vmatprep.subr.mxu0 %v4886
    %6413 = vmatpush1.msra.mxu0 %v4885
    %6414 = vmatprep.subr.mxu0 %v4890
    %6415 = vmatpush1.msra.mxu0 %v4889
    %6416 = vmatprep.subr.mxu0 0.0
    %6417 = vmatpush1.msra.mxu0 0.0
    %6418 = vmatprep.subr.mxu0 0.0
    %6419 = vmatpush1.msra.mxu0 0.0
    %6420 = vmatprep.subr.mxu0 0.0
    %6421 = vmatpush1.msra.mxu0 0.0
    %6422 = vmatprep.subr.mxu0 0.0
    %6423 = vmatpush1.msra.mxu0 0.0
    %6424 = vmatprep.subr.mxu0 0.0
    %6425 = vmatpush1.msra.mxu0 0.0
    %6426 = vmatprep.subr.mxu0 0.0
    %6427 = vmatpush1.msra.mxu0 0.0
    %6428 = vmatprep.subr.mxu0 0.0
    %6429 = vmatpush1.msra.mxu0 0.0
    %6430 = vmatprep.subr.mxu0 0.0
    %6431 = vmatpush1.msra.mxu0 0.0
    %6432 = vmatprep.subr.mxu0 0.0
    %6433 = vmatpush1.msra.mxu0 0.0
    %6434 = vmatprep.subr.mxu0 0.0
    %6435 = vmatpush1.msra.mxu0 0.0
    %6436 = vmatprep.subr.mxu0 0.0
    %6437 = vmatpush1.msra.mxu0 0.0
    %6438 = vmatprep.subr.mxu0 0.0
    %6439 = vmatpush1.msra.mxu0 0.0
    %6440 = vmatprep.subr.mxu0 0.0
    %6441 = vmatpush1.msra.mxu0 0.0
    %6442 = vmatprep.subr.mxu0 0.0
    %6443 = vmatpush1.msra.mxu0 0.0
    %6444 = vmatprep.subr.mxu0 0.0
    %6445 = vmatpush1.msra.mxu0 0.0
    %6446 = vmatprep.subr.mxu0 0.0
    %6447 = vmatpush1.msra.mxu0 0.0
    %6448 = vmatprep.subr.mxu0 0.0
    %6449 = vmatpush1.msra.mxu0 0.0
    %6450 = vmatprep.subr.mxu0 0.0
    %6451 = vmatpush1.msra.mxu0 0.0
    %6452 = vmatprep.subr.mxu0 0.0
    %6453 = vmatpush1.msra.mxu0 0.0
    %6454 = vmatprep.subr.mxu0 0.0
    %6455 = vmatpush1.msra.mxu0 0.0
    %6456 = vmatprep.subr.mxu0 0.0
    %6457 = vmatpush1.msra.mxu0 0.0
    %6458 = vmatprep.subr.mxu0 0.0
    %6459 = vmatpush1.msra.mxu0 0.0
    %6460 = vmatprep.subr.mxu0 0.0
    %6461 = vmatpush1.msra.mxu0 0.0
    %6462 = vmatprep.subr.mxu0 0.0
    %6463 = vmatpush1.msra.mxu0 0.0
    %6464 = vmatprep.mubr.f32.mxu0 0.0
    %6465 = vmatmul.mubr.f32.gmra.mrb[0].mxu0 %v6327
    %v6466 = vpop.f32.mrb[0].mxu0
    %v6467 = vadd.f32 0.0, %v6466
    %v6468 = vpop.f32.mrb[0].mxu0
    %v6469 = vadd.f32 0.0, %v6468
    %6470 = vdwg.mxu0
    %v6475 = vrot.slane %v6396, 2
    %v6476 = vrot.slane %v6398, 2
    %v6477 = vrot.slane %v6467, 2
    %v6478 = vrot.slane %v6469, 2
    %v6483 = vadd.f32 %v6321, %v6475
    %v6484 = vadd.f32 %v6322, %v6476
    %v6485 = vadd.f32 %v6323, %v6477
    %v6486 = vadd.f32 %v6324, %v6478
    %v6487 = vxor.u32 %v6483, 2147483648
    %v6488 = vmul.f32 %v6487, 1.442695
    %v6489 = vpow.pop %v6488
    %v6490 = vadd.f32 %v6489, 1.0
    %v6491 = vrcp.pop %v6490
    %v6492 = vmul.f32 1.0, %v6491
    %v6493 = vxor.u32 %v6484, 2147483648
    %v6494 = vmul.f32 %v6493, 1.442695
    %v6495 = vpow.pop %v6494
    %v6496 = vadd.f32 %v6495, 1.0
    %v6497 = vrcp.pop %v6496
    %v6498 = vmul.f32 1.0, %v6497
    %v6499 = vxor.u32 %v6485, 2147483648
    %v6500 = vmul.f32 %v6499, 1.442695
    %v6501 = vpow.pop %v6500
    %v6502 = vadd.f32 %v6501, 1.0
    %v6503 = vrcp.pop %v6502
    %v6504 = vmul.f32 1.0, %v6503
    %v6505 = vtanh.pop %v6486
    %v6507 = vrot.slane %v6310, 6
    %v6509 = vmul.f32 %v6498, %v6507
    %v6510 = vmul.f32 %v6492, %v6505
    %v6511 = vadd.f32 %v6509, %v6510
    %v6512 = vtanh.pop %v6511
    %v6513 = vmul.f32 %v6504, %v6512
    %v6514 = vld [vmem:[#allocation3 + $0x40] sm:$0x3]
    %v6515 = vld [vmem:[#allocation3 + $0x48] sm:$0x3]
    %v6516 = vld [vmem:[#allocation3 + $0x50] sm:$0x3]
    %v6517 = vld [vmem:[#allocation3 + $0x58] sm:$0x3]
    %v6518 = vld [vmem:[#allocation4 + $0x20] sm:$0x30]
    %v6519 = vld [vmem:[#allocation4 + $0x28] sm:$0x30]
    %v6520 = vld [vmem:[#allocation4 + $0x30] sm:$0x30]
    %v6521 = vld [vmem:[#allocation4 + $0x38] sm:$0x30]
    %v6526 = vrot.slane %v6518, 4
    %v6527 = vrot.slane %v6519, 4
    %v6528 = vrot.slane %v6520, 4
    %v6529 = vrot.slane %v6521, 4
    %v6534 = vadd.f32 %v6514, %v6526
    %v6535 = vadd.f32 %v6515, %v6527
    %v6536 = vadd.f32 %v6516, %v6528
    %v6537 = vadd.f32 %v6517, %v6529
    %v6539 = vrot.slane %v6513, 6
    %v6540 = vsel %vm1514, %v6539, 0
    %6542 = vmatprep.subr.mxu0 %v4860
    %6543 = vmatpush1.msra.mxu0 %v4859
    %6544 = vmatprep.subr.mxu0 %v4864
    %6545 = vmatpush1.msra.mxu0 %v4863
    %6546 = vmatprep.subr.mxu0 %v4868
    %6547 = vmatpush1.msra.mxu0 %v4867
    %6548 = vmatprep.subr.mxu0 %v4872
    %6549 = vmatpush1.msra.mxu0 %v4871
    %6550 = vmatprep.subr.mxu0 %v4876
    %6551 = vmatpush1.msra.mxu0 %v4875
    %6552 = vmatprep.subr.mxu0 %v4880
    %6553 = vmatpush1.msra.mxu0 %v4879
    %6554 = vmatprep.subr.mxu0 %v4884
    %6555 = vmatpush1.msra.mxu0 %v4883
    %6556 = vmatprep.subr.mxu0 %v4888
    %6557 = vmatpush1.msra.mxu0 %v4887
    %6558 = vmatprep.subr.mxu0 0.0
    %6559 = vmatpush1.msra.mxu0 0.0
    %6560 = vmatprep.subr.mxu0 0.0
    %6561 = vmatpush1.msra.mxu0 0.0
    %6562 = vmatprep.subr.mxu0 0.0
    %6563 = vmatpush1.msra.mxu0 0.0
    %6564 = vmatprep.subr.mxu0 0.0
    %6565 = vmatpush1.msra.mxu0 0.0
    %6566 = vmatprep.subr.mxu0 0.0
    %6567 = vmatpush1.msra.mxu0 0.0
    %6568 = vmatprep.subr.mxu0 0.0
    %6569 = vmatpush1.msra.mxu0 0.0
    %6570 = vmatprep.subr.mxu0 0.0
    %6571 = vmatpush1.msra.mxu0 0.0
    %6572 = vmatprep.subr.mxu0 0.0
    %6573 = vmatpush1.msra.mxu0 0.0
    %6574 = vmatprep.subr.mxu0 0.0
    %6575 = vmatpush1.msra.mxu0 0.0
    %6576 = vmatprep.subr.mxu0 0.0
    %6577 = vmatpush1.msra.mxu0 0.0
    %6578 = vmatprep.subr.mxu0 0.0
    %6579 = vmatpush1.msra.mxu0 0.0
    %6580 = vmatprep.subr.mxu0 0.0
    %6581 = vmatpush1.msra.mxu0 0.0
    %6582 = vmatprep.subr.mxu0 0.0
    %6583 = vmatpush1.msra.mxu0 0.0
    %6584 = vmatprep.subr.mxu0 0.0
    %6585 = vmatpush1.msra.mxu0 0.0
    %6586 = vmatprep.subr.mxu0 0.0
    %6587 = vmatpush1.msra.mxu0 0.0
    %6588 = vmatprep.subr.mxu0 0.0
    %6589 = vmatpush1.msra.mxu0 0.0
    %6590 = vmatprep.subr.mxu0 0.0
    %6591 = vmatpush1.msra.mxu0 0.0
    %6592 = vmatprep.subr.mxu0 0.0
    %6593 = vmatpush1.msra.mxu0 0.0
    %6594 = vmatprep.subr.mxu0 0.0
    %6595 = vmatpush1.msra.mxu0 0.0
    %6596 = vmatprep.subr.mxu0 0.0
    %6597 = vmatpush1.msra.mxu0 0.0
    %6598 = vmatprep.subr.mxu0 0.0
    %6599 = vmatpush1.msra.mxu0 0.0
    %6600 = vmatprep.subr.mxu0 0.0
    %6601 = vmatpush1.msra.mxu0 0.0
    %6602 = vmatprep.subr.mxu0 0.0
    %6603 = vmatpush1.msra.mxu0 0.0
    %6604 = vmatprep.subr.mxu0 0.0
    %6605 = vmatpush1.msra.mxu0 0.0
    %6606 = vmatprep.mubr.f32.mxu0 0.0
    %6607 = vmatmul.mubr.f32.gmra.mrb[0].mxu0 %v6540
    %v6608 = vpop.f32.mrb[0].mxu0
    %v6609 = vadd.f32 0.0, %v6608
    %v6610 = vpop.f32.mrb[0].mxu0
    %v6611 = vadd.f32 0.0, %v6610
    %6612 = vdwg.mxu0
    %6613 = vmatprep.subr.mxu0 %v4862
    %6614 = vmatpush1.msra.mxu0 %v4861
    %6615 = vmatprep.subr.mxu0 %v4866
    %6616 = vmatpush1.msra.mxu0 %v4865
    %6617 = vmatprep.subr.mxu0 %v4870
    %6618 = vmatpush1.msra.mxu0 %v4869
    %6619 = vmatprep.subr.mxu0 %v4874
    %6620 = vmatpush1.msra.mxu0 %v4873
    %6621 = vmatprep.subr.mxu0 %v4878
    %6622 = vmatpush1.msra.mxu0 %v4877
    %6623 = vmatprep.subr.mxu0 %v4882
    %6624 = vmatpush1.msra.mxu0 %v4881
    %6625 = vmatprep.subr.mxu0 %v4886
    %6626 = vmatpush1.msra.mxu0 %v4885
    %6627 = vmatprep.subr.mxu0 %v4890
    %6628 = vmatpush1.msra.mxu0 %v4889
    %6629 = vmatprep.subr.mxu0 0.0
    %6630 = vmatpush1.msra.mxu0 0.0
    %6631 = vmatprep.subr.mxu0 0.0
    %6632 = vmatpush1.msra.mxu0 0.0
    %6633 = vmatprep.subr.mxu0 0.0
    %6634 = vmatpush1.msra.mxu0 0.0
    %6635 = vmatprep.subr.mxu0 0.0
    %6636 = vmatpush1.msra.mxu0 0.0
    %6637 = vmatprep.subr.mxu0 0.0
    %6638 = vmatpush1.msra.mxu0 0.0
    %6639 = vmatprep.subr.mxu0 0.0
    %6640 = vmatpush1.msra.mxu0 0.0
    %6641 = vmatprep.subr.mxu0 0.0
    %6642 = vmatpush1.msra.mxu0 0.0
    %6643 = vmatprep.subr.mxu0 0.0
    %6644 = vmatpush1.msra.mxu0 0.0
    %6645 = vmatprep.subr.mxu0 0.0
    %6646 = vmatpush1.msra.mxu0 0.0
    %6647 = vmatprep.subr.mxu0 0.0
    %6648 = vmatpush1.msra.mxu0 0.0
    %6649 = vmatprep.subr.mxu0 0.0
    %6650 = vmatpush1.msra.mxu0 0.0
    %6651 = vmatprep.subr.mxu0 0.0
    %6652 = vmatpush1.msra.mxu0 0.0
    %6653 = vmatprep.subr.mxu0 0.0
    %6654 = vmatpush1.msra.mxu0 0.0
    %6655 = vmatprep.subr.mxu0 0.0
    %6656 = vmatpush1.msra.mxu0 0.0
    %6657 = vmatprep.subr.mxu0 0.0
    %6658 = vmatpush1.msra.mxu0 0.0
    %6659 = vmatprep.subr.mxu0 0.0
    %6660 = vmatpush1.msra.mxu0 0.0
    %6661 = vmatprep.subr.mxu0 0.0
    %6662 = vmatpush1.msra.mxu0 0.0
    %6663 = vmatprep.subr.mxu0 0.0
    %6664 = vmatpush1.msra.mxu0 0.0
    %6665 = vmatprep.subr.mxu0 0.0
    %6666 = vmatpush1.msra.mxu0 0.0
    %6667 = vmatprep.subr.mxu0 0.0
    %6668 = vmatpush1.msra.mxu0 0.0
    %6669 = vmatprep.subr.mxu0 0.0
    %6670 = vmatpush1.msra.mxu0 0.0
    %6671 = vmatprep.subr.mxu0 0.0
    %6672 = vmatpush1.msra.mxu0 0.0
    %6673 = vmatprep.subr.mxu0 0.0
    %6674 = vmatpush1.msra.mxu0 0.0
    %6675 = vmatprep.subr.mxu0 0.0
    %6676 = vmatpush1.msra.mxu0 0.0
    %6677 = vmatprep.mubr.f32.mxu0 0.0
    %6678 = vmatmul.mubr.f32.gmra.mrb[0].mxu0 %v6540
    %v6679 = vpop.f32.mrb[0].mxu0
    %v6680 = vadd.f32 0.0, %v6679
    %v6681 = vpop.f32.mrb[0].mxu0
    %v6682 = vadd.f32 0.0, %v6681
    %6683 = vdwg.mxu0
    %v6684 = vadd.f32 %v6534, %v6609
    %v6685 = vadd.f32 %v6535, %v6611
    %v6686 = vadd.f32 %v6536, %v6680
    %v6687 = vadd.f32 %v6537, %v6682
    %v6688 = vxor.u32 %v6684, 2147483648
    %v6689 = vmul.f32 %v6688, 1.442695
    %v6690 = vpow.pop %v6689
    %v6691 = vadd.f32 %v6690, 1.0
    %v6692 = vrcp.pop %v6691
    %v6693 = vmul.f32 1.0, %v6692
    %v6694 = vxor.u32 %v6685, 2147483648
    %v6695 = vmul.f32 %v6694, 1.442695
    %v6696 = vpow.pop %v6695
    %v6697 = vadd.f32 %v6696, 1.0
    %v6698 = vrcp.pop %v6697
    %v6699 = vmul.f32 1.0, %v6698
    %v6700 = vxor.u32 %v6686, 2147483648
    %v6701 = vmul.f32 %v6700, 1.442695
    %v6702 = vpow.pop %v6701
    %v6703 = vadd.f32 %v6702, 1.0
    %v6704 = vrcp.pop %v6703
    %v6705 = vmul.f32 1.0, %v6704
    %v6706 = vtanh.pop %v6687
    %v6708 = vrot.slane %v6511, 6
    %v6710 = vmul.f32 %v6699, %v6708
    %v6711 = vmul.f32 %v6693, %v6706
    %v6712 = vadd.f32 %v6710, %v6711
    %v6713 = vtanh.pop %v6712
    %v6714 = vmul.f32 %v6705, %v6713
    %v6715 = vld [vmem:[#allocation3 + $0x40] sm:$0xc]
    %v6716 = vld [vmem:[#allocation3 + $0x48] sm:$0xc]
    %v6717 = vld [vmem:[#allocation3 + $0x50] sm:$0xc]
    %v6718 = vld [vmem:[#allocation3 + $0x58] sm:$0xc]
    %v6719 = vld [vmem:[#allocation4 + $0x20] sm:$0xc]
    %v6720 = vld [vmem:[#allocation4 + $0x28] sm:$0xc]
    %v6721 = vld [vmem:[#allocation4 + $0x30] sm:$0xc]
    %v6722 = vld [vmem:[#allocation4 + $0x38] sm:$0xc]
    %v6723 = vadd.f32 %v6715, %v6719
    %v6724 = vadd.f32 %v6716, %v6720
    %v6725 = vadd.f32 %v6717, %v6721
    %v6726 = vadd.f32 %v6718, %v6722
    %v6728 = vsel %vm1514, %v6714, 0
    %6730 = vmatprep.subr.mxu0 %v4860
    %6731 = vmatpush1.msra.mxu0 %v4859
    %6732 = vmatprep.subr.mxu0 %v4864
    %6733 = vmatpush1.msra.mxu0 %v4863
    %6734 = vmatprep.subr.mxu0 %v4868
    %6735 = vmatpush1.msra.mxu0 %v4867
    %6736 = vmatprep.subr.mxu0 %v4872
    %6737 = vmatpush1.msra.mxu0 %v4871
    %6738 = vmatprep.subr.mxu0 %v4876
    %6739 = vmatpush1.msra.mxu0 %v4875
    %6740 = vmatprep.subr.mxu0 %v4880
    %6741 = vmatpush1.msra.mxu0 %v4879
    %6742 = vmatprep.subr.mxu0 %v4884
    %6743 = vmatpush1.msra.mxu0 %v4883
    %6744 = vmatprep.subr.mxu0 %v4888
    %6745 = vmatpush1.msra.mxu0 %v4887
    %6746 = vmatprep.subr.mxu0 0.0
    %6747 = vmatpush1.msra.mxu0 0.0
    %6748 = vmatprep.subr.mxu0 0.0
    %6749 = vmatpush1.msra.mxu0 0.0
    %6750 = vmatprep.subr.mxu0 0.0
    %6751 = vmatpush1.msra.mxu0 0.0
    %6752 = vmatprep.subr.mxu0 0.0
    %6753 = vmatpush1.msra.mxu0 0.0
    %6754 = vmatprep.subr.mxu0 0.0
    %6755 = vmatpush1.msra.mxu0 0.0
    %6756 = vmatprep.subr.mxu0 0.0
    %6757 = vmatpush1.msra.mxu0 0.0
    %6758 = vmatprep.subr.mxu0 0.0
    %6759 = vmatpush1.msra.mxu0 0.0
    %6760 = vmatprep.subr.mxu0 0.0
    %6761 = vmatpush1.msra.mxu0 0.0
    %6762 = vmatprep.subr.mxu0 0.0
    %6763 = vmatpush1.msra.mxu0 0.0
    %6764 = vmatprep.subr.mxu0 0.0
    %6765 = vmatpush1.msra.mxu0 0.0
    %6766 = vmatprep.subr.mxu0 0.0
    %6767 = vmatpush1.msra.mxu0 0.0
    %6768 = vmatprep.subr.mxu0 0.0
    %6769 = vmatpush1.msra.mxu0 0.0
    %6770 = vmatprep.subr.mxu0 0.0
    %6771 = vmatpush1.msra.mxu0 0.0
    %6772 = vmatprep.subr.mxu0 0.0
    %6773 = vmatpush1.msra.mxu0 0.0
    %6774 = vmatprep.subr.mxu0 0.0
    %6775 = vmatpush1.msra.mxu0 0.0
    %6776 = vmatprep.subr.mxu0 0.0
    %6777 = vmatpush1.msra.mxu0 0.0
    %6778 = vmatprep.subr.mxu0 0.0
    %6779 = vmatpush1.msra.mxu0 0.0
    %6780 = vmatprep.subr.mxu0 0.0
    %6781 = vmatpush1.msra.mxu0 0.0
    %6782 = vmatprep.subr.mxu0 0.0
    %6783 = vmatpush1.msra.mxu0 0.0
    %6784 = vmatprep.subr.mxu0 0.0
    %6785 = vmatpush1.msra.mxu0 0.0
    %6786 = vmatprep.subr.mxu0 0.0
    %6787 = vmatpush1.msra.mxu0 0.0
    %6788 = vmatprep.subr.mxu0 0.0
    %6789 = vmatpush1.msra.mxu0 0.0
    %6790 = vmatprep.subr.mxu0 0.0
    %6791 = vmatpush1.msra.mxu0 0.0
    %6792 = vmatprep.subr.mxu0 0.0
    %6793 = vmatpush1.msra.mxu0 0.0
    %6794 = vmatprep.mubr.f32.mxu0 0.0
    %6795 = vmatmul.mubr.f32.gmra.mrb[0].mxu0 %v6728
    %v6796 = vpop.f32.mrb[0].mxu0
    %v6797 = vadd.f32 0.0, %v6796
    %v6798 = vpop.f32.mrb[0].mxu0
    %v6799 = vadd.f32 0.0, %v6798
    %6800 = vdwg.mxu0
    %6801 = vmatprep.subr.mxu0 %v4862
    %6802 = vmatpush1.msra.mxu0 %v4861
    %6803 = vmatprep.subr.mxu0 %v4866
    %6804 = vmatpush1.msra.mxu0 %v4865
    %6805 = vmatprep.subr.mxu0 %v4870
    %6806 = vmatpush1.msra.mxu0 %v4869
    %6807 = vmatprep.subr.mxu0 %v4874
    %6808 = vmatpush1.msra.mxu0 %v4873
    %6809 = vmatprep.subr.mxu0 %v4878
    %6810 = vmatpush1.msra.mxu0 %v4877
    %6811 = vmatprep.subr.mxu0 %v4882
    %6812 = vmatpush1.msra.mxu0 %v4881
    %6813 = vmatprep.subr.mxu0 %v4886
    %6814 = vmatpush1.msra.mxu0 %v4885
    %6815 = vmatprep.subr.mxu0 %v4890
    %6816 = vmatpush1.msra.mxu0 %v4889
    %6817 = vmatprep.subr.mxu0 0.0
    %6818 = vmatpush1.msra.mxu0 0.0
    %6819 = vmatprep.subr.mxu0 0.0
    %6820 = vmatpush1.msra.mxu0 0.0
    %6821 = vmatprep.subr.mxu0 0.0
    %6822 = vmatpush1.msra.mxu0 0.0
    %6823 = vmatprep.subr.mxu0 0.0
    %6824 = vmatpush1.msra.mxu0 0.0
    %6825 = vmatprep.subr.mxu0 0.0
    %6826 = vmatpush1.msra.mxu0 0.0
    %6827 = vmatprep.subr.mxu0 0.0
    %6828 = vmatpush1.msra.mxu0 0.0
    %6829 = vmatprep.subr.mxu0 0.0
    %6830 = vmatpush1.msra.mxu0 0.0
    %6831 = vmatprep.subr.mxu0 0.0
    %6832 = vmatpush1.msra.mxu0 0.0
    %6833 = vmatprep.subr.mxu0 0.0
    %6834 = vmatpush1.msra.mxu0 0.0
    %6835 = vmatprep.subr.mxu0 0.0
    %6836 = vmatpush1.msra.mxu0 0.0
    %6837 = vmatprep.subr.mxu0 0.0
    %6838 = vmatpush1.msra.mxu0 0.0
    %6839 = vmatprep.subr.mxu0 0.0
    %6840 = vmatpush1.msra.mxu0 0.0
    %6841 = vmatprep.subr.mxu0 0.0
    %6842 = vmatpush1.msra.mxu0 0.0
    %6843 = vmatprep.subr.mxu0 0.0
    %6844 = vmatpush1.msra.mxu0 0.0
    %6845 = vmatprep.subr.mxu0 0.0
    %6846 = vmatpush1.msra.mxu0 0.0
    %6847 = vmatprep.subr.mxu0 0.0
    %6848 = vmatpush1.msra.mxu0 0.0
    %6849 = vmatprep.subr.mxu0 0.0
    %6850 = vmatpush1.msra.mxu0 0.0
    %6851 = vmatprep.subr.mxu0 0.0
    %6852 = vmatpush1.msra.mxu0 0.0
    %6853 = vmatprep.subr.mxu0 0.0
    %6854 = vmatpush1.msra.mxu0 0.0
    %6855 = vmatprep.subr.mxu0 0.0
    %6856 = vmatpush1.msra.mxu0 0.0
    %6857 = vmatprep.subr.mxu0 0.0
    %6858 = vmatpush1.msra.mxu0 0.0
    %6859 = vmatprep.subr.mxu0 0.0
    %6860 = vmatpush1.msra.mxu0 0.0
    %6861 = vmatprep.subr.mxu0 0.0
    %6862 = vmatpush1.msra.mxu0 0.0
    %6863 = vmatprep.subr.mxu0 0.0
    %6864 = vmatpush1.msra.mxu0 0.0
    %6865 = vmatprep.mubr.f32.mxu0 0.0
    %6866 = vmatmul.mubr.f32.gmra.mrb[0].mxu0 %v6728
    %v6867 = vpop.f32.mrb[0].mxu0
    %v6868 = vadd.f32 0.0, %v6867
    %v6869 = vpop.f32.mrb[0].mxu0
    %v6870 = vadd.f32 0.0, %v6869
    %6871 = vdwg.mxu0
    %v6876 = vrot.slane %v6797, 6
    %v6877 = vrot.slane %v6799, 6
    %v6878 = vrot.slane %v6868, 6
    %v6879 = vrot.slane %v6870, 6
    %v6884 = vadd.f32 %v6723, %v6876
    %v6885 = vadd.f32 %v6724, %v6877
    %v6886 = vadd.f32 %v6725, %v6878
    %v6887 = vadd.f32 %v6726, %v6879
    %v6888 = vxor.u32 %v6884, 2147483648
    %v6889 = vmul.f32 %v6888, 1.442695
    %v6890 = vpow.pop %v6889
    %v6891 = vadd.f32 %v6890, 1.0
    %v6892 = vrcp.pop %v6891
    %v6893 = vmul.f32 1.0, %v6892
    %v6894 = vxor.u32 %v6885, 2147483648
    %v6895 = vmul.f32 %v6894, 1.442695
    %v6896 = vpow.pop %v6895
    %v6897 = vadd.f32 %v6896, 1.0
    %v6898 = vrcp.pop %v6897
    %v6899 = vmul.f32 1.0, %v6898
    %v6900 = vxor.u32 %v6886, 2147483648
    %v6901 = vmul.f32 %v6900, 1.442695
    %v6902 = vpow.pop %v6901
    %v6903 = vadd.f32 %v6902, 1.0
    %v6904 = vrcp.pop %v6903
    %v6905 = vmul.f32 1.0, %v6904
    %v6906 = vtanh.pop %v6887
    %v6908 = vrot.slane %v6712, 6
    %v6910 = vmul.f32 %v6899, %v6908
    %v6911 = vmul.f32 %v6893, %v6906
    %v6912 = vadd.f32 %v6910, %v6911
    %v6913 = vtanh.pop %v6912
    %v6914 = vmul.f32 %v6905, %v6913
    %v6915 = vld [vmem:[#allocation3 + $0x40] sm:$0x30]
    %v6916 = vld [vmem:[#allocation3 + $0x48] sm:$0x30]
    %v6917 = vld [vmem:[#allocation3 + $0x50] sm:$0x30]
    %v6918 = vld [vmem:[#allocation3 + $0x58] sm:$0x30]
    %v6919 = vld [vmem:[#allocation4 + $0x20] sm:$0x3]
    %v6920 = vld [vmem:[#allocation4 + $0x28] sm:$0x3]
    %v6921 = vld [vmem:[#allocation4 + $0x30] sm:$0x3]
    %v6922 = vld [vmem:[#allocation4 + $0x38] sm:$0x3]
    %v6927 = vrot.slane %v6919, 4
    %v6928 = vrot.slane %v6920, 4
    %v6929 = vrot.slane %v6921, 4
    %v6930 = vrot.slane %v6922, 4
    %v6935 = vadd.f32 %v6915, %v6927
    %v6936 = vadd.f32 %v6916, %v6928
    %v6937 = vadd.f32 %v6917, %v6929
    %v6938 = vadd.f32 %v6918, %v6930
    %v6940 = vrot.slane %v6914, 2
    %v6941 = vsel %vm1514, %v6940, 0
    %6943 = vmatprep.subr.mxu0 %v4860
    %6944 = vmatpush1.msra.mxu0 %v4859
    %6945 = vmatprep.subr.mxu0 %v4864
    %6946 = vmatpush1.msra.mxu0 %v4863
    %6947 = vmatprep.subr.mxu0 %v4868
    %6948 = vmatpush1.msra.mxu0 %v4867
    %6949 = vmatprep.subr.mxu0 %v4872
    %6950 = vmatpush1.msra.mxu0 %v4871
    %6951 = vmatprep.subr.mxu0 %v4876
    %6952 = vmatpush1.msra.mxu0 %v4875
    %6953 = vmatprep.subr.mxu0 %v4880
    %6954 = vmatpush1.msra.mxu0 %v4879
    %6955 = vmatprep.subr.mxu0 %v4884
    %6956 = vmatpush1.msra.mxu0 %v4883
    %6957 = vmatprep.subr.mxu0 %v4888
    %6958 = vmatpush1.msra.mxu0 %v4887
    %6959 = vmatprep.subr.mxu0 0.0
    %6960 = vmatpush1.msra.mxu0 0.0
    %6961 = vmatprep.subr.mxu0 0.0
    %6962 = vmatpush1.msra.mxu0 0.0
    %6963 = vmatprep.subr.mxu0 0.0
    %6964 = vmatpush1.msra.mxu0 0.0
    %6965 = vmatprep.subr.mxu0 0.0
    %6966 = vmatpush1.msra.mxu0 0.0
    %6967 = vmatprep.subr.mxu0 0.0
    %6968 = vmatpush1.msra.mxu0 0.0
    %6969 = vmatprep.subr.mxu0 0.0
    %6970 = vmatpush1.msra.mxu0 0.0
    %6971 = vmatprep.subr.mxu0 0.0
    %6972 = vmatpush1.msra.mxu0 0.0
    %6973 = vmatprep.subr.mxu0 0.0
    %6974 = vmatpush1.msra.mxu0 0.0
    %6975 = vmatprep.subr.mxu0 0.0
    %6976 = vmatpush1.msra.mxu0 0.0
    %6977 = vmatprep.subr.mxu0 0.0
    %6978 = vmatpush1.msra.mxu0 0.0
    %6979 = vmatprep.subr.mxu0 0.0
    %6980 = vmatpush1.msra.mxu0 0.0
    %6981 = vmatprep.subr.mxu0 0.0
    %6982 = vmatpush1.msra.mxu0 0.0
    %6983 = vmatprep.subr.mxu0 0.0
    %6984 = vmatpush1.msra.mxu0 0.0
    %6985 = vmatprep.subr.mxu0 0.0
    %6986 = vmatpush1.msra.mxu0 0.0
    %6987 = vmatprep.subr.mxu0 0.0
    %6988 = vmatpush1.msra.mxu0 0.0
    %6989 = vmatprep.subr.mxu0 0.0
    %6990 = vmatpush1.msra.mxu0 0.0
    %6991 = vmatprep.subr.mxu0 0.0
    %6992 = vmatpush1.msra.mxu0 0.0
    %6993 = vmatprep.subr.mxu0 0.0
    %6994 = vmatpush1.msra.mxu0 0.0
    %6995 = vmatprep.subr.mxu0 0.0
    %6996 = vmatpush1.msra.mxu0 0.0
    %6997 = vmatprep.subr.mxu0 0.0
    %6998 = vmatpush1.msra.mxu0 0.0
    %6999 = vmatprep.subr.mxu0 0.0
    %7000 = vmatpush1.msra.mxu0 0.0
    %7001 = vmatprep.subr.mxu0 0.0
    %7002 = vmatpush1.msra.mxu0 0.0
    %7003 = vmatprep.subr.mxu0 0.0
    %7004 = vmatpush1.msra.mxu0 0.0
    %7005 = vmatprep.subr.mxu0 0.0
    %7006 = vmatpush1.msra.mxu0 0.0
    %7007 = vmatprep.mubr.f32.mxu0 0.0
    %7008 = vmatmul.mubr.f32.gmra.mrb[0].mxu0 %v6941
    %v7009 = vpop.f32.mrb[0].mxu0
    %v7010 = vadd.f32 0.0, %v7009
    %v7011 = vpop.f32.mrb[0].mxu0
    %v7012 = vadd.f32 0.0, %v7011
    %7013 = vdwg.mxu0
    %7014 = vmatprep.subr.mxu0 %v4862
    %7015 = vmatpush1.msra.mxu0 %v4861
    %7016 = vmatprep.subr.mxu0 %v4866
    %7017 = vmatpush1.msra.mxu0 %v4865
    %7018 = vmatprep.subr.mxu0 %v4870
    %7019 = vmatpush1.msra.mxu0 %v4869
    %7020 = vmatprep.subr.mxu0 %v4874
    %7021 = vmatpush1.msra.mxu0 %v4873
    %7022 = vmatprep.subr.mxu0 %v4878
    %7023 = vmatpush1.msra.mxu0 %v4877
    %7024 = vmatprep.subr.mxu0 %v4882
    %7025 = vmatpush1.msra.mxu0 %v4881
    %7026 = vmatprep.subr.mxu0 %v4886
    %7027 = vmatpush1.msra.mxu0 %v4885
    %7028 = vmatprep.subr.mxu0 %v4890
    %7029 = vmatpush1.msra.mxu0 %v4889
    %7030 = vmatprep.subr.mxu0 0.0
    %7031 = vmatpush1.msra.mxu0 0.0
    %7032 = vmatprep.subr.mxu0 0.0
    %7033 = vmatpush1.msra.mxu0 0.0
    %7034 = vmatprep.subr.mxu0 0.0
    %7035 = vmatpush1.msra.mxu0 0.0
    %7036 = vmatprep.subr.mxu0 0.0
    %7037 = vmatpush1.msra.mxu0 0.0
    %7038 = vmatprep.subr.mxu0 0.0
    %7039 = vmatpush1.msra.mxu0 0.0
    %7040 = vmatprep.subr.mxu0 0.0
    %7041 = vmatpush1.msra.mxu0 0.0
    %7042 = vmatprep.subr.mxu0 0.0
    %7043 = vmatpush1.msra.mxu0 0.0
    %7044 = vmatprep.subr.mxu0 0.0
    %7045 = vmatpush1.msra.mxu0 0.0
    %7046 = vmatprep.subr.mxu0 0.0
    %7047 = vmatpush1.msra.mxu0 0.0
    %7048 = vmatprep.subr.mxu0 0.0
    %7049 = vmatpush1.msra.mxu0 0.0
    %7050 = vmatprep.subr.mxu0 0.0
    %7051 = vmatpush1.msra.mxu0 0.0
    %7052 = vmatprep.subr.mxu0 0.0
    %7053 = vmatpush1.msra.mxu0 0.0
    %7054 = vmatprep.subr.mxu0 0.0
    %7055 = vmatpush1.msra.mxu0 0.0
    %7056 = vmatprep.subr.mxu0 0.0
    %7057 = vmatpush1.msra.mxu0 0.0
    %7058 = vmatprep.subr.mxu0 0.0
    %7059 = vmatpush1.msra.mxu0 0.0
    %7060 = vmatprep.subr.mxu0 0.0
    %7061 = vmatpush1.msra.mxu0 0.0
    %7062 = vmatprep.subr.mxu0 0.0
    %7063 = vmatpush1.msra.mxu0 0.0
    %7064 = vmatprep.subr.mxu0 0.0
    %7065 = vmatpush1.msra.mxu0 0.0
    %7066 = vmatprep.subr.mxu0 0.0
    %7067 = vmatpush1.msra.mxu0 0.0
    %7068 = vmatprep.subr.mxu0 0.0
    %7069 = vmatpush1.msra.mxu0 0.0
    %7070 = vmatprep.subr.mxu0 0.0
    %7071 = vmatpush1.msra.mxu0 0.0
    %7072 = vmatprep.subr.mxu0 0.0
    %7073 = vmatpush1.msra.mxu0 0.0
    %7074 = vmatprep.subr.mxu0 0.0
    %7075 = vmatpush1.msra.mxu0 0.0
    %7076 = vmatprep.subr.mxu0 0.0
    %7077 = vmatpush1.msra.mxu0 0.0
    %7078 = vmatprep.mubr.f32.mxu0 0.0
    %7079 = vmatmul.mubr.f32.gmra.mrb[0].mxu0 %v6941
    %v7080 = vpop.f32.mrb[0].mxu0
    %v7081 = vadd.f32 0.0, %v7080
    %v7082 = vpop.f32.mrb[0].mxu0
    %v7083 = vadd.f32 0.0, %v7082
    %7084 = vdwg.mxu0
    %v7089 = vrot.slane %v7010, 4
    %v7090 = vrot.slane %v7012, 4
    %v7091 = vrot.slane %v7081, 4
    %v7092 = vrot.slane %v7083, 4
    %v7097 = vadd.f32 %v6935, %v7089
    %v7098 = vadd.f32 %v6936, %v7090
    %v7099 = vadd.f32 %v6937, %v7091
    %v7100 = vadd.f32 %v6938, %v7092
    %v7101 = vxor.u32 %v7097, 2147483648
    %v7102 = vmul.f32 %v7101, 1.442695
    %v7103 = vpow.pop %v7102
    %v7104 = vadd.f32 %v7103, 1.0
    %v7105 = vrcp.pop %v7104
    %v7106 = vmul.f32 1.0, %v7105
    %v7107 = vxor.u32 %v7098, 2147483648
    %v7108 = vmul.f32 %v7107, 1.442695
    %v7109 = vpow.pop %v7108
    %v7110 = vadd.f32 %v7109, 1.0
    %v7111 = vrcp.pop %v7110
    %v7112 = vmul.f32 1.0, %v7111
    %v7113 = vxor.u32 %v7099, 2147483648
    %v7114 = vmul.f32 %v7113, 1.442695
    %v7115 = vpow.pop %v7114
    %v7116 = vadd.f32 %v7115, 1.0
    %v7117 = vrcp.pop %v7116
    %v7118 = vmul.f32 1.0, %v7117
    %v7119 = vtanh.pop %v7100
    %v7121 = vrot.slane %v6912, 6
    %v7123 = vmul.f32 %v7112, %v7121
    %v7124 = vmul.f32 %v7106, %v7119
    %v7125 = vadd.f32 %v7123, %v7124
    %v7126 = vtanh.pop %v7125
    %v7127 = vmul.f32 %v7118, %v7126
    %v7128 = vld [vmem:[#allocation3 + $0x40] sm:$0xc0]
    %v7129 = vld [vmem:[#allocation3 + $0x48] sm:$0xc0]
    %v7130 = vld [vmem:[#allocation3 + $0x50] sm:$0xc0]
    %v7131 = vld [vmem:[#allocation3 + $0x58] sm:$0xc0]
    %v7132 = vld [vmem:[#allocation4] sm:$0xc0]
    %v7133 = vld [vmem:[#allocation4 + $0x8] sm:$0xc0]
    %v7134 = vld [vmem:[#allocation4 + $0x10] sm:$0xc0]
    %v7135 = vld [vmem:[#allocation4 + $0x18] sm:$0xc0]
    %v7136 = vadd.f32 %v7128, %v7132
    %v7137 = vadd.f32 %v7129, %v7133
    %v7138 = vadd.f32 %v7130, %v7134
    %v7139 = vadd.f32 %v7131, %v7135
    %v7141 = vrot.slane %v7127, 4
    %v7142 = vsel %vm1514, %v7141, 0
    %7144 = vmatprep.subr.mxu0 %v4860
    %7145 = vmatpush1.msra.mxu0 %v4859
    %7146 = vmatprep.subr.mxu0 %v4864
    %7147 = vmatpush1.msra.mxu0 %v4863
    %7148 = vmatprep.subr.mxu0 %v4868
    %7149 = vmatpush1.msra.mxu0 %v4867
    %7150 = vmatprep.subr.mxu0 %v4872
    %7151 = vmatpush1.msra.mxu0 %v4871
    %7152 = vmatprep.subr.mxu0 %v4876
    %7153 = vmatpush1.msra.mxu0 %v4875
    %7154 = vmatprep.subr.mxu0 %v4880
    %7155 = vmatpush1.msra.mxu0 %v4879
    %7156 = vmatprep.subr.mxu0 %v4884
    %7157 = vmatpush1.msra.mxu0 %v4883
    %7158 = vmatprep.subr.mxu0 %v4888
    %7159 = vmatpush1.msra.mxu0 %v4887
    %7160 = vmatprep.subr.mxu0 0.0
    %7161 = vmatpush1.msra.mxu0 0.0
    %7162 = vmatprep.subr.mxu0 0.0
    %7163 = vmatpush1.msra.mxu0 0.0
    %7164 = vmatprep.subr.mxu0 0.0
    %7165 = vmatpush1.msra.mxu0 0.0
    %7166 = vmatprep.subr.mxu0 0.0
    %7167 = vmatpush1.msra.mxu0 0.0
    %7168 = vmatprep.subr.mxu0 0.0
    %7169 = vmatpush1.msra.mxu0 0.0
    %7170 = vmatprep.subr.mxu0 0.0
    %7171 = vmatpush1.msra.mxu0 0.0
    %7172 = vmatprep.subr.mxu0 0.0
    %7173 = vmatpush1.msra.mxu0 0.0
    %7174 = vmatprep.subr.mxu0 0.0
    %7175 = vmatpush1.msra.mxu0 0.0
    %7176 = vmatprep.subr.mxu0 0.0
    %7177 = vmatpush1.msra.mxu0 0.0
    %7178 = vmatprep.subr.mxu0 0.0
    %7179 = vmatpush1.msra.mxu0 0.0
    %7180 = vmatprep.subr.mxu0 0.0
    %7181 = vmatpush1.msra.mxu0 0.0
    %7182 = vmatprep.subr.mxu0 0.0
    %7183 = vmatpush1.msra.mxu0 0.0
    %7184 = vmatprep.subr.mxu0 0.0
    %7185 = vmatpush1.msra.mxu0 0.0
    %7186 = vmatprep.subr.mxu0 0.0
    %7187 = vmatpush1.msra.mxu0 0.0
    %7188 = vmatprep.subr.mxu0 0.0
    %7189 = vmatpush1.msra.mxu0 0.0
    %7190 = vmatprep.subr.mxu0 0.0
    %7191 = vmatpush1.msra.mxu0 0.0
    %7192 = vmatprep.subr.mxu0 0.0
    %7193 = vmatpush1.msra.mxu0 0.0
    %7194 = vmatprep.subr.mxu0 0.0
    %7195 = vmatpush1.msra.mxu0 0.0
    %7196 = vmatprep.subr.mxu0 0.0
    %7197 = vmatpush1.msra.mxu0 0.0
    %7198 = vmatprep.subr.mxu0 0.0
    %7199 = vmatpush1.msra.mxu0 0.0
    %7200 = vmatprep.subr.mxu0 0.0
    %7201 = vmatpush1.msra.mxu0 0.0
    %7202 = vmatprep.subr.mxu0 0.0
    %7203 = vmatpush1.msra.mxu0 0.0
    %7204 = vmatprep.subr.mxu0 0.0
    %7205 = vmatpush1.msra.mxu0 0.0
    %7206 = vmatprep.subr.mxu0 0.0
    %7207 = vmatpush1.msra.mxu0 0.0
    %7208 = vmatprep.mubr.f32.mxu0 0.0
    %7209 = vmatmul.mubr.f32.gmra.mrb[0].mxu0 %v7142
    %v7210 = vpop.f32.mrb[0].mxu0
    %v7211 = vadd.f32 0.0, %v7210
    %v7212 = vpop.f32.mrb[0].mxu0
    %v7213 = vadd.f32 0.0, %v7212
    %7214 = vdwg.mxu0
    %7215 = vmatprep.subr.mxu0 %v4862
    %7216 = vmatpush1.msra.mxu0 %v4861
    %7217 = vmatprep.subr.mxu0 %v4866
    %7218 = vmatpush1.msra.mxu0 %v4865
    %7219 = vmatprep.subr.mxu0 %v4870
    %7220 = vmatpush1.msra.mxu0 %v4869
    %7221 = vmatprep.subr.mxu0 %v4874
    %7222 = vmatpush1.msra.mxu0 %v4873
    %7223 = vmatprep.subr.mxu0 %v4878
    %7224 = vmatpush1.msra.mxu0 %v4877
    %7225 = vmatprep.subr.mxu0 %v4882
    %7226 = vmatpush1.msra.mxu0 %v4881
    %7227 = vmatprep.subr.mxu0 %v4886
    %7228 = vmatpush1.msra.mxu0 %v4885
    %7229 = vmatprep.subr.mxu0 %v4890
    %7230 = vmatpush1.msra.mxu0 %v4889
    %7231 = vmatprep.subr.mxu0 0.0
    %7232 = vmatpush1.msra.mxu0 0.0
    %7233 = vmatprep.subr.mxu0 0.0
    %7234 = vmatpush1.msra.mxu0 0.0
    %7235 = vmatprep.subr.mxu0 0.0
    %7236 = vmatpush1.msra.mxu0 0.0
    %7237 = vmatprep.subr.mxu0 0.0
    %7238 = vmatpush1.msra.mxu0 0.0
    %7239 = vmatprep.subr.mxu0 0.0
    %7240 = vmatpush1.msra.mxu0 0.0
    %7241 = vmatprep.subr.mxu0 0.0
    %7242 = vmatpush1.msra.mxu0 0.0
    %7243 = vmatprep.subr.mxu0 0.0
    %7244 = vmatpush1.msra.mxu0 0.0
    %7245 = vmatprep.subr.mxu0 0.0
    %7246 = vmatpush1.msra.mxu0 0.0
    %7247 = vmatprep.subr.mxu0 0.0
    %7248 = vmatpush1.msra.mxu0 0.0
    %7249 = vmatprep.subr.mxu0 0.0
    %7250 = vmatpush1.msra.mxu0 0.0
    %7251 = vmatprep.subr.mxu0 0.0
    %7252 = vmatpush1.msra.mxu0 0.0
    %7253 = vmatprep.subr.mxu0 0.0
    %7254 = vmatpush1.msra.mxu0 0.0
    %7255 = vmatprep.subr.mxu0 0.0
    %7256 = vmatpush1.msra.mxu0 0.0
    %7257 = vmatprep.subr.mxu0 0.0
    %7258 = vmatpush1.msra.mxu0 0.0
    %7259 = vmatprep.subr.mxu0 0.0
    %7260 = vmatpush1.msra.mxu0 0.0
    %7261 = vmatprep.subr.mxu0 0.0
    %7262 = vmatpush1.msra.mxu0 0.0
    %7263 = vmatprep.subr.mxu0 0.0
    %7264 = vmatpush1.msra.mxu0 0.0
    %7265 = vmatprep.subr.mxu0 0.0
    %7266 = vmatpush1.msra.mxu0 0.0
    %7267 = vmatprep.subr.mxu0 0.0
    %7268 = vmatpush1.msra.mxu0 0.0
    %7269 = vmatprep.subr.mxu0 0.0
    %7270 = vmatpush1.msra.mxu0 0.0
    %7271 = vmatprep.subr.mxu0 0.0
    %7272 = vmatpush1.msra.mxu0 0.0
    %7273 = vmatprep.subr.mxu0 0.0
    %7274 = vmatpush1.msra.mxu0 0.0
    %7275 = vmatprep.subr.mxu0 0.0
    %7276 = vmatpush1.msra.mxu0 0.0
    %7277 = vmatprep.subr.mxu0 0.0
    %7278 = vmatpush1.msra.mxu0 0.0
    %7279 = vmatprep.mubr.f32.mxu0 0.0
    %7280 = vmatmul.mubr.f32.gmra.mrb[0].mxu0 %v7142
    %v7281 = vpop.f32.mrb[0].mxu0
    %v7282 = vadd.f32 0.0, %v7281
    %v7283 = vpop.f32.mrb[0].mxu0
    %v7284 = vadd.f32 0.0, %v7283
    %7285 = vdwg.mxu0
    %v7290 = vrot.slane %v7211, 2
    %v7291 = vrot.slane %v7213, 2
    %v7292 = vrot.slane %v7282, 2
    %v7293 = vrot.slane %v7284, 2
    %v7298 = vadd.f32 %v7136, %v7290
    %v7299 = vadd.f32 %v7137, %v7291
    %v7300 = vadd.f32 %v7138, %v7292
    %v7301 = vadd.f32 %v7139, %v7293
    %v7302 = vxor.u32 %v7298, 2147483648
    %v7303 = vmul.f32 %v7302, 1.442695
    %v7304 = vpow.pop %v7303
    %v7305 = vadd.f32 %v7304, 1.0
    %v7306 = vrcp.pop %v7305
    %v7307 = vmul.f32 1.0, %v7306
    %v7308 = vxor.u32 %v7299, 2147483648
    %v7309 = vmul.f32 %v7308, 1.442695
    %v7310 = vpow.pop %v7309
    %v7311 = vadd.f32 %v7310, 1.0
    %v7312 = vrcp.pop %v7311
    %v7313 = vmul.f32 1.0, %v7312
    %v7314 = vxor.u32 %v7300, 2147483648
    %v7315 = vmul.f32 %v7314, 1.442695
    %v7316 = vpow.pop %v7315
    %v7317 = vadd.f32 %v7316, 1.0
    %v7318 = vrcp.pop %v7317
    %v7319 = vmul.f32 1.0, %v7318
    %v7320 = vtanh.pop %v7301
    %v7322 = vrot.slane %v7125, 6
    %v7324 = vmul.f32 %v7313, %v7322
    %v7325 = vmul.f32 %v7307, %v7320
    %v7326 = vadd.f32 %v7324, %v7325
    %v7327 = vtanh.pop %v7326
    %v7328 = vmul.f32 %v7319, %v7327
    %v7329 = vld [vmem:[#allocation3 + $0x60] sm:$0x3]
    %v7330 = vld [vmem:[#allocation3 + $0x68] sm:$0x3]
    %v7331 = vld [vmem:[#allocation3 + $0x70] sm:$0x3]
    %v7332 = vld [vmem:[#allocation3 + $0x78] sm:$0x3]
    %v7333 = vld [vmem:[#allocation4] sm:$0x30]
    %v7334 = vld [vmem:[#allocation4 + $0x8] sm:$0x30]
    %v7335 = vld [vmem:[#allocation4 + $0x10] sm:$0x30]
    %v7336 = vld [vmem:[#allocation4 + $0x18] sm:$0x30]
    %v7341 = vrot.slane %v7333, 4
    %v7342 = vrot.slane %v7334, 4
    %v7343 = vrot.slane %v7335, 4
    %v7344 = vrot.slane %v7336, 4
    %v7349 = vadd.f32 %v7329, %v7341
    %v7350 = vadd.f32 %v7330, %v7342
    %v7351 = vadd.f32 %v7331, %v7343
    %v7352 = vadd.f32 %v7332, %v7344
    %v7354 = vrot.slane %v7328, 6
    %v7355 = vsel %vm1514, %v7354, 0
    %7357 = vmatprep.subr.mxu0 %v4860
    %7358 = vmatpush1.msra.mxu0 %v4859
    %7359 = vmatprep.subr.mxu0 %v4864
    %7360 = vmatpush1.msra.mxu0 %v4863
    %7361 = vmatprep.subr.mxu0 %v4868
    %7362 = vmatpush1.msra.mxu0 %v4867
    %7363 = vmatprep.subr.mxu0 %v4872
    %7364 = vmatpush1.msra.mxu0 %v4871
    %7365 = vmatprep.subr.mxu0 %v4876
    %7366 = vmatpush1.msra.mxu0 %v4875
    %7367 = vmatprep.subr.mxu0 %v4880
    %7368 = vmatpush1.msra.mxu0 %v4879
    %7369 = vmatprep.subr.mxu0 %v4884
    %7370 = vmatpush1.msra.mxu0 %v4883
    %7371 = vmatprep.subr.mxu0 %v4888
    %7372 = vmatpush1.msra.mxu0 %v4887
    %7373 = vmatprep.subr.mxu0 0.0
    %7374 = vmatpush1.msra.mxu0 0.0
    %7375 = vmatprep.subr.mxu0 0.0
    %7376 = vmatpush1.msra.mxu0 0.0
    %7377 = vmatprep.subr.mxu0 0.0
    %7378 = vmatpush1.msra.mxu0 0.0
    %7379 = vmatprep.subr.mxu0 0.0
    %7380 = vmatpush1.msra.mxu0 0.0
    %7381 = vmatprep.subr.mxu0 0.0
    %7382 = vmatpush1.msra.mxu0 0.0
    %7383 = vmatprep.subr.mxu0 0.0
    %7384 = vmatpush1.msra.mxu0 0.0
    %7385 = vmatprep.subr.mxu0 0.0
    %7386 = vmatpush1.msra.mxu0 0.0
    %7387 = vmatprep.subr.mxu0 0.0
    %7388 = vmatpush1.msra.mxu0 0.0
    %7389 = vmatprep.subr.mxu0 0.0
    %7390 = vmatpush1.msra.mxu0 0.0
    %7391 = vmatprep.subr.mxu0 0.0
    %7392 = vmatpush1.msra.mxu0 0.0
    %7393 = vmatprep.subr.mxu0 0.0
    %7394 = vmatpush1.msra.mxu0 0.0
    %7395 = vmatprep.subr.mxu0 0.0
    %7396 = vmatpush1.msra.mxu0 0.0
    %7397 = vmatprep.subr.mxu0 0.0
    %7398 = vmatpush1.msra.mxu0 0.0
    %7399 = vmatprep.subr.mxu0 0.0
    %7400 = vmatpush1.msra.mxu0 0.0
    %7401 = vmatprep.subr.mxu0 0.0
    %7402 = vmatpush1.msra.mxu0 0.0
    %7403 = vmatprep.subr.mxu0 0.0
    %7404 = vmatpush1.msra.mxu0 0.0
    %7405 = vmatprep.subr.mxu0 0.0
    %7406 = vmatpush1.msra.mxu0 0.0
    %7407 = vmatprep.subr.mxu0 0.0
    %7408 = vmatpush1.msra.mxu0 0.0
    %7409 = vmatprep.subr.mxu0 0.0
    %7410 = vmatpush1.msra.mxu0 0.0
    %7411 = vmatprep.subr.mxu0 0.0
    %7412 = vmatpush1.msra.mxu0 0.0
    %7413 = vmatprep.subr.mxu0 0.0
    %7414 = vmatpush1.msra.mxu0 0.0
    %7415 = vmatprep.subr.mxu0 0.0
    %7416 = vmatpush1.msra.mxu0 0.0
    %7417 = vmatprep.subr.mxu0 0.0
    %7418 = vmatpush1.msra.mxu0 0.0
    %7419 = vmatprep.subr.mxu0 0.0
    %7420 = vmatpush1.msra.mxu0 0.0
    %7421 = vmatprep.mubr.f32.mxu0 0.0
    %7422 = vmatmul.mubr.f32.gmra.mrb[0].mxu0 %v7355
    %v7423 = vpop.f32.mrb[0].mxu0
    %v7424 = vadd.f32 0.0, %v7423
    %v7425 = vpop.f32.mrb[0].mxu0
    %v7426 = vadd.f32 0.0, %v7425
    %7427 = vdwg.mxu0
    %7428 = vmatprep.subr.mxu0 %v4862
    %7429 = vmatpush1.msra.mxu0 %v4861
    %7430 = vmatprep.subr.mxu0 %v4866
    %7431 = vmatpush1.msra.mxu0 %v4865
    %7432 = vmatprep.subr.mxu0 %v4870
    %7433 = vmatpush1.msra.mxu0 %v4869
    %7434 = vmatprep.subr.mxu0 %v4874
    %7435 = vmatpush1.msra.mxu0 %v4873
    %7436 = vmatprep.subr.mxu0 %v4878
    %7437 = vmatpush1.msra.mxu0 %v4877
    %7438 = vmatprep.subr.mxu0 %v4882
    %7439 = vmatpush1.msra.mxu0 %v4881
    %7440 = vmatprep.subr.mxu0 %v4886
    %7441 = vmatpush1.msra.mxu0 %v4885
    %7442 = vmatprep.subr.mxu0 %v4890
    %7443 = vmatpush1.msra.mxu0 %v4889
    %7444 = vmatprep.subr.mxu0 0.0
    %7445 = vmatpush1.msra.mxu0 0.0
    %7446 = vmatprep.subr.mxu0 0.0
    %7447 = vmatpush1.msra.mxu0 0.0
    %7448 = vmatprep.subr.mxu0 0.0
    %7449 = vmatpush1.msra.mxu0 0.0
    %7450 = vmatprep.subr.mxu0 0.0
    %7451 = vmatpush1.msra.mxu0 0.0
    %7452 = vmatprep.subr.mxu0 0.0
    %7453 = vmatpush1.msra.mxu0 0.0
    %7454 = vmatprep.subr.mxu0 0.0
    %7455 = vmatpush1.msra.mxu0 0.0
    %7456 = vmatprep.subr.mxu0 0.0
    %7457 = vmatpush1.msra.mxu0 0.0
    %7458 = vmatprep.subr.mxu0 0.0
    %7459 = vmatpush1.msra.mxu0 0.0
    %7460 = vmatprep.subr.mxu0 0.0
    %7461 = vmatpush1.msra.mxu0 0.0
    %7462 = vmatprep.subr.mxu0 0.0
    %7463 = vmatpush1.msra.mxu0 0.0
    %7464 = vmatprep.subr.mxu0 0.0
    %7465 = vmatpush1.msra.mxu0 0.0
    %7466 = vmatprep.subr.mxu0 0.0
    %7467 = vmatpush1.msra.mxu0 0.0
    %7468 = vmatprep.subr.mxu0 0.0
    %7469 = vmatpush1.msra.mxu0 0.0
    %7470 = vmatprep.subr.mxu0 0.0
    %7471 = vmatpush1.msra.mxu0 0.0
    %7472 = vmatprep.subr.mxu0 0.0
    %7473 = vmatpush1.msra.mxu0 0.0
    %7474 = vmatprep.subr.mxu0 0.0
    %7475 = vmatpush1.msra.mxu0 0.0
    %7476 = vmatprep.subr.mxu0 0.0
    %7477 = vmatpush1.msra.mxu0 0.0
    %7478 = vmatprep.subr.mxu0 0.0
    %7479 = vmatpush1.msra.mxu0 0.0
    %7480 = vmatprep.subr.mxu0 0.0
    %7481 = vmatpush1.msra.mxu0 0.0
    %7482 = vmatprep.subr.mxu0 0.0
    %7483 = vmatpush1.msra.mxu0 0.0
    %7484 = vmatprep.subr.mxu0 0.0
    %7485 = vmatpush1.msra.mxu0 0.0
    %7486 = vmatprep.subr.mxu0 0.0
    %7487 = vmatpush1.msra.mxu0 0.0
    %7488 = vmatprep.subr.mxu0 0.0
    %7489 = vmatpush1.msra.mxu0 0.0
    %7490 = vmatprep.subr.mxu0 0.0
    %7491 = vmatpush1.msra.mxu0 0.0
    %7492 = vmatprep.mubr.f32.mxu0 0.0
    %7493 = vmatmul.mubr.f32.gmra.mrb[0].mxu0 %v7355
    %v7494 = vpop.f32.mrb[0].mxu0
    %v7495 = vadd.f32 0.0, %v7494
    %v7496 = vpop.f32.mrb[0].mxu0
    %v7497 = vadd.f32 0.0, %v7496
    %7498 = vdwg.mxu0
    %v7499 = vadd.f32 %v7349, %v7424
    %v7500 = vadd.f32 %v7350, %v7426
    %v7501 = vadd.f32 %v7351, %v7495
    %v7502 = vadd.f32 %v7352, %v7497
    %v7503 = vxor.u32 %v7499, 2147483648
    %v7504 = vmul.f32 %v7503, 1.442695
    %v7505 = vpow.pop %v7504
    %v7506 = vadd.f32 %v7505, 1.0
    %v7507 = vrcp.pop %v7506
    %v7508 = vmul.f32 1.0, %v7507
    %v7509 = vxor.u32 %v7500, 2147483648
    %v7510 = vmul.f32 %v7509, 1.442695
    %v7511 = vpow.pop %v7510
    %v7512 = vadd.f32 %v7511, 1.0
    %v7513 = vrcp.pop %v7512
    %v7514 = vmul.f32 1.0, %v7513
    %v7515 = vxor.u32 %v7501, 2147483648
    %v7516 = vmul.f32 %v7515, 1.442695
    %v7517 = vpow.pop %v7516
    %v7518 = vadd.f32 %v7517, 1.0
    %v7519 = vrcp.pop %v7518
    %v7520 = vmul.f32 1.0, %v7519
    %v7521 = vtanh.pop %v7502
    %v7523 = vrot.slane %v7326, 6
    %v7525 = vmul.f32 %v7514, %v7523
    %v7526 = vmul.f32 %v7508, %v7521
    %v7527 = vadd.f32 %v7525, %v7526
    %v7528 = vtanh.pop %v7527
    %v7529 = vmul.f32 %v7520, %v7528
    %v7530 = vld [vmem:[#allocation3 + $0x60] sm:$0xc]
    %v7531 = vld [vmem:[#allocation3 + $0x68] sm:$0xc]
    %v7532 = vld [vmem:[#allocation3 + $0x70] sm:$0xc]
    %v7533 = vld [vmem:[#allocation3 + $0x78] sm:$0xc]
    %v7534 = vld [vmem:[#allocation4] sm:$0xc]
    %v7535 = vld [vmem:[#allocation4 + $0x8] sm:$0xc]
    %v7536 = vld [vmem:[#allocation4 + $0x10] sm:$0xc]
    %v7537 = vld [vmem:[#allocation4 + $0x18] sm:$0xc]
    %v7538 = vadd.f32 %v7530, %v7534
    %v7539 = vadd.f32 %v7531, %v7535
    %v7540 = vadd.f32 %v7532, %v7536
    %v7541 = vadd.f32 %v7533, %v7537
    %v7543 = vsel %vm1514, %v7529, 0
    %7545 = vmatprep.subr.mxu0 %v4860
    %7546 = vmatpush1.msra.mxu0 %v4859
    %7547 = vmatprep.subr.mxu0 %v4864
    %7548 = vmatpush1.msra.mxu0 %v4863
    %7549 = vmatprep.subr.mxu0 %v4868
    %7550 = vmatpush1.msra.mxu0 %v4867
    %7551 = vmatprep.subr.mxu0 %v4872
    %7552 = vmatpush1.msra.mxu0 %v4871
    %7553 = vmatprep.subr.mxu0 %v4876
    %7554 = vmatpush1.msra.mxu0 %v4875
    %7555 = vmatprep.subr.mxu0 %v4880
    %7556 = vmatpush1.msra.mxu0 %v4879
    %7557 = vmatprep.subr.mxu0 %v4884
    %7558 = vmatpush1.msra.mxu0 %v4883
    %7559 = vmatprep.subr.mxu0 %v4888
    %7560 = vmatpush1.msra.mxu0 %v4887
    %7561 = vmatprep.subr.mxu0 0.0
    %7562 = vmatpush1.msra.mxu0 0.0
    %7563 = vmatprep.subr.mxu0 0.0
    %7564 = vmatpush1.msra.mxu0 0.0
    %7565 = vmatprep.subr.mxu0 0.0
    %7566 = vmatpush1.msra.mxu0 0.0
    %7567 = vmatprep.subr.mxu0 0.0
    %7568 = vmatpush1.msra.mxu0 0.0
    %7569 = vmatprep.subr.mxu0 0.0
    %7570 = vmatpush1.msra.mxu0 0.0
    %7571 = vmatprep.subr.mxu0 0.0
    %7572 = vmatpush1.msra.mxu0 0.0
    %7573 = vmatprep.subr.mxu0 0.0
    %7574 = vmatpush1.msra.mxu0 0.0
    %7575 = vmatprep.subr.mxu0 0.0
    %7576 = vmatpush1.msra.mxu0 0.0
    %7577 = vmatprep.subr.mxu0 0.0
    %7578 = vmatpush1.msra.mxu0 0.0
    %7579 = vmatprep.subr.mxu0 0.0
    %7580 = vmatpush1.msra.mxu0 0.0
    %7581 = vmatprep.subr.mxu0 0.0
    %7582 = vmatpush1.msra.mxu0 0.0
    %7583 = vmatprep.subr.mxu0 0.0
    %7584 = vmatpush1.msra.mxu0 0.0
    %7585 = vmatprep.subr.mxu0 0.0
    %7586 = vmatpush1.msra.mxu0 0.0
    %7587 = vmatprep.subr.mxu0 0.0
    %7588 = vmatpush1.msra.mxu0 0.0
    %7589 = vmatprep.subr.mxu0 0.0
    %7590 = vmatpush1.msra.mxu0 0.0
    %7591 = vmatprep.subr.mxu0 0.0
    %7592 = vmatpush1.msra.mxu0 0.0
    %7593 = vmatprep.subr.mxu0 0.0
    %7594 = vmatpush1.msra.mxu0 0.0
    %7595 = vmatprep.subr.mxu0 0.0
    %7596 = vmatpush1.msra.mxu0 0.0
    %7597 = vmatprep.subr.mxu0 0.0
    %7598 = vmatpush1.msra.mxu0 0.0
    %7599 = vmatprep.subr.mxu0 0.0
    %7600 = vmatpush1.msra.mxu0 0.0
    %7601 = vmatprep.subr.mxu0 0.0
    %7602 = vmatpush1.msra.mxu0 0.0
    %7603 = vmatprep.subr.mxu0 0.0
    %7604 = vmatpush1.msra.mxu0 0.0
    %7605 = vmatprep.subr.mxu0 0.0
    %7606 = vmatpush1.msra.mxu0 0.0
    %7607 = vmatprep.subr.mxu0 0.0
    %7608 = vmatpush1.msra.mxu0 0.0
    %7609 = vmatprep.mubr.f32.mxu0 0.0
    %7610 = vmatmul.mubr.f32.gmra.mrb[0].mxu0 %v7543
    %v7611 = vpop.f32.mrb[0].mxu0
    %v7612 = vadd.f32 0.0, %v7611
    %v7613 = vpop.f32.mrb[0].mxu0
    %v7614 = vadd.f32 0.0, %v7613
    %7615 = vdwg.mxu0
    %7616 = vmatprep.subr.mxu0 %v4862
    %7617 = vmatpush1.msra.mxu0 %v4861
    %7618 = vmatprep.subr.mxu0 %v4866
    %7619 = vmatpush1.msra.mxu0 %v4865
    %7620 = vmatprep.subr.mxu0 %v4870
    %7621 = vmatpush1.msra.mxu0 %v4869
    %7622 = vmatprep.subr.mxu0 %v4874
    %7623 = vmatpush1.msra.mxu0 %v4873
    %7624 = vmatprep.subr.mxu0 %v4878
    %7625 = vmatpush1.msra.mxu0 %v4877
    %7626 = vmatprep.subr.mxu0 %v4882
    %7627 = vmatpush1.msra.mxu0 %v4881
    %7628 = vmatprep.subr.mxu0 %v4886
    %7629 = vmatpush1.msra.mxu0 %v4885
    %7630 = vmatprep.subr.mxu0 %v4890
    %7631 = vmatpush1.msra.mxu0 %v4889
    %7632 = vmatprep.subr.mxu0 0.0
    %7633 = vmatpush1.msra.mxu0 0.0
    %7634 = vmatprep.subr.mxu0 0.0
    %7635 = vmatpush1.msra.mxu0 0.0
    %7636 = vmatprep.subr.mxu0 0.0
    %7637 = vmatpush1.msra.mxu0 0.0
    %7638 = vmatprep.subr.mxu0 0.0
    %7639 = vmatpush1.msra.mxu0 0.0
    %7640 = vmatprep.subr.mxu0 0.0
    %7641 = vmatpush1.msra.mxu0 0.0
    %7642 = vmatprep.subr.mxu0 0.0
    %7643 = vmatpush1.msra.mxu0 0.0
    %7644 = vmatprep.subr.mxu0 0.0
    %7645 = vmatpush1.msra.mxu0 0.0
    %7646 = vmatprep.subr.mxu0 0.0
    %7647 = vmatpush1.msra.mxu0 0.0
    %7648 = vmatprep.subr.mxu0 0.0
    %7649 = vmatpush1.msra.mxu0 0.0
    %7650 = vmatprep.subr.mxu0 0.0
    %7651 = vmatpush1.msra.mxu0 0.0
    %7652 = vmatprep.subr.mxu0 0.0
    %7653 = vmatpush1.msra.mxu0 0.0
    %7654 = vmatprep.subr.mxu0 0.0
    %7655 = vmatpush1.msra.mxu0 0.0
    %7656 = vmatprep.subr.mxu0 0.0
    %7657 = vmatpush1.msra.mxu0 0.0
    %7658 = vmatprep.subr.mxu0 0.0
    %7659 = vmatpush1.msra.mxu0 0.0
    %7660 = vmatprep.subr.mxu0 0.0
    %7661 = vmatpush1.msra.mxu0 0.0
    %7662 = vmatprep.subr.mxu0 0.0
    %7663 = vmatpush1.msra.mxu0 0.0
    %7664 = vmatprep.subr.mxu0 0.0
    %7665 = vmatpush1.msra.mxu0 0.0
    %7666 = vmatprep.subr.mxu0 0.0
    %7667 = vmatpush1.msra.mxu0 0.0
    %7668 = vmatprep.subr.mxu0 0.0
    %7669 = vmatpush1.msra.mxu0 0.0
    %7670 = vmatprep.subr.mxu0 0.0
    %7671 = vmatpush1.msra.mxu0 0.0
    %7672 = vmatprep.subr.mxu0 0.0
    %7673 = vmatpush1.msra.mxu0 0.0
    %7674 = vmatprep.subr.mxu0 0.0
    %7675 = vmatpush1.msra.mxu0 0.0
    %7676 = vmatprep.subr.mxu0 0.0
    %7677 = vmatpush1.msra.mxu0 0.0
    %7678 = vmatprep.subr.mxu0 0.0
    %7679 = vmatpush1.msra.mxu0 0.0
    %7680 = vmatprep.mubr.f32.mxu0 0.0
    %7681 = vmatmul.mubr.f32.gmra.mrb[0].mxu0 %v7543
    %v7682 = vpop.f32.mrb[0].mxu0
    %v7683 = vadd.f32 0.0, %v7682
    %v7684 = vpop.f32.mrb[0].mxu0
    %v7685 = vadd.f32 0.0, %v7684
    %7686 = vdwg.mxu0
    %v7691 = vrot.slane %v7612, 6
    %v7692 = vrot.slane %v7614, 6
    %v7693 = vrot.slane %v7683, 6
    %v7694 = vrot.slane %v7685, 6
    %v7699 = vadd.f32 %v7538, %v7691
    %v7700 = vadd.f32 %v7539, %v7692
    %v7701 = vadd.f32 %v7540, %v7693
    %v7702 = vadd.f32 %v7541, %v7694
    %v7703 = vxor.u32 %v7699, 2147483648
    %v7704 = vmul.f32 %v7703, 1.442695
    %v7705 = vpow.pop %v7704
    %v7706 = vadd.f32 %v7705, 1.0
    %v7707 = vrcp.pop %v7706
    %v7708 = vmul.f32 1.0, %v7707
    %v7709 = vxor.u32 %v7700, 2147483648
    %v7710 = vmul.f32 %v7709, 1.442695
    %v7711 = vpow.pop %v7710
    %v7712 = vadd.f32 %v7711, 1.0
    %v7713 = vrcp.pop %v7712
    %v7714 = vmul.f32 1.0, %v7713
    %v7715 = vxor.u32 %v7701, 2147483648
    %v7716 = vmul.f32 %v7715, 1.442695
    %v7717 = vpow.pop %v7716
    %v7718 = vadd.f32 %v7717, 1.0
    %v7719 = vrcp.pop %v7718
    %v7720 = vmul.f32 1.0, %v7719
    %v7721 = vtanh.pop %v7702
    %v7723 = vrot.slane %v7527, 6
    %v7725 = vmul.f32 %v7714, %v7723
    %v7726 = vmul.f32 %v7708, %v7721
    %v7727 = vadd.f32 %v7725, %v7726
    %v7728 = vtanh.pop %v7727
    %v7729 = vmul.f32 %v7720, %v7728
    %v7730 = vld [vmem:[#allocation3 + $0x60] sm:$0x30]
    %v7731 = vld [vmem:[#allocation3 + $0x68] sm:$0x30]
    %v7732 = vld [vmem:[#allocation3 + $0x70] sm:$0x30]
    %v7733 = vld [vmem:[#allocation3 + $0x78] sm:$0x30]
    %v7734 = vld [vmem:[#allocation4] sm:$0x3]
    %v7735 = vld [vmem:[#allocation4 + $0x8] sm:$0x3]
    %v7736 = vld [vmem:[#allocation4 + $0x10] sm:$0x3]
    %v7737 = vld [vmem:[#allocation4 + $0x18] sm:$0x3]
    %v7742 = vrot.slane %v7734, 4
    %v7743 = vrot.slane %v7735, 4
    %v7744 = vrot.slane %v7736, 4
    %v7745 = vrot.slane %v7737, 4
    %v7750 = vadd.f32 %v7730, %v7742
    %v7751 = vadd.f32 %v7731, %v7743
    %v7752 = vadd.f32 %v7732, %v7744
    %v7753 = vadd.f32 %v7733, %v7745
    %v7755 = vrot.slane %v7729, 2
    %v7756 = vsel %vm1514, %v7755, 0
    %7758 = vmatprep.subr.mxu0 %v4860
    %7759 = vmatpush1.msra.mxu0 %v4859
    %7760 = vmatprep.subr.mxu0 %v4864
    %7761 = vmatpush1.msra.mxu0 %v4863
    %7762 = vmatprep.subr.mxu0 %v4868
    %7763 = vmatpush1.msra.mxu0 %v4867
    %7764 = vmatprep.subr.mxu0 %v4872
    %7765 = vmatpush1.msra.mxu0 %v4871
    %7766 = vmatprep.subr.mxu0 %v4876
    %7767 = vmatpush1.msra.mxu0 %v4875
    %7768 = vmatprep.subr.mxu0 %v4880
    %7769 = vmatpush1.msra.mxu0 %v4879
    %7770 = vmatprep.subr.mxu0 %v4884
    %7771 = vmatpush1.msra.mxu0 %v4883
    %7772 = vmatprep.subr.mxu0 %v4888
    %7773 = vmatpush1.msra.mxu0 %v4887
    %7774 = vmatprep.subr.mxu0 0.0
    %7775 = vmatpush1.msra.mxu0 0.0
    %7776 = vmatprep.subr.mxu0 0.0
    %7777 = vmatpush1.msra.mxu0 0.0
    %7778 = vmatprep.subr.mxu0 0.0
    %7779 = vmatpush1.msra.mxu0 0.0
    %7780 = vmatprep.subr.mxu0 0.0
    %7781 = vmatpush1.msra.mxu0 0.0
    %7782 = vmatprep.subr.mxu0 0.0
    %7783 = vmatpush1.msra.mxu0 0.0
    %7784 = vmatprep.subr.mxu0 0.0
    %7785 = vmatpush1.msra.mxu0 0.0
    %7786 = vmatprep.subr.mxu0 0.0
    %7787 = vmatpush1.msra.mxu0 0.0
    %7788 = vmatprep.subr.mxu0 0.0
    %7789 = vmatpush1.msra.mxu0 0.0
    %7790 = vmatprep.subr.mxu0 0.0
    %7791 = vmatpush1.msra.mxu0 0.0
    %7792 = vmatprep.subr.mxu0 0.0
    %7793 = vmatpush1.msra.mxu0 0.0
    %7794 = vmatprep.subr.mxu0 0.0
    %7795 = vmatpush1.msra.mxu0 0.0
    %7796 = vmatprep.subr.mxu0 0.0
    %7797 = vmatpush1.msra.mxu0 0.0
    %7798 = vmatprep.subr.mxu0 0.0
    %7799 = vmatpush1.msra.mxu0 0.0
    %7800 = vmatprep.subr.mxu0 0.0
    %7801 = vmatpush1.msra.mxu0 0.0
    %7802 = vmatprep.subr.mxu0 0.0
    %7803 = vmatpush1.msra.mxu0 0.0
    %7804 = vmatprep.subr.mxu0 0.0
    %7805 = vmatpush1.msra.mxu0 0.0
    %7806 = vmatprep.subr.mxu0 0.0
    %7807 = vmatpush1.msra.mxu0 0.0
    %7808 = vmatprep.subr.mxu0 0.0
    %7809 = vmatpush1.msra.mxu0 0.0
    %7810 = vmatprep.subr.mxu0 0.0
    %7811 = vmatpush1.msra.mxu0 0.0
    %7812 = vmatprep.subr.mxu0 0.0
    %7813 = vmatpush1.msra.mxu0 0.0
    %7814 = vmatprep.subr.mxu0 0.0
    %7815 = vmatpush1.msra.mxu0 0.0
    %7816 = vmatprep.subr.mxu0 0.0
    %7817 = vmatpush1.msra.mxu0 0.0
    %7818 = vmatprep.subr.mxu0 0.0
    %7819 = vmatpush1.msra.mxu0 0.0
    %7820 = vmatprep.subr.mxu0 0.0
    %7821 = vmatpush1.msra.mxu0 0.0
    %7822 = vmatprep.mubr.f32.mxu0 0.0
    %7823 = vmatmul.mubr.f32.gmra.mrb[0].mxu0 %v7756
    %v7824 = vpop.f32.mrb[0].mxu0
    %v7825 = vadd.f32 0.0, %v7824
    %v7826 = vpop.f32.mrb[0].mxu0
    %v7827 = vadd.f32 0.0, %v7826
    %7828 = vdwg.mxu0
    %7829 = vmatprep.subr.mxu0 %v4862
    %7830 = vmatpush1.msra.mxu0 %v4861
    %7831 = vmatprep.subr.mxu0 %v4866
    %7832 = vmatpush1.msra.mxu0 %v4865
    %7833 = vmatprep.subr.mxu0 %v4870
    %7834 = vmatpush1.msra.mxu0 %v4869
    %7835 = vmatprep.subr.mxu0 %v4874
    %7836 = vmatpush1.msra.mxu0 %v4873
    %7837 = vmatprep.subr.mxu0 %v4878
    %7838 = vmatpush1.msra.mxu0 %v4877
    %7839 = vmatprep.subr.mxu0 %v4882
    %7840 = vmatpush1.msra.mxu0 %v4881
    %7841 = vmatprep.subr.mxu0 %v4886
    %7842 = vmatpush1.msra.mxu0 %v4885
    %7843 = vmatprep.subr.mxu0 %v4890
    %7844 = vmatpush1.msra.mxu0 %v4889
    %7845 = vmatprep.subr.mxu0 0.0
    %7846 = vmatpush1.msra.mxu0 0.0
    %7847 = vmatprep.subr.mxu0 0.0
    %7848 = vmatpush1.msra.mxu0 0.0
    %7849 = vmatprep.subr.mxu0 0.0
    %7850 = vmatpush1.msra.mxu0 0.0
    %7851 = vmatprep.subr.mxu0 0.0
    %7852 = vmatpush1.msra.mxu0 0.0
    %7853 = vmatprep.subr.mxu0 0.0
    %7854 = vmatpush1.msra.mxu0 0.0
    %7855 = vmatprep.subr.mxu0 0.0
    %7856 = vmatpush1.msra.mxu0 0.0
    %7857 = vmatprep.subr.mxu0 0.0
    %7858 = vmatpush1.msra.mxu0 0.0
    %7859 = vmatprep.subr.mxu0 0.0
    %7860 = vmatpush1.msra.mxu0 0.0
    %7861 = vmatprep.subr.mxu0 0.0
    %7862 = vmatpush1.msra.mxu0 0.0
    %7863 = vmatprep.subr.mxu0 0.0
    %7864 = vmatpush1.msra.mxu0 0.0
    %7865 = vmatprep.subr.mxu0 0.0
    %7866 = vmatpush1.msra.mxu0 0.0
    %7867 = vmatprep.subr.mxu0 0.0
    %7868 = vmatpush1.msra.mxu0 0.0
    %7869 = vmatprep.subr.mxu0 0.0
    %7870 = vmatpush1.msra.mxu0 0.0
    %7871 = vmatprep.subr.mxu0 0.0
    %7872 = vmatpush1.msra.mxu0 0.0
    %7873 = vmatprep.subr.mxu0 0.0
    %7874 = vmatpush1.msra.mxu0 0.0
    %7875 = vmatprep.subr.mxu0 0.0
    %7876 = vmatpush1.msra.mxu0 0.0
    %7877 = vmatprep.subr.mxu0 0.0
    %7878 = vmatpush1.msra.mxu0 0.0
    %7879 = vmatprep.subr.mxu0 0.0
    %7880 = vmatpush1.msra.mxu0 0.0
    %7881 = vmatprep.subr.mxu0 0.0
    %7882 = vmatpush1.msra.mxu0 0.0
    %7883 = vmatprep.subr.mxu0 0.0
    %7884 = vmatpush1.msra.mxu0 0.0
    %7885 = vmatprep.subr.mxu0 0.0
    %7886 = vmatpush1.msra.mxu0 0.0
    %7887 = vmatprep.subr.mxu0 0.0
    %7888 = vmatpush1.msra.mxu0 0.0
    %7889 = vmatprep.subr.mxu0 0.0
    %7890 = vmatpush1.msra.mxu0 0.0
    %7891 = vmatprep.subr.mxu0 0.0
    %7892 = vmatpush1.msra.mxu0 0.0
    %7893 = vmatprep.mubr.f32.mxu0 0.0
    %7894 = vmatmul.mubr.f32.gmra.mrb[0].mxu0 %v7756
    %v7895 = vpop.f32.mrb[0].mxu0
    %v7896 = vadd.f32 0.0, %v7895
    %v7897 = vpop.f32.mrb[0].mxu0
    %v7898 = vadd.f32 0.0, %v7897
    %7899 = vdwg.mxu0
    %v7904 = vrot.slane %v7825, 4
    %v7905 = vrot.slane %v7827, 4
    %v7906 = vrot.slane %v7896, 4
    %v7907 = vrot.slane %v7898, 4
    %v7912 = vadd.f32 %v7750, %v7904
    %v7913 = vadd.f32 %v7751, %v7905
    %v7914 = vadd.f32 %v7752, %v7906
    %v7915 = vadd.f32 %v7753, %v7907
    %v7916 = vxor.u32 %v7912, 2147483648
    %v7917 = vmul.f32 %v7916, 1.442695
    %v7918 = vpow.pop %v7917
    %v7919 = vadd.f32 %v7918, 1.0
    %v7920 = vrcp.pop %v7919
    %v7921 = vmul.f32 1.0, %v7920
    %v7922 = vxor.u32 %v7913, 2147483648
    %v7923 = vmul.f32 %v7922, 1.442695
    %v7924 = vpow.pop %v7923
    %v7925 = vadd.f32 %v7924, 1.0
    %v7926 = vrcp.pop %v7925
    %v7927 = vmul.f32 1.0, %v7926
    %v7928 = vxor.u32 %v7914, 2147483648
    %v7929 = vmul.f32 %v7928, 1.442695
    %v7930 = vpow.pop %v7929
    %v7931 = vadd.f32 %v7930, 1.0
    %v7932 = vrcp.pop %v7931
    %v7933 = vmul.f32 1.0, %v7932
    %v7934 = vtanh.pop %v7915
    %v7936 = vrot.slane %v7727, 6
    %v7938 = vmul.f32 %v7927, %v7936
    %v7939 = vmul.f32 %v7921, %v7934
    %v7940 = vadd.f32 %v7938, %v7939
    %v7941 = vtanh.pop %v7940
    %v7942 = vmul.f32 %v7933, %v7941
    %v7943 = vld [vmem:[#allocation22] sm:$0xff]
    %v7944 = vld [vmem:[#allocation22 + $0x8] sm:$0xff]
    %v7945 = vld [vmem:[#allocation22 + $0x10] sm:$0xff]
    %v7946 = vld [vmem:[#allocation22 + $0x18] sm:$0xff]
    %v7947 = vld [vmem:[#allocation22 + $0x20] sm:$0xff]
    %v7948 = vld [vmem:[#allocation22 + $0x28] sm:$0xff]
    %v7949 = vld [vmem:[#allocation22 + $0x30] sm:$0xff]
    %v7950 = vld [vmem:[#allocation22 + $0x38] sm:$0xff]
    %v7951 = vld [vmem:[%s15] sm:$0x1]
    %v7953 = vlaneseq
    %v7954 = vshrl.u32 %v7953, 7
    %v7955 = vsub.s32 0, %v7954
    %v7956 = vrot.slane %v7951, %v7955
    %v7959 = vrot.slane %v7942, 4
    %v7960 = vsel %vm1514, %v7959, 0
    %7962 = vmatprep.subr.mxu0 0.0
    %7963 = vmatpush1.msra.mxu0 %v7943
    %7964 = vmatprep.subr.mxu0 0.0
    %7965 = vmatpush1.msra.mxu0 %v7944
    %7966 = vmatprep.subr.mxu0 0.0
    %7967 = vmatpush1.msra.mxu0 %v7945
    %7968 = vmatprep.subr.mxu0 0.0
    %7969 = vmatpush1.msra.mxu0 %v7946
    %7970 = vmatprep.subr.mxu0 0.0
    %7971 = vmatpush1.msra.mxu0 %v7947
    %7972 = vmatprep.subr.mxu0 0.0
    %7973 = vmatpush1.msra.mxu0 %v7948
    %7974 = vmatprep.subr.mxu0 0.0
    %7975 = vmatpush1.msra.mxu0 %v7949
    %7976 = vmatprep.subr.mxu0 0.0
    %7977 = vmatpush1.msra.mxu0 %v7950
    %7978 = vmatprep.subr.mxu0 0.0
    %7979 = vmatpush1.msra.mxu0 0.0
    %7980 = vmatprep.subr.mxu0 0.0
    %7981 = vmatpush1.msra.mxu0 0.0
    %7982 = vmatprep.subr.mxu0 0.0
    %7983 = vmatpush1.msra.mxu0 0.0
    %7984 = vmatprep.subr.mxu0 0.0
    %7985 = vmatpush1.msra.mxu0 0.0
    %7986 = vmatprep.subr.mxu0 0.0
    %7987 = vmatpush1.msra.mxu0 0.0
    %7988 = vmatprep.subr.mxu0 0.0
    %7989 = vmatpush1.msra.mxu0 0.0
    %7990 = vmatprep.subr.mxu0 0.0
    %7991 = vmatpush1.msra.mxu0 0.0
    %7992 = vmatprep.subr.mxu0 0.0
    %7993 = vmatpush1.msra.mxu0 0.0
    %7994 = vmatprep.subr.mxu0 0.0
    %7995 = vmatpush1.msra.mxu0 0.0
    %7996 = vmatprep.subr.mxu0 0.0
    %7997 = vmatpush1.msra.mxu0 0.0
    %7998 = vmatprep.subr.mxu0 0.0
    %7999 = vmatpush1.msra.mxu0 0.0
    %8000 = vmatprep.subr.mxu0 0.0
    %8001 = vmatpush1.msra.mxu0 0.0
    %8002 = vmatprep.subr.mxu0 0.0
    %8003 = vmatpush1.msra.mxu0 0.0
    %8004 = vmatprep.subr.mxu0 0.0
    %8005 = vmatpush1.msra.mxu0 0.0
    %8006 = vmatprep.subr.mxu0 0.0
    %8007 = vmatpush1.msra.mxu0 0.0
    %8008 = vmatprep.subr.mxu0 0.0
    %8009 = vmatpush1.msra.mxu0 0.0
    %8010 = vmatprep.subr.mxu0 0.0
    %8011 = vmatpush1.msra.mxu0 0.0
    %8012 = vmatprep.subr.mxu0 0.0
    %8013 = vmatpush1.msra.mxu0 0.0
    %8014 = vmatprep.subr.mxu0 0.0
    %8015 = vmatpush1.msra.mxu0 0.0
    %8016 = vmatprep.subr.mxu0 0.0
    %8017 = vmatpush1.msra.mxu0 0.0
    %8018 = vmatprep.subr.mxu0 0.0
    %8019 = vmatpush1.msra.mxu0 0.0
    %8020 = vmatprep.subr.mxu0 0.0
    %8021 = vmatpush1.msra.mxu0 0.0
    %8022 = vmatprep.subr.mxu0 0.0
    %8023 = vmatpush1.msra.mxu0 0.0
    %8024 = vmatprep.subr.mxu0 0.0
    %8025 = vmatpush1.msra.mxu0 0.0
    %8026 = vmatprep.mubr.f32.mxu0 0.0
    %8027 = vmatmul.mubr.f32.gmra.mrb[0].mxu0 %v7960
    %v8028 = vpop.f32.mrb[0].mxu0
    %v8029 = vadd.f32 %v7956, %v8028
    %v8030 = vpop.f32.mrb[0].mxu0
    %8031 = vdwg.mxu0
    %v8032 = vxor.u32 %v8029, 2147483648
    %v8033 = vmul.f32 %v8032, 1.442695
    %v8034 = vpow.pop %v8033
    %v8035 = vadd.f32 %v8034, 1.0
    %v8036 = vrcp.pop %v8035
    %v8037 = vmul.f32 1.0, %v8036
    %vm8038 = vcmask 9216
    %8039 = vst.msk [vmem:[#allocation24] sm:$0x3] %vm8038, %v8037
    // Predicated region
    $region110: #{forward.1} parent=1 // pred_check
      _
    $region111: #{forward.1} parent=1 // pred_check_branch
      %8041 = sbr.rel (0) target = $region113
    $region112: #{forward.1} parent=1 // pred_region
      %s8043 = ssub.s32 32, 32
      %8044 = vsyncadd [#allocation7], %s8043
      %s8046 = sshll.u32 [#allocation24], 4
      %s8047 = int_to_ptr.vmem [resolvable:$true] %s8046
      %8049 = dma.vmem_to_hbm [thread:$0]  %s8047, 32, %s16, [#allocation7]
    $region113: #{forward.1} parent=1 // pred_fallthru
      _
    // Predicated region
    $region114: #{forward.1} parent=1 // pred_check
      _
    $region115: #{forward.1} parent=1 // pred_check_branch
      %8051 = sbr.rel (0) target = $region117
    $region116: #{forward.1} parent=1 // pred_region
      %8052 = dma.done [#allocation7], 32
    $region117: #{forward.1} parent=1 // pred_fallthru
      _
    %8053 = vsyncpa [#allocation6], 1
    %8054 = vsyncpa [#allocation10], 1
    %8055 = vsyncpa [#allocation13], 1
    %8056 = vsyncpa [#allocation17], 1
    %8057 = vsyncpa [#allocation20], 1
    %8058 = vsyncpa [#allocation23], 1
    %8059 = vsyncpa [#allocation7], 1
    %8060 = vsyncpa [#allocation8], 1

</llo_original>
